<compile_context>
chip_gen: v5e
topology: v5e:2x2
jax: 0.10.0
libtpu: 0.0.40
codegen_flags: <defaults>
</compile_context>

<pallas_src>
import functools

import jax
import jax.numpy as jnp
from jax.experimental import pallas as pl
from jax.experimental.pallas import tpu as pltpu

# ---------------- model configuration (small, consistent with the module) ----
IMAGE_SIZE = 16
PATCH_SIZE = 8
CHANNELS = 3
DIM = 32
DEPTH = 2
HEADS = 4
DIM_HEAD = 8
MLP_DIM = 64

NUM_PATCHES = (IMAGE_SIZE // PATCH_SIZE) * (IMAGE_SIZE // PATCH_SIZE)   # 4
NUM_TOKENS = 2 * NUM_PATCHES                                            # 8 (before+after)
PATCH_DIM = CHANNELS * PATCH_SIZE * PATCH_SIZE                          # 192
INNER = HEADS * DIM_HEAD                                                # 32
SEQ = NUM_TOKENS + 1                                                    # 9 real tokens
SEQ_PAD = 16                                                            # sublane-aligned
LN_EPS = 1e-5
ATTN_SCALE = DIM_HEAD ** (-0.5)
MAX_BATCH_TILE = 128


# ---------------- shared math helpers -----------------------------------------
def _layer_norm(x, g, b):
    mu = jnp.mean(x, axis=-1, keepdims=True)
    var = jnp.mean((x - mu) ** 2, axis=-1, keepdims=True)
    return (x - mu) * jax.lax.rsqrt(var + LN_EPS) * g + b


def _softmax_lastdim(x):
    m = jnp.max(x, axis=-1, keepdims=True)
    e = jnp.exp(x - m)
    return e / jnp.sum(e, axis=-1, keepdims=True)


def _gelu_exact(x):
    # matches torch.nn.GELU() default (erf form)
    return 0.5 * x * (1.0 + jax.lax.erf(x * 0.7071067811865476))


# ---------------- Pallas kernel ------------------------------------------------
def vit_kernel(patches_ref, patch_w_ref, tok_add_ref, qkv_w_ref, out_w_ref,
               ff1_wb_ref, ff2_w_ref, vec_ref, o_ref, xs_ref, *, bt):
    m_rows = bt * SEQ_PAD

    # ---- patch embedding: ONE matmul for the before+after slabs of BT images
    emb = jnp.dot(patches_ref[...], patch_w_ref[...],
                  preferred_element_type=jnp.float32)                 # (bt*8, DIM)
    emb3 = emb.reshape(bt, NUM_TOKENS, DIM)                           # free (8-aligned)

    tok = tok_add_ref[...]                                            # (SEQ_PAD, DIM)
    # assemble the padded token sequence per image in a VMEM scratch:
    #   row 0 = cls token, rows 1..8 = patch emb + bias + pos, rows 9..15 = pad
    xs_ref[:, 0:1, :] = jnp.broadcast_to(tok[0:1, :][None], (bt, 1, DIM))
    xs_ref[:, 1:1 + NUM_TOKENS, :] = emb3 + tok[1:1 + NUM_TOKENS, :][None]
    xs_ref[:, 1 + NUM_TOKENS:, :] = jnp.zeros((bt, SEQ_PAD - SEQ, DIM), jnp.float32)

    x = xs_ref[...].reshape(m_rows, DIM)                              # (bt*16, DIM)

    # key-padding mask: pad columns (>= SEQ) never get attention weight
    col = jax.lax.broadcasted_iota(jnp.int32, (1, 1, SEQ_PAD), 2)
    key_mask = jnp.where(col < SEQ, 0.0, -1e30).astype(jnp.float32)

    for l in range(DEPTH):                                            # static unroll
        vec = vec_ref[l]                                              # (8, DIM)
        ln1_g, ln1_b = vec[0:1], vec[1:2]
        out_b = vec[2:3]
        ln2_g, ln2_b = vec[3:4], vec[4:5]
        ff2_b = vec[5:6]

        # ---- PreNorm + multi-head self-attention + residual ------------------
        y = _layer_norm(x, ln1_g, ln1_b)
        qkv = jnp.dot(y, qkv_w_ref[l], preferred_element_type=jnp.float32)  # (M, 96)
        qkv3 = qkv.reshape(bt, SEQ_PAD, 3 * INNER)                    # free reshape

        out_w = out_w_ref[l]                                          # (INNER, DIM)
        attn_out = jnp.zeros((m_rows, DIM), jnp.float32)
        for h in range(HEADS):                                        # batched over bt
            qh = qkv3[:, :, h * DIM_HEAD:(h + 1) * DIM_HEAD]
            kh = qkv3[:, :, INNER + h * DIM_HEAD:INNER + (h + 1) * DIM_HEAD]
            vh = qkv3[:, :, 2 * INNER + h * DIM_HEAD:2 * INNER + (h + 1) * DIM_HEAD]
            s = jnp.einsum('bid,bjd->bij', qh, kh,
                           preferred_element_type=jnp.float32) * ATTN_SCALE + key_mask
            s_max = jnp.max(s, axis=-1, keepdims=True)
            e = jnp.exp(s - s_max)
            p = e * pl.reciprocal(jnp.sum(e, axis=-1, keepdims=True), approx=True)
            ctx = jnp.einsum('bij,bjd->bid', p, vh,
                             preferred_element_type=jnp.float32)      # (bt, 16, 8)
            # fold the head-concat into the output projection:
            #   concat_h(ctx_h) @ W == sum_h ctx_h @ W[h*dh:(h+1)*dh]
            attn_out = attn_out + jnp.dot(
                ctx.reshape(m_rows, DIM_HEAD),
                out_w[h * DIM_HEAD:(h + 1) * DIM_HEAD, :],
                preferred_element_type=jnp.float32)
        x = x + attn_out + out_b

        # ---- PreNorm + FeedForward (Linear -> GELU -> Linear) + residual -----
        y = _layer_norm(x, ln2_g, ln2_b)
        ff1 = ff1_wb_ref[l]                                           # (DIM+1, MLP_DIM)
        h1 = jnp.dot(y, ff1[0:DIM, :],
                     preferred_element_type=jnp.float32) + ff1[DIM:DIM + 1, :]
        h1 = _gelu_exact(h1)
        x = x + jnp.dot(h1, ff2_w_ref[l],
                        preferred_element_type=jnp.float32) + ff2_b

    # ---- pool == 'cls': row 0 of every 16-row token group -> (bt, DIM) -------
    o_ref[...] = x.reshape(bt, SEQ_PAD, DIM)[:, 0, :]


# ---------------- glue: patch rearrange, param packing, pallas_call -----------
def rearrange_patches(img, p):
    # 'b c (h p1) (w p2) -> b (h w) (p1 p2 c)'
    B, C, H, W = img.shape
    x = img.reshape(B, C, H // p, p, W // p, p)
    x = x.transpose(0, 2, 4, 3, 5, 1)
    return x.reshape(B, (H // p) * (W // p), p * p * C)


def _round_up(x, m):
    return (x + m - 1) // m * m


def _default_batch_tile(B):
    bt = _round_up(B, 8)
    if bt > 8:
        # keep >=2 grid steps so the "parallel" batch axis can split across
        # TensorCores (v7x has two TCs per chip)
        bt = _round_up(-(-B // 2), 8)
    return min(MAX_BATCH_TILE, bt)


def pack_params(params):
    """Consolidate 15 parameter tensors into 7 kernel-friendly buffers."""
    pos2 = jnp.concatenate([params['pos'], params['pos']], axis=0)        # (8, DIM)
    tok_add = jnp.zeros((SEQ_PAD, DIM), jnp.float32)
    tok_add = tok_add.at[0:1].set(params['cls'])                          # cls token
    tok_add = tok_add.at[1:1 + NUM_TOKENS].set(pos2 + params['patch_b'])  # bias + pos

    vec = jnp.zeros((DEPTH, 8, DIM), jnp.float32)
    vec = vec.at[:, 0].set(params['ln1_g'][:, 0])
    vec = vec.at[:, 1].set(params['ln1_b'][:, 0])
    vec = vec.at[:, 2].set(params['out_b'][:, 0])
    vec = vec.at[:, 3].set(params['ln2_g'][:, 0])
    vec = vec.at[:, 4].set(params['ln2_b'][:, 0])
    vec = vec.at[:, 5].set(params['ff2_b'][:, 0])

    ff1_wb = jnp.concatenate([params['ff1_w'], params['ff1_b']], axis=1)  # (DEPTH, DIM+1, MLP)
    return (params['patch_w'], tok_add, params['qkv_w'], params['out_w'],
            ff1_wb, params['ff2_w'], vec)


def vit_v2_forward(img_before, img_after, params, *, batch_tile=None):
    B = img_before.shape[0]
    bt = batch_tile if batch_tile is not None else _default_batch_tile(B)
    B_pad = _round_up(B, bt)
    n_steps = B_pad // bt

    before_p = rearrange_patches(img_before, PATCH_SIZE)          # (B, 4, PATCH_DIM)
    after_p = rearrange_patches(img_after, PATCH_SIZE)
    patches = jnp.concatenate([before_p, after_p], axis=1)        # (B, 8, PATCH_DIM)
    if B_pad != B:
        patches = jnp.pad(patches, ((0, B_pad - B), (0, 0), (0, 0)))
    patches_flat = patches.reshape(B_pad * NUM_TOKENS, PATCH_DIM)

    packed = pack_params(params)

    def _full(shape):
        zeros = (0,) * len(shape)
        return pl.BlockSpec(shape, lambda i, _z=zeros: _z)

    in_specs = [
        pl.BlockSpec((bt * NUM_TOKENS, PATCH_DIM), lambda i: (i, 0)),  # patch slab
        _full((PATCH_DIM, DIM)),                                       # patch_w
        _full((SEQ_PAD, DIM)),                                         # cls / bias+pos / pad
        _full((DEPTH, DIM, 3 * INNER)),                                # qkv_w
        _full((DEPTH, INNER, DIM)),                                    # out_w
        _full((DEPTH, DIM + 1, MLP_DIM)),                              # ff1 weight+bias
        _full((DEPTH, MLP_DIM, DIM)),                                  # ff2_w
        _full((DEPTH, 8, DIM)),                                        # packed LN/bias vectors
    ]

    out = pl.pallas_call(
        functools.partial(vit_kernel, bt=bt),
        out_shape=jax.ShapeDtypeStruct((B_pad, DIM), jnp.float32),
        grid=(n_steps,),
        in_specs=in_specs,
        out_specs=pl.BlockSpec((bt, DIM), lambda i: (i, 0)),
        scratch_shapes=[pltpu.VMEM((bt, SEQ_PAD, DIM), jnp.float32)],
        compiler_params=pltpu.CompilerParams(dimension_semantics=("parallel",)),
    )(patches_flat, *packed)
    return out[:B]                                                 # (B, DIM)


# ---------------- pure-JAX reference (for correctness check) ------------------
def vit_v2_reference(img_before, img_after, params):
    before_p = rearrange_patches(img_before, PATCH_SIZE)
    after_p = rearrange_patches(img_after, PATCH_SIZE)
    before_x = before_p @ params['patch_w'] + params['patch_b'] + params['pos']
    after_x = after_p @ params['patch_w'] + params['patch_b'] + params['pos']
    B = before_x.shape[0]
    cls = jnp.broadcast_to(params['cls'][None], (B, 1, DIM))
    x = jnp.concatenate([cls, before_x, after_x], axis=1)
    for l in range(DEPTH):
        y = _layer_norm(x, params['ln1_g'][l], params['ln1_b'][l])
        qkv = y @ params['qkv_w'][l]
        q, k, v = jnp.split(qkv, 3, axis=-1)
        sh = lambda t: t.reshape(B, SEQ, HEADS, DIM_HEAD).transpose(0, 2, 1, 3)
        qh, kh, vh = sh(q), sh(k), sh(v)
        dots = jnp.einsum('bhid,bhjd->bhij', qh, kh) * ATTN_SCALE
        attn = _softmax_lastdim(dots)
        out = jnp.einsum('bhij,bhjd->bhid', attn, vh)
        out = out.transpose(0, 2, 1, 3).reshape(B, SEQ, INNER)
        out = out @ params['out_w'][l] + params['out_b'][l]
        x = x + out
        y = _layer_norm(x, params['ln2_g'][l], params['ln2_b'][l])
        hdn = _gelu_exact(y @ params['ff1_w'][l] + params['ff1_b'][l])
        x = x + (hdn @ params['ff2_w'][l] + params['ff2_b'][l])
    return x[:, 0]


# ---------------- deterministic parameter init ---------------------------------
def init_params(key):
    ks = jax.random.split(key, 12)
    nrm = lambda k, shape, s=0.02: jax.random.normal(k, shape, jnp.float32) * s
    return {
        'patch_w': nrm(ks[0], (PATCH_DIM, DIM)),
        'patch_b': nrm(ks[1], (1, DIM)),
        'pos':     nrm(ks[2], (NUM_PATCHES, DIM)),
        'cls':     nrm(ks[3], (1, DIM)),
        'ln1_g':   jnp.ones((DEPTH, 1, DIM), jnp.float32),
        'ln1_b':   jnp.zeros((DEPTH, 1, DIM), jnp.float32),
        'qkv_w':   nrm(ks[4], (DEPTH, DIM, 3 * INNER)),
        'out_w':   nrm(ks[5], (DEPTH, INNER, DIM)),
        'out_b':   nrm(ks[6], (DEPTH, 1, DIM)),
        'ln2_g':   jnp.ones((DEPTH, 1, DIM), jnp.float32),
        'ln2_b':   jnp.zeros((DEPTH, 1, DIM), jnp.float32),
        'ff1_w':   nrm(ks[7], (DEPTH, DIM, MLP_DIM)),
        'ff1_b':   nrm(ks[8], (DEPTH, 1, MLP_DIM)),
        'ff2_w':   nrm(ks[9], (DEPTH, MLP_DIM, DIM)),
        'ff2_b':   nrm(ks[10], (DEPTH, 1, DIM)),
    }


if __name__ == "__main__":
    key = jax.random.PRNGKey(0)
    kp, kb, ka = jax.random.split(key, 3)
    params = init_params(kp)

    img_before = jax.random.normal(kb, (2, CHANNELS, IMAGE_SIZE, IMAGE_SIZE), jnp.float32)
    img_after = jax.random.normal(ka, (2, CHANNELS, IMAGE_SIZE, IMAGE_SIZE), jnp.float32)

    out = vit_v2_forward(img_before, img_after, params)
    out = jax.block_until_ready(out)

    ref = vit_v2_reference(img_before, img_after, params)
    assert out.shape == (2, DIM), out.shape
    assert jnp.allclose(out, ref, rtol=2e-2, atol=2e-2), (out, ref)
    print("KERNEL_OK")
</pallas_src>

<mosaic_0001>
module attributes {stable_mosaic.version = 11 : i64} {
  func.func @vit_kernel(%arg0: i32, %arg1: memref<64x192xf32, #tpu.memory_space<vmem>>, %arg2: memref<192x32xf32, #tpu.memory_space<vmem>>, %arg3: memref<16x32xf32, #tpu.memory_space<vmem>>, %arg4: memref<2x32x96xf32, #tpu.memory_space<vmem>>, %arg5: memref<2x32x32xf32, #tpu.memory_space<vmem>>, %arg6: memref<2x33x64xf32, #tpu.memory_space<vmem>>, %arg7: memref<2x64x32xf32, #tpu.memory_space<vmem>>, %arg8: memref<2x8x32xf32, #tpu.memory_space<vmem>>, %arg9: memref<8x32xf32, #tpu.memory_space<vmem>>, %arg10: memref<8x16x32xf32, #tpu.memory_space<vmem>>) attributes {dimension_semantics = [#tpu.dimension_semantics<parallel>], iteration_bounds = array<i64: 1>, scalar_prefetch = 0 : i64, scratch_operands = 1 : i64, tpu.core_type = #tpu.core_type<tc>, window_params = [{transform_indices = @transform_0, window_bounds = array<i64: 64, 192>}, {pipeline_mode = #tpu.pipeline_mode<synchronous>, transform_indices = @transform_1, window_bounds = array<i64: 192, 32>}, {pipeline_mode = #tpu.pipeline_mode<synchronous>, transform_indices = @transform_2, window_bounds = array<i64: 16, 32>}, {pipeline_mode = #tpu.pipeline_mode<synchronous>, transform_indices = @transform_3, window_bounds = array<i64: 2, 32, 96>}, {pipeline_mode = #tpu.pipeline_mode<synchronous>, transform_indices = @transform_4, window_bounds = array<i64: 2, 32, 32>}, {pipeline_mode = #tpu.pipeline_mode<synchronous>, transform_indices = @transform_5, window_bounds = array<i64: 2, 33, 64>}, {pipeline_mode = #tpu.pipeline_mode<synchronous>, transform_indices = @transform_6, window_bounds = array<i64: 2, 64, 32>}, {pipeline_mode = #tpu.pipeline_mode<synchronous>, transform_indices = @transform_7, window_bounds = array<i64: 2, 8, 32>}, {transform_indices = @transform_8, window_bounds = array<i64: 8, 32>}]} {
    %c0 = arith.constant 0 : index
    %c0_0 = arith.constant 0 : index
    %0 = vector.load %arg1[%c0, %c0_0] : memref<64x192xf32, #tpu.memory_space<vmem>>, vector<64x192xf32>
    %c0_1 = arith.constant 0 : index
    %c0_2 = arith.constant 0 : index
    %1 = vector.load %arg2[%c0_1, %c0_2] : memref<192x32xf32, #tpu.memory_space<vmem>>, vector<192x32xf32>
    %cst = arith.constant dense<0.000000e+00> : vector<64x32xf32>
    %2 = tpu.matmul %0, %1, %cst {dimension_numbers = #tpu.dot_dimension_numbers<[1], [0], [0], [1], [0, 0, 1, 1], [], []>} : vector<64x192xf32>, vector<192x32xf32>, vector<64x32xf32> -> vector<64x32xf32>
    %3 = vector.shape_cast %2 : vector<64x32xf32> to vector<8x8x32xf32>
    %c0_3 = arith.constant 0 : index
    %c0_4 = arith.constant 0 : index
    %4 = vector.load %arg3[%c0_3, %c0_4] : memref<16x32xf32, #tpu.memory_space<vmem>>, vector<16x32xf32>
    %5 = vector.extract_strided_slice %4 {offsets = [0, 0], sizes = [1, 32], strides = [1, 1]} : vector<16x32xf32> to vector<1x32xf32>
    %6 = vector.shape_cast %5 : vector<1x32xf32> to vector<1x1x32xf32>
    %7 = vector.shape_cast %6 : vector<1x1x32xf32> to vector<1x1x32xf32>
    %8 = vector.broadcast %7 : vector<1x1x32xf32> to vector<8x1x32xf32>
    %c0_5 = arith.constant 0 : index
    %c0_6 = arith.constant 0 : index
    %c0_7 = arith.constant 0 : index
    %9 = vector.load %arg10[%c0_5, %c0_6, %c0_7] : memref<8x16x32xf32, #tpu.memory_space<vmem>>, vector<8x1x32xf32>
    tpu.vector_store %arg10[%c0_5, %c0_6, %c0_7], %8 {strides = array<i32>} : memref<8x16x32xf32, #tpu.memory_space<vmem>>, vector<8x1x32xf32>,
    %10 = vector.extract_strided_slice %4 {offsets = [1, 0], sizes = [8, 32], strides = [1, 1]} : vector<16x32xf32> to vector<8x32xf32>
    %11 = vector.shape_cast %10 : vector<8x32xf32> to vector<1x8x32xf32>
    %12 = vector.broadcast %11 : vector<1x8x32xf32> to vector<8x8x32xf32>
    %13 = arith.addf %3, %12 : vector<8x8x32xf32>
    %c0_8 = arith.constant 0 : index
    %c1 = arith.constant 1 : index
    %c0_9 = arith.constant 0 : index
    %14 = vector.load %arg10[%c0_8, %c1, %c0_9] : memref<8x16x32xf32, #tpu.memory_space<vmem>>, vector<8x8x32xf32>
    tpu.vector_store %arg10[%c0_8, %c1, %c0_9], %13 {strides = array<i32>} : memref<8x16x32xf32, #tpu.memory_space<vmem>>, vector<8x8x32xf32>,
    %cst_10 = arith.constant 0.000000e+00 : f32
    %15 = vector.broadcast %cst_10 : f32 to vector<8x7x32xf32>
    %c0_11 = arith.constant 0 : index
    %c9 = arith.constant 9 : index
    %c0_12 = arith.constant 0 : index
    %16 = vector.load %arg10[%c0_11, %c9, %c0_12] : memref<8x16x32xf32, #tpu.memory_space<vmem>>, vector<8x7x32xf32>
    tpu.vector_store %arg10[%c0_11, %c9, %c0_12], %15 {strides = array<i32>} : memref<8x16x32xf32, #tpu.memory_space<vmem>>, vector<8x7x32xf32>,
    %c0_13 = arith.constant 0 : index
    %c0_14 = arith.constant 0 : index
    %c0_15 = arith.constant 0 : index
    %17 = vector.load %arg10[%c0_13, %c0_14, %c0_15] : memref<8x16x32xf32, #tpu.memory_space<vmem>>, vector<8x16x32xf32>
    %18 = vector.shape_cast %17 : vector<8x16x32xf32> to vector<128x32xf32>
    %19 = tpu.iota {dimensions = array<i32: 2>} : vector<1x1x16xi32>
    %c9_i32 = arith.constant 9 : i32
    %20 = vector.broadcast %c9_i32 : i32 to vector<1x1x16xi32>
    %21 = arith.cmpi slt, %19, %20 : vector<1x1x16xi32>
    %cst_16 = arith.constant 0.000000e+00 : f32
    %cst_17 = arith.constant -1.000000e+30 : f32
    %22 = vector.broadcast %cst_16 : f32 to vector<1x1x16xf32>
    %23 = vector.broadcast %cst_17 : f32 to vector<1x1x16xf32>
    %24 = arith.select %21, %22, %23 : vector<1x1x16xi1>, vector<1x1x16xf32>
    %c0_18 = arith.constant 0 : index
    %c0_19 = arith.constant 0 : index
    %c0_20 = arith.constant 0 : index
    %25 = vector.load %arg8[%c0_18, %c0_19, %c0_20] : memref<2x8x32xf32, #tpu.memory_space<vmem>>, vector<1x8x32xf32>
    %26 = vector.shape_cast %25 : vector<1x8x32xf32> to vector<8x32xf32>
    %27 = vector.extract_strided_slice %26 {offsets = [0, 0], sizes = [1, 32], strides = [1, 1]} : vector<8x32xf32> to vector<1x32xf32>
    %28 = vector.extract_strided_slice %26 {offsets = [1, 0], sizes = [1, 32], strides = [1, 1]} : vector<8x32xf32> to vector<1x32xf32>
    %29 = vector.extract_strided_slice %26 {offsets = [2, 0], sizes = [1, 32], strides = [1, 1]} : vector<8x32xf32> to vector<1x32xf32>
    %30 = vector.extract_strided_slice %26 {offsets = [3, 0], sizes = [1, 32], strides = [1, 1]} : vector<8x32xf32> to vector<1x32xf32>
    %31 = vector.extract_strided_slice %26 {offsets = [4, 0], sizes = [1, 32], strides = [1, 1]} : vector<8x32xf32> to vector<1x32xf32>
    %32 = vector.extract_strided_slice %26 {offsets = [5, 0], sizes = [1, 32], strides = [1, 1]} : vector<8x32xf32> to vector<1x32xf32>
    %cst_21 = arith.constant dense<0.000000e+00> : vector<128xf32>
    %33 = vector.multi_reduction <add>, %18, %cst_21 [1] : vector<128x32xf32> to vector<128xf32>
    %34 = vector.shape_cast %33 : vector<128xf32> to vector<128x1xf32>
    %cst_22 = arith.constant 3.200000e+01 : f32
    %35 = vector.broadcast %cst_22 : f32 to vector<128x1xf32>
    %36 = arith.divf %34, %35 : vector<128x1xf32>
    %37 = vector.broadcast %36 : vector<128x1xf32> to vector<128x32xf32>
    %38 = arith.subf %18, %37 : vector<128x32xf32>
    %39 = arith.mulf %38, %38 : vector<128x32xf32>
    %cst_23 = arith.constant dense<0.000000e+00> : vector<128xf32>
    %40 = vector.multi_reduction <add>, %39, %cst_23 [1] : vector<128x32xf32> to vector<128xf32>
    %41 = vector.shape_cast %40 : vector<128xf32> to vector<128x1xf32>
    %cst_24 = arith.constant 3.200000e+01 : f32
    %42 = vector.broadcast %cst_24 : f32 to vector<128x1xf32>
    %43 = arith.divf %41, %42 : vector<128x1xf32>
    %44 = vector.broadcast %36 : vector<128x1xf32> to vector<128x32xf32>
    %45 = arith.subf %18, %44 : vector<128x32xf32>
    %cst_25 = arith.constant 9.99999974E-6 : f32
    %46 = vector.broadcast %cst_25 : f32 to vector<128x1xf32>
    %47 = arith.addf %43, %46 : vector<128x1xf32>
    %48 = math.rsqrt %47 : vector<128x1xf32>
    %49 = vector.broadcast %48 : vector<128x1xf32> to vector<128x32xf32>
    %50 = arith.mulf %45, %49 : vector<128x32xf32>
    %51 = vector.broadcast %27 : vector<1x32xf32> to vector<128x32xf32>
    %52 = arith.mulf %50, %51 : vector<128x32xf32>
    %53 = vector.broadcast %28 : vector<1x32xf32> to vector<128x32xf32>
    %54 = arith.addf %52, %53 : vector<128x32xf32>
    %c0_26 = arith.constant 0 : index
    %c0_27 = arith.constant 0 : index
    %c0_28 = arith.constant 0 : index
    %55 = vector.load %arg4[%c0_26, %c0_27, %c0_28] : memref<2x32x96xf32, #tpu.memory_space<vmem>>, vector<1x32x96xf32>
    %56 = vector.shape_cast %55 : vector<1x32x96xf32> to vector<32x96xf32>
    %cst_29 = arith.constant dense<0.000000e+00> : vector<128x96xf32>
    %57 = tpu.matmul %54, %56, %cst_29 {dimension_numbers = #tpu.dot_dimension_numbers<[1], [0], [0], [1], [0, 0, 1, 1], [], []>} : vector<128x32xf32>, vector<32x96xf32>, vector<128x96xf32> -> vector<128x96xf32>
    %58 = vector.shape_cast %57 : vector<128x96xf32> to vector<8x16x96xf32>
    %c0_30 = arith.constant 0 : index
    %c0_31 = arith.constant 0 : index
    %c0_32 = arith.constant 0 : index
    %59 = vector.load %arg5[%c0_30, %c0_31, %c0_32] : memref<2x32x32xf32, #tpu.memory_space<vmem>>, vector<1x32x32xf32>
    %60 = vector.shape_cast %59 : vector<1x32x32xf32> to vector<32x32xf32>
    %cst_33 = arith.constant 0.000000e+00 : f32
    %61 = vector.broadcast %cst_33 : f32 to vector<128x32xf32>
    %62 = vector.extract_strided_slice %58 {offsets = [0, 0, 0], sizes = [8, 16, 8], strides = [1, 1, 1]} : vector<8x16x96xf32> to vector<8x16x8xf32>
    %63 = vector.extract_strided_slice %58 {offsets = [0, 0, 32], sizes = [8, 16, 8], strides = [1, 1, 1]} : vector<8x16x96xf32> to vector<8x16x8xf32>
    %64 = vector.extract_strided_slice %58 {offsets = [0, 0, 64], sizes = [8, 16, 8], strides = [1, 1, 1]} : vector<8x16x96xf32> to vector<8x16x8xf32>
    "tpu.trace_start"() <{level = 10 : i32, message = "bid,bjd->bij"}> : () -> ()
    %cst_34 = arith.constant dense<0.000000e+00> : vector<8x16x16xf32>
    %65 = tpu.matmul %62, %63, %cst_34 {dimension_numbers = #tpu.dot_dimension_numbers<[2], [2], [1], [1], [0, 0, 0, 1, 1, 1], [0], [0]>} : vector<8x16x8xf32>, vector<8x16x8xf32>, vector<8x16x16xf32> -> vector<8x16x16xf32>
    "tpu.trace_stop"() : () -> ()
    %cst_35 = arith.constant 0.353553385 : f32
    %66 = vector.broadcast %cst_35 : f32 to vector<8x16x16xf32>
    %67 = arith.mulf %65, %66 : vector<8x16x16xf32>
    %68 = vector.broadcast %24 : vector<1x1x16xf32> to vector<8x16x16xf32>
    %69 = arith.addf %67, %68 : vector<8x16x16xf32>
    %cst_36 = arith.constant dense<0xFF800000> : vector<8x16xf32>
    %70 = vector.multi_reduction <maximumf>, %69, %cst_36 [2] : vector<8x16x16xf32> to vector<8x16xf32>
    %71 = vector.shape_cast %70 : vector<8x16xf32> to vector<8x16x1xf32>
    %72 = vector.broadcast %71 : vector<8x16x1xf32> to vector<8x16x16xf32>
    %73 = arith.subf %69, %72 : vector<8x16x16xf32>
    %74 = math.exp %73 : vector<8x16x16xf32>
    %cst_37 = arith.constant dense<0.000000e+00> : vector<8x16xf32>
    %75 = vector.multi_reduction <add>, %74, %cst_37 [2] : vector<8x16x16xf32> to vector<8x16xf32>
    %76 = vector.shape_cast %75 : vector<8x16xf32> to vector<8x16x1xf32>
    %77 = tpu.reciprocal %76 {approx = true} : vector<8x16x1xf32> -> vector<8x16x1xf32>
    %78 = vector.broadcast %77 : vector<8x16x1xf32> to vector<8x16x16xf32>
    %79 = arith.mulf %74, %78 : vector<8x16x16xf32>
    "tpu.trace_start"() <{level = 10 : i32, message = "bij,bjd->bid"}> : () -> ()
    %cst_38 = arith.constant dense<0.000000e+00> : vector<8x16x8xf32>
    %80 = tpu.matmul %79, %64, %cst_38 {dimension_numbers = #tpu.dot_dimension_numbers<[2], [1], [1], [2], [0, 0, 0, 1, 1, 2], [0], [0]>} : vector<8x16x16xf32>, vector<8x16x8xf32>, vector<8x16x8xf32> -> vector<8x16x8xf32>
    "tpu.trace_stop"() : () -> ()
    %81 = vector.shape_cast %80 : vector<8x16x8xf32> to vector<128x8xf32>
    %82 = vector.extract_strided_slice %60 {offsets = [0, 0], sizes = [8, 32], strides = [1, 1]} : vector<32x32xf32> to vector<8x32xf32>
    %cst_39 = arith.constant dense<0.000000e+00> : vector<128x32xf32>
    %83 = tpu.matmul %81, %82, %cst_39 {dimension_numbers = #tpu.dot_dimension_numbers<[1], [0], [0], [1], [0, 0, 1, 1], [], []>} : vector<128x8xf32>, vector<8x32xf32>, vector<128x32xf32> -> vector<128x32xf32>
    %84 = arith.addf %61, %83 : vector<128x32xf32>
    %85 = vector.extract_strided_slice %58 {offsets = [0, 0, 8], sizes = [8, 16, 8], strides = [1, 1, 1]} : vector<8x16x96xf32> to vector<8x16x8xf32>
    %86 = vector.extract_strided_slice %58 {offsets = [0, 0, 40], sizes = [8, 16, 8], strides = [1, 1, 1]} : vector<8x16x96xf32> to vector<8x16x8xf32>
    %87 = vector.extract_strided_slice %58 {offsets = [0, 0, 72], sizes = [8, 16, 8], strides = [1, 1, 1]} : vector<8x16x96xf32> to vector<8x16x8xf32>
    "tpu.trace_start"() <{level = 10 : i32, message = "bid,bjd->bij"}> : () -> ()
    %cst_40 = arith.constant dense<0.000000e+00> : vector<8x16x16xf32>
    %88 = tpu.matmul %85, %86, %cst_40 {dimension_numbers = #tpu.dot_dimension_numbers<[2], [2], [1], [1], [0, 0, 0, 1, 1, 1], [0], [0]>} : vector<8x16x8xf32>, vector<8x16x8xf32>, vector<8x16x16xf32> -> vector<8x16x16xf32>
    "tpu.trace_stop"() : () -> ()
    %cst_41 = arith.constant 0.353553385 : f32
    %89 = vector.broadcast %cst_41 : f32 to vector<8x16x16xf32>
    %90 = arith.mulf %88, %89 : vector<8x16x16xf32>
    %91 = vector.broadcast %24 : vector<1x1x16xf32> to vector<8x16x16xf32>
    %92 = arith.addf %90, %91 : vector<8x16x16xf32>
    %cst_42 = arith.constant dense<0xFF800000> : vector<8x16xf32>
    %93 = vector.multi_reduction <maximumf>, %92, %cst_42 [2] : vector<8x16x16xf32> to vector<8x16xf32>
    %94 = vector.shape_cast %93 : vector<8x16xf32> to vector<8x16x1xf32>
    %95 = vector.broadcast %94 : vector<8x16x1xf32> to vector<8x16x16xf32>
    %96 = arith.subf %92, %95 : vector<8x16x16xf32>
    %97 = math.exp %96 : vector<8x16x16xf32>
    %cst_43 = arith.constant dense<0.000000e+00> : vector<8x16xf32>
    %98 = vector.multi_reduction <add>, %97, %cst_43 [2] : vector<8x16x16xf32> to vector<8x16xf32>
    %99 = vector.shape_cast %98 : vector<8x16xf32> to vector<8x16x1xf32>
    %100 = tpu.reciprocal %99 {approx = true} : vector<8x16x1xf32> -> vector<8x16x1xf32>
    %101 = vector.broadcast %100 : vector<8x16x1xf32> to vector<8x16x16xf32>
    %102 = arith.mulf %97, %101 : vector<8x16x16xf32>
    "tpu.trace_start"() <{level = 10 : i32, message = "bij,bjd->bid"}> : () -> ()
    %cst_44 = arith.constant dense<0.000000e+00> : vector<8x16x8xf32>
    %103 = tpu.matmul %102, %87, %cst_44 {dimension_numbers = #tpu.dot_dimension_numbers<[2], [1], [1], [2], [0, 0, 0, 1, 1, 2], [0], [0]>} : vector<8x16x16xf32>, vector<8x16x8xf32>, vector<8x16x8xf32> -> vector<8x16x8xf32>
    "tpu.trace_stop"() : () -> ()
    %104 = vector.shape_cast %103 : vector<8x16x8xf32> to vector<128x8xf32>
    %105 = vector.extract_strided_slice %60 {offsets = [8, 0], sizes = [8, 32], strides = [1, 1]} : vector<32x32xf32> to vector<8x32xf32>
    %cst_45 = arith.constant dense<0.000000e+00> : vector<128x32xf32>
    %106 = tpu.matmul %104, %105, %cst_45 {dimension_numbers = #tpu.dot_dimension_numbers<[1], [0], [0], [1], [0, 0, 1, 1], [], []>} : vector<128x8xf32>, vector<8x32xf32>, vector<128x32xf32> -> vector<128x32xf32>
    %107 = arith.addf %84, %106 : vector<128x32xf32>
    %108 = vector.extract_strided_slice %58 {offsets = [0, 0, 16], sizes = [8, 16, 8], strides = [1, 1, 1]} : vector<8x16x96xf32> to vector<8x16x8xf32>
    %109 = vector.extract_strided_slice %58 {offsets = [0, 0, 48], sizes = [8, 16, 8], strides = [1, 1, 1]} : vector<8x16x96xf32> to vector<8x16x8xf32>
    %110 = vector.extract_strided_slice %58 {offsets = [0, 0, 80], sizes = [8, 16, 8], strides = [1, 1, 1]} : vector<8x16x96xf32> to vector<8x16x8xf32>
    "tpu.trace_start"() <{level = 10 : i32, message = "bid,bjd->bij"}> : () -> ()
    %cst_46 = arith.constant dense<0.000000e+00> : vector<8x16x16xf32>
    %111 = tpu.matmul %108, %109, %cst_46 {dimension_numbers = #tpu.dot_dimension_numbers<[2], [2], [1], [1], [0, 0, 0, 1, 1, 1], [0], [0]>} : vector<8x16x8xf32>, vector<8x16x8xf32>, vector<8x16x16xf32> -> vector<8x16x16xf32>
    "tpu.trace_stop"() : () -> ()
    %cst_47 = arith.constant 0.353553385 : f32
    %112 = vector.broadcast %cst_47 : f32 to vector<8x16x16xf32>
    %113 = arith.mulf %111, %112 : vector<8x16x16xf32>
    %114 = vector.broadcast %24 : vector<1x1x16xf32> to vector<8x16x16xf32>
    %115 = arith.addf %113, %114 : vector<8x16x16xf32>
    %cst_48 = arith.constant dense<0xFF800000> : vector<8x16xf32>
    %116 = vector.multi_reduction <maximumf>, %115, %cst_48 [2] : vector<8x16x16xf32> to vector<8x16xf32>
    %117 = vector.shape_cast %116 : vector<8x16xf32> to vector<8x16x1xf32>
    %118 = vector.broadcast %117 : vector<8x16x1xf32> to vector<8x16x16xf32>
    %119 = arith.subf %115, %118 : vector<8x16x16xf32>
    %120 = math.exp %119 : vector<8x16x16xf32>
    %cst_49 = arith.constant dense<0.000000e+00> : vector<8x16xf32>
    %121 = vector.multi_reduction <add>, %120, %cst_49 [2] : vector<8x16x16xf32> to vector<8x16xf32>
    %122 = vector.shape_cast %121 : vector<8x16xf32> to vector<8x16x1xf32>
    %123 = tpu.reciprocal %122 {approx = true} : vector<8x16x1xf32> -> vector<8x16x1xf32>
    %124 = vector.broadcast %123 : vector<8x16x1xf32> to vector<8x16x16xf32>
    %125 = arith.mulf %120, %124 : vector<8x16x16xf32>
    "tpu.trace_start"() <{level = 10 : i32, message = "bij,bjd->bid"}> : () -> ()
    %cst_50 = arith.constant dense<0.000000e+00> : vector<8x16x8xf32>
    %126 = tpu.matmul %125, %110, %cst_50 {dimension_numbers = #tpu.dot_dimension_numbers<[2], [1], [1], [2], [0, 0, 0, 1, 1, 2], [0], [0]>} : vector<8x16x16xf32>, vector<8x16x8xf32>, vector<8x16x8xf32> -> vector<8x16x8xf32>
    "tpu.trace_stop"() : () -> ()
    %127 = vector.shape_cast %126 : vector<8x16x8xf32> to vector<128x8xf32>
    %128 = vector.extract_strided_slice %60 {offsets = [16, 0], sizes = [8, 32], strides = [1, 1]} : vector<32x32xf32> to vector<8x32xf32>
    %cst_51 = arith.constant dense<0.000000e+00> : vector<128x32xf32>
    %129 = tpu.matmul %127, %128, %cst_51 {dimension_numbers = #tpu.dot_dimension_numbers<[1], [0], [0], [1], [0, 0, 1, 1], [], []>} : vector<128x8xf32>, vector<8x32xf32>, vector<128x32xf32> -> vector<128x32xf32>
    %130 = arith.addf %107, %129 : vector<128x32xf32>
    %131 = vector.extract_strided_slice %58 {offsets = [0, 0, 24], sizes = [8, 16, 8], strides = [1, 1, 1]} : vector<8x16x96xf32> to vector<8x16x8xf32>
    %132 = vector.extract_strided_slice %58 {offsets = [0, 0, 56], sizes = [8, 16, 8], strides = [1, 1, 1]} : vector<8x16x96xf32> to vector<8x16x8xf32>
    %133 = vector.extract_strided_slice %58 {offsets = [0, 0, 88], sizes = [8, 16, 8], strides = [1, 1, 1]} : vector<8x16x96xf32> to vector<8x16x8xf32>
    "tpu.trace_start"() <{level = 10 : i32, message = "bid,bjd->bij"}> : () -> ()
    %cst_52 = arith.constant dense<0.000000e+00> : vector<8x16x16xf32>
    %134 = tpu.matmul %131, %132, %cst_52 {dimension_numbers = #tpu.dot_dimension_numbers<[2], [2], [1], [1], [0, 0, 0, 1, 1, 1], [0], [0]>} : vector<8x16x8xf32>, vector<8x16x8xf32>, vector<8x16x16xf32> -> vector<8x16x16xf32>
    "tpu.trace_stop"() : () -> ()
    %cst_53 = arith.constant 0.353553385 : f32
    %135 = vector.broadcast %cst_53 : f32 to vector<8x16x16xf32>
    %136 = arith.mulf %134, %135 : vector<8x16x16xf32>
    %137 = vector.broadcast %24 : vector<1x1x16xf32> to vector<8x16x16xf32>
    %138 = arith.addf %136, %137 : vector<8x16x16xf32>
    %cst_54 = arith.constant dense<0xFF800000> : vector<8x16xf32>
    %139 = vector.multi_reduction <maximumf>, %138, %cst_54 [2] : vector<8x16x16xf32> to vector<8x16xf32>
    %140 = vector.shape_cast %139 : vector<8x16xf32> to vector<8x16x1xf32>
    %141 = vector.broadcast %140 : vector<8x16x1xf32> to vector<8x16x16xf32>
    %142 = arith.subf %138, %141 : vector<8x16x16xf32>
    %143 = math.exp %142 : vector<8x16x16xf32>
    %cst_55 = arith.constant dense<0.000000e+00> : vector<8x16xf32>
    %144 = vector.multi_reduction <add>, %143, %cst_55 [2] : vector<8x16x16xf32> to vector<8x16xf32>
    %145 = vector.shape_cast %144 : vector<8x16xf32> to vector<8x16x1xf32>
    %146 = tpu.reciprocal %145 {approx = true} : vector<8x16x1xf32> -> vector<8x16x1xf32>
    %147 = vector.broadcast %146 : vector<8x16x1xf32> to vector<8x16x16xf32>
    %148 = arith.mulf %143, %147 : vector<8x16x16xf32>
    "tpu.trace_start"() <{level = 10 : i32, message = "bij,bjd->bid"}> : () -> ()
    %cst_56 = arith.constant dense<0.000000e+00> : vector<8x16x8xf32>
    %149 = tpu.matmul %148, %133, %cst_56 {dimension_numbers = #tpu.dot_dimension_numbers<[2], [1], [1], [2], [0, 0, 0, 1, 1, 2], [0], [0]>} : vector<8x16x16xf32>, vector<8x16x8xf32>, vector<8x16x8xf32> -> vector<8x16x8xf32>
    "tpu.trace_stop"() : () -> ()
    %150 = vector.shape_cast %149 : vector<8x16x8xf32> to vector<128x8xf32>
    %151 = vector.extract_strided_slice %60 {offsets = [24, 0], sizes = [8, 32], strides = [1, 1]} : vector<32x32xf32> to vector<8x32xf32>
    %cst_57 = arith.constant dense<0.000000e+00> : vector<128x32xf32>
    %152 = tpu.matmul %150, %151, %cst_57 {dimension_numbers = #tpu.dot_dimension_numbers<[1], [0], [0], [1], [0, 0, 1, 1], [], []>} : vector<128x8xf32>, vector<8x32xf32>, vector<128x32xf32> -> vector<128x32xf32>
    %153 = arith.addf %130, %152 : vector<128x32xf32>
    %154 = arith.addf %18, %153 : vector<128x32xf32>
    %155 = vector.broadcast %29 : vector<1x32xf32> to vector<128x32xf32>
    %156 = arith.addf %154, %155 : vector<128x32xf32>
    %cst_58 = arith.constant dense<0.000000e+00> : vector<128xf32>
    %157 = vector.multi_reduction <add>, %156, %cst_58 [1] : vector<128x32xf32> to vector<128xf32>
    %158 = vector.shape_cast %157 : vector<128xf32> to vector<128x1xf32>
    %cst_59 = arith.constant 3.200000e+01 : f32
    %159 = vector.broadcast %cst_59 : f32 to vector<128x1xf32>
    %160 = arith.divf %158, %159 : vector<128x1xf32>
    %161 = vector.broadcast %160 : vector<128x1xf32> to vector<128x32xf32>
    %162 = arith.subf %156, %161 : vector<128x32xf32>
    %163 = arith.mulf %162, %162 : vector<128x32xf32>
    %cst_60 = arith.constant dense<0.000000e+00> : vector<128xf32>
    %164 = vector.multi_reduction <add>, %163, %cst_60 [1] : vector<128x32xf32> to vector<128xf32>
    %165 = vector.shape_cast %164 : vector<128xf32> to vector<128x1xf32>
    %cst_61 = arith.constant 3.200000e+01 : f32
    %166 = vector.broadcast %cst_61 : f32 to vector<128x1xf32>
    %167 = arith.divf %165, %166 : vector<128x1xf32>
    %168 = vector.broadcast %160 : vector<128x1xf32> to vector<128x32xf32>
    %169 = arith.subf %156, %168 : vector<128x32xf32>
    %cst_62 = arith.constant 9.99999974E-6 : f32
    %170 = vector.broadcast %cst_62 : f32 to vector<128x1xf32>
    %171 = arith.addf %167, %170 : vector<128x1xf32>
    %172 = math.rsqrt %171 : vector<128x1xf32>
    %173 = vector.broadcast %172 : vector<128x1xf32> to vector<128x32xf32>
    %174 = arith.mulf %169, %173 : vector<128x32xf32>
    %175 = vector.broadcast %30 : vector<1x32xf32> to vector<128x32xf32>
    %176 = arith.mulf %174, %175 : vector<128x32xf32>
    %177 = vector.broadcast %31 : vector<1x32xf32> to vector<128x32xf32>
    %178 = arith.addf %176, %177 : vector<128x32xf32>
    %c0_63 = arith.constant 0 : index
    %c0_64 = arith.constant 0 : index
    %c0_65 = arith.constant 0 : index
    %179 = vector.load %arg6[%c0_63, %c0_64, %c0_65] : memref<2x33x64xf32, #tpu.memory_space<vmem>>, vector<1x33x64xf32>
    %180 = vector.shape_cast %179 : vector<1x33x64xf32> to vector<33x64xf32>
    %181 = vector.extract_strided_slice %180 {offsets = [0, 0], sizes = [32, 64], strides = [1, 1]} : vector<33x64xf32> to vector<32x64xf32>
    %cst_66 = arith.constant dense<0.000000e+00> : vector<128x64xf32>
    %182 = tpu.matmul %178, %181, %cst_66 {dimension_numbers = #tpu.dot_dimension_numbers<[1], [0], [0], [1], [0, 0, 1, 1], [], []>} : vector<128x32xf32>, vector<32x64xf32>, vector<128x64xf32> -> vector<128x64xf32>
    %183 = vector.extract_strided_slice %180 {offsets = [32, 0], sizes = [1, 64], strides = [1, 1]} : vector<33x64xf32> to vector<1x64xf32>
    %184 = vector.broadcast %183 : vector<1x64xf32> to vector<128x64xf32>
    %185 = arith.addf %182, %184 : vector<128x64xf32>
    %cst_67 = arith.constant 5.000000e-01 : f32
    %186 = vector.broadcast %cst_67 : f32 to vector<128x64xf32>
    %187 = arith.mulf %186, %185 : vector<128x64xf32>
    %cst_68 = arith.constant 0.707106769 : f32
    %188 = vector.broadcast %cst_68 : f32 to vector<128x64xf32>
    %189 = arith.mulf %185, %188 : vector<128x64xf32>
    %190 = math.erf %189 : vector<128x64xf32>
    %cst_69 = arith.constant 1.000000e+00 : f32
    %191 = vector.broadcast %cst_69 : f32 to vector<128x64xf32>
    %192 = arith.addf %191, %190 : vector<128x64xf32>
    %193 = arith.mulf %187, %192 : vector<128x64xf32>
    %c0_70 = arith.constant 0 : index
    %c0_71 = arith.constant 0 : index
    %c0_72 = arith.constant 0 : index
    %194 = vector.load %arg7[%c0_70, %c0_71, %c0_72] : memref<2x64x32xf32, #tpu.memory_space<vmem>>, vector<1x64x32xf32>
    %195 = vector.shape_cast %194 : vector<1x64x32xf32> to vector<64x32xf32>
    %cst_73 = arith.constant dense<0.000000e+00> : vector<128x32xf32>
    %196 = tpu.matmul %193, %195, %cst_73 {dimension_numbers = #tpu.dot_dimension_numbers<[1], [0], [0], [1], [0, 0, 1, 1], [], []>} : vector<128x64xf32>, vector<64x32xf32>, vector<128x32xf32> -> vector<128x32xf32>
    %197 = arith.addf %156, %196 : vector<128x32xf32>
    %198 = vector.broadcast %32 : vector<1x32xf32> to vector<128x32xf32>
    %199 = arith.addf %197, %198 : vector<128x32xf32>
    %c1_74 = arith.constant 1 : index
    %c0_75 = arith.constant 0 : index
    %c0_76 = arith.constant 0 : index
    %200 = vector.load %arg8[%c1_74, %c0_75, %c0_76] : memref<2x8x32xf32, #tpu.memory_space<vmem>>, vector<1x8x32xf32>
    %201 = vector.shape_cast %200 : vector<1x8x32xf32> to vector<8x32xf32>
    %202 = vector.extract_strided_slice %201 {offsets = [0, 0], sizes = [1, 32], strides = [1, 1]} : vector<8x32xf32> to vector<1x32xf32>
    %203 = vector.extract_strided_slice %201 {offsets = [1, 0], sizes = [1, 32], strides = [1, 1]} : vector<8x32xf32> to vector<1x32xf32>
    %204 = vector.extract_strided_slice %201 {offsets = [2, 0], sizes = [1, 32], strides = [1, 1]} : vector<8x32xf32> to vector<1x32xf32>
    %205 = vector.extract_strided_slice %201 {offsets = [3, 0], sizes = [1, 32], strides = [1, 1]} : vector<8x32xf32> to vector<1x32xf32>
    %206 = vector.extract_strided_slice %201 {offsets = [4, 0], sizes = [1, 32], strides = [1, 1]} : vector<8x32xf32> to vector<1x32xf32>
    %207 = vector.extract_strided_slice %201 {offsets = [5, 0], sizes = [1, 32], strides = [1, 1]} : vector<8x32xf32> to vector<1x32xf32>
    %cst_77 = arith.constant dense<0.000000e+00> : vector<128xf32>
    %208 = vector.multi_reduction <add>, %199, %cst_77 [1] : vector<128x32xf32> to vector<128xf32>
    %209 = vector.shape_cast %208 : vector<128xf32> to vector<128x1xf32>
    %cst_78 = arith.constant 3.200000e+01 : f32
    %210 = vector.broadcast %cst_78 : f32 to vector<128x1xf32>
    %211 = arith.divf %209, %210 : vector<128x1xf32>
    %212 = vector.broadcast %211 : vector<128x1xf32> to vector<128x32xf32>
    %213 = arith.subf %199, %212 : vector<128x32xf32>
    %214 = arith.mulf %213, %213 : vector<128x32xf32>
    %cst_79 = arith.constant dense<0.000000e+00> : vector<128xf32>
    %215 = vector.multi_reduction <add>, %214, %cst_79 [1] : vector<128x32xf32> to vector<128xf32>
    %216 = vector.shape_cast %215 : vector<128xf32> to vector<128x1xf32>
    %cst_80 = arith.constant 3.200000e+01 : f32
    %217 = vector.broadcast %cst_80 : f32 to vector<128x1xf32>
    %218 = arith.divf %216, %217 : vector<128x1xf32>
    %219 = vector.broadcast %211 : vector<128x1xf32> to vector<128x32xf32>
    %220 = arith.subf %199, %219 : vector<128x32xf32>
    %cst_81 = arith.constant 9.99999974E-6 : f32
    %221 = vector.broadcast %cst_81 : f32 to vector<128x1xf32>
    %222 = arith.addf %218, %221 : vector<128x1xf32>
    %223 = math.rsqrt %222 : vector<128x1xf32>
    %224 = vector.broadcast %223 : vector<128x1xf32> to vector<128x32xf32>
    %225 = arith.mulf %220, %224 : vector<128x32xf32>
    %226 = vector.broadcast %202 : vector<1x32xf32> to vector<128x32xf32>
    %227 = arith.mulf %225, %226 : vector<128x32xf32>
    %228 = vector.broadcast %203 : vector<1x32xf32> to vector<128x32xf32>
    %229 = arith.addf %227, %228 : vector<128x32xf32>
    %c1_82 = arith.constant 1 : index
    %c0_83 = arith.constant 0 : index
    %c0_84 = arith.constant 0 : index
    %230 = vector.load %arg4[%c1_82, %c0_83, %c0_84] : memref<2x32x96xf32, #tpu.memory_space<vmem>>, vector<1x32x96xf32>
    %231 = vector.shape_cast %230 : vector<1x32x96xf32> to vector<32x96xf32>
    %cst_85 = arith.constant dense<0.000000e+00> : vector<128x96xf32>
    %232 = tpu.matmul %229, %231, %cst_85 {dimension_numbers = #tpu.dot_dimension_numbers<[1], [0], [0], [1], [0, 0, 1, 1], [], []>} : vector<128x32xf32>, vector<32x96xf32>, vector<128x96xf32> -> vector<128x96xf32>
    %233 = vector.shape_cast %232 : vector<128x96xf32> to vector<8x16x96xf32>
    %c1_86 = arith.constant 1 : index
    %c0_87 = arith.constant 0 : index
    %c0_88 = arith.constant 0 : index
    %234 = vector.load %arg5[%c1_86, %c0_87, %c0_88] : memref<2x32x32xf32, #tpu.memory_space<vmem>>, vector<1x32x32xf32>
    %235 = vector.shape_cast %234 : vector<1x32x32xf32> to vector<32x32xf32>
    %cst_89 = arith.constant 0.000000e+00 : f32
    %236 = vector.broadcast %cst_89 : f32 to vector<128x32xf32>
    %237 = vector.extract_strided_slice %233 {offsets = [0, 0, 0], sizes = [8, 16, 8], strides = [1, 1, 1]} : vector<8x16x96xf32> to vector<8x16x8xf32>
    %238 = vector.extract_strided_slice %233 {offsets = [0, 0, 32], sizes = [8, 16, 8], strides = [1, 1, 1]} : vector<8x16x96xf32> to vector<8x16x8xf32>
    %239 = vector.extract_strided_slice %233 {offsets = [0, 0, 64], sizes = [8, 16, 8], strides = [1, 1, 1]} : vector<8x16x96xf32> to vector<8x16x8xf32>
    "tpu.trace_start"() <{level = 10 : i32, message = "bid,bjd->bij"}> : () -> ()
    %cst_90 = arith.constant dense<0.000000e+00> : vector<8x16x16xf32>
    %240 = tpu.matmul %237, %238, %cst_90 {dimension_numbers = #tpu.dot_dimension_numbers<[2], [2], [1], [1], [0, 0, 0, 1, 1, 1], [0], [0]>} : vector<8x16x8xf32>, vector<8x16x8xf32>, vector<8x16x16xf32> -> vector<8x16x16xf32>
    "tpu.trace_stop"() : () -> ()
    %cst_91 = arith.constant 0.353553385 : f32
    %241 = vector.broadcast %cst_91 : f32 to vector<8x16x16xf32>
    %242 = arith.mulf %240, %241 : vector<8x16x16xf32>
    %243 = vector.broadcast %24 : vector<1x1x16xf32> to vector<8x16x16xf32>
    %244 = arith.addf %242, %243 : vector<8x16x16xf32>
    %cst_92 = arith.constant dense<0xFF800000> : vector<8x16xf32>
    %245 = vector.multi_reduction <maximumf>, %244, %cst_92 [2] : vector<8x16x16xf32> to vector<8x16xf32>
    %246 = vector.shape_cast %245 : vector<8x16xf32> to vector<8x16x1xf32>
    %247 = vector.broadcast %246 : vector<8x16x1xf32> to vector<8x16x16xf32>
    %248 = arith.subf %244, %247 : vector<8x16x16xf32>
    %249 = math.exp %248 : vector<8x16x16xf32>
    %cst_93 = arith.constant dense<0.000000e+00> : vector<8x16xf32>
    %250 = vector.multi_reduction <add>, %249, %cst_93 [2] : vector<8x16x16xf32> to vector<8x16xf32>
    %251 = vector.shape_cast %250 : vector<8x16xf32> to vector<8x16x1xf32>
    %252 = tpu.reciprocal %251 {approx = true} : vector<8x16x1xf32> -> vector<8x16x1xf32>
    %253 = vector.broadcast %252 : vector<8x16x1xf32> to vector<8x16x16xf32>
    %254 = arith.mulf %249, %253 : vector<8x16x16xf32>
    "tpu.trace_start"() <{level = 10 : i32, message = "bij,bjd->bid"}> : () -> ()
    %cst_94 = arith.constant dense<0.000000e+00> : vector<8x16x8xf32>
    %255 = tpu.matmul %254, %239, %cst_94 {dimension_numbers = #tpu.dot_dimension_numbers<[2], [1], [1], [2], [0, 0, 0, 1, 1, 2], [0], [0]>} : vector<8x16x16xf32>, vector<8x16x8xf32>, vector<8x16x8xf32> -> vector<8x16x8xf32>
    "tpu.trace_stop"() : () -> ()
    %256 = vector.shape_cast %255 : vector<8x16x8xf32> to vector<128x8xf32>
    %257 = vector.extract_strided_slice %235 {offsets = [0, 0], sizes = [8, 32], strides = [1, 1]} : vector<32x32xf32> to vector<8x32xf32>
    %cst_95 = arith.constant dense<0.000000e+00> : vector<128x32xf32>
    %258 = tpu.matmul %256, %257, %cst_95 {dimension_numbers = #tpu.dot_dimension_numbers<[1], [0], [0], [1], [0, 0, 1, 1], [], []>} : vector<128x8xf32>, vector<8x32xf32>, vector<128x32xf32> -> vector<128x32xf32>
    %259 = arith.addf %236, %258 : vector<128x32xf32>
    %260 = vector.extract_strided_slice %233 {offsets = [0, 0, 8], sizes = [8, 16, 8], strides = [1, 1, 1]} : vector<8x16x96xf32> to vector<8x16x8xf32>
    %261 = vector.extract_strided_slice %233 {offsets = [0, 0, 40], sizes = [8, 16, 8], strides = [1, 1, 1]} : vector<8x16x96xf32> to vector<8x16x8xf32>
    %262 = vector.extract_strided_slice %233 {offsets = [0, 0, 72], sizes = [8, 16, 8], strides = [1, 1, 1]} : vector<8x16x96xf32> to vector<8x16x8xf32>
    "tpu.trace_start"() <{level = 10 : i32, message = "bid,bjd->bij"}> : () -> ()
    %cst_96 = arith.constant dense<0.000000e+00> : vector<8x16x16xf32>
    %263 = tpu.matmul %260, %261, %cst_96 {dimension_numbers = #tpu.dot_dimension_numbers<[2], [2], [1], [1], [0, 0, 0, 1, 1, 1], [0], [0]>} : vector<8x16x8xf32>, vector<8x16x8xf32>, vector<8x16x16xf32> -> vector<8x16x16xf32>
    "tpu.trace_stop"() : () -> ()
    %cst_97 = arith.constant 0.353553385 : f32
    %264 = vector.broadcast %cst_97 : f32 to vector<8x16x16xf32>
    %265 = arith.mulf %263, %264 : vector<8x16x16xf32>
    %266 = vector.broadcast %24 : vector<1x1x16xf32> to vector<8x16x16xf32>
    %267 = arith.addf %265, %266 : vector<8x16x16xf32>
    %cst_98 = arith.constant dense<0xFF800000> : vector<8x16xf32>
    %268 = vector.multi_reduction <maximumf>, %267, %cst_98 [2] : vector<8x16x16xf32> to vector<8x16xf32>
    %269 = vector.shape_cast %268 : vector<8x16xf32> to vector<8x16x1xf32>
    %270 = vector.broadcast %269 : vector<8x16x1xf32> to vector<8x16x16xf32>
    %271 = arith.subf %267, %270 : vector<8x16x16xf32>
    %272 = math.exp %271 : vector<8x16x16xf32>
    %cst_99 = arith.constant dense<0.000000e+00> : vector<8x16xf32>
    %273 = vector.multi_reduction <add>, %272, %cst_99 [2] : vector<8x16x16xf32> to vector<8x16xf32>
    %274 = vector.shape_cast %273 : vector<8x16xf32> to vector<8x16x1xf32>
    %275 = tpu.reciprocal %274 {approx = true} : vector<8x16x1xf32> -> vector<8x16x1xf32>
    %276 = vector.broadcast %275 : vector<8x16x1xf32> to vector<8x16x16xf32>
    %277 = arith.mulf %272, %276 : vector<8x16x16xf32>
    "tpu.trace_start"() <{level = 10 : i32, message = "bij,bjd->bid"}> : () -> ()
    %cst_100 = arith.constant dense<0.000000e+00> : vector<8x16x8xf32>
    %278 = tpu.matmul %277, %262, %cst_100 {dimension_numbers = #tpu.dot_dimension_numbers<[2], [1], [1], [2], [0, 0, 0, 1, 1, 2], [0], [0]>} : vector<8x16x16xf32>, vector<8x16x8xf32>, vector<8x16x8xf32> -> vector<8x16x8xf32>
    "tpu.trace_stop"() : () -> ()
    %279 = vector.shape_cast %278 : vector<8x16x8xf32> to vector<128x8xf32>
    %280 = vector.extract_strided_slice %235 {offsets = [8, 0], sizes = [8, 32], strides = [1, 1]} : vector<32x32xf32> to vector<8x32xf32>
    %cst_101 = arith.constant dense<0.000000e+00> : vector<128x32xf32>
    %281 = tpu.matmul %279, %280, %cst_101 {dimension_numbers = #tpu.dot_dimension_numbers<[1], [0], [0], [1], [0, 0, 1, 1], [], []>} : vector<128x8xf32>, vector<8x32xf32>, vector<128x32xf32> -> vector<128x32xf32>
    %282 = arith.addf %259, %281 : vector<128x32xf32>
    %283 = vector.extract_strided_slice %233 {offsets = [0, 0, 16], sizes = [8, 16, 8], strides = [1, 1, 1]} : vector<8x16x96xf32> to vector<8x16x8xf32>
    %284 = vector.extract_strided_slice %233 {offsets = [0, 0, 48], sizes = [8, 16, 8], strides = [1, 1, 1]} : vector<8x16x96xf32> to vector<8x16x8xf32>
    %285 = vector.extract_strided_slice %233 {offsets = [0, 0, 80], sizes = [8, 16, 8], strides = [1, 1, 1]} : vector<8x16x96xf32> to vector<8x16x8xf32>
    "tpu.trace_start"() <{level = 10 : i32, message = "bid,bjd->bij"}> : () -> ()
    %cst_102 = arith.constant dense<0.000000e+00> : vector<8x16x16xf32>
    %286 = tpu.matmul %283, %284, %cst_102 {dimension_numbers = #tpu.dot_dimension_numbers<[2], [2], [1], [1], [0, 0, 0, 1, 1, 1], [0], [0]>} : vector<8x16x8xf32>, vector<8x16x8xf32>, vector<8x16x16xf32> -> vector<8x16x16xf32>
    "tpu.trace_stop"() : () -> ()
    %cst_103 = arith.constant 0.353553385 : f32
    %287 = vector.broadcast %cst_103 : f32 to vector<8x16x16xf32>
    %288 = arith.mulf %286, %287 : vector<8x16x16xf32>
    %289 = vector.broadcast %24 : vector<1x1x16xf32> to vector<8x16x16xf32>
    %290 = arith.addf %288, %289 : vector<8x16x16xf32>
    %cst_104 = arith.constant dense<0xFF800000> : vector<8x16xf32>
    %291 = vector.multi_reduction <maximumf>, %290, %cst_104 [2] : vector<8x16x16xf32> to vector<8x16xf32>
    %292 = vector.shape_cast %291 : vector<8x16xf32> to vector<8x16x1xf32>
    %293 = vector.broadcast %292 : vector<8x16x1xf32> to vector<8x16x16xf32>
    %294 = arith.subf %290, %293 : vector<8x16x16xf32>
    %295 = math.exp %294 : vector<8x16x16xf32>
    %cst_105 = arith.constant dense<0.000000e+00> : vector<8x16xf32>
    %296 = vector.multi_reduction <add>, %295, %cst_105 [2] : vector<8x16x16xf32> to vector<8x16xf32>
    %297 = vector.shape_cast %296 : vector<8x16xf32> to vector<8x16x1xf32>
    %298 = tpu.reciprocal %297 {approx = true} : vector<8x16x1xf32> -> vector<8x16x1xf32>
    %299 = vector.broadcast %298 : vector<8x16x1xf32> to vector<8x16x16xf32>
    %300 = arith.mulf %295, %299 : vector<8x16x16xf32>
    "tpu.trace_start"() <{level = 10 : i32, message = "bij,bjd->bid"}> : () -> ()
    %cst_106 = arith.constant dense<0.000000e+00> : vector<8x16x8xf32>
    %301 = tpu.matmul %300, %285, %cst_106 {dimension_numbers = #tpu.dot_dimension_numbers<[2], [1], [1], [2], [0, 0, 0, 1, 1, 2], [0], [0]>} : vector<8x16x16xf32>, vector<8x16x8xf32>, vector<8x16x8xf32> -> vector<8x16x8xf32>
    "tpu.trace_stop"() : () -> ()
    %302 = vector.shape_cast %301 : vector<8x16x8xf32> to vector<128x8xf32>
    %303 = vector.extract_strided_slice %235 {offsets = [16, 0], sizes = [8, 32], strides = [1, 1]} : vector<32x32xf32> to vector<8x32xf32>
    %cst_107 = arith.constant dense<0.000000e+00> : vector<128x32xf32>
    %304 = tpu.matmul %302, %303, %cst_107 {dimension_numbers = #tpu.dot_dimension_numbers<[1], [0], [0], [1], [0, 0, 1, 1], [], []>} : vector<128x8xf32>, vector<8x32xf32>, vector<128x32xf32> -> vector<128x32xf32>
    %305 = arith.addf %282, %304 : vector<128x32xf32>
    %306 = vector.extract_strided_slice %233 {offsets = [0, 0, 24], sizes = [8, 16, 8], strides = [1, 1, 1]} : vector<8x16x96xf32> to vector<8x16x8xf32>
    %307 = vector.extract_strided_slice %233 {offsets = [0, 0, 56], sizes = [8, 16, 8], strides = [1, 1, 1]} : vector<8x16x96xf32> to vector<8x16x8xf32>
    %308 = vector.extract_strided_slice %233 {offsets = [0, 0, 88], sizes = [8, 16, 8], strides = [1, 1, 1]} : vector<8x16x96xf32> to vector<8x16x8xf32>
    "tpu.trace_start"() <{level = 10 : i32, message = "bid,bjd->bij"}> : () -> ()
    %cst_108 = arith.constant dense<0.000000e+00> : vector<8x16x16xf32>
    %309 = tpu.matmul %306, %307, %cst_108 {dimension_numbers = #tpu.dot_dimension_numbers<[2], [2], [1], [1], [0, 0, 0, 1, 1, 1], [0], [0]>} : vector<8x16x8xf32>, vector<8x16x8xf32>, vector<8x16x16xf32> -> vector<8x16x16xf32>
    "tpu.trace_stop"() : () -> ()
    %cst_109 = arith.constant 0.353553385 : f32
    %310 = vector.broadcast %cst_109 : f32 to vector<8x16x16xf32>
    %311 = arith.mulf %309, %310 : vector<8x16x16xf32>
    %312 = vector.broadcast %24 : vector<1x1x16xf32> to vector<8x16x16xf32>
    %313 = arith.addf %311, %312 : vector<8x16x16xf32>
    %cst_110 = arith.constant dense<0xFF800000> : vector<8x16xf32>
    %314 = vector.multi_reduction <maximumf>, %313, %cst_110 [2] : vector<8x16x16xf32> to vector<8x16xf32>
    %315 = vector.shape_cast %314 : vector<8x16xf32> to vector<8x16x1xf32>
    %316 = vector.broadcast %315 : vector<8x16x1xf32> to vector<8x16x16xf32>
    %317 = arith.subf %313, %316 : vector<8x16x16xf32>
    %318 = math.exp %317 : vector<8x16x16xf32>
    %cst_111 = arith.constant dense<0.000000e+00> : vector<8x16xf32>
    %319 = vector.multi_reduction <add>, %318, %cst_111 [2] : vector<8x16x16xf32> to vector<8x16xf32>
    %320 = vector.shape_cast %319 : vector<8x16xf32> to vector<8x16x1xf32>
    %321 = tpu.reciprocal %320 {approx = true} : vector<8x16x1xf32> -> vector<8x16x1xf32>
    %322 = vector.broadcast %321 : vector<8x16x1xf32> to vector<8x16x16xf32>
    %323 = arith.mulf %318, %322 : vector<8x16x16xf32>
    "tpu.trace_start"() <{level = 10 : i32, message = "bij,bjd->bid"}> : () -> ()
    %cst_112 = arith.constant dense<0.000000e+00> : vector<8x16x8xf32>
    %324 = tpu.matmul %323, %308, %cst_112 {dimension_numbers = #tpu.dot_dimension_numbers<[2], [1], [1], [2], [0, 0, 0, 1, 1, 2], [0], [0]>} : vector<8x16x16xf32>, vector<8x16x8xf32>, vector<8x16x8xf32> -> vector<8x16x8xf32>
    "tpu.trace_stop"() : () -> ()
    %325 = vector.shape_cast %324 : vector<8x16x8xf32> to vector<128x8xf32>
    %326 = vector.extract_strided_slice %235 {offsets = [24, 0], sizes = [8, 32], strides = [1, 1]} : vector<32x32xf32> to vector<8x32xf32>
    %cst_113 = arith.constant dense<0.000000e+00> : vector<128x32xf32>
    %327 = tpu.matmul %325, %326, %cst_113 {dimension_numbers = #tpu.dot_dimension_numbers<[1], [0], [0], [1], [0, 0, 1, 1], [], []>} : vector<128x8xf32>, vector<8x32xf32>, vector<128x32xf32> -> vector<128x32xf32>
    %328 = arith.addf %305, %327 : vector<128x32xf32>
    %329 = arith.addf %199, %328 : vector<128x32xf32>
    %330 = vector.broadcast %204 : vector<1x32xf32> to vector<128x32xf32>
    %331 = arith.addf %329, %330 : vector<128x32xf32>
    %cst_114 = arith.constant dense<0.000000e+00> : vector<128xf32>
    %332 = vector.multi_reduction <add>, %331, %cst_114 [1] : vector<128x32xf32> to vector<128xf32>
    %333 = vector.shape_cast %332 : vector<128xf32> to vector<128x1xf32>
    %cst_115 = arith.constant 3.200000e+01 : f32
    %334 = vector.broadcast %cst_115 : f32 to vector<128x1xf32>
    %335 = arith.divf %333, %334 : vector<128x1xf32>
    %336 = vector.broadcast %335 : vector<128x1xf32> to vector<128x32xf32>
    %337 = arith.subf %331, %336 : vector<128x32xf32>
    %338 = arith.mulf %337, %337 : vector<128x32xf32>
    %cst_116 = arith.constant dense<0.000000e+00> : vector<128xf32>
    %339 = vector.multi_reduction <add>, %338, %cst_116 [1] : vector<128x32xf32> to vector<128xf32>
    %340 = vector.shape_cast %339 : vector<128xf32> to vector<128x1xf32>
    %cst_117 = arith.constant 3.200000e+01 : f32
    %341 = vector.broadcast %cst_117 : f32 to vector<128x1xf32>
    %342 = arith.divf %340, %341 : vector<128x1xf32>
    %343 = vector.broadcast %335 : vector<128x1xf32> to vector<128x32xf32>
    %344 = arith.subf %331, %343 : vector<128x32xf32>
    %cst_118 = arith.constant 9.99999974E-6 : f32
    %345 = vector.broadcast %cst_118 : f32 to vector<128x1xf32>
    %346 = arith.addf %342, %345 : vector<128x1xf32>
    %347 = math.rsqrt %346 : vector<128x1xf32>
    %348 = vector.broadcast %347 : vector<128x1xf32> to vector<128x32xf32>
    %349 = arith.mulf %344, %348 : vector<128x32xf32>
    %350 = vector.broadcast %205 : vector<1x32xf32> to vector<128x32xf32>
    %351 = arith.mulf %349, %350 : vector<128x32xf32>
    %352 = vector.broadcast %206 : vector<1x32xf32> to vector<128x32xf32>
    %353 = arith.addf %351, %352 : vector<128x32xf32>
    %c1_119 = arith.constant 1 : index
    %c0_120 = arith.constant 0 : index
    %c0_121 = arith.constant 0 : index
    %354 = vector.load %arg6[%c1_119, %c0_120, %c0_121] : memref<2x33x64xf32, #tpu.memory_space<vmem>>, vector<1x33x64xf32>
    %355 = vector.shape_cast %354 : vector<1x33x64xf32> to vector<33x64xf32>
    %356 = vector.extract_strided_slice %355 {offsets = [0, 0], sizes = [32, 64], strides = [1, 1]} : vector<33x64xf32> to vector<32x64xf32>
    %cst_122 = arith.constant dense<0.000000e+00> : vector<128x64xf32>
    %357 = tpu.matmul %353, %356, %cst_122 {dimension_numbers = #tpu.dot_dimension_numbers<[1], [0], [0], [1], [0, 0, 1, 1], [], []>} : vector<128x32xf32>, vector<32x64xf32>, vector<128x64xf32> -> vector<128x64xf32>
    %358 = vector.extract_strided_slice %355 {offsets = [32, 0], sizes = [1, 64], strides = [1, 1]} : vector<33x64xf32> to vector<1x64xf32>
    %359 = vector.broadcast %358 : vector<1x64xf32> to vector<128x64xf32>
    %360 = arith.addf %357, %359 : vector<128x64xf32>
    %cst_123 = arith.constant 5.000000e-01 : f32
    %361 = vector.broadcast %cst_123 : f32 to vector<128x64xf32>
    %362 = arith.mulf %361, %360 : vector<128x64xf32>
    %cst_124 = arith.constant 0.707106769 : f32
    %363 = vector.broadcast %cst_124 : f32 to vector<128x64xf32>
    %364 = arith.mulf %360, %363 : vector<128x64xf32>
    %365 = math.erf %364 : vector<128x64xf32>
    %cst_125 = arith.constant 1.000000e+00 : f32
    %366 = vector.broadcast %cst_125 : f32 to vector<128x64xf32>
    %367 = arith.addf %366, %365 : vector<128x64xf32>
    %368 = arith.mulf %362, %367 : vector<128x64xf32>
    %c1_126 = arith.constant 1 : index
    %c0_127 = arith.constant 0 : index
    %c0_128 = arith.constant 0 : index
    %369 = vector.load %arg7[%c1_126, %c0_127, %c0_128] : memref<2x64x32xf32, #tpu.memory_space<vmem>>, vector<1x64x32xf32>
    %370 = vector.shape_cast %369 : vector<1x64x32xf32> to vector<64x32xf32>
    %cst_129 = arith.constant dense<0.000000e+00> : vector<128x32xf32>
    %371 = tpu.matmul %368, %370, %cst_129 {dimension_numbers = #tpu.dot_dimension_numbers<[1], [0], [0], [1], [0, 0, 1, 1], [], []>} : vector<128x64xf32>, vector<64x32xf32>, vector<128x32xf32> -> vector<128x32xf32>
    %372 = arith.addf %331, %371 : vector<128x32xf32>
    %373 = vector.broadcast %207 : vector<1x32xf32> to vector<128x32xf32>
    %374 = arith.addf %372, %373 : vector<128x32xf32>
    %375 = vector.shape_cast %374 : vector<128x32xf32> to vector<8x16x32xf32>
    %376 = vector.extract_strided_slice %375 {offsets = [0, 0, 0], sizes = [8, 1, 32], strides = [1, 1, 1]} : vector<8x16x32xf32> to vector<8x1x32xf32>
    %377 = vector.shape_cast %376 : vector<8x1x32xf32> to vector<8x32xf32>
    %c0_130 = arith.constant 0 : index
    %c0_131 = arith.constant 0 : index
    %378 = vector.load %arg9[%c0_130, %c0_131] : memref<8x32xf32, #tpu.memory_space<vmem>>, vector<8x32xf32>
    tpu.vector_store %arg9[%c0_130, %c0_131], %377 {strides = array<i32>} : memref<8x32xf32, #tpu.memory_space<vmem>>, vector<8x32xf32>,
    return
  }
  func.func @transform_0(%arg0: i32) -> (i32, i32) {
    %c0_i32 = arith.constant 0 : i32
    %c0_i32_0 = arith.constant 0 : i32
    return %arg0, %c0_i32 : i32, i32
  }
  func.func @transform_1(%arg0: i32) -> (i32, i32) {
    %c0_i32 = arith.constant 0 : i32
    %c0_i32_0 = arith.constant 0 : i32
    %c0_i32_1 = arith.constant 0 : i32
    return %c0_i32, %c0_i32_0 : i32, i32
  }
  func.func @transform_2(%arg0: i32) -> (i32, i32) {
    %c0_i32 = arith.constant 0 : i32
    %c0_i32_0 = arith.constant 0 : i32
    %c0_i32_1 = arith.constant 0 : i32
    return %c0_i32, %c0_i32_0 : i32, i32
  }
  func.func @transform_3(%arg0: i32) -> (i32, i32, i32) {
    %c0_i32 = arith.constant 0 : i32
    %c0_i32_0 = arith.constant 0 : i32
    %c0_i32_1 = arith.constant 0 : i32
    %c0_i32_2 = arith.constant 0 : i32
    return %c0_i32, %c0_i32_0, %c0_i32_1 : i32, i32, i32
  }
  func.func @transform_4(%arg0: i32) -> (i32, i32, i32) {
    %c0_i32 = arith.constant 0 : i32
    %c0_i32_0 = arith.constant 0 : i32
    %c0_i32_1 = arith.constant 0 : i32
    %c0_i32_2 = arith.constant 0 : i32
    return %c0_i32, %c0_i32_0, %c0_i32_1 : i32, i32, i32
  }
  func.func @transform_5(%arg0: i32) -> (i32, i32, i32) {
    %c0_i32 = arith.constant 0 : i32
    %c0_i32_0 = arith.constant 0 : i32
    %c0_i32_1 = arith.constant 0 : i32
    %c0_i32_2 = arith.constant 0 : i32
    return %c0_i32, %c0_i32_0, %c0_i32_1 : i32, i32, i32
  }
  func.func @transform_6(%arg0: i32) -> (i32, i32, i32) {
    %c0_i32 = arith.constant 0 : i32
    %c0_i32_0 = arith.constant 0 : i32
    %c0_i32_1 = arith.constant 0 : i32
    %c0_i32_2 = arith.constant 0 : i32
    return %c0_i32, %c0_i32_0, %c0_i32_1 : i32, i32, i32
  }
  func.func @transform_7(%arg0: i32) -> (i32, i32, i32) {
    %c0_i32 = arith.constant 0 : i32
    %c0_i32_0 = arith.constant 0 : i32
    %c0_i32_1 = arith.constant 0 : i32
    %c0_i32_2 = arith.constant 0 : i32
    return %c0_i32, %c0_i32_0, %c0_i32_1 : i32, i32, i32
  }
  func.func @transform_8(%arg0: i32) -> (i32, i32) {
    %c0_i32 = arith.constant 0 : i32
    %c0_i32_0 = arith.constant 0 : i32
    return %arg0, %c0_i32 : i32, i32
  }
}

</mosaic_0001>

<llo_original>
// kernel: tpu_custom_call.1
$region0: #{tpu_custom_call.1}
  #allocation0 [shape = 'u32[]', space=smem, size = 0x4, offset = 0x4, fixed_abs, tag = 'smem constant byte address 0x4 - core index']
  #allocation1 [shape = 'u32[72,128]{1,0:T(1,128)}', space=vmem, size = 0x9000, scoped, tag = 'internal scratch']
  #allocation2 [shape = 'f32[8,16,32]{2,1,0:T(8,128)}', space=vmem, size = 0x10000, scoped, tag = 'scratch operand']
  %s0 = inlined_call_operand.vmem [shape: f32[64,192], index: 0, kind: input, shape index: {}]
  %s1 = inlined_call_operand.vmem [shape: f32[192,32], index: 1, kind: input, shape index: {}]
  %s2 = inlined_call_operand.vmem [shape: f32[16,32], index: 2, kind: input, shape index: {}]
  %s3 = inlined_call_operand.vmem [shape: f32[2,32,96], index: 3, kind: input, shape index: {}]
  %s4 = inlined_call_operand.vmem [shape: f32[2,32,32], index: 4, kind: input, shape index: {}]
  %s5 = inlined_call_operand.vmem [shape: f32[2,33,64], index: 5, kind: input, shape index: {}]
  %s6 = inlined_call_operand.vmem [shape: f32[2,64,32], index: 6, kind: input, shape index: {}]
  %s7 = inlined_call_operand.vmem [shape: f32[2,8,32], index: 7, kind: input, shape index: {}]
  %s8 = inlined_call_operand.hbm [shape: f32[8,32], index: 8, kind: output, shape index: {}]
  %s9 = sld [smem:[#allocation0]]
  $region42: #{tpu_custom_call.1} parent=0
    _
  %s11 = ssub.s32 1, %s9
  %s12 = scalar_select 0, %s11, %s9
  $region1: #{tpu_custom_call.1} parent=0
    #allocation3 [shape = 'u8[4096]{0}', space=vmem, size = 0x1000, scoped, tag = 'output window, operand 0, single buffered']
    #allocation4 [shape = 's32[1]{0}', space=sflag, size = 0x4, scoped, tag = 'scoped memory for tpu_custom_call.1']
    %13 = vsyncpa [#allocation4], 0
    // Predicated region
    $region2: #{tpu_custom_call.1} parent=1 // pred_check
      _
    $region3: #{tpu_custom_call.1} parent=1 // pred_check_branch
      %15 = sbr.rel (0) target = $region5
    $region4: #{tpu_custom_call.1} parent=1 // pred_region
      _
    $region5: #{tpu_custom_call.1} parent=1 // pred_fallthru
      _
    // Predicated region
    $region6: #{tpu_custom_call.1} parent=1 // pred_check
      _
    $region7: #{tpu_custom_call.1} parent=1 // pred_check_branch
      %17 = sbr.rel (0) target = $region9
    $region8: #{tpu_custom_call.1} parent=1 // pred_region
      _
    $region9: #{tpu_custom_call.1} parent=1 // pred_fallthru
      _
    // Predicated region
    $region10: #{tpu_custom_call.1} parent=1 // pred_check
      _
    $region11: #{tpu_custom_call.1} parent=1 // pred_check_branch
      %19 = sbr.rel (0) target = $region13
    $region12: #{tpu_custom_call.1} parent=1 // pred_region
      _
    $region13: #{tpu_custom_call.1} parent=1 // pred_fallthru
      _
    // Predicated region
    $region14: #{tpu_custom_call.1} parent=1 // pred_check
      _
    $region15: #{tpu_custom_call.1} parent=1 // pred_check_branch
      %21 = sbr.rel (0) target = $region17
    $region16: #{tpu_custom_call.1} parent=1 // pred_region
      _
    $region17: #{tpu_custom_call.1} parent=1 // pred_fallthru
      _
    // Predicated region
    $region18: #{tpu_custom_call.1} parent=1 // pred_check
      _
    $region19: #{tpu_custom_call.1} parent=1 // pred_check_branch
      %23 = sbr.rel (0) target = $region21
    $region20: #{tpu_custom_call.1} parent=1 // pred_region
      _
    $region21: #{tpu_custom_call.1} parent=1 // pred_fallthru
      _
    // Predicated region
    $region22: #{tpu_custom_call.1} parent=1 // pred_check
      _
    $region23: #{tpu_custom_call.1} parent=1 // pred_check_branch
      %25 = sbr.rel (0) target = $region25
    $region24: #{tpu_custom_call.1} parent=1 // pred_region
      _
    $region25: #{tpu_custom_call.1} parent=1 // pred_fallthru
      _
    // Predicated region
    $region26: #{tpu_custom_call.1} parent=1 // pred_check
      _
    $region27: #{tpu_custom_call.1} parent=1 // pred_check_branch
      %27 = sbr.rel (0) target = $region29
    $region28: #{tpu_custom_call.1} parent=1 // pred_region
      _
    $region29: #{tpu_custom_call.1} parent=1 // pred_fallthru
      _
    // Predicated region
    $region30: #{tpu_custom_call.1} parent=1 // pred_check
      _
    $region31: #{tpu_custom_call.1} parent=1 // pred_check_branch
      %29 = sbr.rel (0) target = $region33
    $region32: #{tpu_custom_call.1} parent=1 // pred_region
      _
    $region33: #{tpu_custom_call.1} parent=1 // pred_fallthru
      _
    %v30 = vld [vmem:[%s0] sm:$0xff]
    %v31 = vld [vmem:[%s0 + $0x8] sm:$0xff]
    %v32 = vld [vmem:[%s0 + $0x10] sm:$0xff]
    %v33 = vld [vmem:[%s0 + $0x18] sm:$0xff]
    %v34 = vld [vmem:[%s0 + $0x20] sm:$0xff]
    %v35 = vld [vmem:[%s0 + $0x28] sm:$0xff]
    %v36 = vld [vmem:[%s0 + $0x30] sm:$0xff]
    %v37 = vld [vmem:[%s0 + $0x38] sm:$0xff]
    %v38 = vld [vmem:[%s0 + $0x40] sm:$0xff]
    %v39 = vld [vmem:[%s0 + $0x48] sm:$0xff]
    %v40 = vld [vmem:[%s0 + $0x50] sm:$0xff]
    %v41 = vld [vmem:[%s0 + $0x58] sm:$0xff]
    %v42 = vld [vmem:[%s0 + $0x60] sm:$0xff]
    %v43 = vld [vmem:[%s0 + $0x68] sm:$0xff]
    %v44 = vld [vmem:[%s0 + $0x70] sm:$0xff]
    %v45 = vld [vmem:[%s0 + $0x78] sm:$0xff]
    %v46 = vld [vmem:[%s1] sm:$0xff]
    %v47 = vld [vmem:[%s1 + $0x8] sm:$0xff]
    %v48 = vld [vmem:[%s1 + $0x10] sm:$0xff]
    %v49 = vld [vmem:[%s1 + $0x18] sm:$0xff]
    %v50 = vld [vmem:[%s1 + $0x20] sm:$0xff]
    %v51 = vld [vmem:[%s1 + $0x28] sm:$0xff]
    %v52 = vld [vmem:[%s1 + $0x30] sm:$0xff]
    %v53 = vld [vmem:[%s1 + $0x38] sm:$0xff]
    %v54 = vld [vmem:[%s1 + $0x40] sm:$0xff]
    %v55 = vld [vmem:[%s1 + $0x48] sm:$0xff]
    %v56 = vld [vmem:[%s1 + $0x50] sm:$0xff]
    %v57 = vld [vmem:[%s1 + $0x58] sm:$0xff]
    %v58 = vld [vmem:[%s1 + $0x60] sm:$0xff]
    %v59 = vld [vmem:[%s1 + $0x68] sm:$0xff]
    %v60 = vld [vmem:[%s1 + $0x70] sm:$0xff]
    %v61 = vld [vmem:[%s1 + $0x78] sm:$0xff]
    %v62 = vld [vmem:[%s1 + $0x80] sm:$0xff]
    %v63 = vld [vmem:[%s1 + $0x88] sm:$0xff]
    %v64 = vld [vmem:[%s1 + $0x90] sm:$0xff]
    %v65 = vld [vmem:[%s1 + $0x98] sm:$0xff]
    %v66 = vld [vmem:[%s1 + $0xa0] sm:$0xff]
    %v67 = vld [vmem:[%s1 + $0xa8] sm:$0xff]
    %v68 = vld [vmem:[%s1 + $0xb0] sm:$0xff]
    %v69 = vld [vmem:[%s1 + $0xb8] sm:$0xff]
    %vm70 = vcmask 523264
    %v72 = vsel %vm70, %v31, 0
    %v75 = vsel %vm70, %v33, 0
    %v78 = vsel %vm70, %v35, 0
    %v81 = vsel %vm70, %v37, 0
    %v84 = vsel %vm70, %v39, 0
    %v87 = vsel %vm70, %v41, 0
    %v90 = vsel %vm70, %v43, 0
    %v93 = vsel %vm70, %v45, 0
    %95 = vmatpush.msra.mxu0 %v61
    %96 = vmatpush.msra.mxu0 %v60
    %97 = vmatpush.msra.mxu0 %v59
    %98 = vmatpush.msra.mxu0 %v58
    %99 = vmatpush.msra.mxu0 %v57
    %100 = vmatpush.msra.mxu0 %v56
    %101 = vmatpush.msra.mxu0 %v55
    %102 = vmatpush.msra.mxu0 %v54
    %103 = vmatpush.msra.mxu0 %v53
    %104 = vmatpush.msra.mxu0 %v52
    %105 = vmatpush.msra.mxu0 %v51
    %106 = vmatpush.msra.mxu0 %v50
    %107 = vmatpush.msra.mxu0 %v49
    %108 = vmatpush.msra.mxu0 %v48
    %109 = vmatpush.msra.mxu0 %v47
    %110 = vmatpush.msra.mxu0 %v46
    %111 = vmatmul.f32.gmra.mxu0 %v30
    %v112 = vpop.f32.mrf.mxu0
    %v113 = vadd.f32 0.0, %v112
    %114 = vmatmul.f32.gmra.mxu0 %v32
    %v115 = vpop.f32.mrf.mxu0
    %v116 = vadd.f32 0.0, %v115
    %117 = vmatmul.f32.gmra.mxu0 %v34
    %v118 = vpop.f32.mrf.mxu0
    %v119 = vadd.f32 0.0, %v118
    %120 = vmatmul.f32.gmra.mxu0 %v36
    %v121 = vpop.f32.mrf.mxu0
    %v122 = vadd.f32 0.0, %v121
    %123 = vmatmul.f32.gmra.mxu0 %v38
    %v124 = vpop.f32.mrf.mxu0
    %v125 = vadd.f32 0.0, %v124
    %126 = vmatmul.f32.gmra.mxu0 %v40
    %v127 = vpop.f32.mrf.mxu0
    %v128 = vadd.f32 0.0, %v127
    %129 = vmatmul.f32.gmra.mxu0 %v42
    %v130 = vpop.f32.mrf.mxu0
    %v131 = vadd.f32 0.0, %v130
    %132 = vmatmul.f32.gmra.mxu0 %v44
    %v133 = vpop.f32.mrf.mxu0
    %v134 = vadd.f32 0.0, %v133
    %135 = vdwg.mxu0
    %136 = vmatpush.msra.mxu0 0.0
    %137 = vmatpush.msra.mxu0 0.0
    %138 = vmatpush.msra.mxu0 0.0
    %139 = vmatpush.msra.mxu0 0.0
    %140 = vmatpush.msra.mxu0 0.0
    %141 = vmatpush.msra.mxu0 0.0
    %142 = vmatpush.msra.mxu0 0.0
    %143 = vmatpush.msra.mxu0 0.0
    %144 = vmatpush.msra.mxu0 %v69
    %145 = vmatpush.msra.mxu0 %v68
    %146 = vmatpush.msra.mxu0 %v67
    %147 = vmatpush.msra.mxu0 %v66
    %148 = vmatpush.msra.mxu0 %v65
    %149 = vmatpush.msra.mxu0 %v64
    %150 = vmatpush.msra.mxu0 %v63
    %151 = vmatpush.msra.mxu0 %v62
    %152 = vmatmul.f32.gmra.mxu0 %v72
    %v153 = vpop.f32.mrf.mxu0
    %v154 = vadd.f32 %v113, %v153
    %155 = vmatmul.f32.gmra.mxu0 %v75
    %v156 = vpop.f32.mrf.mxu0
    %v157 = vadd.f32 %v116, %v156
    %158 = vmatmul.f32.gmra.mxu0 %v78
    %v159 = vpop.f32.mrf.mxu0
    %v160 = vadd.f32 %v119, %v159
    %161 = vmatmul.f32.gmra.mxu0 %v81
    %v162 = vpop.f32.mrf.mxu0
    %v163 = vadd.f32 %v122, %v162
    %164 = vmatmul.f32.gmra.mxu0 %v84
    %v165 = vpop.f32.mrf.mxu0
    %v166 = vadd.f32 %v125, %v165
    %167 = vmatmul.f32.gmra.mxu0 %v87
    %v168 = vpop.f32.mrf.mxu0
    %v169 = vadd.f32 %v128, %v168
    %170 = vmatmul.f32.gmra.mxu0 %v90
    %v171 = vpop.f32.mrf.mxu0
    %v172 = vadd.f32 %v131, %v171
    %173 = vmatmul.f32.gmra.mxu0 %v93
    %v174 = vpop.f32.mrf.mxu0
    %v175 = vadd.f32 %v134, %v174
    %176 = vdwg.mxu0
    %v177 = vld [vmem:[%s2] sm:$0xff]
    %v178 = vld [vmem:[%s2 + $0x8] sm:$0xff]
    %vm179 = vcmask 253952
    %180 = vst.msk [vmem:[#allocation2] sm:$0x1] %vm179, %v177
    %181 = vst.msk [vmem:[#allocation2 + $0x10] sm:$0x1] %vm179, %v177
    %182 = vst.msk [vmem:[#allocation2 + $0x20] sm:$0x1] %vm179, %v177
    %183 = vst.msk [vmem:[#allocation2 + $0x30] sm:$0x1] %vm179, %v177
    %184 = vst.msk [vmem:[#allocation2 + $0x40] sm:$0x1] %vm179, %v177
    %185 = vst.msk [vmem:[#allocation2 + $0x50] sm:$0x1] %vm179, %v177
    %186 = vst.msk [vmem:[#allocation2 + $0x60] sm:$0x1] %vm179, %v177
    %187 = vst.msk [vmem:[#allocation2 + $0x70] sm:$0x1] %vm179, %v177
    %vm190 = vcmask 1046528
    %v191 = vrot.slane %v177, 1
    %v192 = vrot.slane %v178, 1
    %v193 = vsel %vm190, %v191, %v192
    %v195 = vadd.f32 %v154, %v193
    %v196 = vadd.f32 %v157, %v193
    %v197 = vadd.f32 %v160, %v193
    %v198 = vadd.f32 %v163, %v193
    %v199 = vadd.f32 %v166, %v193
    %v200 = vadd.f32 %v169, %v193
    %v201 = vadd.f32 %v172, %v193
    %v202 = vadd.f32 %v175, %v193
    %vm203 = vcmask 261120
    %204 = vst.msk [vmem:[#allocation2 + $0x1] sm:$0xff] %vm203, %v195
    %205 = vst.msk [vmem:[#allocation2 + $0x11] sm:$0xff] %vm203, %v196
    %206 = vst.msk [vmem:[#allocation2 + $0x21] sm:$0xff] %vm203, %v197
    %207 = vst.msk [vmem:[#allocation2 + $0x31] sm:$0xff] %vm203, %v198
    %208 = vst.msk [vmem:[#allocation2 + $0x41] sm:$0xff] %vm203, %v199
    %209 = vst.msk [vmem:[#allocation2 + $0x51] sm:$0xff] %vm203, %v200
    %210 = vst.msk [vmem:[#allocation2 + $0x61] sm:$0xff] %vm203, %v201
    %211 = vst.msk [vmem:[#allocation2 + $0x71] sm:$0xff] %vm203, %v202
    %vm212 = vcmask 260096
    %213 = vst.msk [vmem:[#allocation2 + $0x9] sm:$0x7f] %vm212, 0.0
    %214 = vst.msk [vmem:[#allocation2 + $0x19] sm:$0x7f] %vm212, 0.0
    %215 = vst.msk [vmem:[#allocation2 + $0x29] sm:$0x7f] %vm212, 0.0
    %216 = vst.msk [vmem:[#allocation2 + $0x39] sm:$0x7f] %vm212, 0.0
    %217 = vst.msk [vmem:[#allocation2 + $0x49] sm:$0x7f] %vm212, 0.0
    %218 = vst.msk [vmem:[#allocation2 + $0x59] sm:$0x7f] %vm212, 0.0
    %219 = vst.msk [vmem:[#allocation2 + $0x69] sm:$0x7f] %vm212, 0.0
    %220 = vst.msk [vmem:[#allocation2 + $0x79] sm:$0x7f] %vm212, 0.0
    %v221 = vld [vmem:[#allocation2] sm:$0xff]
    %v222 = vld [vmem:[#allocation2 + $0x8] sm:$0xff]
    %v223 = vld [vmem:[#allocation2 + $0x10] sm:$0xff]
    %v224 = vld [vmem:[#allocation2 + $0x18] sm:$0xff]
    %v225 = vld [vmem:[#allocation2 + $0x20] sm:$0xff]
    %v226 = vld [vmem:[#allocation2 + $0x28] sm:$0xff]
    %v227 = vld [vmem:[#allocation2 + $0x30] sm:$0xff]
    %v228 = vld [vmem:[#allocation2 + $0x38] sm:$0xff]
    %v229 = vld [vmem:[#allocation2 + $0x40] sm:$0xff]
    %v230 = vld [vmem:[#allocation2 + $0x48] sm:$0xff]
    %v231 = vld [vmem:[#allocation2 + $0x50] sm:$0xff]
    %v232 = vld [vmem:[#allocation2 + $0x58] sm:$0xff]
    %v233 = vld [vmem:[#allocation2 + $0x60] sm:$0xff]
    %v234 = vld [vmem:[#allocation2 + $0x68] sm:$0xff]
    %v235 = vld [vmem:[#allocation2 + $0x70] sm:$0xff]
    %v236 = vld [vmem:[#allocation2 + $0x78] sm:$0xff]
    %v237 = vlaneseq
    %v238 = vand.u32 %v237, 127
    %vm239 = vcmp.lt.s32.totalorder %v238, 9
    %v240 = vsel %vm239, 0.0, -1e+30
    %v241 = vld [vmem:[%s7] sm:$0xff]
    %v242 = vsel %vm203, %v221, 0.0
    %243 = vadd.xlane.f32.xlu0 %v242
    %v244 = vpop.xlane.xlu0 %243
    %v245 = vsel %vm203, %v222, 0.0
    %246 = vadd.xlane.f32.xlu0 %v245
    %v247 = vpop.xlane.xlu0 %246
    %v248 = vsel %vm203, %v223, 0.0
    %249 = vadd.xlane.f32.xlu0 %v248
    %v250 = vpop.xlane.xlu0 %249
    %v251 = vsel %vm203, %v224, 0.0
    %252 = vadd.xlane.f32.xlu0 %v251
    %v253 = vpop.xlane.xlu0 %252
    %v254 = vsel %vm203, %v225, 0.0
    %255 = vadd.xlane.f32.xlu0 %v254
    %v256 = vpop.xlane.xlu0 %255
    %v257 = vsel %vm203, %v226, 0.0
    %258 = vadd.xlane.f32.xlu0 %v257
    %v259 = vpop.xlane.xlu0 %258
    %v260 = vsel %vm203, %v227, 0.0
    %261 = vadd.xlane.f32.xlu0 %v260
    %v262 = vpop.xlane.xlu0 %261
    %v263 = vsel %vm203, %v228, 0.0
    %264 = vadd.xlane.f32.xlu0 %v263
    %v265 = vpop.xlane.xlu0 %264
    %v266 = vsel %vm203, %v229, 0.0
    %267 = vadd.xlane.f32.xlu0 %v266
    %v268 = vpop.xlane.xlu0 %267
    %v269 = vsel %vm203, %v230, 0.0
    %270 = vadd.xlane.f32.xlu0 %v269
    %v271 = vpop.xlane.xlu0 %270
    %v272 = vsel %vm203, %v231, 0.0
    %273 = vadd.xlane.f32.xlu0 %v272
    %v274 = vpop.xlane.xlu0 %273
    %v275 = vsel %vm203, %v232, 0.0
    %276 = vadd.xlane.f32.xlu0 %v275
    %v277 = vpop.xlane.xlu0 %276
    %v278 = vsel %vm203, %v233, 0.0
    %279 = vadd.xlane.f32.xlu0 %v278
    %v280 = vpop.xlane.xlu0 %279
    %v281 = vsel %vm203, %v234, 0.0
    %282 = vadd.xlane.f32.xlu0 %v281
    %v283 = vpop.xlane.xlu0 %282
    %v284 = vsel %vm203, %v235, 0.0
    %285 = vadd.xlane.f32.xlu0 %v284
    %v286 = vpop.xlane.xlu0 %285
    %v287 = vsel %vm203, %v236, 0.0
    %288 = vadd.xlane.f32.xlu0 %v287
    %v289 = vpop.xlane.xlu0 %288
    %v290 = vrcp.pop 32.0
    %v291 = vmul.f32 32.0, %v290
    %v292 = vsub.f32 1.0, %v291
    %v293 = vmul.f32 %v290, %v292
    %v294 = vadd.f32 %v290, %v293
    %vm295 = vweird.f32 %v290
    %v296 = vsel %vm295, %v290, %v294
    %v297 = vmul.f32 %v244, %v296
    %v298 = vmul.f32 %v247, %v296
    %v299 = vmul.f32 %v250, %v296
    %v300 = vmul.f32 %v253, %v296
    %v301 = vmul.f32 %v256, %v296
    %v302 = vmul.f32 %v259, %v296
    %v303 = vmul.f32 %v262, %v296
    %v304 = vmul.f32 %v265, %v296
    %v305 = vmul.f32 %v268, %v296
    %v306 = vmul.f32 %v271, %v296
    %v307 = vmul.f32 %v274, %v296
    %v308 = vmul.f32 %v277, %v296
    %v309 = vmul.f32 %v280, %v296
    %v310 = vmul.f32 %v283, %v296
    %v311 = vmul.f32 %v286, %v296
    %v312 = vmul.f32 %v289, %v296
    %v313 = vsub.f32 %v221, %v297
    %v314 = vsub.f32 %v222, %v298
    %v315 = vsub.f32 %v223, %v299
    %v316 = vsub.f32 %v224, %v300
    %v317 = vsub.f32 %v225, %v301
    %v318 = vsub.f32 %v226, %v302
    %v319 = vsub.f32 %v227, %v303
    %v320 = vsub.f32 %v228, %v304
    %v321 = vsub.f32 %v229, %v305
    %v322 = vsub.f32 %v230, %v306
    %v323 = vsub.f32 %v231, %v307
    %v324 = vsub.f32 %v232, %v308
    %v325 = vsub.f32 %v233, %v309
    %v326 = vsub.f32 %v234, %v310
    %v327 = vsub.f32 %v235, %v311
    %v328 = vsub.f32 %v236, %v312
    %v329 = vmul.f32 %v313, %v313
    %v330 = vmul.f32 %v314, %v314
    %v331 = vmul.f32 %v315, %v315
    %v332 = vmul.f32 %v316, %v316
    %v333 = vmul.f32 %v317, %v317
    %v334 = vmul.f32 %v318, %v318
    %v335 = vmul.f32 %v319, %v319
    %v336 = vmul.f32 %v320, %v320
    %v337 = vmul.f32 %v321, %v321
    %v338 = vmul.f32 %v322, %v322
    %v339 = vmul.f32 %v323, %v323
    %v340 = vmul.f32 %v324, %v324
    %v341 = vmul.f32 %v325, %v325
    %v342 = vmul.f32 %v326, %v326
    %v343 = vmul.f32 %v327, %v327
    %v344 = vmul.f32 %v328, %v328
    %v345 = vsel %vm203, %v329, 0.0
    %346 = vadd.xlane.f32.xlu0 %v345
    %v347 = vpop.xlane.xlu0 %346
    %v348 = vsel %vm203, %v330, 0.0
    %349 = vadd.xlane.f32.xlu0 %v348
    %v350 = vpop.xlane.xlu0 %349
    %v351 = vsel %vm203, %v331, 0.0
    %352 = vadd.xlane.f32.xlu0 %v351
    %v353 = vpop.xlane.xlu0 %352
    %v354 = vsel %vm203, %v332, 0.0
    %355 = vadd.xlane.f32.xlu0 %v354
    %v356 = vpop.xlane.xlu0 %355
    %v357 = vsel %vm203, %v333, 0.0
    %358 = vadd.xlane.f32.xlu0 %v357
    %v359 = vpop.xlane.xlu0 %358
    %v360 = vsel %vm203, %v334, 0.0
    %361 = vadd.xlane.f32.xlu0 %v360
    %v362 = vpop.xlane.xlu0 %361
    %v363 = vsel %vm203, %v335, 0.0
    %364 = vadd.xlane.f32.xlu0 %v363
    %v365 = vpop.xlane.xlu0 %364
    %v366 = vsel %vm203, %v336, 0.0
    %367 = vadd.xlane.f32.xlu0 %v366
    %v368 = vpop.xlane.xlu0 %367
    %v369 = vsel %vm203, %v337, 0.0
    %370 = vadd.xlane.f32.xlu0 %v369
    %v371 = vpop.xlane.xlu0 %370
    %v372 = vsel %vm203, %v338, 0.0
    %373 = vadd.xlane.f32.xlu0 %v372
    %v374 = vpop.xlane.xlu0 %373
    %v375 = vsel %vm203, %v339, 0.0
    %376 = vadd.xlane.f32.xlu0 %v375
    %v377 = vpop.xlane.xlu0 %376
    %v378 = vsel %vm203, %v340, 0.0
    %379 = vadd.xlane.f32.xlu0 %v378
    %v380 = vpop.xlane.xlu0 %379
    %v381 = vsel %vm203, %v341, 0.0
    %382 = vadd.xlane.f32.xlu0 %v381
    %v383 = vpop.xlane.xlu0 %382
    %v384 = vsel %vm203, %v342, 0.0
    %385 = vadd.xlane.f32.xlu0 %v384
    %v386 = vpop.xlane.xlu0 %385
    %v387 = vsel %vm203, %v343, 0.0
    %388 = vadd.xlane.f32.xlu0 %v387
    %v389 = vpop.xlane.xlu0 %388
    %v390 = vsel %vm203, %v344, 0.0
    %391 = vadd.xlane.f32.xlu0 %v390
    %v392 = vpop.xlane.xlu0 %391
    %v393 = vmul.f32 %v347, %v296
    %v394 = vmul.f32 %v350, %v296
    %v395 = vmul.f32 %v353, %v296
    %v396 = vmul.f32 %v356, %v296
    %v397 = vmul.f32 %v359, %v296
    %v398 = vmul.f32 %v362, %v296
    %v399 = vmul.f32 %v365, %v296
    %v400 = vmul.f32 %v368, %v296
    %v401 = vmul.f32 %v371, %v296
    %v402 = vmul.f32 %v374, %v296
    %v403 = vmul.f32 %v377, %v296
    %v404 = vmul.f32 %v380, %v296
    %v405 = vmul.f32 %v383, %v296
    %v406 = vmul.f32 %v386, %v296
    %v407 = vmul.f32 %v389, %v296
    %v408 = vmul.f32 %v392, %v296
    %v409 = vadd.f32 %v393, 1e-05
    %v410 = vadd.f32 %v394, 1e-05
    %v411 = vadd.f32 %v395, 1e-05
    %v412 = vadd.f32 %v396, 1e-05
    %v413 = vadd.f32 %v397, 1e-05
    %v414 = vadd.f32 %v398, 1e-05
    %v415 = vadd.f32 %v399, 1e-05
    %v416 = vadd.f32 %v400, 1e-05
    %v417 = vadd.f32 %v401, 1e-05
    %v418 = vadd.f32 %v402, 1e-05
    %v419 = vadd.f32 %v403, 1e-05
    %v420 = vadd.f32 %v404, 1e-05
    %v421 = vadd.f32 %v405, 1e-05
    %v422 = vadd.f32 %v406, 1e-05
    %v423 = vadd.f32 %v407, 1e-05
    %v424 = vadd.f32 %v408, 1e-05
    %v425 = vrsqrt.pop %v409
    %v426 = vmul.f32 %v425, %v409
    %v427 = vmul.f32 %v426, %v425
    %v428 = vmul.f32 0.5, %v427
    %v429 = vsub.f32 1.5, %v428
    %v430 = vmul.f32 %v425, %v429
    %vm431 = vweird.f32 %v409
    %vm432 = vweird.f32 %v425
    %vm433 = vmor %vm431, %vm432
    %v434 = vsel %vm433, %v425, %v430
    %v435 = vrsqrt.pop %v410
    %v436 = vmul.f32 %v435, %v410
    %v437 = vmul.f32 %v436, %v435
    %v438 = vmul.f32 0.5, %v437
    %v439 = vsub.f32 1.5, %v438
    %v440 = vmul.f32 %v435, %v439
    %vm441 = vweird.f32 %v410
    %vm442 = vweird.f32 %v435
    %vm443 = vmor %vm441, %vm442
    %v444 = vsel %vm443, %v435, %v440
    %v445 = vrsqrt.pop %v411
    %v446 = vmul.f32 %v445, %v411
    %v447 = vmul.f32 %v446, %v445
    %v448 = vmul.f32 0.5, %v447
    %v449 = vsub.f32 1.5, %v448
    %v450 = vmul.f32 %v445, %v449
    %vm451 = vweird.f32 %v411
    %vm452 = vweird.f32 %v445
    %vm453 = vmor %vm451, %vm452
    %v454 = vsel %vm453, %v445, %v450
    %v455 = vrsqrt.pop %v412
    %v456 = vmul.f32 %v455, %v412
    %v457 = vmul.f32 %v456, %v455
    %v458 = vmul.f32 0.5, %v457
    %v459 = vsub.f32 1.5, %v458
    %v460 = vmul.f32 %v455, %v459
    %vm461 = vweird.f32 %v412
    %vm462 = vweird.f32 %v455
    %vm463 = vmor %vm461, %vm462
    %v464 = vsel %vm463, %v455, %v460
    %v465 = vrsqrt.pop %v413
    %v466 = vmul.f32 %v465, %v413
    %v467 = vmul.f32 %v466, %v465
    %v468 = vmul.f32 0.5, %v467
    %v469 = vsub.f32 1.5, %v468
    %v470 = vmul.f32 %v465, %v469
    %vm471 = vweird.f32 %v413
    %vm472 = vweird.f32 %v465
    %vm473 = vmor %vm471, %vm472
    %v474 = vsel %vm473, %v465, %v470
    %v475 = vrsqrt.pop %v414
    %v476 = vmul.f32 %v475, %v414
    %v477 = vmul.f32 %v476, %v475
    %v478 = vmul.f32 0.5, %v477
    %v479 = vsub.f32 1.5, %v478
    %v480 = vmul.f32 %v475, %v479
    %vm481 = vweird.f32 %v414
    %vm482 = vweird.f32 %v475
    %vm483 = vmor %vm481, %vm482
    %v484 = vsel %vm483, %v475, %v480
    %v485 = vrsqrt.pop %v415
    %v486 = vmul.f32 %v485, %v415
    %v487 = vmul.f32 %v486, %v485
    %v488 = vmul.f32 0.5, %v487
    %v489 = vsub.f32 1.5, %v488
    %v490 = vmul.f32 %v485, %v489
    %vm491 = vweird.f32 %v415
    %vm492 = vweird.f32 %v485
    %vm493 = vmor %vm491, %vm492
    %v494 = vsel %vm493, %v485, %v490
    %v495 = vrsqrt.pop %v416
    %v496 = vmul.f32 %v495, %v416
    %v497 = vmul.f32 %v496, %v495
    %v498 = vmul.f32 0.5, %v497
    %v499 = vsub.f32 1.5, %v498
    %v500 = vmul.f32 %v495, %v499
    %vm501 = vweird.f32 %v416
    %vm502 = vweird.f32 %v495
    %vm503 = vmor %vm501, %vm502
    %v504 = vsel %vm503, %v495, %v500
    %v505 = vrsqrt.pop %v417
    %v506 = vmul.f32 %v505, %v417
    %v507 = vmul.f32 %v506, %v505
    %v508 = vmul.f32 0.5, %v507
    %v509 = vsub.f32 1.5, %v508
    %v510 = vmul.f32 %v505, %v509
    %vm511 = vweird.f32 %v417
    %vm512 = vweird.f32 %v505
    %vm513 = vmor %vm511, %vm512
    %v514 = vsel %vm513, %v505, %v510
    %v515 = vrsqrt.pop %v418
    %v516 = vmul.f32 %v515, %v418
    %v517 = vmul.f32 %v516, %v515
    %v518 = vmul.f32 0.5, %v517
    %v519 = vsub.f32 1.5, %v518
    %v520 = vmul.f32 %v515, %v519
    %vm521 = vweird.f32 %v418
    %vm522 = vweird.f32 %v515
    %vm523 = vmor %vm521, %vm522
    %v524 = vsel %vm523, %v515, %v520
    %v525 = vrsqrt.pop %v419
    %v526 = vmul.f32 %v525, %v419
    %v527 = vmul.f32 %v526, %v525
    %v528 = vmul.f32 0.5, %v527
    %v529 = vsub.f32 1.5, %v528
    %v530 = vmul.f32 %v525, %v529
    %vm531 = vweird.f32 %v419
    %vm532 = vweird.f32 %v525
    %vm533 = vmor %vm531, %vm532
    %v534 = vsel %vm533, %v525, %v530
    %v535 = vrsqrt.pop %v420
    %v536 = vmul.f32 %v535, %v420
    %v537 = vmul.f32 %v536, %v535
    %v538 = vmul.f32 0.5, %v537
    %v539 = vsub.f32 1.5, %v538
    %v540 = vmul.f32 %v535, %v539
    %vm541 = vweird.f32 %v420
    %vm542 = vweird.f32 %v535
    %vm543 = vmor %vm541, %vm542
    %v544 = vsel %vm543, %v535, %v540
    %v545 = vrsqrt.pop %v421
    %v546 = vmul.f32 %v545, %v421
    %v547 = vmul.f32 %v546, %v545
    %v548 = vmul.f32 0.5, %v547
    %v549 = vsub.f32 1.5, %v548
    %v550 = vmul.f32 %v545, %v549
    %vm551 = vweird.f32 %v421
    %vm552 = vweird.f32 %v545
    %vm553 = vmor %vm551, %vm552
    %v554 = vsel %vm553, %v545, %v550
    %v555 = vrsqrt.pop %v422
    %v556 = vmul.f32 %v555, %v422
    %v557 = vmul.f32 %v556, %v555
    %v558 = vmul.f32 0.5, %v557
    %v559 = vsub.f32 1.5, %v558
    %v560 = vmul.f32 %v555, %v559
    %vm561 = vweird.f32 %v422
    %vm562 = vweird.f32 %v555
    %vm563 = vmor %vm561, %vm562
    %v564 = vsel %vm563, %v555, %v560
    %v565 = vrsqrt.pop %v423
    %v566 = vmul.f32 %v565, %v423
    %v567 = vmul.f32 %v566, %v565
    %v568 = vmul.f32 0.5, %v567
    %v569 = vsub.f32 1.5, %v568
    %v570 = vmul.f32 %v565, %v569
    %vm571 = vweird.f32 %v423
    %vm572 = vweird.f32 %v565
    %vm573 = vmor %vm571, %vm572
    %v574 = vsel %vm573, %v565, %v570
    %v575 = vrsqrt.pop %v424
    %v576 = vmul.f32 %v575, %v424
    %v577 = vmul.f32 %v576, %v575
    %v578 = vmul.f32 0.5, %v577
    %v579 = vsub.f32 1.5, %v578
    %v580 = vmul.f32 %v575, %v579
    %vm581 = vweird.f32 %v424
    %vm582 = vweird.f32 %v575
    %vm583 = vmor %vm581, %vm582
    %v584 = vsel %vm583, %v575, %v580
    %v585 = vmul.f32 %v313, %v434
    %v586 = vmul.f32 %v314, %v444
    %v587 = vmul.f32 %v315, %v454
    %v588 = vmul.f32 %v316, %v464
    %v589 = vmul.f32 %v317, %v474
    %v590 = vmul.f32 %v318, %v484
    %v591 = vmul.f32 %v319, %v494
    %v592 = vmul.f32 %v320, %v504
    %v593 = vmul.f32 %v321, %v514
    %v594 = vmul.f32 %v322, %v524
    %v595 = vmul.f32 %v323, %v534
    %v596 = vmul.f32 %v324, %v544
    %v597 = vmul.f32 %v325, %v554
    %v598 = vmul.f32 %v326, %v564
    %v599 = vmul.f32 %v327, %v574
    %v600 = vmul.f32 %v328, %v584
    %v601 = vperm.slane %v241, 0
    %v602 = vmul.f32 %v585, %v601
    %v603 = vmul.f32 %v586, %v601
    %v604 = vmul.f32 %v587, %v601
    %v605 = vmul.f32 %v588, %v601
    %v606 = vmul.f32 %v589, %v601
    %v607 = vmul.f32 %v590, %v601
    %v608 = vmul.f32 %v591, %v601
    %v609 = vmul.f32 %v592, %v601
    %v610 = vmul.f32 %v593, %v601
    %v611 = vmul.f32 %v594, %v601
    %v612 = vmul.f32 %v595, %v601
    %v613 = vmul.f32 %v596, %v601
    %v614 = vmul.f32 %v597, %v601
    %v615 = vmul.f32 %v598, %v601
    %v616 = vmul.f32 %v599, %v601
    %v617 = vmul.f32 %v600, %v601
    %v618 = vperm.slane %v241, 1
    %v619 = vadd.f32 %v602, %v618
    %v620 = vadd.f32 %v603, %v618
    %v621 = vadd.f32 %v604, %v618
    %v622 = vadd.f32 %v605, %v618
    %v623 = vadd.f32 %v606, %v618
    %v624 = vadd.f32 %v607, %v618
    %v625 = vadd.f32 %v608, %v618
    %v626 = vadd.f32 %v609, %v618
    %v627 = vadd.f32 %v610, %v618
    %v628 = vadd.f32 %v611, %v618
    %v629 = vadd.f32 %v612, %v618
    %v630 = vadd.f32 %v613, %v618
    %v631 = vadd.f32 %v614, %v618
    %v632 = vadd.f32 %v615, %v618
    %v633 = vadd.f32 %v616, %v618
    %v634 = vadd.f32 %v617, %v618
    %v635 = vld [vmem:[%s3] sm:$0xff]
    %v636 = vld [vmem:[%s3 + $0x8] sm:$0xff]
    %v637 = vld [vmem:[%s3 + $0x10] sm:$0xff]
    %v638 = vld [vmem:[%s3 + $0x18] sm:$0xff]
    %v640 = vsel %vm203, %v619, 0
    %v643 = vsel %vm203, %v620, 0
    %v646 = vsel %vm203, %v621, 0
    %v649 = vsel %vm203, %v622, 0
    %v652 = vsel %vm203, %v623, 0
    %v655 = vsel %vm203, %v624, 0
    %v658 = vsel %vm203, %v625, 0
    %v661 = vsel %vm203, %v626, 0
    %v664 = vsel %vm203, %v627, 0
    %v667 = vsel %vm203, %v628, 0
    %v670 = vsel %vm203, %v629, 0
    %v673 = vsel %vm203, %v630, 0
    %v676 = vsel %vm203, %v631, 0
    %v679 = vsel %vm203, %v632, 0
    %v682 = vsel %vm203, %v633, 0
    %v685 = vsel %vm203, %v634, 0
    %687 = vmatpush.msra.mxu0 0.0
    %688 = vmatpush.msra.mxu0 0.0
    %689 = vmatpush.msra.mxu0 0.0
    %690 = vmatpush.msra.mxu0 0.0
    %691 = vmatpush.msra.mxu0 0.0
    %692 = vmatpush.msra.mxu0 0.0
    %693 = vmatpush.msra.mxu0 0.0
    %694 = vmatpush.msra.mxu0 0.0
    %695 = vmatpush.msra.mxu0 0.0
    %696 = vmatpush.msra.mxu0 0.0
    %697 = vmatpush.msra.mxu0 0.0
    %698 = vmatpush.msra.mxu0 0.0
    %699 = vmatpush.msra.mxu0 %v638
    %700 = vmatpush.msra.mxu0 %v637
    %701 = vmatpush.msra.mxu0 %v636
    %702 = vmatpush.msra.mxu0 %v635
    %703 = vmatmul.f32.gmra.mxu0 %v640
    %v704 = vpop.f32.mrf.mxu0
    %v705 = vadd.f32 0.0, %v704
    %706 = vmatmul.f32.gmra.mxu0 %v643
    %v707 = vpop.f32.mrf.mxu0
    %v708 = vadd.f32 0.0, %v707
    %709 = vmatmul.f32.gmra.mxu0 %v646
    %v710 = vpop.f32.mrf.mxu0
    %v711 = vadd.f32 0.0, %v710
    %712 = vmatmul.f32.gmra.mxu0 %v649
    %v713 = vpop.f32.mrf.mxu0
    %v714 = vadd.f32 0.0, %v713
    %715 = vmatmul.f32.gmra.mxu0 %v652
    %v716 = vpop.f32.mrf.mxu0
    %v717 = vadd.f32 0.0, %v716
    %718 = vmatmul.f32.gmra.mxu0 %v655
    %v719 = vpop.f32.mrf.mxu0
    %v720 = vadd.f32 0.0, %v719
    %721 = vmatmul.f32.gmra.mxu0 %v658
    %v722 = vpop.f32.mrf.mxu0
    %v723 = vadd.f32 0.0, %v722
    %724 = vmatmul.f32.gmra.mxu0 %v661
    %v725 = vpop.f32.mrf.mxu0
    %v726 = vadd.f32 0.0, %v725
    %727 = vmatmul.f32.gmra.mxu0 %v664
    %v728 = vpop.f32.mrf.mxu0
    %v729 = vadd.f32 0.0, %v728
    %730 = vmatmul.f32.gmra.mxu0 %v667
    %v731 = vpop.f32.mrf.mxu0
    %v732 = vadd.f32 0.0, %v731
    %733 = vmatmul.f32.gmra.mxu0 %v670
    %v734 = vpop.f32.mrf.mxu0
    %v735 = vadd.f32 0.0, %v734
    %736 = vmatmul.f32.gmra.mxu0 %v673
    %v737 = vpop.f32.mrf.mxu0
    %v738 = vadd.f32 0.0, %v737
    %739 = vmatmul.f32.gmra.mxu0 %v676
    %v740 = vpop.f32.mrf.mxu0
    %v741 = vadd.f32 0.0, %v740
    %742 = vmatmul.f32.gmra.mxu0 %v679
    %v743 = vpop.f32.mrf.mxu0
    %v744 = vadd.f32 0.0, %v743
    %745 = vmatmul.f32.gmra.mxu0 %v682
    %v746 = vpop.f32.mrf.mxu0
    %v747 = vadd.f32 0.0, %v746
    %748 = vmatmul.f32.gmra.mxu0 %v685
    %v749 = vpop.f32.mrf.mxu0
    %v750 = vadd.f32 0.0, %v749
    %751 = vdwg.mxu0
    %v752 = vld [vmem:[%s4] sm:$0xff]
    %v753 = vld [vmem:[%s4 + $0x8] sm:$0xff]
    %v754 = vld [vmem:[%s4 + $0x10] sm:$0xff]
    %v755 = vld [vmem:[%s4 + $0x18] sm:$0xff]
    %758 = vrot.lane.b32.xlu0 %v705, 96
    %v759 = vpop.permute.xlu0 %758
    %760 = vrot.lane.b32.xlu0 %v708, 96
    %v761 = vpop.permute.xlu0 %760
    %vm762 = vcmask 64512
    %v763 = vsel %vm762, %v705, 0
    %v765 = vsel %vm762, %v708, 0
    %v767 = vsel %vm762, %v759, 0
    %v769 = vsel %vm762, %v761, 0
    %771 = vmatpush.xpose.msra.mxu0 0.0
    %772 = vmatpush.xpose.msra.mxu0 0.0
    %773 = vmatpush.xpose.msra.mxu0 0.0
    %774 = vmatpush.xpose.msra.mxu0 0.0
    %775 = vmatpush.xpose.msra.mxu0 0.0
    %776 = vmatpush.xpose.msra.mxu0 0.0
    %777 = vmatpush.xpose.msra.mxu0 0.0
    %778 = vmatpush.xpose.msra.mxu0 0.0
    %779 = vmatpush.xpose.msra.mxu0 0.0
    %780 = vmatpush.xpose.msra.mxu0 0.0
    %781 = vmatpush.xpose.msra.mxu0 0.0
    %782 = vmatpush.xpose.msra.mxu0 0.0
    %783 = vmatpush.xpose.msra.mxu0 0.0
    %784 = vmatpush.xpose.msra.mxu0 0.0
    %785 = vmatpush.xpose.msra.mxu0 %v769
    %786 = vmatpush.xpose.msra.mxu0 %v767
    %787 = vmatmul.f32.gmra.mxu0 %v763
    %v788 = vpop.f32.mrf.mxu0
    %v789 = vadd.f32 0.0, %v788
    %790 = vmatmul.f32.gmra.mxu0 %v765
    %v791 = vpop.f32.mrf.mxu0
    %v792 = vadd.f32 0.0, %v791
    %793 = vdwg.mxu0
    %796 = vrot.lane.b32.xlu0 %v711, 96
    %v797 = vpop.permute.xlu0 %796
    %798 = vrot.lane.b32.xlu0 %v714, 96
    %v799 = vpop.permute.xlu0 %798
    %v800 = vsel %vm762, %v711, 0
    %v802 = vsel %vm762, %v714, 0
    %v804 = vsel %vm762, %v797, 0
    %v806 = vsel %vm762, %v799, 0
    %808 = vmatpush.xpose.msra.mxu0 0.0
    %809 = vmatpush.xpose.msra.mxu0 0.0
    %810 = vmatpush.xpose.msra.mxu0 0.0
    %811 = vmatpush.xpose.msra.mxu0 0.0
    %812 = vmatpush.xpose.msra.mxu0 0.0
    %813 = vmatpush.xpose.msra.mxu0 0.0
    %814 = vmatpush.xpose.msra.mxu0 0.0
    %815 = vmatpush.xpose.msra.mxu0 0.0
    %816 = vmatpush.xpose.msra.mxu0 0.0
    %817 = vmatpush.xpose.msra.mxu0 0.0
    %818 = vmatpush.xpose.msra.mxu0 0.0
    %819 = vmatpush.xpose.msra.mxu0 0.0
    %820 = vmatpush.xpose.msra.mxu0 0.0
    %821 = vmatpush.xpose.msra.mxu0 0.0
    %822 = vmatpush.xpose.msra.mxu0 %v806
    %823 = vmatpush.xpose.msra.mxu0 %v804
    %824 = vmatmul.f32.gmra.mxu0 %v800
    %v825 = vpop.f32.mrf.mxu0
    %v826 = vadd.f32 0.0, %v825
    %827 = vmatmul.f32.gmra.mxu0 %v802
    %v828 = vpop.f32.mrf.mxu0
    %v829 = vadd.f32 0.0, %v828
    %830 = vdwg.mxu0
    %833 = vrot.lane.b32.xlu0 %v717, 96
    %v834 = vpop.permute.xlu0 %833
    %835 = vrot.lane.b32.xlu0 %v720, 96
    %v836 = vpop.permute.xlu0 %835
    %v837 = vsel %vm762, %v717, 0
    %v839 = vsel %vm762, %v720, 0
    %v841 = vsel %vm762, %v834, 0
    %v843 = vsel %vm762, %v836, 0
    %845 = vmatpush.xpose.msra.mxu0 0.0
    %846 = vmatpush.xpose.msra.mxu0 0.0
    %847 = vmatpush.xpose.msra.mxu0 0.0
    %848 = vmatpush.xpose.msra.mxu0 0.0
    %849 = vmatpush.xpose.msra.mxu0 0.0
    %850 = vmatpush.xpose.msra.mxu0 0.0
    %851 = vmatpush.xpose.msra.mxu0 0.0
    %852 = vmatpush.xpose.msra.mxu0 0.0
    %853 = vmatpush.xpose.msra.mxu0 0.0
    %854 = vmatpush.xpose.msra.mxu0 0.0
    %855 = vmatpush.xpose.msra.mxu0 0.0
    %856 = vmatpush.xpose.msra.mxu0 0.0
    %857 = vmatpush.xpose.msra.mxu0 0.0
    %858 = vmatpush.xpose.msra.mxu0 0.0
    %859 = vmatpush.xpose.msra.mxu0 %v843
    %860 = vmatpush.xpose.msra.mxu0 %v841
    %861 = vmatmul.f32.gmra.mxu0 %v837
    %v862 = vpop.f32.mrf.mxu0
    %v863 = vadd.f32 0.0, %v862
    %864 = vmatmul.f32.gmra.mxu0 %v839
    %v865 = vpop.f32.mrf.mxu0
    %v866 = vadd.f32 0.0, %v865
    %867 = vdwg.mxu0
    %870 = vrot.lane.b32.xlu0 %v723, 96
    %v871 = vpop.permute.xlu0 %870
    %872 = vrot.lane.b32.xlu0 %v726, 96
    %v873 = vpop.permute.xlu0 %872
    %v874 = vsel %vm762, %v723, 0
    %v876 = vsel %vm762, %v726, 0
    %v878 = vsel %vm762, %v871, 0
    %v880 = vsel %vm762, %v873, 0
    %882 = vmatpush.xpose.msra.mxu0 0.0
    %883 = vmatpush.xpose.msra.mxu0 0.0
    %884 = vmatpush.xpose.msra.mxu0 0.0
    %885 = vmatpush.xpose.msra.mxu0 0.0
    %886 = vmatpush.xpose.msra.mxu0 0.0
    %887 = vmatpush.xpose.msra.mxu0 0.0
    %888 = vmatpush.xpose.msra.mxu0 0.0
    %889 = vmatpush.xpose.msra.mxu0 0.0
    %890 = vmatpush.xpose.msra.mxu0 0.0
    %891 = vmatpush.xpose.msra.mxu0 0.0
    %892 = vmatpush.xpose.msra.mxu0 0.0
    %893 = vmatpush.xpose.msra.mxu0 0.0
    %894 = vmatpush.xpose.msra.mxu0 0.0
    %895 = vmatpush.xpose.msra.mxu0 0.0
    %896 = vmatpush.xpose.msra.mxu0 %v880
    %897 = vmatpush.xpose.msra.mxu0 %v878
    %898 = vmatmul.f32.gmra.mxu0 %v874
    %v899 = vpop.f32.mrf.mxu0
    %v900 = vadd.f32 0.0, %v899
    %901 = vmatmul.f32.gmra.mxu0 %v876
    %v902 = vpop.f32.mrf.mxu0
    %v903 = vadd.f32 0.0, %v902
    %904 = vdwg.mxu0
    %907 = vrot.lane.b32.xlu0 %v729, 96
    %v908 = vpop.permute.xlu0 %907
    %909 = vrot.lane.b32.xlu0 %v732, 96
    %v910 = vpop.permute.xlu0 %909
    %v911 = vsel %vm762, %v729, 0
    %v913 = vsel %vm762, %v732, 0
    %v915 = vsel %vm762, %v908, 0
    %v917 = vsel %vm762, %v910, 0
    %919 = vmatpush.xpose.msra.mxu0 0.0
    %920 = vmatpush.xpose.msra.mxu0 0.0
    %921 = vmatpush.xpose.msra.mxu0 0.0
    %922 = vmatpush.xpose.msra.mxu0 0.0
    %923 = vmatpush.xpose.msra.mxu0 0.0
    %924 = vmatpush.xpose.msra.mxu0 0.0
    %925 = vmatpush.xpose.msra.mxu0 0.0
    %926 = vmatpush.xpose.msra.mxu0 0.0
    %927 = vmatpush.xpose.msra.mxu0 0.0
    %928 = vmatpush.xpose.msra.mxu0 0.0
    %929 = vmatpush.xpose.msra.mxu0 0.0
    %930 = vmatpush.xpose.msra.mxu0 0.0
    %931 = vmatpush.xpose.msra.mxu0 0.0
    %932 = vmatpush.xpose.msra.mxu0 0.0
    %933 = vmatpush.xpose.msra.mxu0 %v917
    %934 = vmatpush.xpose.msra.mxu0 %v915
    %935 = vmatmul.f32.gmra.mxu0 %v911
    %v936 = vpop.f32.mrf.mxu0
    %v937 = vadd.f32 0.0, %v936
    %938 = vmatmul.f32.gmra.mxu0 %v913
    %v939 = vpop.f32.mrf.mxu0
    %v940 = vadd.f32 0.0, %v939
    %941 = vdwg.mxu0
    %944 = vrot.lane.b32.xlu0 %v735, 96
    %v945 = vpop.permute.xlu0 %944
    %946 = vrot.lane.b32.xlu0 %v738, 96
    %v947 = vpop.permute.xlu0 %946
    %v948 = vsel %vm762, %v735, 0
    %v950 = vsel %vm762, %v738, 0
    %v952 = vsel %vm762, %v945, 0
    %v954 = vsel %vm762, %v947, 0
    %956 = vmatpush.xpose.msra.mxu0 0.0
    %957 = vmatpush.xpose.msra.mxu0 0.0
    %958 = vmatpush.xpose.msra.mxu0 0.0
    %959 = vmatpush.xpose.msra.mxu0 0.0
    %960 = vmatpush.xpose.msra.mxu0 0.0
    %961 = vmatpush.xpose.msra.mxu0 0.0
    %962 = vmatpush.xpose.msra.mxu0 0.0
    %963 = vmatpush.xpose.msra.mxu0 0.0
    %964 = vmatpush.xpose.msra.mxu0 0.0
    %965 = vmatpush.xpose.msra.mxu0 0.0
    %966 = vmatpush.xpose.msra.mxu0 0.0
    %967 = vmatpush.xpose.msra.mxu0 0.0
    %968 = vmatpush.xpose.msra.mxu0 0.0
    %969 = vmatpush.xpose.msra.mxu0 0.0
    %970 = vmatpush.xpose.msra.mxu0 %v954
    %971 = vmatpush.xpose.msra.mxu0 %v952
    %972 = vmatmul.f32.gmra.mxu0 %v948
    %v973 = vpop.f32.mrf.mxu0
    %v974 = vadd.f32 0.0, %v973
    %975 = vmatmul.f32.gmra.mxu0 %v950
    %v976 = vpop.f32.mrf.mxu0
    %v977 = vadd.f32 0.0, %v976
    %978 = vdwg.mxu0
    %981 = vrot.lane.b32.xlu0 %v741, 96
    %v982 = vpop.permute.xlu0 %981
    %983 = vrot.lane.b32.xlu0 %v744, 96
    %v984 = vpop.permute.xlu0 %983
    %v985 = vsel %vm762, %v741, 0
    %v987 = vsel %vm762, %v744, 0
    %v989 = vsel %vm762, %v982, 0
    %v991 = vsel %vm762, %v984, 0
    %993 = vmatpush.xpose.msra.mxu0 0.0
    %994 = vmatpush.xpose.msra.mxu0 0.0
    %995 = vmatpush.xpose.msra.mxu0 0.0
    %996 = vmatpush.xpose.msra.mxu0 0.0
    %997 = vmatpush.xpose.msra.mxu0 0.0
    %998 = vmatpush.xpose.msra.mxu0 0.0
    %999 = vmatpush.xpose.msra.mxu0 0.0
    %1000 = vmatpush.xpose.msra.mxu0 0.0
    %1001 = vmatpush.xpose.msra.mxu0 0.0
    %1002 = vmatpush.xpose.msra.mxu0 0.0
    %1003 = vmatpush.xpose.msra.mxu0 0.0
    %1004 = vmatpush.xpose.msra.mxu0 0.0
    %1005 = vmatpush.xpose.msra.mxu0 0.0
    %1006 = vmatpush.xpose.msra.mxu0 0.0
    %1007 = vmatpush.xpose.msra.mxu0 %v991
    %1008 = vmatpush.xpose.msra.mxu0 %v989
    %1009 = vmatmul.f32.gmra.mxu0 %v985
    %v1010 = vpop.f32.mrf.mxu0
    %v1011 = vadd.f32 0.0, %v1010
    %1012 = vmatmul.f32.gmra.mxu0 %v987
    %v1013 = vpop.f32.mrf.mxu0
    %v1014 = vadd.f32 0.0, %v1013
    %1015 = vdwg.mxu0
    %1018 = vrot.lane.b32.xlu0 %v747, 96
    %v1019 = vpop.permute.xlu0 %1018
    %1020 = vrot.lane.b32.xlu0 %v750, 96
    %v1021 = vpop.permute.xlu0 %1020
    %v1022 = vsel %vm762, %v747, 0
    %v1024 = vsel %vm762, %v750, 0
    %v1026 = vsel %vm762, %v1019, 0
    %v1028 = vsel %vm762, %v1021, 0
    %1030 = vmatpush.xpose.msra.mxu0 0.0
    %1031 = vmatpush.xpose.msra.mxu0 0.0
    %1032 = vmatpush.xpose.msra.mxu0 0.0
    %1033 = vmatpush.xpose.msra.mxu0 0.0
    %1034 = vmatpush.xpose.msra.mxu0 0.0
    %1035 = vmatpush.xpose.msra.mxu0 0.0
    %1036 = vmatpush.xpose.msra.mxu0 0.0
    %1037 = vmatpush.xpose.msra.mxu0 0.0
    %1038 = vmatpush.xpose.msra.mxu0 0.0
    %1039 = vmatpush.xpose.msra.mxu0 0.0
    %1040 = vmatpush.xpose.msra.mxu0 0.0
    %1041 = vmatpush.xpose.msra.mxu0 0.0
    %1042 = vmatpush.xpose.msra.mxu0 0.0
    %1043 = vmatpush.xpose.msra.mxu0 0.0
    %1044 = vmatpush.xpose.msra.mxu0 %v1028
    %1045 = vmatpush.xpose.msra.mxu0 %v1026
    %1046 = vmatmul.f32.gmra.mxu0 %v1022
    %v1047 = vpop.f32.mrf.mxu0
    %v1048 = vadd.f32 0.0, %v1047
    %1049 = vmatmul.f32.gmra.mxu0 %v1024
    %v1050 = vpop.f32.mrf.mxu0
    %v1051 = vadd.f32 0.0, %v1050
    %1052 = vdwg.mxu0
    %v1053 = vmul.f32 %v789, 0.35355338
    %v1054 = vmul.f32 %v792, 0.35355338
    %v1055 = vmul.f32 %v826, 0.35355338
    %v1056 = vmul.f32 %v829, 0.35355338
    %v1057 = vmul.f32 %v863, 0.35355338
    %v1058 = vmul.f32 %v866, 0.35355338
    %v1059 = vmul.f32 %v900, 0.35355338
    %v1060 = vmul.f32 %v903, 0.35355338
    %v1061 = vmul.f32 %v937, 0.35355338
    %v1062 = vmul.f32 %v940, 0.35355338
    %v1063 = vmul.f32 %v974, 0.35355338
    %v1064 = vmul.f32 %v977, 0.35355338
    %v1065 = vmul.f32 %v1011, 0.35355338
    %v1066 = vmul.f32 %v1014, 0.35355338
    %v1067 = vmul.f32 %v1048, 0.35355338
    %v1068 = vmul.f32 %v1051, 0.35355338
    %v1069 = vadd.f32 %v1053, %v240
    %v1070 = vadd.f32 %v1054, %v240
    %v1071 = vadd.f32 %v1055, %v240
    %v1072 = vadd.f32 %v1056, %v240
    %v1073 = vadd.f32 %v1057, %v240
    %v1074 = vadd.f32 %v1058, %v240
    %v1075 = vadd.f32 %v1059, %v240
    %v1076 = vadd.f32 %v1060, %v240
    %v1077 = vadd.f32 %v1061, %v240
    %v1078 = vadd.f32 %v1062, %v240
    %v1079 = vadd.f32 %v1063, %v240
    %v1080 = vadd.f32 %v1064, %v240
    %v1081 = vadd.f32 %v1065, %v240
    %v1082 = vadd.f32 %v1066, %v240
    %v1083 = vadd.f32 %v1067, %v240
    %v1084 = vadd.f32 %v1068, %v240
    %vm1085 = vcmask 130048
    %v1086 = vsel %vm1085, %v1069, -inf
    %1087 = vmax.xlane.f32.xlu0 %v1086
    %v1088 = vpop.xlane.xlu0 %1087
    %v1089 = vsel %vm1085, %v1070, -inf
    %1090 = vmax.xlane.f32.xlu0 %v1089
    %v1091 = vpop.xlane.xlu0 %1090
    %v1092 = vsel %vm1085, %v1071, -inf
    %1093 = vmax.xlane.f32.xlu0 %v1092
    %v1094 = vpop.xlane.xlu0 %1093
    %v1095 = vsel %vm1085, %v1072, -inf
    %1096 = vmax.xlane.f32.xlu0 %v1095
    %v1097 = vpop.xlane.xlu0 %1096
    %v1098 = vsel %vm1085, %v1073, -inf
    %1099 = vmax.xlane.f32.xlu0 %v1098
    %v1100 = vpop.xlane.xlu0 %1099
    %v1101 = vsel %vm1085, %v1074, -inf
    %1102 = vmax.xlane.f32.xlu0 %v1101
    %v1103 = vpop.xlane.xlu0 %1102
    %v1104 = vsel %vm1085, %v1075, -inf
    %1105 = vmax.xlane.f32.xlu0 %v1104
    %v1106 = vpop.xlane.xlu0 %1105
    %v1107 = vsel %vm1085, %v1076, -inf
    %1108 = vmax.xlane.f32.xlu0 %v1107
    %v1109 = vpop.xlane.xlu0 %1108
    %v1110 = vsel %vm1085, %v1077, -inf
    %1111 = vmax.xlane.f32.xlu0 %v1110
    %v1112 = vpop.xlane.xlu0 %1111
    %v1113 = vsel %vm1085, %v1078, -inf
    %1114 = vmax.xlane.f32.xlu0 %v1113
    %v1115 = vpop.xlane.xlu0 %1114
    %v1116 = vsel %vm1085, %v1079, -inf
    %1117 = vmax.xlane.f32.xlu0 %v1116
    %v1118 = vpop.xlane.xlu0 %1117
    %v1119 = vsel %vm1085, %v1080, -inf
    %1120 = vmax.xlane.f32.xlu0 %v1119
    %v1121 = vpop.xlane.xlu0 %1120
    %v1122 = vsel %vm1085, %v1081, -inf
    %1123 = vmax.xlane.f32.xlu0 %v1122
    %v1124 = vpop.xlane.xlu0 %1123
    %v1125 = vsel %vm1085, %v1082, -inf
    %1126 = vmax.xlane.f32.xlu0 %v1125
    %v1127 = vpop.xlane.xlu0 %1126
    %v1128 = vsel %vm1085, %v1083, -inf
    %1129 = vmax.xlane.f32.xlu0 %v1128
    %v1130 = vpop.xlane.xlu0 %1129
    %v1131 = vsel %vm1085, %v1084, -inf
    %1132 = vmax.xlane.f32.xlu0 %v1131
    %v1133 = vpop.xlane.xlu0 %1132
    %v1134 = vsub.f32 %v1069, %v1088
    %v1135 = vsub.f32 %v1070, %v1091
    %v1136 = vsub.f32 %v1071, %v1094
    %v1137 = vsub.f32 %v1072, %v1097
    %v1138 = vsub.f32 %v1073, %v1100
    %v1139 = vsub.f32 %v1074, %v1103
    %v1140 = vsub.f32 %v1075, %v1106
    %v1141 = vsub.f32 %v1076, %v1109
    %v1142 = vsub.f32 %v1077, %v1112
    %v1143 = vsub.f32 %v1078, %v1115
    %v1144 = vsub.f32 %v1079, %v1118
    %v1145 = vsub.f32 %v1080, %v1121
    %v1146 = vsub.f32 %v1081, %v1124
    %v1147 = vsub.f32 %v1082, %v1127
    %v1148 = vsub.f32 %v1083, %v1130
    %v1149 = vsub.f32 %v1084, %v1133
    %v1150 = vmul.f32 %v1134, 1.442695
    %v1151 = vpow.pop %v1150
    %v1152 = vmul.f32 %v1135, 1.442695
    %v1153 = vpow.pop %v1152
    %v1154 = vmul.f32 %v1136, 1.442695
    %v1155 = vpow.pop %v1154
    %v1156 = vmul.f32 %v1137, 1.442695
    %v1157 = vpow.pop %v1156
    %v1158 = vmul.f32 %v1138, 1.442695
    %v1159 = vpow.pop %v1158
    %v1160 = vmul.f32 %v1139, 1.442695
    %v1161 = vpow.pop %v1160
    %v1162 = vmul.f32 %v1140, 1.442695
    %v1163 = vpow.pop %v1162
    %v1164 = vmul.f32 %v1141, 1.442695
    %v1165 = vpow.pop %v1164
    %v1166 = vmul.f32 %v1142, 1.442695
    %v1167 = vpow.pop %v1166
    %v1168 = vmul.f32 %v1143, 1.442695
    %v1169 = vpow.pop %v1168
    %v1170 = vmul.f32 %v1144, 1.442695
    %v1171 = vpow.pop %v1170
    %v1172 = vmul.f32 %v1145, 1.442695
    %v1173 = vpow.pop %v1172
    %v1174 = vmul.f32 %v1146, 1.442695
    %v1175 = vpow.pop %v1174
    %v1176 = vmul.f32 %v1147, 1.442695
    %v1177 = vpow.pop %v1176
    %v1178 = vmul.f32 %v1148, 1.442695
    %v1179 = vpow.pop %v1178
    %v1180 = vmul.f32 %v1149, 1.442695
    %v1181 = vpow.pop %v1180
    %v1182 = vsel %vm1085, %v1151, 0.0
    %1183 = vadd.xlane.f32.xlu0 %v1182
    %v1184 = vpop.xlane.xlu0 %1183
    %v1185 = vsel %vm1085, %v1153, 0.0
    %1186 = vadd.xlane.f32.xlu0 %v1185
    %v1187 = vpop.xlane.xlu0 %1186
    %v1188 = vsel %vm1085, %v1155, 0.0
    %1189 = vadd.xlane.f32.xlu0 %v1188
    %v1190 = vpop.xlane.xlu0 %1189
    %v1191 = vsel %vm1085, %v1157, 0.0
    %1192 = vadd.xlane.f32.xlu0 %v1191
    %v1193 = vpop.xlane.xlu0 %1192
    %v1194 = vsel %vm1085, %v1159, 0.0
    %1195 = vadd.xlane.f32.xlu0 %v1194
    %v1196 = vpop.xlane.xlu0 %1195
    %v1197 = vsel %vm1085, %v1161, 0.0
    %1198 = vadd.xlane.f32.xlu0 %v1197
    %v1199 = vpop.xlane.xlu0 %1198
    %v1200 = vsel %vm1085, %v1163, 0.0
    %1201 = vadd.xlane.f32.xlu0 %v1200
    %v1202 = vpop.xlane.xlu0 %1201
    %v1203 = vsel %vm1085, %v1165, 0.0
    %1204 = vadd.xlane.f32.xlu0 %v1203
    %v1205 = vpop.xlane.xlu0 %1204
    %v1206 = vsel %vm1085, %v1167, 0.0
    %1207 = vadd.xlane.f32.xlu0 %v1206
    %v1208 = vpop.xlane.xlu0 %1207
    %v1209 = vsel %vm1085, %v1169, 0.0
    %1210 = vadd.xlane.f32.xlu0 %v1209
    %v1211 = vpop.xlane.xlu0 %1210
    %v1212 = vsel %vm1085, %v1171, 0.0
    %1213 = vadd.xlane.f32.xlu0 %v1212
    %v1214 = vpop.xlane.xlu0 %1213
    %v1215 = vsel %vm1085, %v1173, 0.0
    %1216 = vadd.xlane.f32.xlu0 %v1215
    %v1217 = vpop.xlane.xlu0 %1216
    %v1218 = vsel %vm1085, %v1175, 0.0
    %1219 = vadd.xlane.f32.xlu0 %v1218
    %v1220 = vpop.xlane.xlu0 %1219
    %v1221 = vsel %vm1085, %v1177, 0.0
    %1222 = vadd.xlane.f32.xlu0 %v1221
    %v1223 = vpop.xlane.xlu0 %1222
    %v1224 = vsel %vm1085, %v1179, 0.0
    %1225 = vadd.xlane.f32.xlu0 %v1224
    %v1226 = vpop.xlane.xlu0 %1225
    %v1227 = vsel %vm1085, %v1181, 0.0
    %1228 = vadd.xlane.f32.xlu0 %v1227
    %v1229 = vpop.xlane.xlu0 %1228
    %v1230 = vrcp.pop %v1184
    %v1231 = vrcp.pop %v1187
    %v1232 = vrcp.pop %v1190
    %v1233 = vrcp.pop %v1193
    %v1234 = vrcp.pop %v1196
    %v1235 = vrcp.pop %v1199
    %v1236 = vrcp.pop %v1202
    %v1237 = vrcp.pop %v1205
    %v1238 = vrcp.pop %v1208
    %v1239 = vrcp.pop %v1211
    %v1240 = vrcp.pop %v1214
    %v1241 = vrcp.pop %v1217
    %v1242 = vrcp.pop %v1220
    %v1243 = vrcp.pop %v1223
    %v1244 = vrcp.pop %v1226
    %v1245 = vrcp.pop %v1229
    %v1246 = vmul.f32 %v1151, %v1230
    %v1247 = vmul.f32 %v1153, %v1231
    %v1248 = vmul.f32 %v1155, %v1232
    %v1249 = vmul.f32 %v1157, %v1233
    %v1250 = vmul.f32 %v1159, %v1234
    %v1251 = vmul.f32 %v1161, %v1235
    %v1252 = vmul.f32 %v1163, %v1236
    %v1253 = vmul.f32 %v1165, %v1237
    %v1254 = vmul.f32 %v1167, %v1238
    %v1255 = vmul.f32 %v1169, %v1239
    %v1256 = vmul.f32 %v1171, %v1240
    %v1257 = vmul.f32 %v1173, %v1241
    %v1258 = vmul.f32 %v1175, %v1242
    %v1259 = vmul.f32 %v1177, %v1243
    %v1260 = vmul.f32 %v1179, %v1244
    %v1261 = vmul.f32 %v1181, %v1245
    %1262 = vrot.lane.b32.xlu0 %v705, 64
    %v1263 = vpop.permute.xlu0 %1262
    %1264 = vrot.lane.b32.xlu0 %v708, 64
    %v1265 = vpop.permute.xlu0 %1264
    %v1269 = vsel %vm1085, %v1246, 0
    %v1272 = vsel %vm1085, %v1247, 0
    %1274 = vmatpush.msra.mxu0 0.0
    %1275 = vmatpush.msra.mxu0 0.0
    %1276 = vmatpush.msra.mxu0 0.0
    %1277 = vmatpush.msra.mxu0 0.0
    %1278 = vmatpush.msra.mxu0 0.0
    %1279 = vmatpush.msra.mxu0 0.0
    %1280 = vmatpush.msra.mxu0 0.0
    %1281 = vmatpush.msra.mxu0 0.0
    %1282 = vmatpush.msra.mxu0 0.0
    %1283 = vmatpush.msra.mxu0 0.0
    %1284 = vmatpush.msra.mxu0 0.0
    %1285 = vmatpush.msra.mxu0 0.0
    %1286 = vmatpush.msra.mxu0 0.0
    %1287 = vmatpush.msra.mxu0 0.0
    %1288 = vmatpush.msra.mxu0 %v1265
    %1289 = vmatpush.msra.mxu0 %v1263
    %1290 = vmatmul.f32.gmra.mxu0 %v1269
    %v1291 = vpop.f32.mrf.mxu0
    %v1292 = vadd.f32 0.0, %v1291
    %1293 = vmatmul.f32.gmra.mxu0 %v1272
    %v1294 = vpop.f32.mrf.mxu0
    %v1295 = vadd.f32 0.0, %v1294
    %1296 = vdwg.mxu0
    %1297 = vrot.lane.b32.xlu0 %v711, 64
    %v1298 = vpop.permute.xlu0 %1297
    %1299 = vrot.lane.b32.xlu0 %v714, 64
    %v1300 = vpop.permute.xlu0 %1299
    %v1304 = vsel %vm1085, %v1248, 0
    %v1307 = vsel %vm1085, %v1249, 0
    %1309 = vmatpush.msra.mxu0 0.0
    %1310 = vmatpush.msra.mxu0 0.0
    %1311 = vmatpush.msra.mxu0 0.0
    %1312 = vmatpush.msra.mxu0 0.0
    %1313 = vmatpush.msra.mxu0 0.0
    %1314 = vmatpush.msra.mxu0 0.0
    %1315 = vmatpush.msra.mxu0 0.0
    %1316 = vmatpush.msra.mxu0 0.0
    %1317 = vmatpush.msra.mxu0 0.0
    %1318 = vmatpush.msra.mxu0 0.0
    %1319 = vmatpush.msra.mxu0 0.0
    %1320 = vmatpush.msra.mxu0 0.0
    %1321 = vmatpush.msra.mxu0 0.0
    %1322 = vmatpush.msra.mxu0 0.0
    %1323 = vmatpush.msra.mxu0 %v1300
    %1324 = vmatpush.msra.mxu0 %v1298
    %1325 = vmatmul.f32.gmra.mxu0 %v1304
    %v1326 = vpop.f32.mrf.mxu0
    %v1327 = vadd.f32 0.0, %v1326
    %1328 = vmatmul.f32.gmra.mxu0 %v1307
    %v1329 = vpop.f32.mrf.mxu0
    %v1330 = vadd.f32 0.0, %v1329
    %1331 = vdwg.mxu0
    %1332 = vrot.lane.b32.xlu0 %v717, 64
    %v1333 = vpop.permute.xlu0 %1332
    %1334 = vrot.lane.b32.xlu0 %v720, 64
    %v1335 = vpop.permute.xlu0 %1334
    %v1339 = vsel %vm1085, %v1250, 0
    %v1342 = vsel %vm1085, %v1251, 0
    %1344 = vmatpush.msra.mxu0 0.0
    %1345 = vmatpush.msra.mxu0 0.0
    %1346 = vmatpush.msra.mxu0 0.0
    %1347 = vmatpush.msra.mxu0 0.0
    %1348 = vmatpush.msra.mxu0 0.0
    %1349 = vmatpush.msra.mxu0 0.0
    %1350 = vmatpush.msra.mxu0 0.0
    %1351 = vmatpush.msra.mxu0 0.0
    %1352 = vmatpush.msra.mxu0 0.0
    %1353 = vmatpush.msra.mxu0 0.0
    %1354 = vmatpush.msra.mxu0 0.0
    %1355 = vmatpush.msra.mxu0 0.0
    %1356 = vmatpush.msra.mxu0 0.0
    %1357 = vmatpush.msra.mxu0 0.0
    %1358 = vmatpush.msra.mxu0 %v1335
    %1359 = vmatpush.msra.mxu0 %v1333
    %1360 = vmatmul.f32.gmra.mxu0 %v1339
    %v1361 = vpop.f32.mrf.mxu0
    %v1362 = vadd.f32 0.0, %v1361
    %1363 = vmatmul.f32.gmra.mxu0 %v1342
    %v1364 = vpop.f32.mrf.mxu0
    %v1365 = vadd.f32 0.0, %v1364
    %1366 = vdwg.mxu0
    %1367 = vrot.lane.b32.xlu0 %v723, 64
    %v1368 = vpop.permute.xlu0 %1367
    %1369 = vrot.lane.b32.xlu0 %v726, 64
    %v1370 = vpop.permute.xlu0 %1369
    %v1374 = vsel %vm1085, %v1252, 0
    %v1377 = vsel %vm1085, %v1253, 0
    %1379 = vmatpush.msra.mxu0 0.0
    %1380 = vmatpush.msra.mxu0 0.0
    %1381 = vmatpush.msra.mxu0 0.0
    %1382 = vmatpush.msra.mxu0 0.0
    %1383 = vmatpush.msra.mxu0 0.0
    %1384 = vmatpush.msra.mxu0 0.0
    %1385 = vmatpush.msra.mxu0 0.0
    %1386 = vmatpush.msra.mxu0 0.0
    %1387 = vmatpush.msra.mxu0 0.0
    %1388 = vmatpush.msra.mxu0 0.0
    %1389 = vmatpush.msra.mxu0 0.0
    %1390 = vmatpush.msra.mxu0 0.0
    %1391 = vmatpush.msra.mxu0 0.0
    %1392 = vmatpush.msra.mxu0 0.0
    %1393 = vmatpush.msra.mxu0 %v1370
    %1394 = vmatpush.msra.mxu0 %v1368
    %1395 = vmatmul.f32.gmra.mxu0 %v1374
    %v1396 = vpop.f32.mrf.mxu0
    %v1397 = vadd.f32 0.0, %v1396
    %1398 = vmatmul.f32.gmra.mxu0 %v1377
    %v1399 = vpop.f32.mrf.mxu0
    %v1400 = vadd.f32 0.0, %v1399
    %1401 = vdwg.mxu0
    %1402 = vrot.lane.b32.xlu0 %v729, 64
    %v1403 = vpop.permute.xlu0 %1402
    %1404 = vrot.lane.b32.xlu0 %v732, 64
    %v1405 = vpop.permute.xlu0 %1404
    %v1409 = vsel %vm1085, %v1254, 0
    %v1412 = vsel %vm1085, %v1255, 0
    %1414 = vmatpush.msra.mxu0 0.0
    %1415 = vmatpush.msra.mxu0 0.0
    %1416 = vmatpush.msra.mxu0 0.0
    %1417 = vmatpush.msra.mxu0 0.0
    %1418 = vmatpush.msra.mxu0 0.0
    %1419 = vmatpush.msra.mxu0 0.0
    %1420 = vmatpush.msra.mxu0 0.0
    %1421 = vmatpush.msra.mxu0 0.0
    %1422 = vmatpush.msra.mxu0 0.0
    %1423 = vmatpush.msra.mxu0 0.0
    %1424 = vmatpush.msra.mxu0 0.0
    %1425 = vmatpush.msra.mxu0 0.0
    %1426 = vmatpush.msra.mxu0 0.0
    %1427 = vmatpush.msra.mxu0 0.0
    %1428 = vmatpush.msra.mxu0 %v1405
    %1429 = vmatpush.msra.mxu0 %v1403
    %1430 = vmatmul.f32.gmra.mxu0 %v1409
    %v1431 = vpop.f32.mrf.mxu0
    %v1432 = vadd.f32 0.0, %v1431
    %1433 = vmatmul.f32.gmra.mxu0 %v1412
    %v1434 = vpop.f32.mrf.mxu0
    %v1435 = vadd.f32 0.0, %v1434
    %1436 = vdwg.mxu0
    %1437 = vrot.lane.b32.xlu0 %v735, 64
    %v1438 = vpop.permute.xlu0 %1437
    %1439 = vrot.lane.b32.xlu0 %v738, 64
    %v1440 = vpop.permute.xlu0 %1439
    %v1444 = vsel %vm1085, %v1256, 0
    %v1447 = vsel %vm1085, %v1257, 0
    %1449 = vmatpush.msra.mxu0 0.0
    %1450 = vmatpush.msra.mxu0 0.0
    %1451 = vmatpush.msra.mxu0 0.0
    %1452 = vmatpush.msra.mxu0 0.0
    %1453 = vmatpush.msra.mxu0 0.0
    %1454 = vmatpush.msra.mxu0 0.0
    %1455 = vmatpush.msra.mxu0 0.0
    %1456 = vmatpush.msra.mxu0 0.0
    %1457 = vmatpush.msra.mxu0 0.0
    %1458 = vmatpush.msra.mxu0 0.0
    %1459 = vmatpush.msra.mxu0 0.0
    %1460 = vmatpush.msra.mxu0 0.0
    %1461 = vmatpush.msra.mxu0 0.0
    %1462 = vmatpush.msra.mxu0 0.0
    %1463 = vmatpush.msra.mxu0 %v1440
    %1464 = vmatpush.msra.mxu0 %v1438
    %1465 = vmatmul.f32.gmra.mxu0 %v1444
    %v1466 = vpop.f32.mrf.mxu0
    %v1467 = vadd.f32 0.0, %v1466
    %1468 = vmatmul.f32.gmra.mxu0 %v1447
    %v1469 = vpop.f32.mrf.mxu0
    %v1470 = vadd.f32 0.0, %v1469
    %1471 = vdwg.mxu0
    %1472 = vrot.lane.b32.xlu0 %v741, 64
    %v1473 = vpop.permute.xlu0 %1472
    %1474 = vrot.lane.b32.xlu0 %v744, 64
    %v1475 = vpop.permute.xlu0 %1474
    %v1479 = vsel %vm1085, %v1258, 0
    %v1482 = vsel %vm1085, %v1259, 0
    %1484 = vmatpush.msra.mxu0 0.0
    %1485 = vmatpush.msra.mxu0 0.0
    %1486 = vmatpush.msra.mxu0 0.0
    %1487 = vmatpush.msra.mxu0 0.0
    %1488 = vmatpush.msra.mxu0 0.0
    %1489 = vmatpush.msra.mxu0 0.0
    %1490 = vmatpush.msra.mxu0 0.0
    %1491 = vmatpush.msra.mxu0 0.0
    %1492 = vmatpush.msra.mxu0 0.0
    %1493 = vmatpush.msra.mxu0 0.0
    %1494 = vmatpush.msra.mxu0 0.0
    %1495 = vmatpush.msra.mxu0 0.0
    %1496 = vmatpush.msra.mxu0 0.0
    %1497 = vmatpush.msra.mxu0 0.0
    %1498 = vmatpush.msra.mxu0 %v1475
    %1499 = vmatpush.msra.mxu0 %v1473
    %1500 = vmatmul.f32.gmra.mxu0 %v1479
    %v1501 = vpop.f32.mrf.mxu0
    %v1502 = vadd.f32 0.0, %v1501
    %1503 = vmatmul.f32.gmra.mxu0 %v1482
    %v1504 = vpop.f32.mrf.mxu0
    %v1505 = vadd.f32 0.0, %v1504
    %1506 = vdwg.mxu0
    %1507 = vrot.lane.b32.xlu0 %v747, 64
    %v1508 = vpop.permute.xlu0 %1507
    %1509 = vrot.lane.b32.xlu0 %v750, 64
    %v1510 = vpop.permute.xlu0 %1509
    %v1514 = vsel %vm1085, %v1260, 0
    %v1517 = vsel %vm1085, %v1261, 0
    %1519 = vmatpush.msra.mxu0 0.0
    %1520 = vmatpush.msra.mxu0 0.0
    %1521 = vmatpush.msra.mxu0 0.0
    %1522 = vmatpush.msra.mxu0 0.0
    %1523 = vmatpush.msra.mxu0 0.0
    %1524 = vmatpush.msra.mxu0 0.0
    %1525 = vmatpush.msra.mxu0 0.0
    %1526 = vmatpush.msra.mxu0 0.0
    %1527 = vmatpush.msra.mxu0 0.0
    %1528 = vmatpush.msra.mxu0 0.0
    %1529 = vmatpush.msra.mxu0 0.0
    %1530 = vmatpush.msra.mxu0 0.0
    %1531 = vmatpush.msra.mxu0 0.0
    %1532 = vmatpush.msra.mxu0 0.0
    %1533 = vmatpush.msra.mxu0 %v1510
    %1534 = vmatpush.msra.mxu0 %v1508
    %1535 = vmatmul.f32.gmra.mxu0 %v1514
    %v1536 = vpop.f32.mrf.mxu0
    %v1537 = vadd.f32 0.0, %v1536
    %1538 = vmatmul.f32.gmra.mxu0 %v1517
    %v1539 = vpop.f32.mrf.mxu0
    %v1540 = vadd.f32 0.0, %v1539
    %1541 = vdwg.mxu0
    %1542 = vrot.lane.b32.xlu0 %v705, 120
    %v1543 = vpop.permute.xlu0 %1542
    %1544 = vrot.lane.b32.xlu0 %v708, 120
    %v1545 = vpop.permute.xlu0 %1544
    %1546 = vrot.lane.b32.xlu0 %v705, 88
    %v1547 = vpop.permute.xlu0 %1546
    %1548 = vrot.lane.b32.xlu0 %v708, 88
    %v1549 = vpop.permute.xlu0 %1548
    %v1550 = vsel %vm762, %v1543, 0
    %v1552 = vsel %vm762, %v1545, 0
    %v1554 = vsel %vm762, %v1547, 0
    %v1556 = vsel %vm762, %v1549, 0
    %1558 = vmatpush.xpose.msra.mxu0 0.0
    %1559 = vmatpush.xpose.msra.mxu0 0.0
    %1560 = vmatpush.xpose.msra.mxu0 0.0
    %1561 = vmatpush.xpose.msra.mxu0 0.0
    %1562 = vmatpush.xpose.msra.mxu0 0.0
    %1563 = vmatpush.xpose.msra.mxu0 0.0
    %1564 = vmatpush.xpose.msra.mxu0 0.0
    %1565 = vmatpush.xpose.msra.mxu0 0.0
    %1566 = vmatpush.xpose.msra.mxu0 0.0
    %1567 = vmatpush.xpose.msra.mxu0 0.0
    %1568 = vmatpush.xpose.msra.mxu0 0.0
    %1569 = vmatpush.xpose.msra.mxu0 0.0
    %1570 = vmatpush.xpose.msra.mxu0 0.0
    %1571 = vmatpush.xpose.msra.mxu0 0.0
    %1572 = vmatpush.xpose.msra.mxu0 %v1556
    %1573 = vmatpush.xpose.msra.mxu0 %v1554
    %1574 = vmatmul.f32.gmra.mxu0 %v1550
    %v1575 = vpop.f32.mrf.mxu0
    %v1576 = vadd.f32 0.0, %v1575
    %1577 = vmatmul.f32.gmra.mxu0 %v1552
    %v1578 = vpop.f32.mrf.mxu0
    %v1579 = vadd.f32 0.0, %v1578
    %1580 = vdwg.mxu0
    %1581 = vrot.lane.b32.xlu0 %v711, 120
    %v1582 = vpop.permute.xlu0 %1581
    %1583 = vrot.lane.b32.xlu0 %v714, 120
    %v1584 = vpop.permute.xlu0 %1583
    %1585 = vrot.lane.b32.xlu0 %v711, 88
    %v1586 = vpop.permute.xlu0 %1585
    %1587 = vrot.lane.b32.xlu0 %v714, 88
    %v1588 = vpop.permute.xlu0 %1587
    %v1589 = vsel %vm762, %v1582, 0
    %v1591 = vsel %vm762, %v1584, 0
    %v1593 = vsel %vm762, %v1586, 0
    %v1595 = vsel %vm762, %v1588, 0
    %1597 = vmatpush.xpose.msra.mxu0 0.0
    %1598 = vmatpush.xpose.msra.mxu0 0.0
    %1599 = vmatpush.xpose.msra.mxu0 0.0
    %1600 = vmatpush.xpose.msra.mxu0 0.0
    %1601 = vmatpush.xpose.msra.mxu0 0.0
    %1602 = vmatpush.xpose.msra.mxu0 0.0
    %1603 = vmatpush.xpose.msra.mxu0 0.0
    %1604 = vmatpush.xpose.msra.mxu0 0.0
    %1605 = vmatpush.xpose.msra.mxu0 0.0
    %1606 = vmatpush.xpose.msra.mxu0 0.0
    %1607 = vmatpush.xpose.msra.mxu0 0.0
    %1608 = vmatpush.xpose.msra.mxu0 0.0
    %1609 = vmatpush.xpose.msra.mxu0 0.0
    %1610 = vmatpush.xpose.msra.mxu0 0.0
    %1611 = vmatpush.xpose.msra.mxu0 %v1595
    %1612 = vmatpush.xpose.msra.mxu0 %v1593
    %1613 = vmatmul.f32.gmra.mxu0 %v1589
    %v1614 = vpop.f32.mrf.mxu0
    %v1615 = vadd.f32 0.0, %v1614
    %1616 = vmatmul.f32.gmra.mxu0 %v1591
    %v1617 = vpop.f32.mrf.mxu0
    %v1618 = vadd.f32 0.0, %v1617
    %1619 = vdwg.mxu0
    %1620 = vrot.lane.b32.xlu0 %v717, 120
    %v1621 = vpop.permute.xlu0 %1620
    %1622 = vrot.lane.b32.xlu0 %v720, 120
    %v1623 = vpop.permute.xlu0 %1622
    %1624 = vrot.lane.b32.xlu0 %v717, 88
    %v1625 = vpop.permute.xlu0 %1624
    %1626 = vrot.lane.b32.xlu0 %v720, 88
    %v1627 = vpop.permute.xlu0 %1626
    %v1628 = vsel %vm762, %v1621, 0
    %v1630 = vsel %vm762, %v1623, 0
    %v1632 = vsel %vm762, %v1625, 0
    %v1634 = vsel %vm762, %v1627, 0
    %1636 = vmatpush.xpose.msra.mxu0 0.0
    %1637 = vmatpush.xpose.msra.mxu0 0.0
    %1638 = vmatpush.xpose.msra.mxu0 0.0
    %1639 = vmatpush.xpose.msra.mxu0 0.0
    %1640 = vmatpush.xpose.msra.mxu0 0.0
    %1641 = vmatpush.xpose.msra.mxu0 0.0
    %1642 = vmatpush.xpose.msra.mxu0 0.0
    %1643 = vmatpush.xpose.msra.mxu0 0.0
    %1644 = vmatpush.xpose.msra.mxu0 0.0
    %1645 = vmatpush.xpose.msra.mxu0 0.0
    %1646 = vmatpush.xpose.msra.mxu0 0.0
    %1647 = vmatpush.xpose.msra.mxu0 0.0
    %1648 = vmatpush.xpose.msra.mxu0 0.0
    %1649 = vmatpush.xpose.msra.mxu0 0.0
    %1650 = vmatpush.xpose.msra.mxu0 %v1634
    %1651 = vmatpush.xpose.msra.mxu0 %v1632
    %1652 = vmatmul.f32.gmra.mxu0 %v1628
    %v1653 = vpop.f32.mrf.mxu0
    %v1654 = vadd.f32 0.0, %v1653
    %1655 = vmatmul.f32.gmra.mxu0 %v1630
    %v1656 = vpop.f32.mrf.mxu0
    %v1657 = vadd.f32 0.0, %v1656
    %1658 = vdwg.mxu0
    %1659 = vrot.lane.b32.xlu0 %v723, 120
    %v1660 = vpop.permute.xlu0 %1659
    %1661 = vrot.lane.b32.xlu0 %v726, 120
    %v1662 = vpop.permute.xlu0 %1661
    %1663 = vrot.lane.b32.xlu0 %v723, 88
    %v1664 = vpop.permute.xlu0 %1663
    %1665 = vrot.lane.b32.xlu0 %v726, 88
    %v1666 = vpop.permute.xlu0 %1665
    %v1667 = vsel %vm762, %v1660, 0
    %v1669 = vsel %vm762, %v1662, 0
    %v1671 = vsel %vm762, %v1664, 0
    %v1673 = vsel %vm762, %v1666, 0
    %1675 = vmatpush.xpose.msra.mxu0 0.0
    %1676 = vmatpush.xpose.msra.mxu0 0.0
    %1677 = vmatpush.xpose.msra.mxu0 0.0
    %1678 = vmatpush.xpose.msra.mxu0 0.0
    %1679 = vmatpush.xpose.msra.mxu0 0.0
    %1680 = vmatpush.xpose.msra.mxu0 0.0
    %1681 = vmatpush.xpose.msra.mxu0 0.0
    %1682 = vmatpush.xpose.msra.mxu0 0.0
    %1683 = vmatpush.xpose.msra.mxu0 0.0
    %1684 = vmatpush.xpose.msra.mxu0 0.0
    %1685 = vmatpush.xpose.msra.mxu0 0.0
    %1686 = vmatpush.xpose.msra.mxu0 0.0
    %1687 = vmatpush.xpose.msra.mxu0 0.0
    %1688 = vmatpush.xpose.msra.mxu0 0.0
    %1689 = vmatpush.xpose.msra.mxu0 %v1673
    %1690 = vmatpush.xpose.msra.mxu0 %v1671
    %1691 = vmatmul.f32.gmra.mxu0 %v1667
    %v1692 = vpop.f32.mrf.mxu0
    %v1693 = vadd.f32 0.0, %v1692
    %1694 = vmatmul.f32.gmra.mxu0 %v1669
    %v1695 = vpop.f32.mrf.mxu0
    %v1696 = vadd.f32 0.0, %v1695
    %1697 = vdwg.mxu0
    %1698 = vrot.lane.b32.xlu0 %v729, 120
    %v1699 = vpop.permute.xlu0 %1698
    %1700 = vrot.lane.b32.xlu0 %v732, 120
    %v1701 = vpop.permute.xlu0 %1700
    %1702 = vrot.lane.b32.xlu0 %v729, 88
    %v1703 = vpop.permute.xlu0 %1702
    %1704 = vrot.lane.b32.xlu0 %v732, 88
    %v1705 = vpop.permute.xlu0 %1704
    %v1706 = vsel %vm762, %v1699, 0
    %v1708 = vsel %vm762, %v1701, 0
    %v1710 = vsel %vm762, %v1703, 0
    %v1712 = vsel %vm762, %v1705, 0
    %1714 = vmatpush.xpose.msra.mxu0 0.0
    %1715 = vmatpush.xpose.msra.mxu0 0.0
    %1716 = vmatpush.xpose.msra.mxu0 0.0
    %1717 = vmatpush.xpose.msra.mxu0 0.0
    %1718 = vmatpush.xpose.msra.mxu0 0.0
    %1719 = vmatpush.xpose.msra.mxu0 0.0
    %1720 = vmatpush.xpose.msra.mxu0 0.0
    %1721 = vmatpush.xpose.msra.mxu0 0.0
    %1722 = vmatpush.xpose.msra.mxu0 0.0
    %1723 = vmatpush.xpose.msra.mxu0 0.0
    %1724 = vmatpush.xpose.msra.mxu0 0.0
    %1725 = vmatpush.xpose.msra.mxu0 0.0
    %1726 = vmatpush.xpose.msra.mxu0 0.0
    %1727 = vmatpush.xpose.msra.mxu0 0.0
    %1728 = vmatpush.xpose.msra.mxu0 %v1712
    %1729 = vmatpush.xpose.msra.mxu0 %v1710
    %1730 = vmatmul.f32.gmra.mxu0 %v1706
    %v1731 = vpop.f32.mrf.mxu0
    %v1732 = vadd.f32 0.0, %v1731
    %1733 = vmatmul.f32.gmra.mxu0 %v1708
    %v1734 = vpop.f32.mrf.mxu0
    %v1735 = vadd.f32 0.0, %v1734
    %1736 = vdwg.mxu0
    %1737 = vrot.lane.b32.xlu0 %v735, 120
    %v1738 = vpop.permute.xlu0 %1737
    %1739 = vrot.lane.b32.xlu0 %v738, 120
    %v1740 = vpop.permute.xlu0 %1739
    %1741 = vrot.lane.b32.xlu0 %v735, 88
    %v1742 = vpop.permute.xlu0 %1741
    %1743 = vrot.lane.b32.xlu0 %v738, 88
    %v1744 = vpop.permute.xlu0 %1743
    %v1745 = vsel %vm762, %v1738, 0
    %v1747 = vsel %vm762, %v1740, 0
    %v1749 = vsel %vm762, %v1742, 0
    %v1751 = vsel %vm762, %v1744, 0
    %1753 = vmatpush.xpose.msra.mxu0 0.0
    %1754 = vmatpush.xpose.msra.mxu0 0.0
    %1755 = vmatpush.xpose.msra.mxu0 0.0
    %1756 = vmatpush.xpose.msra.mxu0 0.0
    %1757 = vmatpush.xpose.msra.mxu0 0.0
    %1758 = vmatpush.xpose.msra.mxu0 0.0
    %1759 = vmatpush.xpose.msra.mxu0 0.0
    %1760 = vmatpush.xpose.msra.mxu0 0.0
    %1761 = vmatpush.xpose.msra.mxu0 0.0
    %1762 = vmatpush.xpose.msra.mxu0 0.0
    %1763 = vmatpush.xpose.msra.mxu0 0.0
    %1764 = vmatpush.xpose.msra.mxu0 0.0
    %1765 = vmatpush.xpose.msra.mxu0 0.0
    %1766 = vmatpush.xpose.msra.mxu0 0.0
    %1767 = vmatpush.xpose.msra.mxu0 %v1751
    %1768 = vmatpush.xpose.msra.mxu0 %v1749
    %1769 = vmatmul.f32.gmra.mxu0 %v1745
    %v1770 = vpop.f32.mrf.mxu0
    %v1771 = vadd.f32 0.0, %v1770
    %1772 = vmatmul.f32.gmra.mxu0 %v1747
    %v1773 = vpop.f32.mrf.mxu0
    %v1774 = vadd.f32 0.0, %v1773
    %1775 = vdwg.mxu0
    %1776 = vrot.lane.b32.xlu0 %v741, 120
    %v1777 = vpop.permute.xlu0 %1776
    %1778 = vrot.lane.b32.xlu0 %v744, 120
    %v1779 = vpop.permute.xlu0 %1778
    %1780 = vrot.lane.b32.xlu0 %v741, 88
    %v1781 = vpop.permute.xlu0 %1780
    %1782 = vrot.lane.b32.xlu0 %v744, 88
    %v1783 = vpop.permute.xlu0 %1782
    %v1784 = vsel %vm762, %v1777, 0
    %v1786 = vsel %vm762, %v1779, 0
    %v1788 = vsel %vm762, %v1781, 0
    %v1790 = vsel %vm762, %v1783, 0
    %1792 = vmatpush.xpose.msra.mxu0 0.0
    %1793 = vmatpush.xpose.msra.mxu0 0.0
    %1794 = vmatpush.xpose.msra.mxu0 0.0
    %1795 = vmatpush.xpose.msra.mxu0 0.0
    %1796 = vmatpush.xpose.msra.mxu0 0.0
    %1797 = vmatpush.xpose.msra.mxu0 0.0
    %1798 = vmatpush.xpose.msra.mxu0 0.0
    %1799 = vmatpush.xpose.msra.mxu0 0.0
    %1800 = vmatpush.xpose.msra.mxu0 0.0
    %1801 = vmatpush.xpose.msra.mxu0 0.0
    %1802 = vmatpush.xpose.msra.mxu0 0.0
    %1803 = vmatpush.xpose.msra.mxu0 0.0
    %1804 = vmatpush.xpose.msra.mxu0 0.0
    %1805 = vmatpush.xpose.msra.mxu0 0.0
    %1806 = vmatpush.xpose.msra.mxu0 %v1790
    %1807 = vmatpush.xpose.msra.mxu0 %v1788
    %1808 = vmatmul.f32.gmra.mxu0 %v1784
    %v1809 = vpop.f32.mrf.mxu0
    %v1810 = vadd.f32 0.0, %v1809
    %1811 = vmatmul.f32.gmra.mxu0 %v1786
    %v1812 = vpop.f32.mrf.mxu0
    %v1813 = vadd.f32 0.0, %v1812
    %1814 = vdwg.mxu0
    %1815 = vrot.lane.b32.xlu0 %v747, 120
    %v1816 = vpop.permute.xlu0 %1815
    %1817 = vrot.lane.b32.xlu0 %v750, 120
    %v1818 = vpop.permute.xlu0 %1817
    %1819 = vrot.lane.b32.xlu0 %v747, 88
    %v1820 = vpop.permute.xlu0 %1819
    %1821 = vrot.lane.b32.xlu0 %v750, 88
    %v1822 = vpop.permute.xlu0 %1821
    %v1823 = vsel %vm762, %v1816, 0
    %v1825 = vsel %vm762, %v1818, 0
    %v1827 = vsel %vm762, %v1820, 0
    %v1829 = vsel %vm762, %v1822, 0
    %1831 = vmatpush.xpose.msra.mxu0 0.0
    %1832 = vmatpush.xpose.msra.mxu0 0.0
    %1833 = vmatpush.xpose.msra.mxu0 0.0
    %1834 = vmatpush.xpose.msra.mxu0 0.0
    %1835 = vmatpush.xpose.msra.mxu0 0.0
    %1836 = vmatpush.xpose.msra.mxu0 0.0
    %1837 = vmatpush.xpose.msra.mxu0 0.0
    %1838 = vmatpush.xpose.msra.mxu0 0.0
    %1839 = vmatpush.xpose.msra.mxu0 0.0
    %1840 = vmatpush.xpose.msra.mxu0 0.0
    %1841 = vmatpush.xpose.msra.mxu0 0.0
    %1842 = vmatpush.xpose.msra.mxu0 0.0
    %1843 = vmatpush.xpose.msra.mxu0 0.0
    %1844 = vmatpush.xpose.msra.mxu0 0.0
    %1845 = vmatpush.xpose.msra.mxu0 %v1829
    %1846 = vmatpush.xpose.msra.mxu0 %v1827
    %1847 = vmatmul.f32.gmra.mxu0 %v1823
    %v1848 = vpop.f32.mrf.mxu0
    %v1849 = vadd.f32 0.0, %v1848
    %1850 = vmatmul.f32.gmra.mxu0 %v1825
    %v1851 = vpop.f32.mrf.mxu0
    %v1852 = vadd.f32 0.0, %v1851
    %1853 = vdwg.mxu0
    %v1854 = vmul.f32 %v1576, 0.35355338
    %v1855 = vmul.f32 %v1579, 0.35355338
    %v1856 = vmul.f32 %v1615, 0.35355338
    %v1857 = vmul.f32 %v1618, 0.35355338
    %v1858 = vmul.f32 %v1654, 0.35355338
    %v1859 = vmul.f32 %v1657, 0.35355338
    %v1860 = vmul.f32 %v1693, 0.35355338
    %v1861 = vmul.f32 %v1696, 0.35355338
    %v1862 = vmul.f32 %v1732, 0.35355338
    %v1863 = vmul.f32 %v1735, 0.35355338
    %v1864 = vmul.f32 %v1771, 0.35355338
    %v1865 = vmul.f32 %v1774, 0.35355338
    %v1866 = vmul.f32 %v1810, 0.35355338
    %v1867 = vmul.f32 %v1813, 0.35355338
    %v1868 = vmul.f32 %v1849, 0.35355338
    %v1869 = vmul.f32 %v1852, 0.35355338
    %v1870 = vadd.f32 %v1854, %v240
    %v1871 = vadd.f32 %v1855, %v240
    %v1872 = vadd.f32 %v1856, %v240
    %v1873 = vadd.f32 %v1857, %v240
    %v1874 = vadd.f32 %v1858, %v240
    %v1875 = vadd.f32 %v1859, %v240
    %v1876 = vadd.f32 %v1860, %v240
    %v1877 = vadd.f32 %v1861, %v240
    %v1878 = vadd.f32 %v1862, %v240
    %v1879 = vadd.f32 %v1863, %v240
    %v1880 = vadd.f32 %v1864, %v240
    %v1881 = vadd.f32 %v1865, %v240
    %v1882 = vadd.f32 %v1866, %v240
    %v1883 = vadd.f32 %v1867, %v240
    %v1884 = vadd.f32 %v1868, %v240
    %v1885 = vadd.f32 %v1869, %v240
    %v1886 = vsel %vm1085, %v1870, -inf
    %1887 = vmax.xlane.f32.xlu0 %v1886
    %v1888 = vpop.xlane.xlu0 %1887
    %v1889 = vsel %vm1085, %v1871, -inf
    %1890 = vmax.xlane.f32.xlu0 %v1889
    %v1891 = vpop.xlane.xlu0 %1890
    %v1892 = vsel %vm1085, %v1872, -inf
    %1893 = vmax.xlane.f32.xlu0 %v1892
    %v1894 = vpop.xlane.xlu0 %1893
    %v1895 = vsel %vm1085, %v1873, -inf
    %1896 = vmax.xlane.f32.xlu0 %v1895
    %v1897 = vpop.xlane.xlu0 %1896
    %v1898 = vsel %vm1085, %v1874, -inf
    %1899 = vmax.xlane.f32.xlu0 %v1898
    %v1900 = vpop.xlane.xlu0 %1899
    %v1901 = vsel %vm1085, %v1875, -inf
    %1902 = vmax.xlane.f32.xlu0 %v1901
    %v1903 = vpop.xlane.xlu0 %1902
    %v1904 = vsel %vm1085, %v1876, -inf
    %1905 = vmax.xlane.f32.xlu0 %v1904
    %v1906 = vpop.xlane.xlu0 %1905
    %v1907 = vsel %vm1085, %v1877, -inf
    %1908 = vmax.xlane.f32.xlu0 %v1907
    %v1909 = vpop.xlane.xlu0 %1908
    %v1910 = vsel %vm1085, %v1878, -inf
    %1911 = vmax.xlane.f32.xlu0 %v1910
    %v1912 = vpop.xlane.xlu0 %1911
    %v1913 = vsel %vm1085, %v1879, -inf
    %1914 = vmax.xlane.f32.xlu0 %v1913
    %v1915 = vpop.xlane.xlu0 %1914
    %v1916 = vsel %vm1085, %v1880, -inf
    %1917 = vmax.xlane.f32.xlu0 %v1916
    %v1918 = vpop.xlane.xlu0 %1917
    %v1919 = vsel %vm1085, %v1881, -inf
    %1920 = vmax.xlane.f32.xlu0 %v1919
    %v1921 = vpop.xlane.xlu0 %1920
    %v1922 = vsel %vm1085, %v1882, -inf
    %1923 = vmax.xlane.f32.xlu0 %v1922
    %v1924 = vpop.xlane.xlu0 %1923
    %v1925 = vsel %vm1085, %v1883, -inf
    %1926 = vmax.xlane.f32.xlu0 %v1925
    %v1927 = vpop.xlane.xlu0 %1926
    %v1928 = vsel %vm1085, %v1884, -inf
    %1929 = vmax.xlane.f32.xlu0 %v1928
    %v1930 = vpop.xlane.xlu0 %1929
    %v1931 = vsel %vm1085, %v1885, -inf
    %1932 = vmax.xlane.f32.xlu0 %v1931
    %v1933 = vpop.xlane.xlu0 %1932
    %v1934 = vsub.f32 %v1870, %v1888
    %v1935 = vsub.f32 %v1871, %v1891
    %v1936 = vsub.f32 %v1872, %v1894
    %v1937 = vsub.f32 %v1873, %v1897
    %v1938 = vsub.f32 %v1874, %v1900
    %v1939 = vsub.f32 %v1875, %v1903
    %v1940 = vsub.f32 %v1876, %v1906
    %v1941 = vsub.f32 %v1877, %v1909
    %v1942 = vsub.f32 %v1878, %v1912
    %v1943 = vsub.f32 %v1879, %v1915
    %v1944 = vsub.f32 %v1880, %v1918
    %v1945 = vsub.f32 %v1881, %v1921
    %v1946 = vsub.f32 %v1882, %v1924
    %v1947 = vsub.f32 %v1883, %v1927
    %v1948 = vsub.f32 %v1884, %v1930
    %v1949 = vsub.f32 %v1885, %v1933
    %v1950 = vmul.f32 %v1934, 1.442695
    %v1951 = vpow.pop %v1950
    %v1952 = vmul.f32 %v1935, 1.442695
    %v1953 = vpow.pop %v1952
    %v1954 = vmul.f32 %v1936, 1.442695
    %v1955 = vpow.pop %v1954
    %v1956 = vmul.f32 %v1937, 1.442695
    %v1957 = vpow.pop %v1956
    %v1958 = vmul.f32 %v1938, 1.442695
    %v1959 = vpow.pop %v1958
    %v1960 = vmul.f32 %v1939, 1.442695
    %v1961 = vpow.pop %v1960
    %v1962 = vmul.f32 %v1940, 1.442695
    %v1963 = vpow.pop %v1962
    %v1964 = vmul.f32 %v1941, 1.442695
    %v1965 = vpow.pop %v1964
    %v1966 = vmul.f32 %v1942, 1.442695
    %v1967 = vpow.pop %v1966
    %v1968 = vmul.f32 %v1943, 1.442695
    %v1969 = vpow.pop %v1968
    %v1970 = vmul.f32 %v1944, 1.442695
    %v1971 = vpow.pop %v1970
    %v1972 = vmul.f32 %v1945, 1.442695
    %v1973 = vpow.pop %v1972
    %v1974 = vmul.f32 %v1946, 1.442695
    %v1975 = vpow.pop %v1974
    %v1976 = vmul.f32 %v1947, 1.442695
    %v1977 = vpow.pop %v1976
    %v1978 = vmul.f32 %v1948, 1.442695
    %v1979 = vpow.pop %v1978
    %v1980 = vmul.f32 %v1949, 1.442695
    %v1981 = vpow.pop %v1980
    %v1982 = vsel %vm1085, %v1951, 0.0
    %1983 = vadd.xlane.f32.xlu0 %v1982
    %v1984 = vpop.xlane.xlu0 %1983
    %v1985 = vsel %vm1085, %v1953, 0.0
    %1986 = vadd.xlane.f32.xlu0 %v1985
    %v1987 = vpop.xlane.xlu0 %1986
    %v1988 = vsel %vm1085, %v1955, 0.0
    %1989 = vadd.xlane.f32.xlu0 %v1988
    %v1990 = vpop.xlane.xlu0 %1989
    %v1991 = vsel %vm1085, %v1957, 0.0
    %1992 = vadd.xlane.f32.xlu0 %v1991
    %v1993 = vpop.xlane.xlu0 %1992
    %v1994 = vsel %vm1085, %v1959, 0.0
    %1995 = vadd.xlane.f32.xlu0 %v1994
    %v1996 = vpop.xlane.xlu0 %1995
    %v1997 = vsel %vm1085, %v1961, 0.0
    %1998 = vadd.xlane.f32.xlu0 %v1997
    %v1999 = vpop.xlane.xlu0 %1998
    %v2000 = vsel %vm1085, %v1963, 0.0
    %2001 = vadd.xlane.f32.xlu0 %v2000
    %v2002 = vpop.xlane.xlu0 %2001
    %v2003 = vsel %vm1085, %v1965, 0.0
    %2004 = vadd.xlane.f32.xlu0 %v2003
    %v2005 = vpop.xlane.xlu0 %2004
    %v2006 = vsel %vm1085, %v1967, 0.0
    %2007 = vadd.xlane.f32.xlu0 %v2006
    %v2008 = vpop.xlane.xlu0 %2007
    %v2009 = vsel %vm1085, %v1969, 0.0
    %2010 = vadd.xlane.f32.xlu0 %v2009
    %v2011 = vpop.xlane.xlu0 %2010
    %v2012 = vsel %vm1085, %v1971, 0.0
    %2013 = vadd.xlane.f32.xlu0 %v2012
    %v2014 = vpop.xlane.xlu0 %2013
    %v2015 = vsel %vm1085, %v1973, 0.0
    %2016 = vadd.xlane.f32.xlu0 %v2015
    %v2017 = vpop.xlane.xlu0 %2016
    %v2018 = vsel %vm1085, %v1975, 0.0
    %2019 = vadd.xlane.f32.xlu0 %v2018
    %v2020 = vpop.xlane.xlu0 %2019
    %v2021 = vsel %vm1085, %v1977, 0.0
    %2022 = vadd.xlane.f32.xlu0 %v2021
    %v2023 = vpop.xlane.xlu0 %2022
    %v2024 = vsel %vm1085, %v1979, 0.0
    %2025 = vadd.xlane.f32.xlu0 %v2024
    %v2026 = vpop.xlane.xlu0 %2025
    %v2027 = vsel %vm1085, %v1981, 0.0
    %2028 = vadd.xlane.f32.xlu0 %v2027
    %v2029 = vpop.xlane.xlu0 %2028
    %v2030 = vrcp.pop %v1984
    %v2031 = vrcp.pop %v1987
    %v2032 = vrcp.pop %v1990
    %v2033 = vrcp.pop %v1993
    %v2034 = vrcp.pop %v1996
    %v2035 = vrcp.pop %v1999
    %v2036 = vrcp.pop %v2002
    %v2037 = vrcp.pop %v2005
    %v2038 = vrcp.pop %v2008
    %v2039 = vrcp.pop %v2011
    %v2040 = vrcp.pop %v2014
    %v2041 = vrcp.pop %v2017
    %v2042 = vrcp.pop %v2020
    %v2043 = vrcp.pop %v2023
    %v2044 = vrcp.pop %v2026
    %v2045 = vrcp.pop %v2029
    %v2046 = vmul.f32 %v1951, %v2030
    %v2047 = vmul.f32 %v1953, %v2031
    %v2048 = vmul.f32 %v1955, %v2032
    %v2049 = vmul.f32 %v1957, %v2033
    %v2050 = vmul.f32 %v1959, %v2034
    %v2051 = vmul.f32 %v1961, %v2035
    %v2052 = vmul.f32 %v1963, %v2036
    %v2053 = vmul.f32 %v1965, %v2037
    %v2054 = vmul.f32 %v1967, %v2038
    %v2055 = vmul.f32 %v1969, %v2039
    %v2056 = vmul.f32 %v1971, %v2040
    %v2057 = vmul.f32 %v1973, %v2041
    %v2058 = vmul.f32 %v1975, %v2042
    %v2059 = vmul.f32 %v1977, %v2043
    %v2060 = vmul.f32 %v1979, %v2044
    %v2061 = vmul.f32 %v1981, %v2045
    %2062 = vrot.lane.b32.xlu0 %v705, 56
    %v2063 = vpop.permute.xlu0 %2062
    %2064 = vrot.lane.b32.xlu0 %v708, 56
    %v2065 = vpop.permute.xlu0 %2064
    %v2069 = vsel %vm1085, %v2046, 0
    %v2072 = vsel %vm1085, %v2047, 0
    %2074 = vmatpush.msra.mxu0 0.0
    %2075 = vmatpush.msra.mxu0 0.0
    %2076 = vmatpush.msra.mxu0 0.0
    %2077 = vmatpush.msra.mxu0 0.0
    %2078 = vmatpush.msra.mxu0 0.0
    %2079 = vmatpush.msra.mxu0 0.0
    %2080 = vmatpush.msra.mxu0 0.0
    %2081 = vmatpush.msra.mxu0 0.0
    %2082 = vmatpush.msra.mxu0 0.0
    %2083 = vmatpush.msra.mxu0 0.0
    %2084 = vmatpush.msra.mxu0 0.0
    %2085 = vmatpush.msra.mxu0 0.0
    %2086 = vmatpush.msra.mxu0 0.0
    %2087 = vmatpush.msra.mxu0 0.0
    %2088 = vmatpush.msra.mxu0 %v2065
    %2089 = vmatpush.msra.mxu0 %v2063
    %2090 = vmatmul.f32.gmra.mxu0 %v2069
    %v2091 = vpop.f32.mrf.mxu0
    %v2092 = vadd.f32 0.0, %v2091
    %2093 = vmatmul.f32.gmra.mxu0 %v2072
    %v2094 = vpop.f32.mrf.mxu0
    %v2095 = vadd.f32 0.0, %v2094
    %2096 = vdwg.mxu0
    %2097 = vrot.lane.b32.xlu0 %v711, 56
    %v2098 = vpop.permute.xlu0 %2097
    %2099 = vrot.lane.b32.xlu0 %v714, 56
    %v2100 = vpop.permute.xlu0 %2099
    %v2104 = vsel %vm1085, %v2048, 0
    %v2107 = vsel %vm1085, %v2049, 0
    %2109 = vmatpush.msra.mxu0 0.0
    %2110 = vmatpush.msra.mxu0 0.0
    %2111 = vmatpush.msra.mxu0 0.0
    %2112 = vmatpush.msra.mxu0 0.0
    %2113 = vmatpush.msra.mxu0 0.0
    %2114 = vmatpush.msra.mxu0 0.0
    %2115 = vmatpush.msra.mxu0 0.0
    %2116 = vmatpush.msra.mxu0 0.0
    %2117 = vmatpush.msra.mxu0 0.0
    %2118 = vmatpush.msra.mxu0 0.0
    %2119 = vmatpush.msra.mxu0 0.0
    %2120 = vmatpush.msra.mxu0 0.0
    %2121 = vmatpush.msra.mxu0 0.0
    %2122 = vmatpush.msra.mxu0 0.0
    %2123 = vmatpush.msra.mxu0 %v2100
    %2124 = vmatpush.msra.mxu0 %v2098
    %2125 = vmatmul.f32.gmra.mxu0 %v2104
    %v2126 = vpop.f32.mrf.mxu0
    %v2127 = vadd.f32 0.0, %v2126
    %2128 = vmatmul.f32.gmra.mxu0 %v2107
    %v2129 = vpop.f32.mrf.mxu0
    %v2130 = vadd.f32 0.0, %v2129
    %2131 = vdwg.mxu0
    %2132 = vrot.lane.b32.xlu0 %v717, 56
    %v2133 = vpop.permute.xlu0 %2132
    %2134 = vrot.lane.b32.xlu0 %v720, 56
    %v2135 = vpop.permute.xlu0 %2134
    %v2139 = vsel %vm1085, %v2050, 0
    %v2142 = vsel %vm1085, %v2051, 0
    %2144 = vmatpush.msra.mxu0 0.0
    %2145 = vmatpush.msra.mxu0 0.0
    %2146 = vmatpush.msra.mxu0 0.0
    %2147 = vmatpush.msra.mxu0 0.0
    %2148 = vmatpush.msra.mxu0 0.0
    %2149 = vmatpush.msra.mxu0 0.0
    %2150 = vmatpush.msra.mxu0 0.0
    %2151 = vmatpush.msra.mxu0 0.0
    %2152 = vmatpush.msra.mxu0 0.0
    %2153 = vmatpush.msra.mxu0 0.0
    %2154 = vmatpush.msra.mxu0 0.0
    %2155 = vmatpush.msra.mxu0 0.0
    %2156 = vmatpush.msra.mxu0 0.0
    %2157 = vmatpush.msra.mxu0 0.0
    %2158 = vmatpush.msra.mxu0 %v2135
    %2159 = vmatpush.msra.mxu0 %v2133
    %2160 = vmatmul.f32.gmra.mxu0 %v2139
    %v2161 = vpop.f32.mrf.mxu0
    %v2162 = vadd.f32 0.0, %v2161
    %2163 = vmatmul.f32.gmra.mxu0 %v2142
    %v2164 = vpop.f32.mrf.mxu0
    %v2165 = vadd.f32 0.0, %v2164
    %2166 = vdwg.mxu0
    %2167 = vrot.lane.b32.xlu0 %v723, 56
    %v2168 = vpop.permute.xlu0 %2167
    %2169 = vrot.lane.b32.xlu0 %v726, 56
    %v2170 = vpop.permute.xlu0 %2169
    %v2174 = vsel %vm1085, %v2052, 0
    %v2177 = vsel %vm1085, %v2053, 0
    %2179 = vmatpush.msra.mxu0 0.0
    %2180 = vmatpush.msra.mxu0 0.0
    %2181 = vmatpush.msra.mxu0 0.0
    %2182 = vmatpush.msra.mxu0 0.0
    %2183 = vmatpush.msra.mxu0 0.0
    %2184 = vmatpush.msra.mxu0 0.0
    %2185 = vmatpush.msra.mxu0 0.0
    %2186 = vmatpush.msra.mxu0 0.0
    %2187 = vmatpush.msra.mxu0 0.0
    %2188 = vmatpush.msra.mxu0 0.0
    %2189 = vmatpush.msra.mxu0 0.0
    %2190 = vmatpush.msra.mxu0 0.0
    %2191 = vmatpush.msra.mxu0 0.0
    %2192 = vmatpush.msra.mxu0 0.0
    %2193 = vmatpush.msra.mxu0 %v2170
    %2194 = vmatpush.msra.mxu0 %v2168
    %2195 = vmatmul.f32.gmra.mxu0 %v2174
    %v2196 = vpop.f32.mrf.mxu0
    %v2197 = vadd.f32 0.0, %v2196
    %2198 = vmatmul.f32.gmra.mxu0 %v2177
    %v2199 = vpop.f32.mrf.mxu0
    %v2200 = vadd.f32 0.0, %v2199
    %2201 = vdwg.mxu0
    %2202 = vrot.lane.b32.xlu0 %v729, 56
    %v2203 = vpop.permute.xlu0 %2202
    %2204 = vrot.lane.b32.xlu0 %v732, 56
    %v2205 = vpop.permute.xlu0 %2204
    %v2209 = vsel %vm1085, %v2054, 0
    %v2212 = vsel %vm1085, %v2055, 0
    %2214 = vmatpush.msra.mxu0 0.0
    %2215 = vmatpush.msra.mxu0 0.0
    %2216 = vmatpush.msra.mxu0 0.0
    %2217 = vmatpush.msra.mxu0 0.0
    %2218 = vmatpush.msra.mxu0 0.0
    %2219 = vmatpush.msra.mxu0 0.0
    %2220 = vmatpush.msra.mxu0 0.0
    %2221 = vmatpush.msra.mxu0 0.0
    %2222 = vmatpush.msra.mxu0 0.0
    %2223 = vmatpush.msra.mxu0 0.0
    %2224 = vmatpush.msra.mxu0 0.0
    %2225 = vmatpush.msra.mxu0 0.0
    %2226 = vmatpush.msra.mxu0 0.0
    %2227 = vmatpush.msra.mxu0 0.0
    %2228 = vmatpush.msra.mxu0 %v2205
    %2229 = vmatpush.msra.mxu0 %v2203
    %2230 = vmatmul.f32.gmra.mxu0 %v2209
    %v2231 = vpop.f32.mrf.mxu0
    %v2232 = vadd.f32 0.0, %v2231
    %2233 = vmatmul.f32.gmra.mxu0 %v2212
    %v2234 = vpop.f32.mrf.mxu0
    %v2235 = vadd.f32 0.0, %v2234
    %2236 = vdwg.mxu0
    %2237 = vrot.lane.b32.xlu0 %v735, 56
    %v2238 = vpop.permute.xlu0 %2237
    %2239 = vrot.lane.b32.xlu0 %v738, 56
    %v2240 = vpop.permute.xlu0 %2239
    %v2244 = vsel %vm1085, %v2056, 0
    %v2247 = vsel %vm1085, %v2057, 0
    %2249 = vmatpush.msra.mxu0 0.0
    %2250 = vmatpush.msra.mxu0 0.0
    %2251 = vmatpush.msra.mxu0 0.0
    %2252 = vmatpush.msra.mxu0 0.0
    %2253 = vmatpush.msra.mxu0 0.0
    %2254 = vmatpush.msra.mxu0 0.0
    %2255 = vmatpush.msra.mxu0 0.0
    %2256 = vmatpush.msra.mxu0 0.0
    %2257 = vmatpush.msra.mxu0 0.0
    %2258 = vmatpush.msra.mxu0 0.0
    %2259 = vmatpush.msra.mxu0 0.0
    %2260 = vmatpush.msra.mxu0 0.0
    %2261 = vmatpush.msra.mxu0 0.0
    %2262 = vmatpush.msra.mxu0 0.0
    %2263 = vmatpush.msra.mxu0 %v2240
    %2264 = vmatpush.msra.mxu0 %v2238
    %2265 = vmatmul.f32.gmra.mxu0 %v2244
    %v2266 = vpop.f32.mrf.mxu0
    %v2267 = vadd.f32 0.0, %v2266
    %2268 = vmatmul.f32.gmra.mxu0 %v2247
    %v2269 = vpop.f32.mrf.mxu0
    %v2270 = vadd.f32 0.0, %v2269
    %2271 = vdwg.mxu0
    %2272 = vrot.lane.b32.xlu0 %v741, 56
    %v2273 = vpop.permute.xlu0 %2272
    %2274 = vrot.lane.b32.xlu0 %v744, 56
    %v2275 = vpop.permute.xlu0 %2274
    %v2279 = vsel %vm1085, %v2058, 0
    %v2282 = vsel %vm1085, %v2059, 0
    %2284 = vmatpush.msra.mxu0 0.0
    %2285 = vmatpush.msra.mxu0 0.0
    %2286 = vmatpush.msra.mxu0 0.0
    %2287 = vmatpush.msra.mxu0 0.0
    %2288 = vmatpush.msra.mxu0 0.0
    %2289 = vmatpush.msra.mxu0 0.0
    %2290 = vmatpush.msra.mxu0 0.0
    %2291 = vmatpush.msra.mxu0 0.0
    %2292 = vmatpush.msra.mxu0 0.0
    %2293 = vmatpush.msra.mxu0 0.0
    %2294 = vmatpush.msra.mxu0 0.0
    %2295 = vmatpush.msra.mxu0 0.0
    %2296 = vmatpush.msra.mxu0 0.0
    %2297 = vmatpush.msra.mxu0 0.0
    %2298 = vmatpush.msra.mxu0 %v2275
    %2299 = vmatpush.msra.mxu0 %v2273
    %2300 = vmatmul.f32.gmra.mxu0 %v2279
    %v2301 = vpop.f32.mrf.mxu0
    %v2302 = vadd.f32 0.0, %v2301
    %2303 = vmatmul.f32.gmra.mxu0 %v2282
    %v2304 = vpop.f32.mrf.mxu0
    %v2305 = vadd.f32 0.0, %v2304
    %2306 = vdwg.mxu0
    %2307 = vrot.lane.b32.xlu0 %v747, 56
    %v2308 = vpop.permute.xlu0 %2307
    %2309 = vrot.lane.b32.xlu0 %v750, 56
    %v2310 = vpop.permute.xlu0 %2309
    %v2314 = vsel %vm1085, %v2060, 0
    %v2317 = vsel %vm1085, %v2061, 0
    %2319 = vmatpush.msra.mxu0 0.0
    %2320 = vmatpush.msra.mxu0 0.0
    %2321 = vmatpush.msra.mxu0 0.0
    %2322 = vmatpush.msra.mxu0 0.0
    %2323 = vmatpush.msra.mxu0 0.0
    %2324 = vmatpush.msra.mxu0 0.0
    %2325 = vmatpush.msra.mxu0 0.0
    %2326 = vmatpush.msra.mxu0 0.0
    %2327 = vmatpush.msra.mxu0 0.0
    %2328 = vmatpush.msra.mxu0 0.0
    %2329 = vmatpush.msra.mxu0 0.0
    %2330 = vmatpush.msra.mxu0 0.0
    %2331 = vmatpush.msra.mxu0 0.0
    %2332 = vmatpush.msra.mxu0 0.0
    %2333 = vmatpush.msra.mxu0 %v2310
    %2334 = vmatpush.msra.mxu0 %v2308
    %2335 = vmatmul.f32.gmra.mxu0 %v2314
    %v2336 = vpop.f32.mrf.mxu0
    %v2337 = vadd.f32 0.0, %v2336
    %2338 = vmatmul.f32.gmra.mxu0 %v2317
    %v2339 = vpop.f32.mrf.mxu0
    %v2340 = vadd.f32 0.0, %v2339
    %2341 = vdwg.mxu0
    %v2343 = vsel %vm762, %v2092, 0
    %v2346 = vsel %vm762, %v2095, 0
    %v2349 = vsel %vm762, %v2127, 0
    %v2352 = vsel %vm762, %v2130, 0
    %v2355 = vsel %vm762, %v2162, 0
    %v2358 = vsel %vm762, %v2165, 0
    %v2361 = vsel %vm762, %v2197, 0
    %v2364 = vsel %vm762, %v2200, 0
    %v2367 = vsel %vm762, %v2232, 0
    %v2370 = vsel %vm762, %v2235, 0
    %v2373 = vsel %vm762, %v2267, 0
    %v2376 = vsel %vm762, %v2270, 0
    %v2379 = vsel %vm762, %v2302, 0
    %v2382 = vsel %vm762, %v2305, 0
    %v2385 = vsel %vm762, %v2337, 0
    %v2388 = vsel %vm762, %v2340, 0
    %2390 = vmatpush.msra.mxu0 0.0
    %2391 = vmatpush.msra.mxu0 0.0
    %2392 = vmatpush.msra.mxu0 0.0
    %2393 = vmatpush.msra.mxu0 0.0
    %2394 = vmatpush.msra.mxu0 0.0
    %2395 = vmatpush.msra.mxu0 0.0
    %2396 = vmatpush.msra.mxu0 0.0
    %2397 = vmatpush.msra.mxu0 0.0
    %2398 = vmatpush.msra.mxu0 0.0
    %2399 = vmatpush.msra.mxu0 0.0
    %2400 = vmatpush.msra.mxu0 0.0
    %2401 = vmatpush.msra.mxu0 0.0
    %2402 = vmatpush.msra.mxu0 0.0
    %2403 = vmatpush.msra.mxu0 0.0
    %2404 = vmatpush.msra.mxu0 0.0
    %2405 = vmatpush.msra.mxu0 %v753
    %2406 = vmatmul.f32.gmra.mxu0 %v2343
    %v2407 = vpop.f32.mrf.mxu0
    %v2408 = vadd.f32 0.0, %v2407
    %2409 = vmatmul.f32.gmra.mxu0 %v2346
    %v2410 = vpop.f32.mrf.mxu0
    %v2411 = vadd.f32 0.0, %v2410
    %2412 = vmatmul.f32.gmra.mxu0 %v2349
    %v2413 = vpop.f32.mrf.mxu0
    %v2414 = vadd.f32 0.0, %v2413
    %2415 = vmatmul.f32.gmra.mxu0 %v2352
    %v2416 = vpop.f32.mrf.mxu0
    %v2417 = vadd.f32 0.0, %v2416
    %2418 = vmatmul.f32.gmra.mxu0 %v2355
    %v2419 = vpop.f32.mrf.mxu0
    %v2420 = vadd.f32 0.0, %v2419
    %2421 = vmatmul.f32.gmra.mxu0 %v2358
    %v2422 = vpop.f32.mrf.mxu0
    %v2423 = vadd.f32 0.0, %v2422
    %2424 = vmatmul.f32.gmra.mxu0 %v2361
    %v2425 = vpop.f32.mrf.mxu0
    %v2426 = vadd.f32 0.0, %v2425
    %2427 = vmatmul.f32.gmra.mxu0 %v2364
    %v2428 = vpop.f32.mrf.mxu0
    %v2429 = vadd.f32 0.0, %v2428
    %2430 = vmatmul.f32.gmra.mxu0 %v2367
    %v2431 = vpop.f32.mrf.mxu0
    %v2432 = vadd.f32 0.0, %v2431
    %2433 = vmatmul.f32.gmra.mxu0 %v2370
    %v2434 = vpop.f32.mrf.mxu0
    %v2435 = vadd.f32 0.0, %v2434
    %2436 = vmatmul.f32.gmra.mxu0 %v2373
    %v2437 = vpop.f32.mrf.mxu0
    %v2438 = vadd.f32 0.0, %v2437
    %2439 = vmatmul.f32.gmra.mxu0 %v2376
    %v2440 = vpop.f32.mrf.mxu0
    %v2441 = vadd.f32 0.0, %v2440
    %2442 = vmatmul.f32.gmra.mxu0 %v2379
    %v2443 = vpop.f32.mrf.mxu0
    %v2444 = vadd.f32 0.0, %v2443
    %2445 = vmatmul.f32.gmra.mxu0 %v2382
    %v2446 = vpop.f32.mrf.mxu0
    %v2447 = vadd.f32 0.0, %v2446
    %2448 = vmatmul.f32.gmra.mxu0 %v2385
    %v2449 = vpop.f32.mrf.mxu0
    %v2450 = vadd.f32 0.0, %v2449
    %2451 = vmatmul.f32.gmra.mxu0 %v2388
    %v2452 = vpop.f32.mrf.mxu0
    %v2453 = vadd.f32 0.0, %v2452
    %2454 = vdwg.mxu0
    %v2456 = vsel %vm762, %v1292, 0
    %v2459 = vsel %vm762, %v1295, 0
    %v2462 = vsel %vm762, %v1327, 0
    %v2465 = vsel %vm762, %v1330, 0
    %v2468 = vsel %vm762, %v1362, 0
    %v2471 = vsel %vm762, %v1365, 0
    %v2474 = vsel %vm762, %v1397, 0
    %v2477 = vsel %vm762, %v1400, 0
    %v2480 = vsel %vm762, %v1432, 0
    %v2483 = vsel %vm762, %v1435, 0
    %v2486 = vsel %vm762, %v1467, 0
    %v2489 = vsel %vm762, %v1470, 0
    %v2492 = vsel %vm762, %v1502, 0
    %v2495 = vsel %vm762, %v1505, 0
    %v2498 = vsel %vm762, %v1537, 0
    %v2501 = vsel %vm762, %v1540, 0
    %2503 = vmatpush.msra.mxu0 0.0
    %2504 = vmatpush.msra.mxu0 0.0
    %2505 = vmatpush.msra.mxu0 0.0
    %2506 = vmatpush.msra.mxu0 0.0
    %2507 = vmatpush.msra.mxu0 0.0
    %2508 = vmatpush.msra.mxu0 0.0
    %2509 = vmatpush.msra.mxu0 0.0
    %2510 = vmatpush.msra.mxu0 0.0
    %2511 = vmatpush.msra.mxu0 0.0
    %2512 = vmatpush.msra.mxu0 0.0
    %2513 = vmatpush.msra.mxu0 0.0
    %2514 = vmatpush.msra.mxu0 0.0
    %2515 = vmatpush.msra.mxu0 0.0
    %2516 = vmatpush.msra.mxu0 0.0
    %2517 = vmatpush.msra.mxu0 0.0
    %2518 = vmatpush.msra.mxu0 %v752
    %2519 = vmatmul.f32.gmra.mxu0 %v2456
    %v2520 = vpop.f32.mrf.mxu0
    %v2521 = vadd.f32 %v2408, %v2520
    %2522 = vmatmul.f32.gmra.mxu0 %v2459
    %v2523 = vpop.f32.mrf.mxu0
    %v2524 = vadd.f32 %v2411, %v2523
    %2525 = vmatmul.f32.gmra.mxu0 %v2462
    %v2526 = vpop.f32.mrf.mxu0
    %v2527 = vadd.f32 %v2414, %v2526
    %2528 = vmatmul.f32.gmra.mxu0 %v2465
    %v2529 = vpop.f32.mrf.mxu0
    %v2530 = vadd.f32 %v2417, %v2529
    %2531 = vmatmul.f32.gmra.mxu0 %v2468
    %v2532 = vpop.f32.mrf.mxu0
    %v2533 = vadd.f32 %v2420, %v2532
    %2534 = vmatmul.f32.gmra.mxu0 %v2471
    %v2535 = vpop.f32.mrf.mxu0
    %v2536 = vadd.f32 %v2423, %v2535
    %2537 = vmatmul.f32.gmra.mxu0 %v2474
    %v2538 = vpop.f32.mrf.mxu0
    %v2539 = vadd.f32 %v2426, %v2538
    %2540 = vmatmul.f32.gmra.mxu0 %v2477
    %v2541 = vpop.f32.mrf.mxu0
    %v2542 = vadd.f32 %v2429, %v2541
    %2543 = vmatmul.f32.gmra.mxu0 %v2480
    %v2544 = vpop.f32.mrf.mxu0
    %v2545 = vadd.f32 %v2432, %v2544
    %2546 = vmatmul.f32.gmra.mxu0 %v2483
    %v2547 = vpop.f32.mrf.mxu0
    %v2548 = vadd.f32 %v2435, %v2547
    %2549 = vmatmul.f32.gmra.mxu0 %v2486
    %v2550 = vpop.f32.mrf.mxu0
    %v2551 = vadd.f32 %v2438, %v2550
    %2552 = vmatmul.f32.gmra.mxu0 %v2489
    %v2553 = vpop.f32.mrf.mxu0
    %v2554 = vadd.f32 %v2441, %v2553
    %2555 = vmatmul.f32.gmra.mxu0 %v2492
    %v2556 = vpop.f32.mrf.mxu0
    %v2557 = vadd.f32 %v2444, %v2556
    %2558 = vmatmul.f32.gmra.mxu0 %v2495
    %v2559 = vpop.f32.mrf.mxu0
    %v2560 = vadd.f32 %v2447, %v2559
    %2561 = vmatmul.f32.gmra.mxu0 %v2498
    %v2562 = vpop.f32.mrf.mxu0
    %v2563 = vadd.f32 %v2450, %v2562
    %2564 = vmatmul.f32.gmra.mxu0 %v2501
    %v2565 = vpop.f32.mrf.mxu0
    %v2566 = vadd.f32 %v2453, %v2565
    %2567 = vdwg.mxu0
    %2568 = vrot.lane.b32.xlu0 %v705, 112
    %v2569 = vpop.permute.xlu0 %2568
    %2570 = vrot.lane.b32.xlu0 %v708, 112
    %v2571 = vpop.permute.xlu0 %2570
    %2572 = vrot.lane.b32.xlu0 %v705, 80
    %v2573 = vpop.permute.xlu0 %2572
    %2574 = vrot.lane.b32.xlu0 %v708, 80
    %v2575 = vpop.permute.xlu0 %2574
    %v2576 = vsel %vm762, %v2569, 0
    %v2578 = vsel %vm762, %v2571, 0
    %v2580 = vsel %vm762, %v2573, 0
    %v2582 = vsel %vm762, %v2575, 0
    %2584 = vmatpush.xpose.msra.mxu0 0.0
    %2585 = vmatpush.xpose.msra.mxu0 0.0
    %2586 = vmatpush.xpose.msra.mxu0 0.0
    %2587 = vmatpush.xpose.msra.mxu0 0.0
    %2588 = vmatpush.xpose.msra.mxu0 0.0
    %2589 = vmatpush.xpose.msra.mxu0 0.0
    %2590 = vmatpush.xpose.msra.mxu0 0.0
    %2591 = vmatpush.xpose.msra.mxu0 0.0
    %2592 = vmatpush.xpose.msra.mxu0 0.0
    %2593 = vmatpush.xpose.msra.mxu0 0.0
    %2594 = vmatpush.xpose.msra.mxu0 0.0
    %2595 = vmatpush.xpose.msra.mxu0 0.0
    %2596 = vmatpush.xpose.msra.mxu0 0.0
    %2597 = vmatpush.xpose.msra.mxu0 0.0
    %2598 = vmatpush.xpose.msra.mxu0 %v2582
    %2599 = vmatpush.xpose.msra.mxu0 %v2580
    %2600 = vmatmul.f32.gmra.mxu0 %v2576
    %v2601 = vpop.f32.mrf.mxu0
    %v2602 = vadd.f32 0.0, %v2601
    %2603 = vmatmul.f32.gmra.mxu0 %v2578
    %v2604 = vpop.f32.mrf.mxu0
    %v2605 = vadd.f32 0.0, %v2604
    %2606 = vdwg.mxu0
    %2607 = vrot.lane.b32.xlu0 %v711, 112
    %v2608 = vpop.permute.xlu0 %2607
    %2609 = vrot.lane.b32.xlu0 %v714, 112
    %v2610 = vpop.permute.xlu0 %2609
    %2611 = vrot.lane.b32.xlu0 %v711, 80
    %v2612 = vpop.permute.xlu0 %2611
    %2613 = vrot.lane.b32.xlu0 %v714, 80
    %v2614 = vpop.permute.xlu0 %2613
    %v2615 = vsel %vm762, %v2608, 0
    %v2617 = vsel %vm762, %v2610, 0
    %v2619 = vsel %vm762, %v2612, 0
    %v2621 = vsel %vm762, %v2614, 0
    %2623 = vmatpush.xpose.msra.mxu0 0.0
    %2624 = vmatpush.xpose.msra.mxu0 0.0
    %2625 = vmatpush.xpose.msra.mxu0 0.0
    %2626 = vmatpush.xpose.msra.mxu0 0.0
    %2627 = vmatpush.xpose.msra.mxu0 0.0
    %2628 = vmatpush.xpose.msra.mxu0 0.0
    %2629 = vmatpush.xpose.msra.mxu0 0.0
    %2630 = vmatpush.xpose.msra.mxu0 0.0
    %2631 = vmatpush.xpose.msra.mxu0 0.0
    %2632 = vmatpush.xpose.msra.mxu0 0.0
    %2633 = vmatpush.xpose.msra.mxu0 0.0
    %2634 = vmatpush.xpose.msra.mxu0 0.0
    %2635 = vmatpush.xpose.msra.mxu0 0.0
    %2636 = vmatpush.xpose.msra.mxu0 0.0
    %2637 = vmatpush.xpose.msra.mxu0 %v2621
    %2638 = vmatpush.xpose.msra.mxu0 %v2619
    %2639 = vmatmul.f32.gmra.mxu0 %v2615
    %v2640 = vpop.f32.mrf.mxu0
    %v2641 = vadd.f32 0.0, %v2640
    %2642 = vmatmul.f32.gmra.mxu0 %v2617
    %v2643 = vpop.f32.mrf.mxu0
    %v2644 = vadd.f32 0.0, %v2643
    %2645 = vdwg.mxu0
    %2646 = vrot.lane.b32.xlu0 %v717, 112
    %v2647 = vpop.permute.xlu0 %2646
    %2648 = vrot.lane.b32.xlu0 %v720, 112
    %v2649 = vpop.permute.xlu0 %2648
    %2650 = vrot.lane.b32.xlu0 %v717, 80
    %v2651 = vpop.permute.xlu0 %2650
    %2652 = vrot.lane.b32.xlu0 %v720, 80
    %v2653 = vpop.permute.xlu0 %2652
    %v2654 = vsel %vm762, %v2647, 0
    %v2656 = vsel %vm762, %v2649, 0
    %v2658 = vsel %vm762, %v2651, 0
    %v2660 = vsel %vm762, %v2653, 0
    %2662 = vmatpush.xpose.msra.mxu0 0.0
    %2663 = vmatpush.xpose.msra.mxu0 0.0
    %2664 = vmatpush.xpose.msra.mxu0 0.0
    %2665 = vmatpush.xpose.msra.mxu0 0.0
    %2666 = vmatpush.xpose.msra.mxu0 0.0
    %2667 = vmatpush.xpose.msra.mxu0 0.0
    %2668 = vmatpush.xpose.msra.mxu0 0.0
    %2669 = vmatpush.xpose.msra.mxu0 0.0
    %2670 = vmatpush.xpose.msra.mxu0 0.0
    %2671 = vmatpush.xpose.msra.mxu0 0.0
    %2672 = vmatpush.xpose.msra.mxu0 0.0
    %2673 = vmatpush.xpose.msra.mxu0 0.0
    %2674 = vmatpush.xpose.msra.mxu0 0.0
    %2675 = vmatpush.xpose.msra.mxu0 0.0
    %2676 = vmatpush.xpose.msra.mxu0 %v2660
    %2677 = vmatpush.xpose.msra.mxu0 %v2658
    %2678 = vmatmul.f32.gmra.mxu0 %v2654
    %v2679 = vpop.f32.mrf.mxu0
    %v2680 = vadd.f32 0.0, %v2679
    %2681 = vmatmul.f32.gmra.mxu0 %v2656
    %v2682 = vpop.f32.mrf.mxu0
    %v2683 = vadd.f32 0.0, %v2682
    %2684 = vdwg.mxu0
    %2685 = vrot.lane.b32.xlu0 %v723, 112
    %v2686 = vpop.permute.xlu0 %2685
    %2687 = vrot.lane.b32.xlu0 %v726, 112
    %v2688 = vpop.permute.xlu0 %2687
    %2689 = vrot.lane.b32.xlu0 %v723, 80
    %v2690 = vpop.permute.xlu0 %2689
    %2691 = vrot.lane.b32.xlu0 %v726, 80
    %v2692 = vpop.permute.xlu0 %2691
    %v2693 = vsel %vm762, %v2686, 0
    %v2695 = vsel %vm762, %v2688, 0
    %v2697 = vsel %vm762, %v2690, 0
    %v2699 = vsel %vm762, %v2692, 0
    %2701 = vmatpush.xpose.msra.mxu0 0.0
    %2702 = vmatpush.xpose.msra.mxu0 0.0
    %2703 = vmatpush.xpose.msra.mxu0 0.0
    %2704 = vmatpush.xpose.msra.mxu0 0.0
    %2705 = vmatpush.xpose.msra.mxu0 0.0
    %2706 = vmatpush.xpose.msra.mxu0 0.0
    %2707 = vmatpush.xpose.msra.mxu0 0.0
    %2708 = vmatpush.xpose.msra.mxu0 0.0
    %2709 = vmatpush.xpose.msra.mxu0 0.0
    %2710 = vmatpush.xpose.msra.mxu0 0.0
    %2711 = vmatpush.xpose.msra.mxu0 0.0
    %2712 = vmatpush.xpose.msra.mxu0 0.0
    %2713 = vmatpush.xpose.msra.mxu0 0.0
    %2714 = vmatpush.xpose.msra.mxu0 0.0
    %2715 = vmatpush.xpose.msra.mxu0 %v2699
    %2716 = vmatpush.xpose.msra.mxu0 %v2697
    %2717 = vmatmul.f32.gmra.mxu0 %v2693
    %v2718 = vpop.f32.mrf.mxu0
    %v2719 = vadd.f32 0.0, %v2718
    %2720 = vmatmul.f32.gmra.mxu0 %v2695
    %v2721 = vpop.f32.mrf.mxu0
    %v2722 = vadd.f32 0.0, %v2721
    %2723 = vdwg.mxu0
    %2724 = vrot.lane.b32.xlu0 %v729, 112
    %v2725 = vpop.permute.xlu0 %2724
    %2726 = vrot.lane.b32.xlu0 %v732, 112
    %v2727 = vpop.permute.xlu0 %2726
    %2728 = vrot.lane.b32.xlu0 %v729, 80
    %v2729 = vpop.permute.xlu0 %2728
    %2730 = vrot.lane.b32.xlu0 %v732, 80
    %v2731 = vpop.permute.xlu0 %2730
    %v2732 = vsel %vm762, %v2725, 0
    %v2734 = vsel %vm762, %v2727, 0
    %v2736 = vsel %vm762, %v2729, 0
    %v2738 = vsel %vm762, %v2731, 0
    %2740 = vmatpush.xpose.msra.mxu0 0.0
    %2741 = vmatpush.xpose.msra.mxu0 0.0
    %2742 = vmatpush.xpose.msra.mxu0 0.0
    %2743 = vmatpush.xpose.msra.mxu0 0.0
    %2744 = vmatpush.xpose.msra.mxu0 0.0
    %2745 = vmatpush.xpose.msra.mxu0 0.0
    %2746 = vmatpush.xpose.msra.mxu0 0.0
    %2747 = vmatpush.xpose.msra.mxu0 0.0
    %2748 = vmatpush.xpose.msra.mxu0 0.0
    %2749 = vmatpush.xpose.msra.mxu0 0.0
    %2750 = vmatpush.xpose.msra.mxu0 0.0
    %2751 = vmatpush.xpose.msra.mxu0 0.0
    %2752 = vmatpush.xpose.msra.mxu0 0.0
    %2753 = vmatpush.xpose.msra.mxu0 0.0
    %2754 = vmatpush.xpose.msra.mxu0 %v2738
    %2755 = vmatpush.xpose.msra.mxu0 %v2736
    %2756 = vmatmul.f32.gmra.mxu0 %v2732
    %v2757 = vpop.f32.mrf.mxu0
    %v2758 = vadd.f32 0.0, %v2757
    %2759 = vmatmul.f32.gmra.mxu0 %v2734
    %v2760 = vpop.f32.mrf.mxu0
    %v2761 = vadd.f32 0.0, %v2760
    %2762 = vdwg.mxu0
    %2763 = vrot.lane.b32.xlu0 %v735, 112
    %v2764 = vpop.permute.xlu0 %2763
    %2765 = vrot.lane.b32.xlu0 %v738, 112
    %v2766 = vpop.permute.xlu0 %2765
    %2767 = vrot.lane.b32.xlu0 %v735, 80
    %v2768 = vpop.permute.xlu0 %2767
    %2769 = vrot.lane.b32.xlu0 %v738, 80
    %v2770 = vpop.permute.xlu0 %2769
    %v2771 = vsel %vm762, %v2764, 0
    %v2773 = vsel %vm762, %v2766, 0
    %v2775 = vsel %vm762, %v2768, 0
    %v2777 = vsel %vm762, %v2770, 0
    %2779 = vmatpush.xpose.msra.mxu0 0.0
    %2780 = vmatpush.xpose.msra.mxu0 0.0
    %2781 = vmatpush.xpose.msra.mxu0 0.0
    %2782 = vmatpush.xpose.msra.mxu0 0.0
    %2783 = vmatpush.xpose.msra.mxu0 0.0
    %2784 = vmatpush.xpose.msra.mxu0 0.0
    %2785 = vmatpush.xpose.msra.mxu0 0.0
    %2786 = vmatpush.xpose.msra.mxu0 0.0
    %2787 = vmatpush.xpose.msra.mxu0 0.0
    %2788 = vmatpush.xpose.msra.mxu0 0.0
    %2789 = vmatpush.xpose.msra.mxu0 0.0
    %2790 = vmatpush.xpose.msra.mxu0 0.0
    %2791 = vmatpush.xpose.msra.mxu0 0.0
    %2792 = vmatpush.xpose.msra.mxu0 0.0
    %2793 = vmatpush.xpose.msra.mxu0 %v2777
    %2794 = vmatpush.xpose.msra.mxu0 %v2775
    %2795 = vmatmul.f32.gmra.mxu0 %v2771
    %v2796 = vpop.f32.mrf.mxu0
    %v2797 = vadd.f32 0.0, %v2796
    %2798 = vmatmul.f32.gmra.mxu0 %v2773
    %v2799 = vpop.f32.mrf.mxu0
    %v2800 = vadd.f32 0.0, %v2799
    %2801 = vdwg.mxu0
    %2802 = vrot.lane.b32.xlu0 %v741, 112
    %v2803 = vpop.permute.xlu0 %2802
    %2804 = vrot.lane.b32.xlu0 %v744, 112
    %v2805 = vpop.permute.xlu0 %2804
    %2806 = vrot.lane.b32.xlu0 %v741, 80
    %v2807 = vpop.permute.xlu0 %2806
    %2808 = vrot.lane.b32.xlu0 %v744, 80
    %v2809 = vpop.permute.xlu0 %2808
    %v2810 = vsel %vm762, %v2803, 0
    %v2812 = vsel %vm762, %v2805, 0
    %v2814 = vsel %vm762, %v2807, 0
    %v2816 = vsel %vm762, %v2809, 0
    %2818 = vmatpush.xpose.msra.mxu0 0.0
    %2819 = vmatpush.xpose.msra.mxu0 0.0
    %2820 = vmatpush.xpose.msra.mxu0 0.0
    %2821 = vmatpush.xpose.msra.mxu0 0.0
    %2822 = vmatpush.xpose.msra.mxu0 0.0
    %2823 = vmatpush.xpose.msra.mxu0 0.0
    %2824 = vmatpush.xpose.msra.mxu0 0.0
    %2825 = vmatpush.xpose.msra.mxu0 0.0
    %2826 = vmatpush.xpose.msra.mxu0 0.0
    %2827 = vmatpush.xpose.msra.mxu0 0.0
    %2828 = vmatpush.xpose.msra.mxu0 0.0
    %2829 = vmatpush.xpose.msra.mxu0 0.0
    %2830 = vmatpush.xpose.msra.mxu0 0.0
    %2831 = vmatpush.xpose.msra.mxu0 0.0
    %2832 = vmatpush.xpose.msra.mxu0 %v2816
    %2833 = vmatpush.xpose.msra.mxu0 %v2814
    %2834 = vmatmul.f32.gmra.mxu0 %v2810
    %v2835 = vpop.f32.mrf.mxu0
    %v2836 = vadd.f32 0.0, %v2835
    %2837 = vmatmul.f32.gmra.mxu0 %v2812
    %v2838 = vpop.f32.mrf.mxu0
    %v2839 = vadd.f32 0.0, %v2838
    %2840 = vdwg.mxu0
    %2841 = vrot.lane.b32.xlu0 %v747, 112
    %v2842 = vpop.permute.xlu0 %2841
    %2843 = vrot.lane.b32.xlu0 %v750, 112
    %v2844 = vpop.permute.xlu0 %2843
    %2845 = vrot.lane.b32.xlu0 %v747, 80
    %v2846 = vpop.permute.xlu0 %2845
    %2847 = vrot.lane.b32.xlu0 %v750, 80
    %v2848 = vpop.permute.xlu0 %2847
    %v2849 = vsel %vm762, %v2842, 0
    %v2851 = vsel %vm762, %v2844, 0
    %v2853 = vsel %vm762, %v2846, 0
    %v2855 = vsel %vm762, %v2848, 0
    %2857 = vmatpush.xpose.msra.mxu0 0.0
    %2858 = vmatpush.xpose.msra.mxu0 0.0
    %2859 = vmatpush.xpose.msra.mxu0 0.0
    %2860 = vmatpush.xpose.msra.mxu0 0.0
    %2861 = vmatpush.xpose.msra.mxu0 0.0
    %2862 = vmatpush.xpose.msra.mxu0 0.0
    %2863 = vmatpush.xpose.msra.mxu0 0.0
    %2864 = vmatpush.xpose.msra.mxu0 0.0
    %2865 = vmatpush.xpose.msra.mxu0 0.0
    %2866 = vmatpush.xpose.msra.mxu0 0.0
    %2867 = vmatpush.xpose.msra.mxu0 0.0
    %2868 = vmatpush.xpose.msra.mxu0 0.0
    %2869 = vmatpush.xpose.msra.mxu0 0.0
    %2870 = vmatpush.xpose.msra.mxu0 0.0
    %2871 = vmatpush.xpose.msra.mxu0 %v2855
    %2872 = vmatpush.xpose.msra.mxu0 %v2853
    %2873 = vmatmul.f32.gmra.mxu0 %v2849
    %v2874 = vpop.f32.mrf.mxu0
    %v2875 = vadd.f32 0.0, %v2874
    %2876 = vmatmul.f32.gmra.mxu0 %v2851
    %v2877 = vpop.f32.mrf.mxu0
    %v2878 = vadd.f32 0.0, %v2877
    %2879 = vdwg.mxu0
    %v2880 = vmul.f32 %v2602, 0.35355338
    %v2881 = vmul.f32 %v2605, 0.35355338
    %v2882 = vmul.f32 %v2641, 0.35355338
    %v2883 = vmul.f32 %v2644, 0.35355338
    %v2884 = vmul.f32 %v2680, 0.35355338
    %v2885 = vmul.f32 %v2683, 0.35355338
    %v2886 = vmul.f32 %v2719, 0.35355338
    %v2887 = vmul.f32 %v2722, 0.35355338
    %v2888 = vmul.f32 %v2758, 0.35355338
    %v2889 = vmul.f32 %v2761, 0.35355338
    %v2890 = vmul.f32 %v2797, 0.35355338
    %v2891 = vmul.f32 %v2800, 0.35355338
    %v2892 = vmul.f32 %v2836, 0.35355338
    %v2893 = vmul.f32 %v2839, 0.35355338
    %v2894 = vmul.f32 %v2875, 0.35355338
    %v2895 = vmul.f32 %v2878, 0.35355338
    %v2896 = vadd.f32 %v2880, %v240
    %v2897 = vadd.f32 %v2881, %v240
    %v2898 = vadd.f32 %v2882, %v240
    %v2899 = vadd.f32 %v2883, %v240
    %v2900 = vadd.f32 %v2884, %v240
    %v2901 = vadd.f32 %v2885, %v240
    %v2902 = vadd.f32 %v2886, %v240
    %v2903 = vadd.f32 %v2887, %v240
    %v2904 = vadd.f32 %v2888, %v240
    %v2905 = vadd.f32 %v2889, %v240
    %v2906 = vadd.f32 %v2890, %v240
    %v2907 = vadd.f32 %v2891, %v240
    %v2908 = vadd.f32 %v2892, %v240
    %v2909 = vadd.f32 %v2893, %v240
    %v2910 = vadd.f32 %v2894, %v240
    %v2911 = vadd.f32 %v2895, %v240
    %v2912 = vsel %vm1085, %v2896, -inf
    %2913 = vmax.xlane.f32.xlu0 %v2912
    %v2914 = vpop.xlane.xlu0 %2913
    %v2915 = vsel %vm1085, %v2897, -inf
    %2916 = vmax.xlane.f32.xlu0 %v2915
    %v2917 = vpop.xlane.xlu0 %2916
    %v2918 = vsel %vm1085, %v2898, -inf
    %2919 = vmax.xlane.f32.xlu0 %v2918
    %v2920 = vpop.xlane.xlu0 %2919
    %v2921 = vsel %vm1085, %v2899, -inf
    %2922 = vmax.xlane.f32.xlu0 %v2921
    %v2923 = vpop.xlane.xlu0 %2922
    %v2924 = vsel %vm1085, %v2900, -inf
    %2925 = vmax.xlane.f32.xlu0 %v2924
    %v2926 = vpop.xlane.xlu0 %2925
    %v2927 = vsel %vm1085, %v2901, -inf
    %2928 = vmax.xlane.f32.xlu0 %v2927
    %v2929 = vpop.xlane.xlu0 %2928
    %v2930 = vsel %vm1085, %v2902, -inf
    %2931 = vmax.xlane.f32.xlu0 %v2930
    %v2932 = vpop.xlane.xlu0 %2931
    %v2933 = vsel %vm1085, %v2903, -inf
    %2934 = vmax.xlane.f32.xlu0 %v2933
    %v2935 = vpop.xlane.xlu0 %2934
    %v2936 = vsel %vm1085, %v2904, -inf
    %2937 = vmax.xlane.f32.xlu0 %v2936
    %v2938 = vpop.xlane.xlu0 %2937
    %v2939 = vsel %vm1085, %v2905, -inf
    %2940 = vmax.xlane.f32.xlu0 %v2939
    %v2941 = vpop.xlane.xlu0 %2940
    %v2942 = vsel %vm1085, %v2906, -inf
    %2943 = vmax.xlane.f32.xlu0 %v2942
    %v2944 = vpop.xlane.xlu0 %2943
    %v2945 = vsel %vm1085, %v2907, -inf
    %2946 = vmax.xlane.f32.xlu0 %v2945
    %v2947 = vpop.xlane.xlu0 %2946
    %v2948 = vsel %vm1085, %v2908, -inf
    %2949 = vmax.xlane.f32.xlu0 %v2948
    %v2950 = vpop.xlane.xlu0 %2949
    %v2951 = vsel %vm1085, %v2909, -inf
    %2952 = vmax.xlane.f32.xlu0 %v2951
    %v2953 = vpop.xlane.xlu0 %2952
    %v2954 = vsel %vm1085, %v2910, -inf
    %2955 = vmax.xlane.f32.xlu0 %v2954
    %v2956 = vpop.xlane.xlu0 %2955
    %v2957 = vsel %vm1085, %v2911, -inf
    %2958 = vmax.xlane.f32.xlu0 %v2957
    %v2959 = vpop.xlane.xlu0 %2958
    %v2960 = vsub.f32 %v2896, %v2914
    %v2961 = vsub.f32 %v2897, %v2917
    %v2962 = vsub.f32 %v2898, %v2920
    %v2963 = vsub.f32 %v2899, %v2923
    %v2964 = vsub.f32 %v2900, %v2926
    %v2965 = vsub.f32 %v2901, %v2929
    %v2966 = vsub.f32 %v2902, %v2932
    %v2967 = vsub.f32 %v2903, %v2935
    %v2968 = vsub.f32 %v2904, %v2938
    %v2969 = vsub.f32 %v2905, %v2941
    %v2970 = vsub.f32 %v2906, %v2944
    %v2971 = vsub.f32 %v2907, %v2947
    %v2972 = vsub.f32 %v2908, %v2950
    %v2973 = vsub.f32 %v2909, %v2953
    %v2974 = vsub.f32 %v2910, %v2956
    %v2975 = vsub.f32 %v2911, %v2959
    %v2976 = vmul.f32 %v2960, 1.442695
    %v2977 = vpow.pop %v2976
    %v2978 = vmul.f32 %v2961, 1.442695
    %v2979 = vpow.pop %v2978
    %v2980 = vmul.f32 %v2962, 1.442695
    %v2981 = vpow.pop %v2980
    %v2982 = vmul.f32 %v2963, 1.442695
    %v2983 = vpow.pop %v2982
    %v2984 = vmul.f32 %v2964, 1.442695
    %v2985 = vpow.pop %v2984
    %v2986 = vmul.f32 %v2965, 1.442695
    %v2987 = vpow.pop %v2986
    %v2988 = vmul.f32 %v2966, 1.442695
    %v2989 = vpow.pop %v2988
    %v2990 = vmul.f32 %v2967, 1.442695
    %v2991 = vpow.pop %v2990
    %v2992 = vmul.f32 %v2968, 1.442695
    %v2993 = vpow.pop %v2992
    %v2994 = vmul.f32 %v2969, 1.442695
    %v2995 = vpow.pop %v2994
    %v2996 = vmul.f32 %v2970, 1.442695
    %v2997 = vpow.pop %v2996
    %v2998 = vmul.f32 %v2971, 1.442695
    %v2999 = vpow.pop %v2998
    %v3000 = vmul.f32 %v2972, 1.442695
    %v3001 = vpow.pop %v3000
    %v3002 = vmul.f32 %v2973, 1.442695
    %v3003 = vpow.pop %v3002
    %v3004 = vmul.f32 %v2974, 1.442695
    %v3005 = vpow.pop %v3004
    %v3006 = vmul.f32 %v2975, 1.442695
    %v3007 = vpow.pop %v3006
    %v3008 = vsel %vm1085, %v2977, 0.0
    %3009 = vadd.xlane.f32.xlu0 %v3008
    %v3010 = vpop.xlane.xlu0 %3009
    %v3011 = vsel %vm1085, %v2979, 0.0
    %3012 = vadd.xlane.f32.xlu0 %v3011
    %v3013 = vpop.xlane.xlu0 %3012
    %v3014 = vsel %vm1085, %v2981, 0.0
    %3015 = vadd.xlane.f32.xlu0 %v3014
    %v3016 = vpop.xlane.xlu0 %3015
    %v3017 = vsel %vm1085, %v2983, 0.0
    %3018 = vadd.xlane.f32.xlu0 %v3017
    %v3019 = vpop.xlane.xlu0 %3018
    %v3020 = vsel %vm1085, %v2985, 0.0
    %3021 = vadd.xlane.f32.xlu0 %v3020
    %v3022 = vpop.xlane.xlu0 %3021
    %v3023 = vsel %vm1085, %v2987, 0.0
    %3024 = vadd.xlane.f32.xlu0 %v3023
    %v3025 = vpop.xlane.xlu0 %3024
    %v3026 = vsel %vm1085, %v2989, 0.0
    %3027 = vadd.xlane.f32.xlu0 %v3026
    %v3028 = vpop.xlane.xlu0 %3027
    %v3029 = vsel %vm1085, %v2991, 0.0
    %3030 = vadd.xlane.f32.xlu0 %v3029
    %v3031 = vpop.xlane.xlu0 %3030
    %v3032 = vsel %vm1085, %v2993, 0.0
    %3033 = vadd.xlane.f32.xlu0 %v3032
    %v3034 = vpop.xlane.xlu0 %3033
    %v3035 = vsel %vm1085, %v2995, 0.0
    %3036 = vadd.xlane.f32.xlu0 %v3035
    %v3037 = vpop.xlane.xlu0 %3036
    %v3038 = vsel %vm1085, %v2997, 0.0
    %3039 = vadd.xlane.f32.xlu0 %v3038
    %v3040 = vpop.xlane.xlu0 %3039
    %v3041 = vsel %vm1085, %v2999, 0.0
    %3042 = vadd.xlane.f32.xlu0 %v3041
    %v3043 = vpop.xlane.xlu0 %3042
    %v3044 = vsel %vm1085, %v3001, 0.0
    %3045 = vadd.xlane.f32.xlu0 %v3044
    %v3046 = vpop.xlane.xlu0 %3045
    %v3047 = vsel %vm1085, %v3003, 0.0
    %3048 = vadd.xlane.f32.xlu0 %v3047
    %v3049 = vpop.xlane.xlu0 %3048
    %v3050 = vsel %vm1085, %v3005, 0.0
    %3051 = vadd.xlane.f32.xlu0 %v3050
    %v3052 = vpop.xlane.xlu0 %3051
    %v3053 = vsel %vm1085, %v3007, 0.0
    %3054 = vadd.xlane.f32.xlu0 %v3053
    %v3055 = vpop.xlane.xlu0 %3054
    %v3056 = vrcp.pop %v3010
    %v3057 = vrcp.pop %v3013
    %v3058 = vrcp.pop %v3016
    %v3059 = vrcp.pop %v3019
    %v3060 = vrcp.pop %v3022
    %v3061 = vrcp.pop %v3025
    %v3062 = vrcp.pop %v3028
    %v3063 = vrcp.pop %v3031
    %v3064 = vrcp.pop %v3034
    %v3065 = vrcp.pop %v3037
    %v3066 = vrcp.pop %v3040
    %v3067 = vrcp.pop %v3043
    %v3068 = vrcp.pop %v3046
    %v3069 = vrcp.pop %v3049
    %v3070 = vrcp.pop %v3052
    %v3071 = vrcp.pop %v3055
    %v3072 = vmul.f32 %v2977, %v3056
    %v3073 = vmul.f32 %v2979, %v3057
    %v3074 = vmul.f32 %v2981, %v3058
    %v3075 = vmul.f32 %v2983, %v3059
    %v3076 = vmul.f32 %v2985, %v3060
    %v3077 = vmul.f32 %v2987, %v3061
    %v3078 = vmul.f32 %v2989, %v3062
    %v3079 = vmul.f32 %v2991, %v3063
    %v3080 = vmul.f32 %v2993, %v3064
    %v3081 = vmul.f32 %v2995, %v3065
    %v3082 = vmul.f32 %v2997, %v3066
    %v3083 = vmul.f32 %v2999, %v3067
    %v3084 = vmul.f32 %v3001, %v3068
    %v3085 = vmul.f32 %v3003, %v3069
    %v3086 = vmul.f32 %v3005, %v3070
    %v3087 = vmul.f32 %v3007, %v3071
    %3088 = vrot.lane.b32.xlu0 %v705, 48
    %v3089 = vpop.permute.xlu0 %3088
    %3090 = vrot.lane.b32.xlu0 %v708, 48
    %v3091 = vpop.permute.xlu0 %3090
    %v3095 = vsel %vm1085, %v3072, 0
    %v3098 = vsel %vm1085, %v3073, 0
    %3100 = vmatpush.msra.mxu0 0.0
    %3101 = vmatpush.msra.mxu0 0.0
    %3102 = vmatpush.msra.mxu0 0.0
    %3103 = vmatpush.msra.mxu0 0.0
    %3104 = vmatpush.msra.mxu0 0.0
    %3105 = vmatpush.msra.mxu0 0.0
    %3106 = vmatpush.msra.mxu0 0.0
    %3107 = vmatpush.msra.mxu0 0.0
    %3108 = vmatpush.msra.mxu0 0.0
    %3109 = vmatpush.msra.mxu0 0.0
    %3110 = vmatpush.msra.mxu0 0.0
    %3111 = vmatpush.msra.mxu0 0.0
    %3112 = vmatpush.msra.mxu0 0.0
    %3113 = vmatpush.msra.mxu0 0.0
    %3114 = vmatpush.msra.mxu0 %v3091
    %3115 = vmatpush.msra.mxu0 %v3089
    %3116 = vmatmul.f32.gmra.mxu0 %v3095
    %v3117 = vpop.f32.mrf.mxu0
    %v3118 = vadd.f32 0.0, %v3117
    %3119 = vmatmul.f32.gmra.mxu0 %v3098
    %v3120 = vpop.f32.mrf.mxu0
    %v3121 = vadd.f32 0.0, %v3120
    %3122 = vdwg.mxu0
    %3123 = vrot.lane.b32.xlu0 %v711, 48
    %v3124 = vpop.permute.xlu0 %3123
    %3125 = vrot.lane.b32.xlu0 %v714, 48
    %v3126 = vpop.permute.xlu0 %3125
    %v3130 = vsel %vm1085, %v3074, 0
    %v3133 = vsel %vm1085, %v3075, 0
    %3135 = vmatpush.msra.mxu0 0.0
    %3136 = vmatpush.msra.mxu0 0.0
    %3137 = vmatpush.msra.mxu0 0.0
    %3138 = vmatpush.msra.mxu0 0.0
    %3139 = vmatpush.msra.mxu0 0.0
    %3140 = vmatpush.msra.mxu0 0.0
    %3141 = vmatpush.msra.mxu0 0.0
    %3142 = vmatpush.msra.mxu0 0.0
    %3143 = vmatpush.msra.mxu0 0.0
    %3144 = vmatpush.msra.mxu0 0.0
    %3145 = vmatpush.msra.mxu0 0.0
    %3146 = vmatpush.msra.mxu0 0.0
    %3147 = vmatpush.msra.mxu0 0.0
    %3148 = vmatpush.msra.mxu0 0.0
    %3149 = vmatpush.msra.mxu0 %v3126
    %3150 = vmatpush.msra.mxu0 %v3124
    %3151 = vmatmul.f32.gmra.mxu0 %v3130
    %v3152 = vpop.f32.mrf.mxu0
    %v3153 = vadd.f32 0.0, %v3152
    %3154 = vmatmul.f32.gmra.mxu0 %v3133
    %v3155 = vpop.f32.mrf.mxu0
    %v3156 = vadd.f32 0.0, %v3155
    %3157 = vdwg.mxu0
    %3158 = vrot.lane.b32.xlu0 %v717, 48
    %v3159 = vpop.permute.xlu0 %3158
    %3160 = vrot.lane.b32.xlu0 %v720, 48
    %v3161 = vpop.permute.xlu0 %3160
    %v3165 = vsel %vm1085, %v3076, 0
    %v3168 = vsel %vm1085, %v3077, 0
    %3170 = vmatpush.msra.mxu0 0.0
    %3171 = vmatpush.msra.mxu0 0.0
    %3172 = vmatpush.msra.mxu0 0.0
    %3173 = vmatpush.msra.mxu0 0.0
    %3174 = vmatpush.msra.mxu0 0.0
    %3175 = vmatpush.msra.mxu0 0.0
    %3176 = vmatpush.msra.mxu0 0.0
    %3177 = vmatpush.msra.mxu0 0.0
    %3178 = vmatpush.msra.mxu0 0.0
    %3179 = vmatpush.msra.mxu0 0.0
    %3180 = vmatpush.msra.mxu0 0.0
    %3181 = vmatpush.msra.mxu0 0.0
    %3182 = vmatpush.msra.mxu0 0.0
    %3183 = vmatpush.msra.mxu0 0.0
    %3184 = vmatpush.msra.mxu0 %v3161
    %3185 = vmatpush.msra.mxu0 %v3159
    %3186 = vmatmul.f32.gmra.mxu0 %v3165
    %v3187 = vpop.f32.mrf.mxu0
    %v3188 = vadd.f32 0.0, %v3187
    %3189 = vmatmul.f32.gmra.mxu0 %v3168
    %v3190 = vpop.f32.mrf.mxu0
    %v3191 = vadd.f32 0.0, %v3190
    %3192 = vdwg.mxu0
    %3193 = vrot.lane.b32.xlu0 %v723, 48
    %v3194 = vpop.permute.xlu0 %3193
    %3195 = vrot.lane.b32.xlu0 %v726, 48
    %v3196 = vpop.permute.xlu0 %3195
    %v3200 = vsel %vm1085, %v3078, 0
    %v3203 = vsel %vm1085, %v3079, 0
    %3205 = vmatpush.msra.mxu0 0.0
    %3206 = vmatpush.msra.mxu0 0.0
    %3207 = vmatpush.msra.mxu0 0.0
    %3208 = vmatpush.msra.mxu0 0.0
    %3209 = vmatpush.msra.mxu0 0.0
    %3210 = vmatpush.msra.mxu0 0.0
    %3211 = vmatpush.msra.mxu0 0.0
    %3212 = vmatpush.msra.mxu0 0.0
    %3213 = vmatpush.msra.mxu0 0.0
    %3214 = vmatpush.msra.mxu0 0.0
    %3215 = vmatpush.msra.mxu0 0.0
    %3216 = vmatpush.msra.mxu0 0.0
    %3217 = vmatpush.msra.mxu0 0.0
    %3218 = vmatpush.msra.mxu0 0.0
    %3219 = vmatpush.msra.mxu0 %v3196
    %3220 = vmatpush.msra.mxu0 %v3194
    %3221 = vmatmul.f32.gmra.mxu0 %v3200
    %v3222 = vpop.f32.mrf.mxu0
    %v3223 = vadd.f32 0.0, %v3222
    %3224 = vmatmul.f32.gmra.mxu0 %v3203
    %v3225 = vpop.f32.mrf.mxu0
    %v3226 = vadd.f32 0.0, %v3225
    %3227 = vdwg.mxu0
    %3228 = vrot.lane.b32.xlu0 %v729, 48
    %v3229 = vpop.permute.xlu0 %3228
    %3230 = vrot.lane.b32.xlu0 %v732, 48
    %v3231 = vpop.permute.xlu0 %3230
    %v3235 = vsel %vm1085, %v3080, 0
    %v3238 = vsel %vm1085, %v3081, 0
    %3240 = vmatpush.msra.mxu0 0.0
    %3241 = vmatpush.msra.mxu0 0.0
    %3242 = vmatpush.msra.mxu0 0.0
    %3243 = vmatpush.msra.mxu0 0.0
    %3244 = vmatpush.msra.mxu0 0.0
    %3245 = vmatpush.msra.mxu0 0.0
    %3246 = vmatpush.msra.mxu0 0.0
    %3247 = vmatpush.msra.mxu0 0.0
    %3248 = vmatpush.msra.mxu0 0.0
    %3249 = vmatpush.msra.mxu0 0.0
    %3250 = vmatpush.msra.mxu0 0.0
    %3251 = vmatpush.msra.mxu0 0.0
    %3252 = vmatpush.msra.mxu0 0.0
    %3253 = vmatpush.msra.mxu0 0.0
    %3254 = vmatpush.msra.mxu0 %v3231
    %3255 = vmatpush.msra.mxu0 %v3229
    %3256 = vmatmul.f32.gmra.mxu0 %v3235
    %v3257 = vpop.f32.mrf.mxu0
    %v3258 = vadd.f32 0.0, %v3257
    %3259 = vmatmul.f32.gmra.mxu0 %v3238
    %v3260 = vpop.f32.mrf.mxu0
    %v3261 = vadd.f32 0.0, %v3260
    %3262 = vdwg.mxu0
    %3263 = vrot.lane.b32.xlu0 %v735, 48
    %v3264 = vpop.permute.xlu0 %3263
    %3265 = vrot.lane.b32.xlu0 %v738, 48
    %v3266 = vpop.permute.xlu0 %3265
    %v3270 = vsel %vm1085, %v3082, 0
    %v3273 = vsel %vm1085, %v3083, 0
    %3275 = vmatpush.msra.mxu0 0.0
    %3276 = vmatpush.msra.mxu0 0.0
    %3277 = vmatpush.msra.mxu0 0.0
    %3278 = vmatpush.msra.mxu0 0.0
    %3279 = vmatpush.msra.mxu0 0.0
    %3280 = vmatpush.msra.mxu0 0.0
    %3281 = vmatpush.msra.mxu0 0.0
    %3282 = vmatpush.msra.mxu0 0.0
    %3283 = vmatpush.msra.mxu0 0.0
    %3284 = vmatpush.msra.mxu0 0.0
    %3285 = vmatpush.msra.mxu0 0.0
    %3286 = vmatpush.msra.mxu0 0.0
    %3287 = vmatpush.msra.mxu0 0.0
    %3288 = vmatpush.msra.mxu0 0.0
    %3289 = vmatpush.msra.mxu0 %v3266
    %3290 = vmatpush.msra.mxu0 %v3264
    %3291 = vmatmul.f32.gmra.mxu0 %v3270
    %v3292 = vpop.f32.mrf.mxu0
    %v3293 = vadd.f32 0.0, %v3292
    %3294 = vmatmul.f32.gmra.mxu0 %v3273
    %v3295 = vpop.f32.mrf.mxu0
    %v3296 = vadd.f32 0.0, %v3295
    %3297 = vdwg.mxu0
    %3298 = vrot.lane.b32.xlu0 %v741, 48
    %v3299 = vpop.permute.xlu0 %3298
    %3300 = vrot.lane.b32.xlu0 %v744, 48
    %v3301 = vpop.permute.xlu0 %3300
    %v3305 = vsel %vm1085, %v3084, 0
    %v3308 = vsel %vm1085, %v3085, 0
    %3310 = vmatpush.msra.mxu0 0.0
    %3311 = vmatpush.msra.mxu0 0.0
    %3312 = vmatpush.msra.mxu0 0.0
    %3313 = vmatpush.msra.mxu0 0.0
    %3314 = vmatpush.msra.mxu0 0.0
    %3315 = vmatpush.msra.mxu0 0.0
    %3316 = vmatpush.msra.mxu0 0.0
    %3317 = vmatpush.msra.mxu0 0.0
    %3318 = vmatpush.msra.mxu0 0.0
    %3319 = vmatpush.msra.mxu0 0.0
    %3320 = vmatpush.msra.mxu0 0.0
    %3321 = vmatpush.msra.mxu0 0.0
    %3322 = vmatpush.msra.mxu0 0.0
    %3323 = vmatpush.msra.mxu0 0.0
    %3324 = vmatpush.msra.mxu0 %v3301
    %3325 = vmatpush.msra.mxu0 %v3299
    %3326 = vmatmul.f32.gmra.mxu0 %v3305
    %v3327 = vpop.f32.mrf.mxu0
    %v3328 = vadd.f32 0.0, %v3327
    %3329 = vmatmul.f32.gmra.mxu0 %v3308
    %v3330 = vpop.f32.mrf.mxu0
    %v3331 = vadd.f32 0.0, %v3330
    %3332 = vdwg.mxu0
    %3333 = vrot.lane.b32.xlu0 %v747, 48
    %v3334 = vpop.permute.xlu0 %3333
    %3335 = vrot.lane.b32.xlu0 %v750, 48
    %v3336 = vpop.permute.xlu0 %3335
    %v3340 = vsel %vm1085, %v3086, 0
    %v3343 = vsel %vm1085, %v3087, 0
    %3345 = vmatpush.msra.mxu0 0.0
    %3346 = vmatpush.msra.mxu0 0.0
    %3347 = vmatpush.msra.mxu0 0.0
    %3348 = vmatpush.msra.mxu0 0.0
    %3349 = vmatpush.msra.mxu0 0.0
    %3350 = vmatpush.msra.mxu0 0.0
    %3351 = vmatpush.msra.mxu0 0.0
    %3352 = vmatpush.msra.mxu0 0.0
    %3353 = vmatpush.msra.mxu0 0.0
    %3354 = vmatpush.msra.mxu0 0.0
    %3355 = vmatpush.msra.mxu0 0.0
    %3356 = vmatpush.msra.mxu0 0.0
    %3357 = vmatpush.msra.mxu0 0.0
    %3358 = vmatpush.msra.mxu0 0.0
    %3359 = vmatpush.msra.mxu0 %v3336
    %3360 = vmatpush.msra.mxu0 %v3334
    %3361 = vmatmul.f32.gmra.mxu0 %v3340
    %v3362 = vpop.f32.mrf.mxu0
    %v3363 = vadd.f32 0.0, %v3362
    %3364 = vmatmul.f32.gmra.mxu0 %v3343
    %v3365 = vpop.f32.mrf.mxu0
    %v3366 = vadd.f32 0.0, %v3365
    %3367 = vdwg.mxu0
    %v3369 = vsel %vm762, %v3118, 0
    %v3372 = vsel %vm762, %v3121, 0
    %v3375 = vsel %vm762, %v3153, 0
    %v3378 = vsel %vm762, %v3156, 0
    %v3381 = vsel %vm762, %v3188, 0
    %v3384 = vsel %vm762, %v3191, 0
    %v3387 = vsel %vm762, %v3223, 0
    %v3390 = vsel %vm762, %v3226, 0
    %v3393 = vsel %vm762, %v3258, 0
    %v3396 = vsel %vm762, %v3261, 0
    %v3399 = vsel %vm762, %v3293, 0
    %v3402 = vsel %vm762, %v3296, 0
    %v3405 = vsel %vm762, %v3328, 0
    %v3408 = vsel %vm762, %v3331, 0
    %v3411 = vsel %vm762, %v3363, 0
    %v3414 = vsel %vm762, %v3366, 0
    %3416 = vmatpush.msra.mxu0 0.0
    %3417 = vmatpush.msra.mxu0 0.0
    %3418 = vmatpush.msra.mxu0 0.0
    %3419 = vmatpush.msra.mxu0 0.0
    %3420 = vmatpush.msra.mxu0 0.0
    %3421 = vmatpush.msra.mxu0 0.0
    %3422 = vmatpush.msra.mxu0 0.0
    %3423 = vmatpush.msra.mxu0 0.0
    %3424 = vmatpush.msra.mxu0 0.0
    %3425 = vmatpush.msra.mxu0 0.0
    %3426 = vmatpush.msra.mxu0 0.0
    %3427 = vmatpush.msra.mxu0 0.0
    %3428 = vmatpush.msra.mxu0 0.0
    %3429 = vmatpush.msra.mxu0 0.0
    %3430 = vmatpush.msra.mxu0 0.0
    %3431 = vmatpush.msra.mxu0 %v754
    %3432 = vmatmul.f32.gmra.mxu0 %v3369
    %v3433 = vpop.f32.mrf.mxu0
    %v3434 = vadd.f32 0.0, %v3433
    %3435 = vmatmul.f32.gmra.mxu0 %v3372
    %v3436 = vpop.f32.mrf.mxu0
    %v3437 = vadd.f32 0.0, %v3436
    %3438 = vmatmul.f32.gmra.mxu0 %v3375
    %v3439 = vpop.f32.mrf.mxu0
    %v3440 = vadd.f32 0.0, %v3439
    %3441 = vmatmul.f32.gmra.mxu0 %v3378
    %v3442 = vpop.f32.mrf.mxu0
    %v3443 = vadd.f32 0.0, %v3442
    %3444 = vmatmul.f32.gmra.mxu0 %v3381
    %v3445 = vpop.f32.mrf.mxu0
    %v3446 = vadd.f32 0.0, %v3445
    %3447 = vmatmul.f32.gmra.mxu0 %v3384
    %v3448 = vpop.f32.mrf.mxu0
    %v3449 = vadd.f32 0.0, %v3448
    %3450 = vmatmul.f32.gmra.mxu0 %v3387
    %v3451 = vpop.f32.mrf.mxu0
    %v3452 = vadd.f32 0.0, %v3451
    %3453 = vmatmul.f32.gmra.mxu0 %v3390
    %v3454 = vpop.f32.mrf.mxu0
    %v3455 = vadd.f32 0.0, %v3454
    %3456 = vmatmul.f32.gmra.mxu0 %v3393
    %v3457 = vpop.f32.mrf.mxu0
    %v3458 = vadd.f32 0.0, %v3457
    %3459 = vmatmul.f32.gmra.mxu0 %v3396
    %v3460 = vpop.f32.mrf.mxu0
    %v3461 = vadd.f32 0.0, %v3460
    %3462 = vmatmul.f32.gmra.mxu0 %v3399
    %v3463 = vpop.f32.mrf.mxu0
    %v3464 = vadd.f32 0.0, %v3463
    %3465 = vmatmul.f32.gmra.mxu0 %v3402
    %v3466 = vpop.f32.mrf.mxu0
    %v3467 = vadd.f32 0.0, %v3466
    %3468 = vmatmul.f32.gmra.mxu0 %v3405
    %v3469 = vpop.f32.mrf.mxu0
    %v3470 = vadd.f32 0.0, %v3469
    %3471 = vmatmul.f32.gmra.mxu0 %v3408
    %v3472 = vpop.f32.mrf.mxu0
    %v3473 = vadd.f32 0.0, %v3472
    %3474 = vmatmul.f32.gmra.mxu0 %v3411
    %v3475 = vpop.f32.mrf.mxu0
    %v3476 = vadd.f32 0.0, %v3475
    %3477 = vmatmul.f32.gmra.mxu0 %v3414
    %v3478 = vpop.f32.mrf.mxu0
    %v3479 = vadd.f32 0.0, %v3478
    %3480 = vdwg.mxu0
    %v3481 = vadd.f32 %v2521, %v3434
    %v3482 = vadd.f32 %v2524, %v3437
    %v3483 = vadd.f32 %v2527, %v3440
    %v3484 = vadd.f32 %v2530, %v3443
    %v3485 = vadd.f32 %v2533, %v3446
    %v3486 = vadd.f32 %v2536, %v3449
    %v3487 = vadd.f32 %v2539, %v3452
    %v3488 = vadd.f32 %v2542, %v3455
    %v3489 = vadd.f32 %v2545, %v3458
    %v3490 = vadd.f32 %v2548, %v3461
    %v3491 = vadd.f32 %v2551, %v3464
    %v3492 = vadd.f32 %v2554, %v3467
    %v3493 = vadd.f32 %v2557, %v3470
    %v3494 = vadd.f32 %v2560, %v3473
    %v3495 = vadd.f32 %v2563, %v3476
    %v3496 = vadd.f32 %v2566, %v3479
    %3497 = vrot.lane.b32.xlu0 %v705, 104
    %v3498 = vpop.permute.xlu0 %3497
    %3499 = vrot.lane.b32.xlu0 %v708, 104
    %v3500 = vpop.permute.xlu0 %3499
    %3501 = vrot.lane.b32.xlu0 %v705, 72
    %v3502 = vpop.permute.xlu0 %3501
    %3503 = vrot.lane.b32.xlu0 %v708, 72
    %v3504 = vpop.permute.xlu0 %3503
    %v3505 = vsel %vm762, %v3498, 0
    %v3507 = vsel %vm762, %v3500, 0
    %v3509 = vsel %vm762, %v3502, 0
    %v3511 = vsel %vm762, %v3504, 0
    %3513 = vmatpush.xpose.msra.mxu0 0.0
    %3514 = vmatpush.xpose.msra.mxu0 0.0
    %3515 = vmatpush.xpose.msra.mxu0 0.0
    %3516 = vmatpush.xpose.msra.mxu0 0.0
    %3517 = vmatpush.xpose.msra.mxu0 0.0
    %3518 = vmatpush.xpose.msra.mxu0 0.0
    %3519 = vmatpush.xpose.msra.mxu0 0.0
    %3520 = vmatpush.xpose.msra.mxu0 0.0
    %3521 = vmatpush.xpose.msra.mxu0 0.0
    %3522 = vmatpush.xpose.msra.mxu0 0.0
    %3523 = vmatpush.xpose.msra.mxu0 0.0
    %3524 = vmatpush.xpose.msra.mxu0 0.0
    %3525 = vmatpush.xpose.msra.mxu0 0.0
    %3526 = vmatpush.xpose.msra.mxu0 0.0
    %3527 = vmatpush.xpose.msra.mxu0 %v3511
    %3528 = vmatpush.xpose.msra.mxu0 %v3509
    %3529 = vmatmul.f32.gmra.mxu0 %v3505
    %v3530 = vpop.f32.mrf.mxu0
    %v3531 = vadd.f32 0.0, %v3530
    %3532 = vmatmul.f32.gmra.mxu0 %v3507
    %v3533 = vpop.f32.mrf.mxu0
    %v3534 = vadd.f32 0.0, %v3533
    %3535 = vdwg.mxu0
    %3536 = vrot.lane.b32.xlu0 %v711, 104
    %v3537 = vpop.permute.xlu0 %3536
    %3538 = vrot.lane.b32.xlu0 %v714, 104
    %v3539 = vpop.permute.xlu0 %3538
    %3540 = vrot.lane.b32.xlu0 %v711, 72
    %v3541 = vpop.permute.xlu0 %3540
    %3542 = vrot.lane.b32.xlu0 %v714, 72
    %v3543 = vpop.permute.xlu0 %3542
    %v3544 = vsel %vm762, %v3537, 0
    %v3546 = vsel %vm762, %v3539, 0
    %v3548 = vsel %vm762, %v3541, 0
    %v3550 = vsel %vm762, %v3543, 0
    %3552 = vmatpush.xpose.msra.mxu0 0.0
    %3553 = vmatpush.xpose.msra.mxu0 0.0
    %3554 = vmatpush.xpose.msra.mxu0 0.0
    %3555 = vmatpush.xpose.msra.mxu0 0.0
    %3556 = vmatpush.xpose.msra.mxu0 0.0
    %3557 = vmatpush.xpose.msra.mxu0 0.0
    %3558 = vmatpush.xpose.msra.mxu0 0.0
    %3559 = vmatpush.xpose.msra.mxu0 0.0
    %3560 = vmatpush.xpose.msra.mxu0 0.0
    %3561 = vmatpush.xpose.msra.mxu0 0.0
    %3562 = vmatpush.xpose.msra.mxu0 0.0
    %3563 = vmatpush.xpose.msra.mxu0 0.0
    %3564 = vmatpush.xpose.msra.mxu0 0.0
    %3565 = vmatpush.xpose.msra.mxu0 0.0
    %3566 = vmatpush.xpose.msra.mxu0 %v3550
    %3567 = vmatpush.xpose.msra.mxu0 %v3548
    %3568 = vmatmul.f32.gmra.mxu0 %v3544
    %v3569 = vpop.f32.mrf.mxu0
    %v3570 = vadd.f32 0.0, %v3569
    %3571 = vmatmul.f32.gmra.mxu0 %v3546
    %v3572 = vpop.f32.mrf.mxu0
    %v3573 = vadd.f32 0.0, %v3572
    %3574 = vdwg.mxu0
    %3575 = vrot.lane.b32.xlu0 %v717, 104
    %v3576 = vpop.permute.xlu0 %3575
    %3577 = vrot.lane.b32.xlu0 %v720, 104
    %v3578 = vpop.permute.xlu0 %3577
    %3579 = vrot.lane.b32.xlu0 %v717, 72
    %v3580 = vpop.permute.xlu0 %3579
    %3581 = vrot.lane.b32.xlu0 %v720, 72
    %v3582 = vpop.permute.xlu0 %3581
    %v3583 = vsel %vm762, %v3576, 0
    %v3585 = vsel %vm762, %v3578, 0
    %v3587 = vsel %vm762, %v3580, 0
    %v3589 = vsel %vm762, %v3582, 0
    %3591 = vmatpush.xpose.msra.mxu0 0.0
    %3592 = vmatpush.xpose.msra.mxu0 0.0
    %3593 = vmatpush.xpose.msra.mxu0 0.0
    %3594 = vmatpush.xpose.msra.mxu0 0.0
    %3595 = vmatpush.xpose.msra.mxu0 0.0
    %3596 = vmatpush.xpose.msra.mxu0 0.0
    %3597 = vmatpush.xpose.msra.mxu0 0.0
    %3598 = vmatpush.xpose.msra.mxu0 0.0
    %3599 = vmatpush.xpose.msra.mxu0 0.0
    %3600 = vmatpush.xpose.msra.mxu0 0.0
    %3601 = vmatpush.xpose.msra.mxu0 0.0
    %3602 = vmatpush.xpose.msra.mxu0 0.0
    %3603 = vmatpush.xpose.msra.mxu0 0.0
    %3604 = vmatpush.xpose.msra.mxu0 0.0
    %3605 = vmatpush.xpose.msra.mxu0 %v3589
    %3606 = vmatpush.xpose.msra.mxu0 %v3587
    %3607 = vmatmul.f32.gmra.mxu0 %v3583
    %v3608 = vpop.f32.mrf.mxu0
    %v3609 = vadd.f32 0.0, %v3608
    %3610 = vmatmul.f32.gmra.mxu0 %v3585
    %v3611 = vpop.f32.mrf.mxu0
    %v3612 = vadd.f32 0.0, %v3611
    %3613 = vdwg.mxu0
    %3614 = vrot.lane.b32.xlu0 %v723, 104
    %v3615 = vpop.permute.xlu0 %3614
    %3616 = vrot.lane.b32.xlu0 %v726, 104
    %v3617 = vpop.permute.xlu0 %3616
    %3618 = vrot.lane.b32.xlu0 %v723, 72
    %v3619 = vpop.permute.xlu0 %3618
    %3620 = vrot.lane.b32.xlu0 %v726, 72
    %v3621 = vpop.permute.xlu0 %3620
    %v3622 = vsel %vm762, %v3615, 0
    %v3624 = vsel %vm762, %v3617, 0
    %v3626 = vsel %vm762, %v3619, 0
    %v3628 = vsel %vm762, %v3621, 0
    %3630 = vmatpush.xpose.msra.mxu0 0.0
    %3631 = vmatpush.xpose.msra.mxu0 0.0
    %3632 = vmatpush.xpose.msra.mxu0 0.0
    %3633 = vmatpush.xpose.msra.mxu0 0.0
    %3634 = vmatpush.xpose.msra.mxu0 0.0
    %3635 = vmatpush.xpose.msra.mxu0 0.0
    %3636 = vmatpush.xpose.msra.mxu0 0.0
    %3637 = vmatpush.xpose.msra.mxu0 0.0
    %3638 = vmatpush.xpose.msra.mxu0 0.0
    %3639 = vmatpush.xpose.msra.mxu0 0.0
    %3640 = vmatpush.xpose.msra.mxu0 0.0
    %3641 = vmatpush.xpose.msra.mxu0 0.0
    %3642 = vmatpush.xpose.msra.mxu0 0.0
    %3643 = vmatpush.xpose.msra.mxu0 0.0
    %3644 = vmatpush.xpose.msra.mxu0 %v3628
    %3645 = vmatpush.xpose.msra.mxu0 %v3626
    %3646 = vmatmul.f32.gmra.mxu0 %v3622
    %v3647 = vpop.f32.mrf.mxu0
    %v3648 = vadd.f32 0.0, %v3647
    %3649 = vmatmul.f32.gmra.mxu0 %v3624
    %v3650 = vpop.f32.mrf.mxu0
    %v3651 = vadd.f32 0.0, %v3650
    %3652 = vdwg.mxu0
    %3653 = vrot.lane.b32.xlu0 %v729, 104
    %v3654 = vpop.permute.xlu0 %3653
    %3655 = vrot.lane.b32.xlu0 %v732, 104
    %v3656 = vpop.permute.xlu0 %3655
    %3657 = vrot.lane.b32.xlu0 %v729, 72
    %v3658 = vpop.permute.xlu0 %3657
    %3659 = vrot.lane.b32.xlu0 %v732, 72
    %v3660 = vpop.permute.xlu0 %3659
    %v3661 = vsel %vm762, %v3654, 0
    %v3663 = vsel %vm762, %v3656, 0
    %v3665 = vsel %vm762, %v3658, 0
    %v3667 = vsel %vm762, %v3660, 0
    %3669 = vmatpush.xpose.msra.mxu0 0.0
    %3670 = vmatpush.xpose.msra.mxu0 0.0
    %3671 = vmatpush.xpose.msra.mxu0 0.0
    %3672 = vmatpush.xpose.msra.mxu0 0.0
    %3673 = vmatpush.xpose.msra.mxu0 0.0
    %3674 = vmatpush.xpose.msra.mxu0 0.0
    %3675 = vmatpush.xpose.msra.mxu0 0.0
    %3676 = vmatpush.xpose.msra.mxu0 0.0
    %3677 = vmatpush.xpose.msra.mxu0 0.0
    %3678 = vmatpush.xpose.msra.mxu0 0.0
    %3679 = vmatpush.xpose.msra.mxu0 0.0
    %3680 = vmatpush.xpose.msra.mxu0 0.0
    %3681 = vmatpush.xpose.msra.mxu0 0.0
    %3682 = vmatpush.xpose.msra.mxu0 0.0
    %3683 = vmatpush.xpose.msra.mxu0 %v3667
    %3684 = vmatpush.xpose.msra.mxu0 %v3665
    %3685 = vmatmul.f32.gmra.mxu0 %v3661
    %v3686 = vpop.f32.mrf.mxu0
    %v3687 = vadd.f32 0.0, %v3686
    %3688 = vmatmul.f32.gmra.mxu0 %v3663
    %v3689 = vpop.f32.mrf.mxu0
    %v3690 = vadd.f32 0.0, %v3689
    %3691 = vdwg.mxu0
    %3692 = vrot.lane.b32.xlu0 %v735, 104
    %v3693 = vpop.permute.xlu0 %3692
    %3694 = vrot.lane.b32.xlu0 %v738, 104
    %v3695 = vpop.permute.xlu0 %3694
    %3696 = vrot.lane.b32.xlu0 %v735, 72
    %v3697 = vpop.permute.xlu0 %3696
    %3698 = vrot.lane.b32.xlu0 %v738, 72
    %v3699 = vpop.permute.xlu0 %3698
    %v3700 = vsel %vm762, %v3693, 0
    %v3702 = vsel %vm762, %v3695, 0
    %v3704 = vsel %vm762, %v3697, 0
    %v3706 = vsel %vm762, %v3699, 0
    %3708 = vmatpush.xpose.msra.mxu0 0.0
    %3709 = vmatpush.xpose.msra.mxu0 0.0
    %3710 = vmatpush.xpose.msra.mxu0 0.0
    %3711 = vmatpush.xpose.msra.mxu0 0.0
    %3712 = vmatpush.xpose.msra.mxu0 0.0
    %3713 = vmatpush.xpose.msra.mxu0 0.0
    %3714 = vmatpush.xpose.msra.mxu0 0.0
    %3715 = vmatpush.xpose.msra.mxu0 0.0
    %3716 = vmatpush.xpose.msra.mxu0 0.0
    %3717 = vmatpush.xpose.msra.mxu0 0.0
    %3718 = vmatpush.xpose.msra.mxu0 0.0
    %3719 = vmatpush.xpose.msra.mxu0 0.0
    %3720 = vmatpush.xpose.msra.mxu0 0.0
    %3721 = vmatpush.xpose.msra.mxu0 0.0
    %3722 = vmatpush.xpose.msra.mxu0 %v3706
    %3723 = vmatpush.xpose.msra.mxu0 %v3704
    %3724 = vmatmul.f32.gmra.mxu0 %v3700
    %v3725 = vpop.f32.mrf.mxu0
    %v3726 = vadd.f32 0.0, %v3725
    %3727 = vmatmul.f32.gmra.mxu0 %v3702
    %v3728 = vpop.f32.mrf.mxu0
    %v3729 = vadd.f32 0.0, %v3728
    %3730 = vdwg.mxu0
    %3731 = vrot.lane.b32.xlu0 %v741, 104
    %v3732 = vpop.permute.xlu0 %3731
    %3733 = vrot.lane.b32.xlu0 %v744, 104
    %v3734 = vpop.permute.xlu0 %3733
    %3735 = vrot.lane.b32.xlu0 %v741, 72
    %v3736 = vpop.permute.xlu0 %3735
    %3737 = vrot.lane.b32.xlu0 %v744, 72
    %v3738 = vpop.permute.xlu0 %3737
    %v3739 = vsel %vm762, %v3732, 0
    %v3741 = vsel %vm762, %v3734, 0
    %v3743 = vsel %vm762, %v3736, 0
    %v3745 = vsel %vm762, %v3738, 0
    %3747 = vmatpush.xpose.msra.mxu0 0.0
    %3748 = vmatpush.xpose.msra.mxu0 0.0
    %3749 = vmatpush.xpose.msra.mxu0 0.0
    %3750 = vmatpush.xpose.msra.mxu0 0.0
    %3751 = vmatpush.xpose.msra.mxu0 0.0
    %3752 = vmatpush.xpose.msra.mxu0 0.0
    %3753 = vmatpush.xpose.msra.mxu0 0.0
    %3754 = vmatpush.xpose.msra.mxu0 0.0
    %3755 = vmatpush.xpose.msra.mxu0 0.0
    %3756 = vmatpush.xpose.msra.mxu0 0.0
    %3757 = vmatpush.xpose.msra.mxu0 0.0
    %3758 = vmatpush.xpose.msra.mxu0 0.0
    %3759 = vmatpush.xpose.msra.mxu0 0.0
    %3760 = vmatpush.xpose.msra.mxu0 0.0
    %3761 = vmatpush.xpose.msra.mxu0 %v3745
    %3762 = vmatpush.xpose.msra.mxu0 %v3743
    %3763 = vmatmul.f32.gmra.mxu0 %v3739
    %v3764 = vpop.f32.mrf.mxu0
    %v3765 = vadd.f32 0.0, %v3764
    %3766 = vmatmul.f32.gmra.mxu0 %v3741
    %v3767 = vpop.f32.mrf.mxu0
    %v3768 = vadd.f32 0.0, %v3767
    %3769 = vdwg.mxu0
    %3770 = vrot.lane.b32.xlu0 %v747, 104
    %v3771 = vpop.permute.xlu0 %3770
    %3772 = vrot.lane.b32.xlu0 %v750, 104
    %v3773 = vpop.permute.xlu0 %3772
    %3774 = vrot.lane.b32.xlu0 %v747, 72
    %v3775 = vpop.permute.xlu0 %3774
    %3776 = vrot.lane.b32.xlu0 %v750, 72
    %v3777 = vpop.permute.xlu0 %3776
    %v3778 = vsel %vm762, %v3771, 0
    %v3780 = vsel %vm762, %v3773, 0
    %v3782 = vsel %vm762, %v3775, 0
    %v3784 = vsel %vm762, %v3777, 0
    %3786 = vmatpush.xpose.msra.mxu0 0.0
    %3787 = vmatpush.xpose.msra.mxu0 0.0
    %3788 = vmatpush.xpose.msra.mxu0 0.0
    %3789 = vmatpush.xpose.msra.mxu0 0.0
    %3790 = vmatpush.xpose.msra.mxu0 0.0
    %3791 = vmatpush.xpose.msra.mxu0 0.0
    %3792 = vmatpush.xpose.msra.mxu0 0.0
    %3793 = vmatpush.xpose.msra.mxu0 0.0
    %3794 = vmatpush.xpose.msra.mxu0 0.0
    %3795 = vmatpush.xpose.msra.mxu0 0.0
    %3796 = vmatpush.xpose.msra.mxu0 0.0
    %3797 = vmatpush.xpose.msra.mxu0 0.0
    %3798 = vmatpush.xpose.msra.mxu0 0.0
    %3799 = vmatpush.xpose.msra.mxu0 0.0
    %3800 = vmatpush.xpose.msra.mxu0 %v3784
    %3801 = vmatpush.xpose.msra.mxu0 %v3782
    %3802 = vmatmul.f32.gmra.mxu0 %v3778
    %v3803 = vpop.f32.mrf.mxu0
    %v3804 = vadd.f32 0.0, %v3803
    %3805 = vmatmul.f32.gmra.mxu0 %v3780
    %v3806 = vpop.f32.mrf.mxu0
    %v3807 = vadd.f32 0.0, %v3806
    %3808 = vdwg.mxu0
    %v3809 = vmul.f32 %v3531, 0.35355338
    %v3810 = vmul.f32 %v3534, 0.35355338
    %v3811 = vmul.f32 %v3570, 0.35355338
    %v3812 = vmul.f32 %v3573, 0.35355338
    %v3813 = vmul.f32 %v3609, 0.35355338
    %v3814 = vmul.f32 %v3612, 0.35355338
    %v3815 = vmul.f32 %v3648, 0.35355338
    %v3816 = vmul.f32 %v3651, 0.35355338
    %v3817 = vmul.f32 %v3687, 0.35355338
    %v3818 = vmul.f32 %v3690, 0.35355338
    %v3819 = vmul.f32 %v3726, 0.35355338
    %v3820 = vmul.f32 %v3729, 0.35355338
    %v3821 = vmul.f32 %v3765, 0.35355338
    %v3822 = vmul.f32 %v3768, 0.35355338
    %v3823 = vmul.f32 %v3804, 0.35355338
    %v3824 = vmul.f32 %v3807, 0.35355338
    %v3825 = vadd.f32 %v3809, %v240
    %v3826 = vadd.f32 %v3810, %v240
    %v3827 = vadd.f32 %v3811, %v240
    %v3828 = vadd.f32 %v3812, %v240
    %v3829 = vadd.f32 %v3813, %v240
    %v3830 = vadd.f32 %v3814, %v240
    %v3831 = vadd.f32 %v3815, %v240
    %v3832 = vadd.f32 %v3816, %v240
    %v3833 = vadd.f32 %v3817, %v240
    %v3834 = vadd.f32 %v3818, %v240
    %v3835 = vadd.f32 %v3819, %v240
    %v3836 = vadd.f32 %v3820, %v240
    %v3837 = vadd.f32 %v3821, %v240
    %v3838 = vadd.f32 %v3822, %v240
    %v3839 = vadd.f32 %v3823, %v240
    %v3840 = vadd.f32 %v3824, %v240
    %v3841 = vsel %vm1085, %v3825, -inf
    %3842 = vmax.xlane.f32.xlu0 %v3841
    %v3843 = vpop.xlane.xlu0 %3842
    %v3844 = vsel %vm1085, %v3826, -inf
    %3845 = vmax.xlane.f32.xlu0 %v3844
    %v3846 = vpop.xlane.xlu0 %3845
    %v3847 = vsel %vm1085, %v3827, -inf
    %3848 = vmax.xlane.f32.xlu0 %v3847
    %v3849 = vpop.xlane.xlu0 %3848
    %v3850 = vsel %vm1085, %v3828, -inf
    %3851 = vmax.xlane.f32.xlu0 %v3850
    %v3852 = vpop.xlane.xlu0 %3851
    %v3853 = vsel %vm1085, %v3829, -inf
    %3854 = vmax.xlane.f32.xlu0 %v3853
    %v3855 = vpop.xlane.xlu0 %3854
    %v3856 = vsel %vm1085, %v3830, -inf
    %3857 = vmax.xlane.f32.xlu0 %v3856
    %v3858 = vpop.xlane.xlu0 %3857
    %v3859 = vsel %vm1085, %v3831, -inf
    %3860 = vmax.xlane.f32.xlu0 %v3859
    %v3861 = vpop.xlane.xlu0 %3860
    %v3862 = vsel %vm1085, %v3832, -inf
    %3863 = vmax.xlane.f32.xlu0 %v3862
    %v3864 = vpop.xlane.xlu0 %3863
    %v3865 = vsel %vm1085, %v3833, -inf
    %3866 = vmax.xlane.f32.xlu0 %v3865
    %v3867 = vpop.xlane.xlu0 %3866
    %v3868 = vsel %vm1085, %v3834, -inf
    %3869 = vmax.xlane.f32.xlu0 %v3868
    %v3870 = vpop.xlane.xlu0 %3869
    %v3871 = vsel %vm1085, %v3835, -inf
    %3872 = vmax.xlane.f32.xlu0 %v3871
    %v3873 = vpop.xlane.xlu0 %3872
    %v3874 = vsel %vm1085, %v3836, -inf
    %3875 = vmax.xlane.f32.xlu0 %v3874
    %v3876 = vpop.xlane.xlu0 %3875
    %v3877 = vsel %vm1085, %v3837, -inf
    %3878 = vmax.xlane.f32.xlu0 %v3877
    %v3879 = vpop.xlane.xlu0 %3878
    %v3880 = vsel %vm1085, %v3838, -inf
    %3881 = vmax.xlane.f32.xlu0 %v3880
    %v3882 = vpop.xlane.xlu0 %3881
    %v3883 = vsel %vm1085, %v3839, -inf
    %3884 = vmax.xlane.f32.xlu0 %v3883
    %v3885 = vpop.xlane.xlu0 %3884
    %v3886 = vsel %vm1085, %v3840, -inf
    %3887 = vmax.xlane.f32.xlu0 %v3886
    %v3888 = vpop.xlane.xlu0 %3887
    %v3889 = vsub.f32 %v3825, %v3843
    %v3890 = vsub.f32 %v3826, %v3846
    %v3891 = vsub.f32 %v3827, %v3849
    %v3892 = vsub.f32 %v3828, %v3852
    %v3893 = vsub.f32 %v3829, %v3855
    %v3894 = vsub.f32 %v3830, %v3858
    %v3895 = vsub.f32 %v3831, %v3861
    %v3896 = vsub.f32 %v3832, %v3864
    %v3897 = vsub.f32 %v3833, %v3867
    %v3898 = vsub.f32 %v3834, %v3870
    %v3899 = vsub.f32 %v3835, %v3873
    %v3900 = vsub.f32 %v3836, %v3876
    %v3901 = vsub.f32 %v3837, %v3879
    %v3902 = vsub.f32 %v3838, %v3882
    %v3903 = vsub.f32 %v3839, %v3885
    %v3904 = vsub.f32 %v3840, %v3888
    %v3905 = vmul.f32 %v3889, 1.442695
    %v3906 = vpow.pop %v3905
    %v3907 = vmul.f32 %v3890, 1.442695
    %v3908 = vpow.pop %v3907
    %v3909 = vmul.f32 %v3891, 1.442695
    %v3910 = vpow.pop %v3909
    %v3911 = vmul.f32 %v3892, 1.442695
    %v3912 = vpow.pop %v3911
    %v3913 = vmul.f32 %v3893, 1.442695
    %v3914 = vpow.pop %v3913
    %v3915 = vmul.f32 %v3894, 1.442695
    %v3916 = vpow.pop %v3915
    %v3917 = vmul.f32 %v3895, 1.442695
    %v3918 = vpow.pop %v3917
    %v3919 = vmul.f32 %v3896, 1.442695
    %v3920 = vpow.pop %v3919
    %v3921 = vmul.f32 %v3897, 1.442695
    %v3922 = vpow.pop %v3921
    %v3923 = vmul.f32 %v3898, 1.442695
    %v3924 = vpow.pop %v3923
    %v3925 = vmul.f32 %v3899, 1.442695
    %v3926 = vpow.pop %v3925
    %v3927 = vmul.f32 %v3900, 1.442695
    %v3928 = vpow.pop %v3927
    %v3929 = vmul.f32 %v3901, 1.442695
    %v3930 = vpow.pop %v3929
    %v3931 = vmul.f32 %v3902, 1.442695
    %v3932 = vpow.pop %v3931
    %v3933 = vmul.f32 %v3903, 1.442695
    %v3934 = vpow.pop %v3933
    %v3935 = vmul.f32 %v3904, 1.442695
    %v3936 = vpow.pop %v3935
    %v3937 = vsel %vm1085, %v3906, 0.0
    %3938 = vadd.xlane.f32.xlu0 %v3937
    %v3939 = vpop.xlane.xlu0 %3938
    %v3940 = vsel %vm1085, %v3908, 0.0
    %3941 = vadd.xlane.f32.xlu0 %v3940
    %v3942 = vpop.xlane.xlu0 %3941
    %v3943 = vsel %vm1085, %v3910, 0.0
    %3944 = vadd.xlane.f32.xlu0 %v3943
    %v3945 = vpop.xlane.xlu0 %3944
    %v3946 = vsel %vm1085, %v3912, 0.0
    %3947 = vadd.xlane.f32.xlu0 %v3946
    %v3948 = vpop.xlane.xlu0 %3947
    %v3949 = vsel %vm1085, %v3914, 0.0
    %3950 = vadd.xlane.f32.xlu0 %v3949
    %v3951 = vpop.xlane.xlu0 %3950
    %v3952 = vsel %vm1085, %v3916, 0.0
    %3953 = vadd.xlane.f32.xlu0 %v3952
    %v3954 = vpop.xlane.xlu0 %3953
    %v3955 = vsel %vm1085, %v3918, 0.0
    %3956 = vadd.xlane.f32.xlu0 %v3955
    %v3957 = vpop.xlane.xlu0 %3956
    %v3958 = vsel %vm1085, %v3920, 0.0
    %3959 = vadd.xlane.f32.xlu0 %v3958
    %v3960 = vpop.xlane.xlu0 %3959
    %v3961 = vsel %vm1085, %v3922, 0.0
    %3962 = vadd.xlane.f32.xlu0 %v3961
    %v3963 = vpop.xlane.xlu0 %3962
    %v3964 = vsel %vm1085, %v3924, 0.0
    %3965 = vadd.xlane.f32.xlu0 %v3964
    %v3966 = vpop.xlane.xlu0 %3965
    %v3967 = vsel %vm1085, %v3926, 0.0
    %3968 = vadd.xlane.f32.xlu0 %v3967
    %v3969 = vpop.xlane.xlu0 %3968
    %v3970 = vsel %vm1085, %v3928, 0.0
    %3971 = vadd.xlane.f32.xlu0 %v3970
    %v3972 = vpop.xlane.xlu0 %3971
    %v3973 = vsel %vm1085, %v3930, 0.0
    %3974 = vadd.xlane.f32.xlu0 %v3973
    %v3975 = vpop.xlane.xlu0 %3974
    %v3976 = vsel %vm1085, %v3932, 0.0
    %3977 = vadd.xlane.f32.xlu0 %v3976
    %v3978 = vpop.xlane.xlu0 %3977
    %v3979 = vsel %vm1085, %v3934, 0.0
    %3980 = vadd.xlane.f32.xlu0 %v3979
    %v3981 = vpop.xlane.xlu0 %3980
    %v3982 = vsel %vm1085, %v3936, 0.0
    %3983 = vadd.xlane.f32.xlu0 %v3982
    %v3984 = vpop.xlane.xlu0 %3983
    %v3985 = vrcp.pop %v3939
    %v3986 = vrcp.pop %v3942
    %v3987 = vrcp.pop %v3945
    %v3988 = vrcp.pop %v3948
    %v3989 = vrcp.pop %v3951
    %v3990 = vrcp.pop %v3954
    %v3991 = vrcp.pop %v3957
    %v3992 = vrcp.pop %v3960
    %v3993 = vrcp.pop %v3963
    %v3994 = vrcp.pop %v3966
    %v3995 = vrcp.pop %v3969
    %v3996 = vrcp.pop %v3972
    %v3997 = vrcp.pop %v3975
    %v3998 = vrcp.pop %v3978
    %v3999 = vrcp.pop %v3981
    %v4000 = vrcp.pop %v3984
    %v4001 = vmul.f32 %v3906, %v3985
    %v4002 = vmul.f32 %v3908, %v3986
    %v4003 = vmul.f32 %v3910, %v3987
    %v4004 = vmul.f32 %v3912, %v3988
    %v4005 = vmul.f32 %v3914, %v3989
    %v4006 = vmul.f32 %v3916, %v3990
    %v4007 = vmul.f32 %v3918, %v3991
    %v4008 = vmul.f32 %v3920, %v3992
    %v4009 = vmul.f32 %v3922, %v3993
    %v4010 = vmul.f32 %v3924, %v3994
    %v4011 = vmul.f32 %v3926, %v3995
    %v4012 = vmul.f32 %v3928, %v3996
    %v4013 = vmul.f32 %v3930, %v3997
    %v4014 = vmul.f32 %v3932, %v3998
    %v4015 = vmul.f32 %v3934, %v3999
    %v4016 = vmul.f32 %v3936, %v4000
    %4017 = vrot.lane.b32.xlu0 %v705, 40
    %v4018 = vpop.permute.xlu0 %4017
    %4019 = vrot.lane.b32.xlu0 %v708, 40
    %v4020 = vpop.permute.xlu0 %4019
    %v4024 = vsel %vm1085, %v4001, 0
    %v4027 = vsel %vm1085, %v4002, 0
    %4029 = vmatpush.msra.mxu0 0.0
    %4030 = vmatpush.msra.mxu0 0.0
    %4031 = vmatpush.msra.mxu0 0.0
    %4032 = vmatpush.msra.mxu0 0.0
    %4033 = vmatpush.msra.mxu0 0.0
    %4034 = vmatpush.msra.mxu0 0.0
    %4035 = vmatpush.msra.mxu0 0.0
    %4036 = vmatpush.msra.mxu0 0.0
    %4037 = vmatpush.msra.mxu0 0.0
    %4038 = vmatpush.msra.mxu0 0.0
    %4039 = vmatpush.msra.mxu0 0.0
    %4040 = vmatpush.msra.mxu0 0.0
    %4041 = vmatpush.msra.mxu0 0.0
    %4042 = vmatpush.msra.mxu0 0.0
    %4043 = vmatpush.msra.mxu0 %v4020
    %4044 = vmatpush.msra.mxu0 %v4018
    %4045 = vmatmul.f32.gmra.mxu0 %v4024
    %v4046 = vpop.f32.mrf.mxu0
    %v4047 = vadd.f32 0.0, %v4046
    %4048 = vmatmul.f32.gmra.mxu0 %v4027
    %v4049 = vpop.f32.mrf.mxu0
    %v4050 = vadd.f32 0.0, %v4049
    %4051 = vdwg.mxu0
    %4052 = vrot.lane.b32.xlu0 %v711, 40
    %v4053 = vpop.permute.xlu0 %4052
    %4054 = vrot.lane.b32.xlu0 %v714, 40
    %v4055 = vpop.permute.xlu0 %4054
    %v4059 = vsel %vm1085, %v4003, 0
    %v4062 = vsel %vm1085, %v4004, 0
    %4064 = vmatpush.msra.mxu0 0.0
    %4065 = vmatpush.msra.mxu0 0.0
    %4066 = vmatpush.msra.mxu0 0.0
    %4067 = vmatpush.msra.mxu0 0.0
    %4068 = vmatpush.msra.mxu0 0.0
    %4069 = vmatpush.msra.mxu0 0.0
    %4070 = vmatpush.msra.mxu0 0.0
    %4071 = vmatpush.msra.mxu0 0.0
    %4072 = vmatpush.msra.mxu0 0.0
    %4073 = vmatpush.msra.mxu0 0.0
    %4074 = vmatpush.msra.mxu0 0.0
    %4075 = vmatpush.msra.mxu0 0.0
    %4076 = vmatpush.msra.mxu0 0.0
    %4077 = vmatpush.msra.mxu0 0.0
    %4078 = vmatpush.msra.mxu0 %v4055
    %4079 = vmatpush.msra.mxu0 %v4053
    %4080 = vmatmul.f32.gmra.mxu0 %v4059
    %v4081 = vpop.f32.mrf.mxu0
    %v4082 = vadd.f32 0.0, %v4081
    %4083 = vmatmul.f32.gmra.mxu0 %v4062
    %v4084 = vpop.f32.mrf.mxu0
    %v4085 = vadd.f32 0.0, %v4084
    %4086 = vdwg.mxu0
    %4087 = vrot.lane.b32.xlu0 %v717, 40
    %v4088 = vpop.permute.xlu0 %4087
    %4089 = vrot.lane.b32.xlu0 %v720, 40
    %v4090 = vpop.permute.xlu0 %4089
    %v4094 = vsel %vm1085, %v4005, 0
    %v4097 = vsel %vm1085, %v4006, 0
    %4099 = vmatpush.msra.mxu0 0.0
    %4100 = vmatpush.msra.mxu0 0.0
    %4101 = vmatpush.msra.mxu0 0.0
    %4102 = vmatpush.msra.mxu0 0.0
    %4103 = vmatpush.msra.mxu0 0.0
    %4104 = vmatpush.msra.mxu0 0.0
    %4105 = vmatpush.msra.mxu0 0.0
    %4106 = vmatpush.msra.mxu0 0.0
    %4107 = vmatpush.msra.mxu0 0.0
    %4108 = vmatpush.msra.mxu0 0.0
    %4109 = vmatpush.msra.mxu0 0.0
    %4110 = vmatpush.msra.mxu0 0.0
    %4111 = vmatpush.msra.mxu0 0.0
    %4112 = vmatpush.msra.mxu0 0.0
    %4113 = vmatpush.msra.mxu0 %v4090
    %4114 = vmatpush.msra.mxu0 %v4088
    %4115 = vmatmul.f32.gmra.mxu0 %v4094
    %v4116 = vpop.f32.mrf.mxu0
    %v4117 = vadd.f32 0.0, %v4116
    %4118 = vmatmul.f32.gmra.mxu0 %v4097
    %v4119 = vpop.f32.mrf.mxu0
    %v4120 = vadd.f32 0.0, %v4119
    %4121 = vdwg.mxu0
    %4122 = vrot.lane.b32.xlu0 %v723, 40
    %v4123 = vpop.permute.xlu0 %4122
    %4124 = vrot.lane.b32.xlu0 %v726, 40
    %v4125 = vpop.permute.xlu0 %4124
    %v4129 = vsel %vm1085, %v4007, 0
    %v4132 = vsel %vm1085, %v4008, 0
    %4134 = vmatpush.msra.mxu0 0.0
    %4135 = vmatpush.msra.mxu0 0.0
    %4136 = vmatpush.msra.mxu0 0.0
    %4137 = vmatpush.msra.mxu0 0.0
    %4138 = vmatpush.msra.mxu0 0.0
    %4139 = vmatpush.msra.mxu0 0.0
    %4140 = vmatpush.msra.mxu0 0.0
    %4141 = vmatpush.msra.mxu0 0.0
    %4142 = vmatpush.msra.mxu0 0.0
    %4143 = vmatpush.msra.mxu0 0.0
    %4144 = vmatpush.msra.mxu0 0.0
    %4145 = vmatpush.msra.mxu0 0.0
    %4146 = vmatpush.msra.mxu0 0.0
    %4147 = vmatpush.msra.mxu0 0.0
    %4148 = vmatpush.msra.mxu0 %v4125
    %4149 = vmatpush.msra.mxu0 %v4123
    %4150 = vmatmul.f32.gmra.mxu0 %v4129
    %v4151 = vpop.f32.mrf.mxu0
    %v4152 = vadd.f32 0.0, %v4151
    %4153 = vmatmul.f32.gmra.mxu0 %v4132
    %v4154 = vpop.f32.mrf.mxu0
    %v4155 = vadd.f32 0.0, %v4154
    %4156 = vdwg.mxu0
    %4157 = vrot.lane.b32.xlu0 %v729, 40
    %v4158 = vpop.permute.xlu0 %4157
    %4159 = vrot.lane.b32.xlu0 %v732, 40
    %v4160 = vpop.permute.xlu0 %4159
    %v4164 = vsel %vm1085, %v4009, 0
    %v4167 = vsel %vm1085, %v4010, 0
    %4169 = vmatpush.msra.mxu0 0.0
    %4170 = vmatpush.msra.mxu0 0.0
    %4171 = vmatpush.msra.mxu0 0.0
    %4172 = vmatpush.msra.mxu0 0.0
    %4173 = vmatpush.msra.mxu0 0.0
    %4174 = vmatpush.msra.mxu0 0.0
    %4175 = vmatpush.msra.mxu0 0.0
    %4176 = vmatpush.msra.mxu0 0.0
    %4177 = vmatpush.msra.mxu0 0.0
    %4178 = vmatpush.msra.mxu0 0.0
    %4179 = vmatpush.msra.mxu0 0.0
    %4180 = vmatpush.msra.mxu0 0.0
    %4181 = vmatpush.msra.mxu0 0.0
    %4182 = vmatpush.msra.mxu0 0.0
    %4183 = vmatpush.msra.mxu0 %v4160
    %4184 = vmatpush.msra.mxu0 %v4158
    %4185 = vmatmul.f32.gmra.mxu0 %v4164
    %v4186 = vpop.f32.mrf.mxu0
    %v4187 = vadd.f32 0.0, %v4186
    %4188 = vmatmul.f32.gmra.mxu0 %v4167
    %v4189 = vpop.f32.mrf.mxu0
    %v4190 = vadd.f32 0.0, %v4189
    %4191 = vdwg.mxu0
    %4192 = vrot.lane.b32.xlu0 %v735, 40
    %v4193 = vpop.permute.xlu0 %4192
    %4194 = vrot.lane.b32.xlu0 %v738, 40
    %v4195 = vpop.permute.xlu0 %4194
    %v4199 = vsel %vm1085, %v4011, 0
    %v4202 = vsel %vm1085, %v4012, 0
    %4204 = vmatpush.msra.mxu0 0.0
    %4205 = vmatpush.msra.mxu0 0.0
    %4206 = vmatpush.msra.mxu0 0.0
    %4207 = vmatpush.msra.mxu0 0.0
    %4208 = vmatpush.msra.mxu0 0.0
    %4209 = vmatpush.msra.mxu0 0.0
    %4210 = vmatpush.msra.mxu0 0.0
    %4211 = vmatpush.msra.mxu0 0.0
    %4212 = vmatpush.msra.mxu0 0.0
    %4213 = vmatpush.msra.mxu0 0.0
    %4214 = vmatpush.msra.mxu0 0.0
    %4215 = vmatpush.msra.mxu0 0.0
    %4216 = vmatpush.msra.mxu0 0.0
    %4217 = vmatpush.msra.mxu0 0.0
    %4218 = vmatpush.msra.mxu0 %v4195
    %4219 = vmatpush.msra.mxu0 %v4193
    %4220 = vmatmul.f32.gmra.mxu0 %v4199
    %v4221 = vpop.f32.mrf.mxu0
    %v4222 = vadd.f32 0.0, %v4221
    %4223 = vmatmul.f32.gmra.mxu0 %v4202
    %v4224 = vpop.f32.mrf.mxu0
    %v4225 = vadd.f32 0.0, %v4224
    %4226 = vdwg.mxu0
    %4227 = vrot.lane.b32.xlu0 %v741, 40
    %v4228 = vpop.permute.xlu0 %4227
    %4229 = vrot.lane.b32.xlu0 %v744, 40
    %v4230 = vpop.permute.xlu0 %4229
    %v4234 = vsel %vm1085, %v4013, 0
    %v4237 = vsel %vm1085, %v4014, 0
    %4239 = vmatpush.msra.mxu0 0.0
    %4240 = vmatpush.msra.mxu0 0.0
    %4241 = vmatpush.msra.mxu0 0.0
    %4242 = vmatpush.msra.mxu0 0.0
    %4243 = vmatpush.msra.mxu0 0.0
    %4244 = vmatpush.msra.mxu0 0.0
    %4245 = vmatpush.msra.mxu0 0.0
    %4246 = vmatpush.msra.mxu0 0.0
    %4247 = vmatpush.msra.mxu0 0.0
    %4248 = vmatpush.msra.mxu0 0.0
    %4249 = vmatpush.msra.mxu0 0.0
    %4250 = vmatpush.msra.mxu0 0.0
    %4251 = vmatpush.msra.mxu0 0.0
    %4252 = vmatpush.msra.mxu0 0.0
    %4253 = vmatpush.msra.mxu0 %v4230
    %4254 = vmatpush.msra.mxu0 %v4228
    %4255 = vmatmul.f32.gmra.mxu0 %v4234
    %v4256 = vpop.f32.mrf.mxu0
    %v4257 = vadd.f32 0.0, %v4256
    %4258 = vmatmul.f32.gmra.mxu0 %v4237
    %v4259 = vpop.f32.mrf.mxu0
    %v4260 = vadd.f32 0.0, %v4259
    %4261 = vdwg.mxu0
    %4262 = vrot.lane.b32.xlu0 %v747, 40
    %v4263 = vpop.permute.xlu0 %4262
    %4264 = vrot.lane.b32.xlu0 %v750, 40
    %v4265 = vpop.permute.xlu0 %4264
    %v4269 = vsel %vm1085, %v4015, 0
    %v4272 = vsel %vm1085, %v4016, 0
    %4274 = vmatpush.msra.mxu0 0.0
    %4275 = vmatpush.msra.mxu0 0.0
    %4276 = vmatpush.msra.mxu0 0.0
    %4277 = vmatpush.msra.mxu0 0.0
    %4278 = vmatpush.msra.mxu0 0.0
    %4279 = vmatpush.msra.mxu0 0.0
    %4280 = vmatpush.msra.mxu0 0.0
    %4281 = vmatpush.msra.mxu0 0.0
    %4282 = vmatpush.msra.mxu0 0.0
    %4283 = vmatpush.msra.mxu0 0.0
    %4284 = vmatpush.msra.mxu0 0.0
    %4285 = vmatpush.msra.mxu0 0.0
    %4286 = vmatpush.msra.mxu0 0.0
    %4287 = vmatpush.msra.mxu0 0.0
    %4288 = vmatpush.msra.mxu0 %v4265
    %4289 = vmatpush.msra.mxu0 %v4263
    %4290 = vmatmul.f32.gmra.mxu0 %v4269
    %v4291 = vpop.f32.mrf.mxu0
    %v4292 = vadd.f32 0.0, %v4291
    %4293 = vmatmul.f32.gmra.mxu0 %v4272
    %v4294 = vpop.f32.mrf.mxu0
    %v4295 = vadd.f32 0.0, %v4294
    %4296 = vdwg.mxu0
    %v4298 = vsel %vm762, %v4047, 0
    %v4301 = vsel %vm762, %v4050, 0
    %v4304 = vsel %vm762, %v4082, 0
    %v4307 = vsel %vm762, %v4085, 0
    %v4310 = vsel %vm762, %v4117, 0
    %v4313 = vsel %vm762, %v4120, 0
    %v4316 = vsel %vm762, %v4152, 0
    %v4319 = vsel %vm762, %v4155, 0
    %v4322 = vsel %vm762, %v4187, 0
    %v4325 = vsel %vm762, %v4190, 0
    %v4328 = vsel %vm762, %v4222, 0
    %v4331 = vsel %vm762, %v4225, 0
    %v4334 = vsel %vm762, %v4257, 0
    %v4337 = vsel %vm762, %v4260, 0
    %v4340 = vsel %vm762, %v4292, 0
    %v4343 = vsel %vm762, %v4295, 0
    %4345 = vmatpush.msra.mxu0 0.0
    %4346 = vmatpush.msra.mxu0 0.0
    %4347 = vmatpush.msra.mxu0 0.0
    %4348 = vmatpush.msra.mxu0 0.0
    %4349 = vmatpush.msra.mxu0 0.0
    %4350 = vmatpush.msra.mxu0 0.0
    %4351 = vmatpush.msra.mxu0 0.0
    %4352 = vmatpush.msra.mxu0 0.0
    %4353 = vmatpush.msra.mxu0 0.0
    %4354 = vmatpush.msra.mxu0 0.0
    %4355 = vmatpush.msra.mxu0 0.0
    %4356 = vmatpush.msra.mxu0 0.0
    %4357 = vmatpush.msra.mxu0 0.0
    %4358 = vmatpush.msra.mxu0 0.0
    %4359 = vmatpush.msra.mxu0 0.0
    %4360 = vmatpush.msra.mxu0 %v755
    %4361 = vmatmul.f32.gmra.mxu0 %v4298
    %v4362 = vpop.f32.mrf.mxu0
    %v4363 = vadd.f32 0.0, %v4362
    %4364 = vmatmul.f32.gmra.mxu0 %v4301
    %v4365 = vpop.f32.mrf.mxu0
    %v4366 = vadd.f32 0.0, %v4365
    %4367 = vmatmul.f32.gmra.mxu0 %v4304
    %v4368 = vpop.f32.mrf.mxu0
    %v4369 = vadd.f32 0.0, %v4368
    %4370 = vmatmul.f32.gmra.mxu0 %v4307
    %v4371 = vpop.f32.mrf.mxu0
    %v4372 = vadd.f32 0.0, %v4371
    %4373 = vmatmul.f32.gmra.mxu0 %v4310
    %v4374 = vpop.f32.mrf.mxu0
    %v4375 = vadd.f32 0.0, %v4374
    %4376 = vmatmul.f32.gmra.mxu0 %v4313
    %v4377 = vpop.f32.mrf.mxu0
    %v4378 = vadd.f32 0.0, %v4377
    %4379 = vmatmul.f32.gmra.mxu0 %v4316
    %v4380 = vpop.f32.mrf.mxu0
    %v4381 = vadd.f32 0.0, %v4380
    %4382 = vmatmul.f32.gmra.mxu0 %v4319
    %v4383 = vpop.f32.mrf.mxu0
    %v4384 = vadd.f32 0.0, %v4383
    %4385 = vmatmul.f32.gmra.mxu0 %v4322
    %v4386 = vpop.f32.mrf.mxu0
    %v4387 = vadd.f32 0.0, %v4386
    %4388 = vmatmul.f32.gmra.mxu0 %v4325
    %v4389 = vpop.f32.mrf.mxu0
    %v4390 = vadd.f32 0.0, %v4389
    %4391 = vmatmul.f32.gmra.mxu0 %v4328
    %v4392 = vpop.f32.mrf.mxu0
    %v4393 = vadd.f32 0.0, %v4392
    %4394 = vmatmul.f32.gmra.mxu0 %v4331
    %v4395 = vpop.f32.mrf.mxu0
    %v4396 = vadd.f32 0.0, %v4395
    %4397 = vmatmul.f32.gmra.mxu0 %v4334
    %v4398 = vpop.f32.mrf.mxu0
    %v4399 = vadd.f32 0.0, %v4398
    %4400 = vmatmul.f32.gmra.mxu0 %v4337
    %v4401 = vpop.f32.mrf.mxu0
    %v4402 = vadd.f32 0.0, %v4401
    %4403 = vmatmul.f32.gmra.mxu0 %v4340
    %v4404 = vpop.f32.mrf.mxu0
    %v4405 = vadd.f32 0.0, %v4404
    %4406 = vmatmul.f32.gmra.mxu0 %v4343
    %v4407 = vpop.f32.mrf.mxu0
    %v4408 = vadd.f32 0.0, %v4407
    %4409 = vdwg.mxu0
    %v4410 = vadd.f32 %v3481, %v4363
    %v4411 = vadd.f32 %v3482, %v4366
    %v4412 = vadd.f32 %v3483, %v4369
    %v4413 = vadd.f32 %v3484, %v4372
    %v4414 = vadd.f32 %v3485, %v4375
    %v4415 = vadd.f32 %v3486, %v4378
    %v4416 = vadd.f32 %v3487, %v4381
    %v4417 = vadd.f32 %v3488, %v4384
    %v4418 = vadd.f32 %v3489, %v4387
    %v4419 = vadd.f32 %v3490, %v4390
    %v4420 = vadd.f32 %v3491, %v4393
    %v4421 = vadd.f32 %v3492, %v4396
    %v4422 = vadd.f32 %v3493, %v4399
    %v4423 = vadd.f32 %v3494, %v4402
    %v4424 = vadd.f32 %v3495, %v4405
    %v4425 = vadd.f32 %v3496, %v4408
    %v4426 = vadd.f32 %v221, %v4410
    %v4427 = vadd.f32 %v222, %v4411
    %v4428 = vadd.f32 %v223, %v4412
    %v4429 = vadd.f32 %v224, %v4413
    %v4430 = vadd.f32 %v225, %v4414
    %v4431 = vadd.f32 %v226, %v4415
    %v4432 = vadd.f32 %v227, %v4416
    %v4433 = vadd.f32 %v228, %v4417
    %v4434 = vadd.f32 %v229, %v4418
    %v4435 = vadd.f32 %v230, %v4419
    %v4436 = vadd.f32 %v231, %v4420
    %v4437 = vadd.f32 %v232, %v4421
    %v4438 = vadd.f32 %v233, %v4422
    %v4439 = vadd.f32 %v234, %v4423
    %v4440 = vadd.f32 %v235, %v4424
    %v4441 = vadd.f32 %v236, %v4425
    %v4442 = vperm.slane %v241, 2
    %v4443 = vadd.f32 %v4426, %v4442
    %v4444 = vadd.f32 %v4427, %v4442
    %v4445 = vadd.f32 %v4428, %v4442
    %v4446 = vadd.f32 %v4429, %v4442
    %v4447 = vadd.f32 %v4430, %v4442
    %v4448 = vadd.f32 %v4431, %v4442
    %v4449 = vadd.f32 %v4432, %v4442
    %v4450 = vadd.f32 %v4433, %v4442
    %v4451 = vadd.f32 %v4434, %v4442
    %v4452 = vadd.f32 %v4435, %v4442
    %v4453 = vadd.f32 %v4436, %v4442
    %v4454 = vadd.f32 %v4437, %v4442
    %v4455 = vadd.f32 %v4438, %v4442
    %v4456 = vadd.f32 %v4439, %v4442
    %v4457 = vadd.f32 %v4440, %v4442
    %v4458 = vadd.f32 %v4441, %v4442
    %v4459 = vsel %vm203, %v4443, 0.0
    %4460 = vadd.xlane.f32.xlu0 %v4459
    %v4461 = vpop.xlane.xlu0 %4460
    %v4462 = vsel %vm203, %v4444, 0.0
    %4463 = vadd.xlane.f32.xlu0 %v4462
    %v4464 = vpop.xlane.xlu0 %4463
    %v4465 = vsel %vm203, %v4445, 0.0
    %4466 = vadd.xlane.f32.xlu0 %v4465
    %v4467 = vpop.xlane.xlu0 %4466
    %v4468 = vsel %vm203, %v4446, 0.0
    %4469 = vadd.xlane.f32.xlu0 %v4468
    %v4470 = vpop.xlane.xlu0 %4469
    %v4471 = vsel %vm203, %v4447, 0.0
    %4472 = vadd.xlane.f32.xlu0 %v4471
    %v4473 = vpop.xlane.xlu0 %4472
    %v4474 = vsel %vm203, %v4448, 0.0
    %4475 = vadd.xlane.f32.xlu0 %v4474
    %v4476 = vpop.xlane.xlu0 %4475
    %v4477 = vsel %vm203, %v4449, 0.0
    %4478 = vadd.xlane.f32.xlu0 %v4477
    %v4479 = vpop.xlane.xlu0 %4478
    %v4480 = vsel %vm203, %v4450, 0.0
    %4481 = vadd.xlane.f32.xlu0 %v4480
    %v4482 = vpop.xlane.xlu0 %4481
    %v4483 = vsel %vm203, %v4451, 0.0
    %4484 = vadd.xlane.f32.xlu0 %v4483
    %v4485 = vpop.xlane.xlu0 %4484
    %v4486 = vsel %vm203, %v4452, 0.0
    %4487 = vadd.xlane.f32.xlu0 %v4486
    %v4488 = vpop.xlane.xlu0 %4487
    %v4489 = vsel %vm203, %v4453, 0.0
    %4490 = vadd.xlane.f32.xlu0 %v4489
    %v4491 = vpop.xlane.xlu0 %4490
    %v4492 = vsel %vm203, %v4454, 0.0
    %4493 = vadd.xlane.f32.xlu0 %v4492
    %v4494 = vpop.xlane.xlu0 %4493
    %v4495 = vsel %vm203, %v4455, 0.0
    %4496 = vadd.xlane.f32.xlu0 %v4495
    %v4497 = vpop.xlane.xlu0 %4496
    %v4498 = vsel %vm203, %v4456, 0.0
    %4499 = vadd.xlane.f32.xlu0 %v4498
    %v4500 = vpop.xlane.xlu0 %4499
    %v4501 = vsel %vm203, %v4457, 0.0
    %4502 = vadd.xlane.f32.xlu0 %v4501
    %v4503 = vpop.xlane.xlu0 %4502
    %v4504 = vsel %vm203, %v4458, 0.0
    %4505 = vadd.xlane.f32.xlu0 %v4504
    %v4506 = vpop.xlane.xlu0 %4505
    %v4507 = vmul.f32 %v4461, %v296
    %v4508 = vmul.f32 %v4464, %v296
    %v4509 = vmul.f32 %v4467, %v296
    %v4510 = vmul.f32 %v4470, %v296
    %v4511 = vmul.f32 %v4473, %v296
    %v4512 = vmul.f32 %v4476, %v296
    %v4513 = vmul.f32 %v4479, %v296
    %v4514 = vmul.f32 %v4482, %v296
    %v4515 = vmul.f32 %v4485, %v296
    %v4516 = vmul.f32 %v4488, %v296
    %v4517 = vmul.f32 %v4491, %v296
    %v4518 = vmul.f32 %v4494, %v296
    %v4519 = vmul.f32 %v4497, %v296
    %v4520 = vmul.f32 %v4500, %v296
    %v4521 = vmul.f32 %v4503, %v296
    %v4522 = vmul.f32 %v4506, %v296
    %v4523 = vsub.f32 %v4443, %v4507
    %v4524 = vsub.f32 %v4444, %v4508
    %v4525 = vsub.f32 %v4445, %v4509
    %v4526 = vsub.f32 %v4446, %v4510
    %v4527 = vsub.f32 %v4447, %v4511
    %v4528 = vsub.f32 %v4448, %v4512
    %v4529 = vsub.f32 %v4449, %v4513
    %v4530 = vsub.f32 %v4450, %v4514
    %v4531 = vsub.f32 %v4451, %v4515
    %v4532 = vsub.f32 %v4452, %v4516
    %v4533 = vsub.f32 %v4453, %v4517
    %v4534 = vsub.f32 %v4454, %v4518
    %v4535 = vsub.f32 %v4455, %v4519
    %v4536 = vsub.f32 %v4456, %v4520
    %v4537 = vsub.f32 %v4457, %v4521
    %v4538 = vsub.f32 %v4458, %v4522
    %v4539 = vmul.f32 %v4523, %v4523
    %v4540 = vmul.f32 %v4524, %v4524
    %v4541 = vmul.f32 %v4525, %v4525
    %v4542 = vmul.f32 %v4526, %v4526
    %v4543 = vmul.f32 %v4527, %v4527
    %v4544 = vmul.f32 %v4528, %v4528
    %v4545 = vmul.f32 %v4529, %v4529
    %v4546 = vmul.f32 %v4530, %v4530
    %v4547 = vmul.f32 %v4531, %v4531
    %v4548 = vmul.f32 %v4532, %v4532
    %v4549 = vmul.f32 %v4533, %v4533
    %v4550 = vmul.f32 %v4534, %v4534
    %v4551 = vmul.f32 %v4535, %v4535
    %v4552 = vmul.f32 %v4536, %v4536
    %v4553 = vmul.f32 %v4537, %v4537
    %v4554 = vmul.f32 %v4538, %v4538
    %v4555 = vsel %vm203, %v4539, 0.0
    %4556 = vadd.xlane.f32.xlu0 %v4555
    %v4557 = vpop.xlane.xlu0 %4556
    %v4558 = vsel %vm203, %v4540, 0.0
    %4559 = vadd.xlane.f32.xlu0 %v4558
    %v4560 = vpop.xlane.xlu0 %4559
    %v4561 = vsel %vm203, %v4541, 0.0
    %4562 = vadd.xlane.f32.xlu0 %v4561
    %v4563 = vpop.xlane.xlu0 %4562
    %v4564 = vsel %vm203, %v4542, 0.0
    %4565 = vadd.xlane.f32.xlu0 %v4564
    %v4566 = vpop.xlane.xlu0 %4565
    %v4567 = vsel %vm203, %v4543, 0.0
    %4568 = vadd.xlane.f32.xlu0 %v4567
    %v4569 = vpop.xlane.xlu0 %4568
    %v4570 = vsel %vm203, %v4544, 0.0
    %4571 = vadd.xlane.f32.xlu0 %v4570
    %v4572 = vpop.xlane.xlu0 %4571
    %v4573 = vsel %vm203, %v4545, 0.0
    %4574 = vadd.xlane.f32.xlu0 %v4573
    %v4575 = vpop.xlane.xlu0 %4574
    %v4576 = vsel %vm203, %v4546, 0.0
    %4577 = vadd.xlane.f32.xlu0 %v4576
    %v4578 = vpop.xlane.xlu0 %4577
    %v4579 = vsel %vm203, %v4547, 0.0
    %4580 = vadd.xlane.f32.xlu0 %v4579
    %v4581 = vpop.xlane.xlu0 %4580
    %v4582 = vsel %vm203, %v4548, 0.0
    %4583 = vadd.xlane.f32.xlu0 %v4582
    %v4584 = vpop.xlane.xlu0 %4583
    %v4585 = vsel %vm203, %v4549, 0.0
    %4586 = vadd.xlane.f32.xlu0 %v4585
    %v4587 = vpop.xlane.xlu0 %4586
    %v4588 = vsel %vm203, %v4550, 0.0
    %4589 = vadd.xlane.f32.xlu0 %v4588
    %v4590 = vpop.xlane.xlu0 %4589
    %v4591 = vsel %vm203, %v4551, 0.0
    %4592 = vadd.xlane.f32.xlu0 %v4591
    %v4593 = vpop.xlane.xlu0 %4592
    %v4594 = vsel %vm203, %v4552, 0.0
    %4595 = vadd.xlane.f32.xlu0 %v4594
    %v4596 = vpop.xlane.xlu0 %4595
    %v4597 = vsel %vm203, %v4553, 0.0
    %4598 = vadd.xlane.f32.xlu0 %v4597
    %v4599 = vpop.xlane.xlu0 %4598
    %v4600 = vsel %vm203, %v4554, 0.0
    %4601 = vadd.xlane.f32.xlu0 %v4600
    %v4602 = vpop.xlane.xlu0 %4601
    %v4603 = vmul.f32 %v4557, %v296
    %v4604 = vmul.f32 %v4560, %v296
    %v4605 = vmul.f32 %v4563, %v296
    %v4606 = vmul.f32 %v4566, %v296
    %v4607 = vmul.f32 %v4569, %v296
    %v4608 = vmul.f32 %v4572, %v296
    %v4609 = vmul.f32 %v4575, %v296
    %v4610 = vmul.f32 %v4578, %v296
    %v4611 = vmul.f32 %v4581, %v296
    %v4612 = vmul.f32 %v4584, %v296
    %v4613 = vmul.f32 %v4587, %v296
    %v4614 = vmul.f32 %v4590, %v296
    %v4615 = vmul.f32 %v4593, %v296
    %v4616 = vmul.f32 %v4596, %v296
    %v4617 = vmul.f32 %v4599, %v296
    %v4618 = vmul.f32 %v4602, %v296
    %v4619 = vadd.f32 %v4603, 1e-05
    %v4620 = vadd.f32 %v4604, 1e-05
    %v4621 = vadd.f32 %v4605, 1e-05
    %v4622 = vadd.f32 %v4606, 1e-05
    %v4623 = vadd.f32 %v4607, 1e-05
    %v4624 = vadd.f32 %v4608, 1e-05
    %v4625 = vadd.f32 %v4609, 1e-05
    %v4626 = vadd.f32 %v4610, 1e-05
    %v4627 = vadd.f32 %v4611, 1e-05
    %v4628 = vadd.f32 %v4612, 1e-05
    %v4629 = vadd.f32 %v4613, 1e-05
    %v4630 = vadd.f32 %v4614, 1e-05
    %v4631 = vadd.f32 %v4615, 1e-05
    %v4632 = vadd.f32 %v4616, 1e-05
    %v4633 = vadd.f32 %v4617, 1e-05
    %v4634 = vadd.f32 %v4618, 1e-05
    %v4635 = vrsqrt.pop %v4619
    %v4636 = vmul.f32 %v4635, %v4619
    %v4637 = vmul.f32 %v4636, %v4635
    %v4638 = vmul.f32 0.5, %v4637
    %v4639 = vsub.f32 1.5, %v4638
    %v4640 = vmul.f32 %v4635, %v4639
    %vm4641 = vweird.f32 %v4619
    %vm4642 = vweird.f32 %v4635
    %vm4643 = vmor %vm4641, %vm4642
    %v4644 = vsel %vm4643, %v4635, %v4640
    %v4645 = vrsqrt.pop %v4620
    %v4646 = vmul.f32 %v4645, %v4620
    %v4647 = vmul.f32 %v4646, %v4645
    %v4648 = vmul.f32 0.5, %v4647
    %v4649 = vsub.f32 1.5, %v4648
    %v4650 = vmul.f32 %v4645, %v4649
    %vm4651 = vweird.f32 %v4620
    %vm4652 = vweird.f32 %v4645
    %vm4653 = vmor %vm4651, %vm4652
    %v4654 = vsel %vm4653, %v4645, %v4650
    %v4655 = vrsqrt.pop %v4621
    %v4656 = vmul.f32 %v4655, %v4621
    %v4657 = vmul.f32 %v4656, %v4655
    %v4658 = vmul.f32 0.5, %v4657
    %v4659 = vsub.f32 1.5, %v4658
    %v4660 = vmul.f32 %v4655, %v4659
    %vm4661 = vweird.f32 %v4621
    %vm4662 = vweird.f32 %v4655
    %vm4663 = vmor %vm4661, %vm4662
    %v4664 = vsel %vm4663, %v4655, %v4660
    %v4665 = vrsqrt.pop %v4622
    %v4666 = vmul.f32 %v4665, %v4622
    %v4667 = vmul.f32 %v4666, %v4665
    %v4668 = vmul.f32 0.5, %v4667
    %v4669 = vsub.f32 1.5, %v4668
    %v4670 = vmul.f32 %v4665, %v4669
    %vm4671 = vweird.f32 %v4622
    %vm4672 = vweird.f32 %v4665
    %vm4673 = vmor %vm4671, %vm4672
    %v4674 = vsel %vm4673, %v4665, %v4670
    %v4675 = vrsqrt.pop %v4623
    %v4676 = vmul.f32 %v4675, %v4623
    %v4677 = vmul.f32 %v4676, %v4675
    %v4678 = vmul.f32 0.5, %v4677
    %v4679 = vsub.f32 1.5, %v4678
    %v4680 = vmul.f32 %v4675, %v4679
    %vm4681 = vweird.f32 %v4623
    %vm4682 = vweird.f32 %v4675
    %vm4683 = vmor %vm4681, %vm4682
    %v4684 = vsel %vm4683, %v4675, %v4680
    %v4685 = vrsqrt.pop %v4624
    %v4686 = vmul.f32 %v4685, %v4624
    %v4687 = vmul.f32 %v4686, %v4685
    %v4688 = vmul.f32 0.5, %v4687
    %v4689 = vsub.f32 1.5, %v4688
    %v4690 = vmul.f32 %v4685, %v4689
    %vm4691 = vweird.f32 %v4624
    %vm4692 = vweird.f32 %v4685
    %vm4693 = vmor %vm4691, %vm4692
    %v4694 = vsel %vm4693, %v4685, %v4690
    %v4695 = vrsqrt.pop %v4625
    %v4696 = vmul.f32 %v4695, %v4625
    %v4697 = vmul.f32 %v4696, %v4695
    %v4698 = vmul.f32 0.5, %v4697
    %v4699 = vsub.f32 1.5, %v4698
    %v4700 = vmul.f32 %v4695, %v4699
    %vm4701 = vweird.f32 %v4625
    %vm4702 = vweird.f32 %v4695
    %vm4703 = vmor %vm4701, %vm4702
    %v4704 = vsel %vm4703, %v4695, %v4700
    %v4705 = vrsqrt.pop %v4626
    %v4706 = vmul.f32 %v4705, %v4626
    %v4707 = vmul.f32 %v4706, %v4705
    %v4708 = vmul.f32 0.5, %v4707
    %v4709 = vsub.f32 1.5, %v4708
    %v4710 = vmul.f32 %v4705, %v4709
    %vm4711 = vweird.f32 %v4626
    %vm4712 = vweird.f32 %v4705
    %vm4713 = vmor %vm4711, %vm4712
    %v4714 = vsel %vm4713, %v4705, %v4710
    %v4715 = vrsqrt.pop %v4627
    %v4716 = vmul.f32 %v4715, %v4627
    %v4717 = vmul.f32 %v4716, %v4715
    %v4718 = vmul.f32 0.5, %v4717
    %v4719 = vsub.f32 1.5, %v4718
    %v4720 = vmul.f32 %v4715, %v4719
    %vm4721 = vweird.f32 %v4627
    %vm4722 = vweird.f32 %v4715
    %vm4723 = vmor %vm4721, %vm4722
    %v4724 = vsel %vm4723, %v4715, %v4720
    %v4725 = vrsqrt.pop %v4628
    %v4726 = vmul.f32 %v4725, %v4628
    %v4727 = vmul.f32 %v4726, %v4725
    %v4728 = vmul.f32 0.5, %v4727
    %v4729 = vsub.f32 1.5, %v4728
    %v4730 = vmul.f32 %v4725, %v4729
    %vm4731 = vweird.f32 %v4628
    %vm4732 = vweird.f32 %v4725
    %vm4733 = vmor %vm4731, %vm4732
    %v4734 = vsel %vm4733, %v4725, %v4730
    %v4735 = vrsqrt.pop %v4629
    %v4736 = vmul.f32 %v4735, %v4629
    %v4737 = vmul.f32 %v4736, %v4735
    %v4738 = vmul.f32 0.5, %v4737
    %v4739 = vsub.f32 1.5, %v4738
    %v4740 = vmul.f32 %v4735, %v4739
    %vm4741 = vweird.f32 %v4629
    %vm4742 = vweird.f32 %v4735
    %vm4743 = vmor %vm4741, %vm4742
    %v4744 = vsel %vm4743, %v4735, %v4740
    %v4745 = vrsqrt.pop %v4630
    %v4746 = vmul.f32 %v4745, %v4630
    %v4747 = vmul.f32 %v4746, %v4745
    %v4748 = vmul.f32 0.5, %v4747
    %v4749 = vsub.f32 1.5, %v4748
    %v4750 = vmul.f32 %v4745, %v4749
    %vm4751 = vweird.f32 %v4630
    %vm4752 = vweird.f32 %v4745
    %vm4753 = vmor %vm4751, %vm4752
    %v4754 = vsel %vm4753, %v4745, %v4750
    %v4755 = vrsqrt.pop %v4631
    %v4756 = vmul.f32 %v4755, %v4631
    %v4757 = vmul.f32 %v4756, %v4755
    %v4758 = vmul.f32 0.5, %v4757
    %v4759 = vsub.f32 1.5, %v4758
    %v4760 = vmul.f32 %v4755, %v4759
    %vm4761 = vweird.f32 %v4631
    %vm4762 = vweird.f32 %v4755
    %vm4763 = vmor %vm4761, %vm4762
    %v4764 = vsel %vm4763, %v4755, %v4760
    %v4765 = vrsqrt.pop %v4632
    %v4766 = vmul.f32 %v4765, %v4632
    %v4767 = vmul.f32 %v4766, %v4765
    %v4768 = vmul.f32 0.5, %v4767
    %v4769 = vsub.f32 1.5, %v4768
    %v4770 = vmul.f32 %v4765, %v4769
    %vm4771 = vweird.f32 %v4632
    %vm4772 = vweird.f32 %v4765
    %vm4773 = vmor %vm4771, %vm4772
    %v4774 = vsel %vm4773, %v4765, %v4770
    %v4775 = vrsqrt.pop %v4633
    %v4776 = vmul.f32 %v4775, %v4633
    %v4777 = vmul.f32 %v4776, %v4775
    %v4778 = vmul.f32 0.5, %v4777
    %v4779 = vsub.f32 1.5, %v4778
    %v4780 = vmul.f32 %v4775, %v4779
    %vm4781 = vweird.f32 %v4633
    %vm4782 = vweird.f32 %v4775
    %vm4783 = vmor %vm4781, %vm4782
    %v4784 = vsel %vm4783, %v4775, %v4780
    %v4785 = vrsqrt.pop %v4634
    %v4786 = vmul.f32 %v4785, %v4634
    %v4787 = vmul.f32 %v4786, %v4785
    %v4788 = vmul.f32 0.5, %v4787
    %v4789 = vsub.f32 1.5, %v4788
    %v4790 = vmul.f32 %v4785, %v4789
    %vm4791 = vweird.f32 %v4634
    %vm4792 = vweird.f32 %v4785
    %vm4793 = vmor %vm4791, %vm4792
    %v4794 = vsel %vm4793, %v4785, %v4790
    %v4795 = vmul.f32 %v4523, %v4644
    %v4796 = vmul.f32 %v4524, %v4654
    %v4797 = vmul.f32 %v4525, %v4664
    %v4798 = vmul.f32 %v4526, %v4674
    %v4799 = vmul.f32 %v4527, %v4684
    %v4800 = vmul.f32 %v4528, %v4694
    %v4801 = vmul.f32 %v4529, %v4704
    %v4802 = vmul.f32 %v4530, %v4714
    %v4803 = vmul.f32 %v4531, %v4724
    %v4804 = vmul.f32 %v4532, %v4734
    %v4805 = vmul.f32 %v4533, %v4744
    %v4806 = vmul.f32 %v4534, %v4754
    %v4807 = vmul.f32 %v4535, %v4764
    %v4808 = vmul.f32 %v4536, %v4774
    %v4809 = vmul.f32 %v4537, %v4784
    %v4810 = vmul.f32 %v4538, %v4794
    %v4811 = vperm.slane %v241, 3
    %v4812 = vmul.f32 %v4795, %v4811
    %v4813 = vmul.f32 %v4796, %v4811
    %v4814 = vmul.f32 %v4797, %v4811
    %v4815 = vmul.f32 %v4798, %v4811
    %v4816 = vmul.f32 %v4799, %v4811
    %v4817 = vmul.f32 %v4800, %v4811
    %v4818 = vmul.f32 %v4801, %v4811
    %v4819 = vmul.f32 %v4802, %v4811
    %v4820 = vmul.f32 %v4803, %v4811
    %v4821 = vmul.f32 %v4804, %v4811
    %v4822 = vmul.f32 %v4805, %v4811
    %v4823 = vmul.f32 %v4806, %v4811
    %v4824 = vmul.f32 %v4807, %v4811
    %v4825 = vmul.f32 %v4808, %v4811
    %v4826 = vmul.f32 %v4809, %v4811
    %v4827 = vmul.f32 %v4810, %v4811
    %v4828 = vperm.slane %v241, 4
    %v4829 = vadd.f32 %v4812, %v4828
    %v4830 = vadd.f32 %v4813, %v4828
    %v4831 = vadd.f32 %v4814, %v4828
    %v4832 = vadd.f32 %v4815, %v4828
    %v4833 = vadd.f32 %v4816, %v4828
    %v4834 = vadd.f32 %v4817, %v4828
    %v4835 = vadd.f32 %v4818, %v4828
    %v4836 = vadd.f32 %v4819, %v4828
    %v4837 = vadd.f32 %v4820, %v4828
    %v4838 = vadd.f32 %v4821, %v4828
    %v4839 = vadd.f32 %v4822, %v4828
    %v4840 = vadd.f32 %v4823, %v4828
    %v4841 = vadd.f32 %v4824, %v4828
    %v4842 = vadd.f32 %v4825, %v4828
    %v4843 = vadd.f32 %v4826, %v4828
    %v4844 = vadd.f32 %v4827, %v4828
    %v4845 = vld [vmem:[%s5] sm:$0xff]
    %v4846 = vld [vmem:[%s5 + $0x8] sm:$0xff]
    %v4847 = vld [vmem:[%s5 + $0x10] sm:$0xff]
    %v4848 = vld [vmem:[%s5 + $0x18] sm:$0xff]
    %v4849 = vld [vmem:[%s5 + $0x20] sm:$0x1]
    %v4850 = vperm.slane %v4849, 0
    %v4852 = vsel %vm203, %v4829, 0
    %v4855 = vsel %vm203, %v4830, 0
    %v4858 = vsel %vm203, %v4831, 0
    %v4861 = vsel %vm203, %v4832, 0
    %v4864 = vsel %vm203, %v4833, 0
    %v4867 = vsel %vm203, %v4834, 0
    %v4870 = vsel %vm203, %v4835, 0
    %v4873 = vsel %vm203, %v4836, 0
    %v4876 = vsel %vm203, %v4837, 0
    %v4879 = vsel %vm203, %v4838, 0
    %v4882 = vsel %vm203, %v4839, 0
    %v4885 = vsel %vm203, %v4840, 0
    %v4888 = vsel %vm203, %v4841, 0
    %v4891 = vsel %vm203, %v4842, 0
    %v4894 = vsel %vm203, %v4843, 0
    %v4897 = vsel %vm203, %v4844, 0
    %4899 = vmatpush.msra.mxu0 0.0
    %4900 = vmatpush.msra.mxu0 0.0
    %4901 = vmatpush.msra.mxu0 0.0
    %4902 = vmatpush.msra.mxu0 0.0
    %4903 = vmatpush.msra.mxu0 0.0
    %4904 = vmatpush.msra.mxu0 0.0
    %4905 = vmatpush.msra.mxu0 0.0
    %4906 = vmatpush.msra.mxu0 0.0
    %4907 = vmatpush.msra.mxu0 0.0
    %4908 = vmatpush.msra.mxu0 0.0
    %4909 = vmatpush.msra.mxu0 0.0
    %4910 = vmatpush.msra.mxu0 0.0
    %4911 = vmatpush.msra.mxu0 %v4848
    %4912 = vmatpush.msra.mxu0 %v4847
    %4913 = vmatpush.msra.mxu0 %v4846
    %4914 = vmatpush.msra.mxu0 %v4845
    %4915 = vmatmul.f32.gmra.mxu0 %v4852
    %v4916 = vpop.f32.mrf.mxu0
    %v4917 = vadd.f32 %v4850, %v4916
    %4918 = vmatmul.f32.gmra.mxu0 %v4855
    %v4919 = vpop.f32.mrf.mxu0
    %v4920 = vadd.f32 %v4850, %v4919
    %4921 = vmatmul.f32.gmra.mxu0 %v4858
    %v4922 = vpop.f32.mrf.mxu0
    %v4923 = vadd.f32 %v4850, %v4922
    %4924 = vmatmul.f32.gmra.mxu0 %v4861
    %v4925 = vpop.f32.mrf.mxu0
    %v4926 = vadd.f32 %v4850, %v4925
    %4927 = vmatmul.f32.gmra.mxu0 %v4864
    %v4928 = vpop.f32.mrf.mxu0
    %v4929 = vadd.f32 %v4850, %v4928
    %4930 = vmatmul.f32.gmra.mxu0 %v4867
    %v4931 = vpop.f32.mrf.mxu0
    %v4932 = vadd.f32 %v4850, %v4931
    %4933 = vmatmul.f32.gmra.mxu0 %v4870
    %v4934 = vpop.f32.mrf.mxu0
    %v4935 = vadd.f32 %v4850, %v4934
    %4936 = vmatmul.f32.gmra.mxu0 %v4873
    %v4937 = vpop.f32.mrf.mxu0
    %v4938 = vadd.f32 %v4850, %v4937
    %4939 = vmatmul.f32.gmra.mxu0 %v4876
    %v4940 = vpop.f32.mrf.mxu0
    %v4941 = vadd.f32 %v4850, %v4940
    %4942 = vmatmul.f32.gmra.mxu0 %v4879
    %v4943 = vpop.f32.mrf.mxu0
    %v4944 = vadd.f32 %v4850, %v4943
    %4945 = vmatmul.f32.gmra.mxu0 %v4882
    %v4946 = vpop.f32.mrf.mxu0
    %v4947 = vadd.f32 %v4850, %v4946
    %4948 = vmatmul.f32.gmra.mxu0 %v4885
    %v4949 = vpop.f32.mrf.mxu0
    %v4950 = vadd.f32 %v4850, %v4949
    %4951 = vmatmul.f32.gmra.mxu0 %v4888
    %v4952 = vpop.f32.mrf.mxu0
    %v4953 = vadd.f32 %v4850, %v4952
    %4954 = vmatmul.f32.gmra.mxu0 %v4891
    %v4955 = vpop.f32.mrf.mxu0
    %v4956 = vadd.f32 %v4850, %v4955
    %4957 = vmatmul.f32.gmra.mxu0 %v4894
    %v4958 = vpop.f32.mrf.mxu0
    %v4959 = vadd.f32 %v4850, %v4958
    %4960 = vmatmul.f32.gmra.mxu0 %v4897
    %v4961 = vpop.f32.mrf.mxu0
    %v4962 = vadd.f32 %v4850, %v4961
    %4963 = vdwg.mxu0
    %v4964 = vmul.f32 %v4917, 0.5
    %v4965 = vmul.f32 %v4920, 0.5
    %v4966 = vmul.f32 %v4923, 0.5
    %v4967 = vmul.f32 %v4926, 0.5
    %v4968 = vmul.f32 %v4929, 0.5
    %v4969 = vmul.f32 %v4932, 0.5
    %v4970 = vmul.f32 %v4935, 0.5
    %v4971 = vmul.f32 %v4938, 0.5
    %v4972 = vmul.f32 %v4941, 0.5
    %v4973 = vmul.f32 %v4944, 0.5
    %v4974 = vmul.f32 %v4947, 0.5
    %v4975 = vmul.f32 %v4950, 0.5
    %v4976 = vmul.f32 %v4953, 0.5
    %v4977 = vmul.f32 %v4956, 0.5
    %v4978 = vmul.f32 %v4959, 0.5
    %v4979 = vmul.f32 %v4962, 0.5
    %v4980 = vmul.f32 %v4917, 0.70710677
    %v4981 = vmul.f32 %v4920, 0.70710677
    %v4982 = vmul.f32 %v4923, 0.70710677
    %v4983 = vmul.f32 %v4926, 0.70710677
    %v4984 = vmul.f32 %v4929, 0.70710677
    %v4985 = vmul.f32 %v4932, 0.70710677
    %v4986 = vmul.f32 %v4935, 0.70710677
    %v4987 = vmul.f32 %v4938, 0.70710677
    %v4988 = vmul.f32 %v4941, 0.70710677
    %v4989 = vmul.f32 %v4944, 0.70710677
    %v4990 = vmul.f32 %v4947, 0.70710677
    %v4991 = vmul.f32 %v4950, 0.70710677
    %v4992 = vmul.f32 %v4953, 0.70710677
    %v4993 = vmul.f32 %v4956, 0.70710677
    %v4994 = vmul.f32 %v4959, 0.70710677
    %v4995 = vmul.f32 %v4962, 0.70710677
    %v4996 = vmul.f32 %v4980, %v4980
    %v4997 = vmin.f32 16.0, %v4996
    %v4998 = vmul.f32 %v4997, 2.1237322e-06
    %v4999 = vadd.f32 %v4998, 0.00028619796
    %v5000 = vmul.f32 %v4997, %v4999
    %v5001 = vadd.f32 %v5000, 0.0036580483
    %v5002 = vmul.f32 %v4997, %v5001
    %v5003 = vadd.f32 %v5002, 0.05243302
    %v5004 = vmul.f32 %v4997, %v5003
    %v5005 = vadd.f32 %v5004, 0.18741608
    %v5006 = vmul.f32 %v4997, %v5005
    %v5007 = vadd.f32 %v5006, 1.1283791
    %v5008 = vmul.f32 %v4980, %v5007
    %v5009 = vmul.f32 %v4997, 3.8918573e-05
    %v5010 = vadd.f32 %v5009, 0.001143296
    %v5011 = vmul.f32 %v4997, %v5010
    %v5012 = vadd.f32 %v5011, 0.014752088
    %v5013 = vmul.f32 %v4997, %v5012
    %v5014 = vadd.f32 %v5013, 0.112945676
    %v5015 = vmul.f32 %v4997, %v5014
    %v5016 = vadd.f32 %v5015, 0.4994258
    %v5017 = vmul.f32 %v4997, %v5016
    %v5018 = vadd.f32 %v5017, 1.0
    %v5019 = vrcp.pop %v5018
    %v5020 = vmul.f32 %v5018, %v5019
    %v5021 = vsub.f32 1.0, %v5020
    %v5022 = vmul.f32 %v5019, %v5021
    %v5023 = vadd.f32 %v5019, %v5022
    %vm5024 = vweird.f32 %v5018
    %vm5025 = vweird.f32 %v5019
    %vm5026 = vmor %vm5024, %vm5025
    %v5027 = vsel %vm5026, %v5019, %v5023
    %v5028 = vand.u32 2147483647, %v5018
    %vm5029 = vcmp.eq.f32.partialorder %v5028, 8.507059e+37
    %v5030 = vand.u32 %v5018, 2147483648
    %v5031 = vor.u32 1.1754944e-38, %v5030
    %v5032 = vsel %vm5029, %v5031, %v5027
    %v5033 = vmul.f32 %v5008, %v5032
    %v5034 = vmin.f32 %v5033, 1.0
    %v5035 = vmax.f32 %v5034, -1.0
    %v5036 = vmul.f32 %v4981, %v4981
    %v5037 = vmin.f32 16.0, %v5036
    %v5038 = vmul.f32 %v5037, 2.1237322e-06
    %v5039 = vadd.f32 %v5038, 0.00028619796
    %v5040 = vmul.f32 %v5037, %v5039
    %v5041 = vadd.f32 %v5040, 0.0036580483
    %v5042 = vmul.f32 %v5037, %v5041
    %v5043 = vadd.f32 %v5042, 0.05243302
    %v5044 = vmul.f32 %v5037, %v5043
    %v5045 = vadd.f32 %v5044, 0.18741608
    %v5046 = vmul.f32 %v5037, %v5045
    %v5047 = vadd.f32 %v5046, 1.1283791
    %v5048 = vmul.f32 %v4981, %v5047
    %v5049 = vmul.f32 %v5037, 3.8918573e-05
    %v5050 = vadd.f32 %v5049, 0.001143296
    %v5051 = vmul.f32 %v5037, %v5050
    %v5052 = vadd.f32 %v5051, 0.014752088
    %v5053 = vmul.f32 %v5037, %v5052
    %v5054 = vadd.f32 %v5053, 0.112945676
    %v5055 = vmul.f32 %v5037, %v5054
    %v5056 = vadd.f32 %v5055, 0.4994258
    %v5057 = vmul.f32 %v5037, %v5056
    %v5058 = vadd.f32 %v5057, 1.0
    %v5059 = vrcp.pop %v5058
    %v5060 = vmul.f32 %v5058, %v5059
    %v5061 = vsub.f32 1.0, %v5060
    %v5062 = vmul.f32 %v5059, %v5061
    %v5063 = vadd.f32 %v5059, %v5062
    %vm5064 = vweird.f32 %v5058
    %vm5065 = vweird.f32 %v5059
    %vm5066 = vmor %vm5064, %vm5065
    %v5067 = vsel %vm5066, %v5059, %v5063
    %v5068 = vand.u32 2147483647, %v5058
    %vm5069 = vcmp.eq.f32.partialorder %v5068, 8.507059e+37
    %v5070 = vand.u32 %v5058, 2147483648
    %v5071 = vor.u32 1.1754944e-38, %v5070
    %v5072 = vsel %vm5069, %v5071, %v5067
    %v5073 = vmul.f32 %v5048, %v5072
    %v5074 = vmin.f32 %v5073, 1.0
    %v5075 = vmax.f32 %v5074, -1.0
    %v5076 = vmul.f32 %v4982, %v4982
    %v5077 = vmin.f32 16.0, %v5076
    %v5078 = vmul.f32 %v5077, 2.1237322e-06
    %v5079 = vadd.f32 %v5078, 0.00028619796
    %v5080 = vmul.f32 %v5077, %v5079
    %v5081 = vadd.f32 %v5080, 0.0036580483
    %v5082 = vmul.f32 %v5077, %v5081
    %v5083 = vadd.f32 %v5082, 0.05243302
    %v5084 = vmul.f32 %v5077, %v5083
    %v5085 = vadd.f32 %v5084, 0.18741608
    %v5086 = vmul.f32 %v5077, %v5085
    %v5087 = vadd.f32 %v5086, 1.1283791
    %v5088 = vmul.f32 %v4982, %v5087
    %v5089 = vmul.f32 %v5077, 3.8918573e-05
    %v5090 = vadd.f32 %v5089, 0.001143296
    %v5091 = vmul.f32 %v5077, %v5090
    %v5092 = vadd.f32 %v5091, 0.014752088
    %v5093 = vmul.f32 %v5077, %v5092
    %v5094 = vadd.f32 %v5093, 0.112945676
    %v5095 = vmul.f32 %v5077, %v5094
    %v5096 = vadd.f32 %v5095, 0.4994258
    %v5097 = vmul.f32 %v5077, %v5096
    %v5098 = vadd.f32 %v5097, 1.0
    %v5099 = vrcp.pop %v5098
    %v5100 = vmul.f32 %v5098, %v5099
    %v5101 = vsub.f32 1.0, %v5100
    %v5102 = vmul.f32 %v5099, %v5101
    %v5103 = vadd.f32 %v5099, %v5102
    %vm5104 = vweird.f32 %v5098
    %vm5105 = vweird.f32 %v5099
    %vm5106 = vmor %vm5104, %vm5105
    %v5107 = vsel %vm5106, %v5099, %v5103
    %v5108 = vand.u32 2147483647, %v5098
    %vm5109 = vcmp.eq.f32.partialorder %v5108, 8.507059e+37
    %v5110 = vand.u32 %v5098, 2147483648
    %v5111 = vor.u32 1.1754944e-38, %v5110
    %v5112 = vsel %vm5109, %v5111, %v5107
    %v5113 = vmul.f32 %v5088, %v5112
    %v5114 = vmin.f32 %v5113, 1.0
    %v5115 = vmax.f32 %v5114, -1.0
    %v5116 = vmul.f32 %v4983, %v4983
    %v5117 = vmin.f32 16.0, %v5116
    %v5118 = vmul.f32 %v5117, 2.1237322e-06
    %v5119 = vadd.f32 %v5118, 0.00028619796
    %v5120 = vmul.f32 %v5117, %v5119
    %v5121 = vadd.f32 %v5120, 0.0036580483
    %v5122 = vmul.f32 %v5117, %v5121
    %v5123 = vadd.f32 %v5122, 0.05243302
    %v5124 = vmul.f32 %v5117, %v5123
    %v5125 = vadd.f32 %v5124, 0.18741608
    %v5126 = vmul.f32 %v5117, %v5125
    %v5127 = vadd.f32 %v5126, 1.1283791
    %v5128 = vmul.f32 %v4983, %v5127
    %v5129 = vmul.f32 %v5117, 3.8918573e-05
    %v5130 = vadd.f32 %v5129, 0.001143296
    %v5131 = vmul.f32 %v5117, %v5130
    %v5132 = vadd.f32 %v5131, 0.014752088
    %v5133 = vmul.f32 %v5117, %v5132
    %v5134 = vadd.f32 %v5133, 0.112945676
    %v5135 = vmul.f32 %v5117, %v5134
    %v5136 = vadd.f32 %v5135, 0.4994258
    %v5137 = vmul.f32 %v5117, %v5136
    %v5138 = vadd.f32 %v5137, 1.0
    %v5139 = vrcp.pop %v5138
    %v5140 = vmul.f32 %v5138, %v5139
    %v5141 = vsub.f32 1.0, %v5140
    %v5142 = vmul.f32 %v5139, %v5141
    %v5143 = vadd.f32 %v5139, %v5142
    %vm5144 = vweird.f32 %v5138
    %vm5145 = vweird.f32 %v5139
    %vm5146 = vmor %vm5144, %vm5145
    %v5147 = vsel %vm5146, %v5139, %v5143
    %v5148 = vand.u32 2147483647, %v5138
    %vm5149 = vcmp.eq.f32.partialorder %v5148, 8.507059e+37
    %v5150 = vand.u32 %v5138, 2147483648
    %v5151 = vor.u32 1.1754944e-38, %v5150
    %v5152 = vsel %vm5149, %v5151, %v5147
    %v5153 = vmul.f32 %v5128, %v5152
    %v5154 = vmin.f32 %v5153, 1.0
    %v5155 = vmax.f32 %v5154, -1.0
    %v5156 = vmul.f32 %v4984, %v4984
    %v5157 = vmin.f32 16.0, %v5156
    %v5158 = vmul.f32 %v5157, 2.1237322e-06
    %v5159 = vadd.f32 %v5158, 0.00028619796
    %v5160 = vmul.f32 %v5157, %v5159
    %v5161 = vadd.f32 %v5160, 0.0036580483
    %v5162 = vmul.f32 %v5157, %v5161
    %v5163 = vadd.f32 %v5162, 0.05243302
    %v5164 = vmul.f32 %v5157, %v5163
    %v5165 = vadd.f32 %v5164, 0.18741608
    %v5166 = vmul.f32 %v5157, %v5165
    %v5167 = vadd.f32 %v5166, 1.1283791
    %v5168 = vmul.f32 %v4984, %v5167
    %v5169 = vmul.f32 %v5157, 3.8918573e-05
    %v5170 = vadd.f32 %v5169, 0.001143296
    %v5171 = vmul.f32 %v5157, %v5170
    %v5172 = vadd.f32 %v5171, 0.014752088
    %v5173 = vmul.f32 %v5157, %v5172
    %v5174 = vadd.f32 %v5173, 0.112945676
    %v5175 = vmul.f32 %v5157, %v5174
    %v5176 = vadd.f32 %v5175, 0.4994258
    %v5177 = vmul.f32 %v5157, %v5176
    %v5178 = vadd.f32 %v5177, 1.0
    %v5179 = vrcp.pop %v5178
    %v5180 = vmul.f32 %v5178, %v5179
    %v5181 = vsub.f32 1.0, %v5180
    %v5182 = vmul.f32 %v5179, %v5181
    %v5183 = vadd.f32 %v5179, %v5182
    %vm5184 = vweird.f32 %v5178
    %vm5185 = vweird.f32 %v5179
    %vm5186 = vmor %vm5184, %vm5185
    %v5187 = vsel %vm5186, %v5179, %v5183
    %v5188 = vand.u32 2147483647, %v5178
    %vm5189 = vcmp.eq.f32.partialorder %v5188, 8.507059e+37
    %v5190 = vand.u32 %v5178, 2147483648
    %v5191 = vor.u32 1.1754944e-38, %v5190
    %v5192 = vsel %vm5189, %v5191, %v5187
    %v5193 = vmul.f32 %v5168, %v5192
    %v5194 = vmin.f32 %v5193, 1.0
    %v5195 = vmax.f32 %v5194, -1.0
    %v5196 = vmul.f32 %v4985, %v4985
    %v5197 = vmin.f32 16.0, %v5196
    %v5198 = vmul.f32 %v5197, 2.1237322e-06
    %v5199 = vadd.f32 %v5198, 0.00028619796
    %v5200 = vmul.f32 %v5197, %v5199
    %v5201 = vadd.f32 %v5200, 0.0036580483
    %v5202 = vmul.f32 %v5197, %v5201
    %v5203 = vadd.f32 %v5202, 0.05243302
    %v5204 = vmul.f32 %v5197, %v5203
    %v5205 = vadd.f32 %v5204, 0.18741608
    %v5206 = vmul.f32 %v5197, %v5205
    %v5207 = vadd.f32 %v5206, 1.1283791
    %v5208 = vmul.f32 %v4985, %v5207
    %v5209 = vmul.f32 %v5197, 3.8918573e-05
    %v5210 = vadd.f32 %v5209, 0.001143296
    %v5211 = vmul.f32 %v5197, %v5210
    %v5212 = vadd.f32 %v5211, 0.014752088
    %v5213 = vmul.f32 %v5197, %v5212
    %v5214 = vadd.f32 %v5213, 0.112945676
    %v5215 = vmul.f32 %v5197, %v5214
    %v5216 = vadd.f32 %v5215, 0.4994258
    %v5217 = vmul.f32 %v5197, %v5216
    %v5218 = vadd.f32 %v5217, 1.0
    %v5219 = vrcp.pop %v5218
    %v5220 = vmul.f32 %v5218, %v5219
    %v5221 = vsub.f32 1.0, %v5220
    %v5222 = vmul.f32 %v5219, %v5221
    %v5223 = vadd.f32 %v5219, %v5222
    %vm5224 = vweird.f32 %v5218
    %vm5225 = vweird.f32 %v5219
    %vm5226 = vmor %vm5224, %vm5225
    %v5227 = vsel %vm5226, %v5219, %v5223
    %v5228 = vand.u32 2147483647, %v5218
    %vm5229 = vcmp.eq.f32.partialorder %v5228, 8.507059e+37
    %v5230 = vand.u32 %v5218, 2147483648
    %v5231 = vor.u32 1.1754944e-38, %v5230
    %v5232 = vsel %vm5229, %v5231, %v5227
    %v5233 = vmul.f32 %v5208, %v5232
    %v5234 = vmin.f32 %v5233, 1.0
    %v5235 = vmax.f32 %v5234, -1.0
    %v5236 = vmul.f32 %v4986, %v4986
    %v5237 = vmin.f32 16.0, %v5236
    %v5238 = vmul.f32 %v5237, 2.1237322e-06
    %v5239 = vadd.f32 %v5238, 0.00028619796
    %v5240 = vmul.f32 %v5237, %v5239
    %v5241 = vadd.f32 %v5240, 0.0036580483
    %v5242 = vmul.f32 %v5237, %v5241
    %v5243 = vadd.f32 %v5242, 0.05243302
    %v5244 = vmul.f32 %v5237, %v5243
    %v5245 = vadd.f32 %v5244, 0.18741608
    %v5246 = vmul.f32 %v5237, %v5245
    %v5247 = vadd.f32 %v5246, 1.1283791
    %v5248 = vmul.f32 %v4986, %v5247
    %v5249 = vmul.f32 %v5237, 3.8918573e-05
    %v5250 = vadd.f32 %v5249, 0.001143296
    %v5251 = vmul.f32 %v5237, %v5250
    %v5252 = vadd.f32 %v5251, 0.014752088
    %v5253 = vmul.f32 %v5237, %v5252
    %v5254 = vadd.f32 %v5253, 0.112945676
    %v5255 = vmul.f32 %v5237, %v5254
    %v5256 = vadd.f32 %v5255, 0.4994258
    %v5257 = vmul.f32 %v5237, %v5256
    %v5258 = vadd.f32 %v5257, 1.0
    %v5259 = vrcp.pop %v5258
    %v5260 = vmul.f32 %v5258, %v5259
    %v5261 = vsub.f32 1.0, %v5260
    %v5262 = vmul.f32 %v5259, %v5261
    %v5263 = vadd.f32 %v5259, %v5262
    %vm5264 = vweird.f32 %v5258
    %vm5265 = vweird.f32 %v5259
    %vm5266 = vmor %vm5264, %vm5265
    %v5267 = vsel %vm5266, %v5259, %v5263
    %v5268 = vand.u32 2147483647, %v5258
    %vm5269 = vcmp.eq.f32.partialorder %v5268, 8.507059e+37
    %v5270 = vand.u32 %v5258, 2147483648
    %v5271 = vor.u32 1.1754944e-38, %v5270
    %v5272 = vsel %vm5269, %v5271, %v5267
    %v5273 = vmul.f32 %v5248, %v5272
    %v5274 = vmin.f32 %v5273, 1.0
    %v5275 = vmax.f32 %v5274, -1.0
    %v5276 = vmul.f32 %v4987, %v4987
    %v5277 = vmin.f32 16.0, %v5276
    %v5278 = vmul.f32 %v5277, 2.1237322e-06
    %v5279 = vadd.f32 %v5278, 0.00028619796
    %v5280 = vmul.f32 %v5277, %v5279
    %v5281 = vadd.f32 %v5280, 0.0036580483
    %v5282 = vmul.f32 %v5277, %v5281
    %v5283 = vadd.f32 %v5282, 0.05243302
    %v5284 = vmul.f32 %v5277, %v5283
    %v5285 = vadd.f32 %v5284, 0.18741608
    %v5286 = vmul.f32 %v5277, %v5285
    %v5287 = vadd.f32 %v5286, 1.1283791
    %v5288 = vmul.f32 %v4987, %v5287
    %v5289 = vmul.f32 %v5277, 3.8918573e-05
    %v5290 = vadd.f32 %v5289, 0.001143296
    %v5291 = vmul.f32 %v5277, %v5290
    %v5292 = vadd.f32 %v5291, 0.014752088
    %v5293 = vmul.f32 %v5277, %v5292
    %v5294 = vadd.f32 %v5293, 0.112945676
    %v5295 = vmul.f32 %v5277, %v5294
    %v5296 = vadd.f32 %v5295, 0.4994258
    %v5297 = vmul.f32 %v5277, %v5296
    %v5298 = vadd.f32 %v5297, 1.0
    %v5299 = vrcp.pop %v5298
    %v5300 = vmul.f32 %v5298, %v5299
    %v5301 = vsub.f32 1.0, %v5300
    %v5302 = vmul.f32 %v5299, %v5301
    %v5303 = vadd.f32 %v5299, %v5302
    %vm5304 = vweird.f32 %v5298
    %vm5305 = vweird.f32 %v5299
    %vm5306 = vmor %vm5304, %vm5305
    %v5307 = vsel %vm5306, %v5299, %v5303
    %v5308 = vand.u32 2147483647, %v5298
    %vm5309 = vcmp.eq.f32.partialorder %v5308, 8.507059e+37
    %v5310 = vand.u32 %v5298, 2147483648
    %v5311 = vor.u32 1.1754944e-38, %v5310
    %v5312 = vsel %vm5309, %v5311, %v5307
    %v5313 = vmul.f32 %v5288, %v5312
    %v5314 = vmin.f32 %v5313, 1.0
    %v5315 = vmax.f32 %v5314, -1.0
    %v5316 = vmul.f32 %v4988, %v4988
    %v5317 = vmin.f32 16.0, %v5316
    %v5318 = vmul.f32 %v5317, 2.1237322e-06
    %v5319 = vadd.f32 %v5318, 0.00028619796
    %v5320 = vmul.f32 %v5317, %v5319
    %v5321 = vadd.f32 %v5320, 0.0036580483
    %v5322 = vmul.f32 %v5317, %v5321
    %v5323 = vadd.f32 %v5322, 0.05243302
    %v5324 = vmul.f32 %v5317, %v5323
    %v5325 = vadd.f32 %v5324, 0.18741608
    %v5326 = vmul.f32 %v5317, %v5325
    %v5327 = vadd.f32 %v5326, 1.1283791
    %v5328 = vmul.f32 %v4988, %v5327
    %v5329 = vmul.f32 %v5317, 3.8918573e-05
    %v5330 = vadd.f32 %v5329, 0.001143296
    %v5331 = vmul.f32 %v5317, %v5330
    %v5332 = vadd.f32 %v5331, 0.014752088
    %v5333 = vmul.f32 %v5317, %v5332
    %v5334 = vadd.f32 %v5333, 0.112945676
    %v5335 = vmul.f32 %v5317, %v5334
    %v5336 = vadd.f32 %v5335, 0.4994258
    %v5337 = vmul.f32 %v5317, %v5336
    %v5338 = vadd.f32 %v5337, 1.0
    %v5339 = vrcp.pop %v5338
    %v5340 = vmul.f32 %v5338, %v5339
    %v5341 = vsub.f32 1.0, %v5340
    %v5342 = vmul.f32 %v5339, %v5341
    %v5343 = vadd.f32 %v5339, %v5342
    %vm5344 = vweird.f32 %v5338
    %vm5345 = vweird.f32 %v5339
    %vm5346 = vmor %vm5344, %vm5345
    %v5347 = vsel %vm5346, %v5339, %v5343
    %v5348 = vand.u32 2147483647, %v5338
    %vm5349 = vcmp.eq.f32.partialorder %v5348, 8.507059e+37
    %v5350 = vand.u32 %v5338, 2147483648
    %v5351 = vor.u32 1.1754944e-38, %v5350
    %v5352 = vsel %vm5349, %v5351, %v5347
    %v5353 = vmul.f32 %v5328, %v5352
    %v5354 = vmin.f32 %v5353, 1.0
    %v5355 = vmax.f32 %v5354, -1.0
    %v5356 = vmul.f32 %v4989, %v4989
    %v5357 = vmin.f32 16.0, %v5356
    %v5358 = vmul.f32 %v5357, 2.1237322e-06
    %v5359 = vadd.f32 %v5358, 0.00028619796
    %v5360 = vmul.f32 %v5357, %v5359
    %v5361 = vadd.f32 %v5360, 0.0036580483
    %v5362 = vmul.f32 %v5357, %v5361
    %v5363 = vadd.f32 %v5362, 0.05243302
    %v5364 = vmul.f32 %v5357, %v5363
    %v5365 = vadd.f32 %v5364, 0.18741608
    %v5366 = vmul.f32 %v5357, %v5365
    %v5367 = vadd.f32 %v5366, 1.1283791
    %v5368 = vmul.f32 %v4989, %v5367
    %v5369 = vmul.f32 %v5357, 3.8918573e-05
    %v5370 = vadd.f32 %v5369, 0.001143296
    %v5371 = vmul.f32 %v5357, %v5370
    %v5372 = vadd.f32 %v5371, 0.014752088
    %v5373 = vmul.f32 %v5357, %v5372
    %v5374 = vadd.f32 %v5373, 0.112945676
    %v5375 = vmul.f32 %v5357, %v5374
    %v5376 = vadd.f32 %v5375, 0.4994258
    %v5377 = vmul.f32 %v5357, %v5376
    %v5378 = vadd.f32 %v5377, 1.0
    %v5379 = vrcp.pop %v5378
    %v5380 = vmul.f32 %v5378, %v5379
    %v5381 = vsub.f32 1.0, %v5380
    %v5382 = vmul.f32 %v5379, %v5381
    %v5383 = vadd.f32 %v5379, %v5382
    %vm5384 = vweird.f32 %v5378
    %vm5385 = vweird.f32 %v5379
    %vm5386 = vmor %vm5384, %vm5385
    %v5387 = vsel %vm5386, %v5379, %v5383
    %v5388 = vand.u32 2147483647, %v5378
    %vm5389 = vcmp.eq.f32.partialorder %v5388, 8.507059e+37
    %v5390 = vand.u32 %v5378, 2147483648
    %v5391 = vor.u32 1.1754944e-38, %v5390
    %v5392 = vsel %vm5389, %v5391, %v5387
    %v5393 = vmul.f32 %v5368, %v5392
    %v5394 = vmin.f32 %v5393, 1.0
    %v5395 = vmax.f32 %v5394, -1.0
    %v5396 = vmul.f32 %v4990, %v4990
    %v5397 = vmin.f32 16.0, %v5396
    %v5398 = vmul.f32 %v5397, 2.1237322e-06
    %v5399 = vadd.f32 %v5398, 0.00028619796
    %v5400 = vmul.f32 %v5397, %v5399
    %v5401 = vadd.f32 %v5400, 0.0036580483
    %v5402 = vmul.f32 %v5397, %v5401
    %v5403 = vadd.f32 %v5402, 0.05243302
    %v5404 = vmul.f32 %v5397, %v5403
    %v5405 = vadd.f32 %v5404, 0.18741608
    %v5406 = vmul.f32 %v5397, %v5405
    %v5407 = vadd.f32 %v5406, 1.1283791
    %v5408 = vmul.f32 %v4990, %v5407
    %v5409 = vmul.f32 %v5397, 3.8918573e-05
    %v5410 = vadd.f32 %v5409, 0.001143296
    %v5411 = vmul.f32 %v5397, %v5410
    %v5412 = vadd.f32 %v5411, 0.014752088
    %v5413 = vmul.f32 %v5397, %v5412
    %v5414 = vadd.f32 %v5413, 0.112945676
    %v5415 = vmul.f32 %v5397, %v5414
    %v5416 = vadd.f32 %v5415, 0.4994258
    %v5417 = vmul.f32 %v5397, %v5416
    %v5418 = vadd.f32 %v5417, 1.0
    %v5419 = vrcp.pop %v5418
    %v5420 = vmul.f32 %v5418, %v5419
    %v5421 = vsub.f32 1.0, %v5420
    %v5422 = vmul.f32 %v5419, %v5421
    %v5423 = vadd.f32 %v5419, %v5422
    %vm5424 = vweird.f32 %v5418
    %vm5425 = vweird.f32 %v5419
    %vm5426 = vmor %vm5424, %vm5425
    %v5427 = vsel %vm5426, %v5419, %v5423
    %v5428 = vand.u32 2147483647, %v5418
    %vm5429 = vcmp.eq.f32.partialorder %v5428, 8.507059e+37
    %v5430 = vand.u32 %v5418, 2147483648
    %v5431 = vor.u32 1.1754944e-38, %v5430
    %v5432 = vsel %vm5429, %v5431, %v5427
    %v5433 = vmul.f32 %v5408, %v5432
    %v5434 = vmin.f32 %v5433, 1.0
    %v5435 = vmax.f32 %v5434, -1.0
    %v5436 = vmul.f32 %v4991, %v4991
    %v5437 = vmin.f32 16.0, %v5436
    %v5438 = vmul.f32 %v5437, 2.1237322e-06
    %v5439 = vadd.f32 %v5438, 0.00028619796
    %v5440 = vmul.f32 %v5437, %v5439
    %v5441 = vadd.f32 %v5440, 0.0036580483
    %v5442 = vmul.f32 %v5437, %v5441
    %v5443 = vadd.f32 %v5442, 0.05243302
    %v5444 = vmul.f32 %v5437, %v5443
    %v5445 = vadd.f32 %v5444, 0.18741608
    %v5446 = vmul.f32 %v5437, %v5445
    %v5447 = vadd.f32 %v5446, 1.1283791
    %v5448 = vmul.f32 %v4991, %v5447
    %v5449 = vmul.f32 %v5437, 3.8918573e-05
    %v5450 = vadd.f32 %v5449, 0.001143296
    %v5451 = vmul.f32 %v5437, %v5450
    %v5452 = vadd.f32 %v5451, 0.014752088
    %v5453 = vmul.f32 %v5437, %v5452
    %v5454 = vadd.f32 %v5453, 0.112945676
    %v5455 = vmul.f32 %v5437, %v5454
    %v5456 = vadd.f32 %v5455, 0.4994258
    %v5457 = vmul.f32 %v5437, %v5456
    %v5458 = vadd.f32 %v5457, 1.0
    %v5459 = vrcp.pop %v5458
    %v5460 = vmul.f32 %v5458, %v5459
    %v5461 = vsub.f32 1.0, %v5460
    %v5462 = vmul.f32 %v5459, %v5461
    %v5463 = vadd.f32 %v5459, %v5462
    %vm5464 = vweird.f32 %v5458
    %vm5465 = vweird.f32 %v5459
    %vm5466 = vmor %vm5464, %vm5465
    %v5467 = vsel %vm5466, %v5459, %v5463
    %v5468 = vand.u32 2147483647, %v5458
    %vm5469 = vcmp.eq.f32.partialorder %v5468, 8.507059e+37
    %v5470 = vand.u32 %v5458, 2147483648
    %v5471 = vor.u32 1.1754944e-38, %v5470
    %v5472 = vsel %vm5469, %v5471, %v5467
    %v5473 = vmul.f32 %v5448, %v5472
    %v5474 = vmin.f32 %v5473, 1.0
    %v5475 = vmax.f32 %v5474, -1.0
    %v5476 = vmul.f32 %v4992, %v4992
    %v5477 = vmin.f32 16.0, %v5476
    %v5478 = vmul.f32 %v5477, 2.1237322e-06
    %v5479 = vadd.f32 %v5478, 0.00028619796
    %v5480 = vmul.f32 %v5477, %v5479
    %v5481 = vadd.f32 %v5480, 0.0036580483
    %v5482 = vmul.f32 %v5477, %v5481
    %v5483 = vadd.f32 %v5482, 0.05243302
    %v5484 = vmul.f32 %v5477, %v5483
    %v5485 = vadd.f32 %v5484, 0.18741608
    %v5486 = vmul.f32 %v5477, %v5485
    %v5487 = vadd.f32 %v5486, 1.1283791
    %v5488 = vmul.f32 %v4992, %v5487
    %v5489 = vmul.f32 %v5477, 3.8918573e-05
    %v5490 = vadd.f32 %v5489, 0.001143296
    %v5491 = vmul.f32 %v5477, %v5490
    %v5492 = vadd.f32 %v5491, 0.014752088
    %v5493 = vmul.f32 %v5477, %v5492
    %v5494 = vadd.f32 %v5493, 0.112945676
    %v5495 = vmul.f32 %v5477, %v5494
    %v5496 = vadd.f32 %v5495, 0.4994258
    %v5497 = vmul.f32 %v5477, %v5496
    %v5498 = vadd.f32 %v5497, 1.0
    %v5499 = vrcp.pop %v5498
    %v5500 = vmul.f32 %v5498, %v5499
    %v5501 = vsub.f32 1.0, %v5500
    %v5502 = vmul.f32 %v5499, %v5501
    %v5503 = vadd.f32 %v5499, %v5502
    %vm5504 = vweird.f32 %v5498
    %vm5505 = vweird.f32 %v5499
    %vm5506 = vmor %vm5504, %vm5505
    %v5507 = vsel %vm5506, %v5499, %v5503
    %v5508 = vand.u32 2147483647, %v5498
    %vm5509 = vcmp.eq.f32.partialorder %v5508, 8.507059e+37
    %v5510 = vand.u32 %v5498, 2147483648
    %v5511 = vor.u32 1.1754944e-38, %v5510
    %v5512 = vsel %vm5509, %v5511, %v5507
    %v5513 = vmul.f32 %v5488, %v5512
    %v5514 = vmin.f32 %v5513, 1.0
    %v5515 = vmax.f32 %v5514, -1.0
    %v5516 = vmul.f32 %v4993, %v4993
    %v5517 = vmin.f32 16.0, %v5516
    %v5518 = vmul.f32 %v5517, 2.1237322e-06
    %v5519 = vadd.f32 %v5518, 0.00028619796
    %v5520 = vmul.f32 %v5517, %v5519
    %v5521 = vadd.f32 %v5520, 0.0036580483
    %v5522 = vmul.f32 %v5517, %v5521
    %v5523 = vadd.f32 %v5522, 0.05243302
    %v5524 = vmul.f32 %v5517, %v5523
    %v5525 = vadd.f32 %v5524, 0.18741608
    %v5526 = vmul.f32 %v5517, %v5525
    %v5527 = vadd.f32 %v5526, 1.1283791
    %v5528 = vmul.f32 %v4993, %v5527
    %v5529 = vmul.f32 %v5517, 3.8918573e-05
    %v5530 = vadd.f32 %v5529, 0.001143296
    %v5531 = vmul.f32 %v5517, %v5530
    %v5532 = vadd.f32 %v5531, 0.014752088
    %v5533 = vmul.f32 %v5517, %v5532
    %v5534 = vadd.f32 %v5533, 0.112945676
    %v5535 = vmul.f32 %v5517, %v5534
    %v5536 = vadd.f32 %v5535, 0.4994258
    %v5537 = vmul.f32 %v5517, %v5536
    %v5538 = vadd.f32 %v5537, 1.0
    %v5539 = vrcp.pop %v5538
    %v5540 = vmul.f32 %v5538, %v5539
    %v5541 = vsub.f32 1.0, %v5540
    %v5542 = vmul.f32 %v5539, %v5541
    %v5543 = vadd.f32 %v5539, %v5542
    %vm5544 = vweird.f32 %v5538
    %vm5545 = vweird.f32 %v5539
    %vm5546 = vmor %vm5544, %vm5545
    %v5547 = vsel %vm5546, %v5539, %v5543
    %v5548 = vand.u32 2147483647, %v5538
    %vm5549 = vcmp.eq.f32.partialorder %v5548, 8.507059e+37
    %v5550 = vand.u32 %v5538, 2147483648
    %v5551 = vor.u32 1.1754944e-38, %v5550
    %v5552 = vsel %vm5549, %v5551, %v5547
    %v5553 = vmul.f32 %v5528, %v5552
    %v5554 = vmin.f32 %v5553, 1.0
    %v5555 = vmax.f32 %v5554, -1.0
    %v5556 = vmul.f32 %v4994, %v4994
    %v5557 = vmin.f32 16.0, %v5556
    %v5558 = vmul.f32 %v5557, 2.1237322e-06
    %v5559 = vadd.f32 %v5558, 0.00028619796
    %v5560 = vmul.f32 %v5557, %v5559
    %v5561 = vadd.f32 %v5560, 0.0036580483
    %v5562 = vmul.f32 %v5557, %v5561
    %v5563 = vadd.f32 %v5562, 0.05243302
    %v5564 = vmul.f32 %v5557, %v5563
    %v5565 = vadd.f32 %v5564, 0.18741608
    %v5566 = vmul.f32 %v5557, %v5565
    %v5567 = vadd.f32 %v5566, 1.1283791
    %v5568 = vmul.f32 %v4994, %v5567
    %v5569 = vmul.f32 %v5557, 3.8918573e-05
    %v5570 = vadd.f32 %v5569, 0.001143296
    %v5571 = vmul.f32 %v5557, %v5570
    %v5572 = vadd.f32 %v5571, 0.014752088
    %v5573 = vmul.f32 %v5557, %v5572
    %v5574 = vadd.f32 %v5573, 0.112945676
    %v5575 = vmul.f32 %v5557, %v5574
    %v5576 = vadd.f32 %v5575, 0.4994258
    %v5577 = vmul.f32 %v5557, %v5576
    %v5578 = vadd.f32 %v5577, 1.0
    %v5579 = vrcp.pop %v5578
    %v5580 = vmul.f32 %v5578, %v5579
    %v5581 = vsub.f32 1.0, %v5580
    %v5582 = vmul.f32 %v5579, %v5581
    %v5583 = vadd.f32 %v5579, %v5582
    %vm5584 = vweird.f32 %v5578
    %vm5585 = vweird.f32 %v5579
    %vm5586 = vmor %vm5584, %vm5585
    %v5587 = vsel %vm5586, %v5579, %v5583
    %v5588 = vand.u32 2147483647, %v5578
    %vm5589 = vcmp.eq.f32.partialorder %v5588, 8.507059e+37
    %v5590 = vand.u32 %v5578, 2147483648
    %v5591 = vor.u32 1.1754944e-38, %v5590
    %v5592 = vsel %vm5589, %v5591, %v5587
    %v5593 = vmul.f32 %v5568, %v5592
    %v5594 = vmin.f32 %v5593, 1.0
    %v5595 = vmax.f32 %v5594, -1.0
    %v5596 = vmul.f32 %v4995, %v4995
    %v5597 = vmin.f32 16.0, %v5596
    %v5598 = vmul.f32 %v5597, 2.1237322e-06
    %v5599 = vadd.f32 %v5598, 0.00028619796
    %v5600 = vmul.f32 %v5597, %v5599
    %v5601 = vadd.f32 %v5600, 0.0036580483
    %v5602 = vmul.f32 %v5597, %v5601
    %v5603 = vadd.f32 %v5602, 0.05243302
    %v5604 = vmul.f32 %v5597, %v5603
    %v5605 = vadd.f32 %v5604, 0.18741608
    %v5606 = vmul.f32 %v5597, %v5605
    %v5607 = vadd.f32 %v5606, 1.1283791
    %v5608 = vmul.f32 %v4995, %v5607
    %v5609 = vmul.f32 %v5597, 3.8918573e-05
    %v5610 = vadd.f32 %v5609, 0.001143296
    %v5611 = vmul.f32 %v5597, %v5610
    %v5612 = vadd.f32 %v5611, 0.014752088
    %v5613 = vmul.f32 %v5597, %v5612
    %v5614 = vadd.f32 %v5613, 0.112945676
    %v5615 = vmul.f32 %v5597, %v5614
    %v5616 = vadd.f32 %v5615, 0.4994258
    %v5617 = vmul.f32 %v5597, %v5616
    %v5618 = vadd.f32 %v5617, 1.0
    %v5619 = vrcp.pop %v5618
    %v5620 = vmul.f32 %v5618, %v5619
    %v5621 = vsub.f32 1.0, %v5620
    %v5622 = vmul.f32 %v5619, %v5621
    %v5623 = vadd.f32 %v5619, %v5622
    %vm5624 = vweird.f32 %v5618
    %vm5625 = vweird.f32 %v5619
    %vm5626 = vmor %vm5624, %vm5625
    %v5627 = vsel %vm5626, %v5619, %v5623
    %v5628 = vand.u32 2147483647, %v5618
    %vm5629 = vcmp.eq.f32.partialorder %v5628, 8.507059e+37
    %v5630 = vand.u32 %v5618, 2147483648
    %v5631 = vor.u32 1.1754944e-38, %v5630
    %v5632 = vsel %vm5629, %v5631, %v5627
    %v5633 = vmul.f32 %v5608, %v5632
    %v5634 = vmin.f32 %v5633, 1.0
    %v5635 = vmax.f32 %v5634, -1.0
    %v5636 = vadd.f32 %v5035, 1.0
    %v5637 = vadd.f32 %v5075, 1.0
    %v5638 = vadd.f32 %v5115, 1.0
    %v5639 = vadd.f32 %v5155, 1.0
    %v5640 = vadd.f32 %v5195, 1.0
    %v5641 = vadd.f32 %v5235, 1.0
    %v5642 = vadd.f32 %v5275, 1.0
    %v5643 = vadd.f32 %v5315, 1.0
    %v5644 = vadd.f32 %v5355, 1.0
    %v5645 = vadd.f32 %v5395, 1.0
    %v5646 = vadd.f32 %v5435, 1.0
    %v5647 = vadd.f32 %v5475, 1.0
    %v5648 = vadd.f32 %v5515, 1.0
    %v5649 = vadd.f32 %v5555, 1.0
    %v5650 = vadd.f32 %v5595, 1.0
    %v5651 = vadd.f32 %v5635, 1.0
    %v5652 = vmul.f32 %v4964, %v5636
    %v5653 = vmul.f32 %v4965, %v5637
    %v5654 = vmul.f32 %v4966, %v5638
    %v5655 = vmul.f32 %v4967, %v5639
    %v5656 = vmul.f32 %v4968, %v5640
    %v5657 = vmul.f32 %v4969, %v5641
    %v5658 = vmul.f32 %v4970, %v5642
    %v5659 = vmul.f32 %v4971, %v5643
    %v5660 = vmul.f32 %v4972, %v5644
    %v5661 = vmul.f32 %v4973, %v5645
    %v5662 = vmul.f32 %v4974, %v5646
    %v5663 = vmul.f32 %v4975, %v5647
    %v5664 = vmul.f32 %v4976, %v5648
    %v5665 = vmul.f32 %v4977, %v5649
    %v5666 = vmul.f32 %v4978, %v5650
    %v5667 = vmul.f32 %v4979, %v5651
    %v5668 = vld [vmem:[%s6] sm:$0xff]
    %v5669 = vld [vmem:[%s6 + $0x8] sm:$0xff]
    %v5670 = vld [vmem:[%s6 + $0x10] sm:$0xff]
    %v5671 = vld [vmem:[%s6 + $0x18] sm:$0xff]
    %v5672 = vld [vmem:[%s6 + $0x20] sm:$0xff]
    %v5673 = vld [vmem:[%s6 + $0x28] sm:$0xff]
    %v5674 = vld [vmem:[%s6 + $0x30] sm:$0xff]
    %v5675 = vld [vmem:[%s6 + $0x38] sm:$0xff]
    %v5677 = vsel %vm70, %v5652, 0
    %v5680 = vsel %vm70, %v5653, 0
    %v5683 = vsel %vm70, %v5654, 0
    %v5686 = vsel %vm70, %v5655, 0
    %v5689 = vsel %vm70, %v5656, 0
    %v5692 = vsel %vm70, %v5657, 0
    %v5695 = vsel %vm70, %v5658, 0
    %v5698 = vsel %vm70, %v5659, 0
    %v5701 = vsel %vm70, %v5660, 0
    %v5704 = vsel %vm70, %v5661, 0
    %v5707 = vsel %vm70, %v5662, 0
    %v5710 = vsel %vm70, %v5663, 0
    %v5713 = vsel %vm70, %v5664, 0
    %v5716 = vsel %vm70, %v5665, 0
    %v5719 = vsel %vm70, %v5666, 0
    %v5722 = vsel %vm70, %v5667, 0
    %5724 = vmatpush.msra.mxu0 0.0
    %5725 = vmatpush.msra.mxu0 0.0
    %5726 = vmatpush.msra.mxu0 0.0
    %5727 = vmatpush.msra.mxu0 0.0
    %5728 = vmatpush.msra.mxu0 0.0
    %5729 = vmatpush.msra.mxu0 0.0
    %5730 = vmatpush.msra.mxu0 0.0
    %5731 = vmatpush.msra.mxu0 0.0
    %5732 = vmatpush.msra.mxu0 %v5675
    %5733 = vmatpush.msra.mxu0 %v5674
    %5734 = vmatpush.msra.mxu0 %v5673
    %5735 = vmatpush.msra.mxu0 %v5672
    %5736 = vmatpush.msra.mxu0 %v5671
    %5737 = vmatpush.msra.mxu0 %v5670
    %5738 = vmatpush.msra.mxu0 %v5669
    %5739 = vmatpush.msra.mxu0 %v5668
    %5740 = vmatmul.f32.gmra.mxu0 %v5677
    %v5741 = vpop.f32.mrf.mxu0
    %v5742 = vadd.f32 0.0, %v5741
    %5743 = vmatmul.f32.gmra.mxu0 %v5680
    %v5744 = vpop.f32.mrf.mxu0
    %v5745 = vadd.f32 0.0, %v5744
    %5746 = vmatmul.f32.gmra.mxu0 %v5683
    %v5747 = vpop.f32.mrf.mxu0
    %v5748 = vadd.f32 0.0, %v5747
    %5749 = vmatmul.f32.gmra.mxu0 %v5686
    %v5750 = vpop.f32.mrf.mxu0
    %v5751 = vadd.f32 0.0, %v5750
    %5752 = vmatmul.f32.gmra.mxu0 %v5689
    %v5753 = vpop.f32.mrf.mxu0
    %v5754 = vadd.f32 0.0, %v5753
    %5755 = vmatmul.f32.gmra.mxu0 %v5692
    %v5756 = vpop.f32.mrf.mxu0
    %v5757 = vadd.f32 0.0, %v5756
    %5758 = vmatmul.f32.gmra.mxu0 %v5695
    %v5759 = vpop.f32.mrf.mxu0
    %v5760 = vadd.f32 0.0, %v5759
    %5761 = vmatmul.f32.gmra.mxu0 %v5698
    %v5762 = vpop.f32.mrf.mxu0
    %v5763 = vadd.f32 0.0, %v5762
    %5764 = vmatmul.f32.gmra.mxu0 %v5701
    %v5765 = vpop.f32.mrf.mxu0
    %v5766 = vadd.f32 0.0, %v5765
    %5767 = vmatmul.f32.gmra.mxu0 %v5704
    %v5768 = vpop.f32.mrf.mxu0
    %v5769 = vadd.f32 0.0, %v5768
    %5770 = vmatmul.f32.gmra.mxu0 %v5707
    %v5771 = vpop.f32.mrf.mxu0
    %v5772 = vadd.f32 0.0, %v5771
    %5773 = vmatmul.f32.gmra.mxu0 %v5710
    %v5774 = vpop.f32.mrf.mxu0
    %v5775 = vadd.f32 0.0, %v5774
    %5776 = vmatmul.f32.gmra.mxu0 %v5713
    %v5777 = vpop.f32.mrf.mxu0
    %v5778 = vadd.f32 0.0, %v5777
    %5779 = vmatmul.f32.gmra.mxu0 %v5716
    %v5780 = vpop.f32.mrf.mxu0
    %v5781 = vadd.f32 0.0, %v5780
    %5782 = vmatmul.f32.gmra.mxu0 %v5719
    %v5783 = vpop.f32.mrf.mxu0
    %v5784 = vadd.f32 0.0, %v5783
    %5785 = vmatmul.f32.gmra.mxu0 %v5722
    %v5786 = vpop.f32.mrf.mxu0
    %v5787 = vadd.f32 0.0, %v5786
    %5788 = vdwg.mxu0
    %v5789 = vadd.f32 %v4443, %v5742
    %v5790 = vadd.f32 %v4444, %v5745
    %v5791 = vadd.f32 %v4445, %v5748
    %v5792 = vadd.f32 %v4446, %v5751
    %v5793 = vadd.f32 %v4447, %v5754
    %v5794 = vadd.f32 %v4448, %v5757
    %v5795 = vadd.f32 %v4449, %v5760
    %v5796 = vadd.f32 %v4450, %v5763
    %v5797 = vadd.f32 %v4451, %v5766
    %v5798 = vadd.f32 %v4452, %v5769
    %v5799 = vadd.f32 %v4453, %v5772
    %v5800 = vadd.f32 %v4454, %v5775
    %v5801 = vadd.f32 %v4455, %v5778
    %v5802 = vadd.f32 %v4456, %v5781
    %v5803 = vadd.f32 %v4457, %v5784
    %v5804 = vadd.f32 %v4458, %v5787
    %v5805 = vperm.slane %v241, 5
    %v5806 = vadd.f32 %v5789, %v5805
    %v5807 = vadd.f32 %v5790, %v5805
    %v5808 = vadd.f32 %v5791, %v5805
    %v5809 = vadd.f32 %v5792, %v5805
    %v5810 = vadd.f32 %v5793, %v5805
    %v5811 = vadd.f32 %v5794, %v5805
    %v5812 = vadd.f32 %v5795, %v5805
    %v5813 = vadd.f32 %v5796, %v5805
    %v5814 = vadd.f32 %v5797, %v5805
    %v5815 = vadd.f32 %v5798, %v5805
    %v5816 = vadd.f32 %v5799, %v5805
    %v5817 = vadd.f32 %v5800, %v5805
    %v5818 = vadd.f32 %v5801, %v5805
    %v5819 = vadd.f32 %v5802, %v5805
    %v5820 = vadd.f32 %v5803, %v5805
    %v5821 = vadd.f32 %v5804, %v5805
    %s5822 = scalar_lea.vmem %s7, 8
    %v5823 = vld [vmem:[%s5822] sm:$0xff]
    %v5824 = vsel %vm203, %v5806, 0.0
    %5825 = vadd.xlane.f32.xlu0 %v5824
    %v5826 = vpop.xlane.xlu0 %5825
    %v5827 = vsel %vm203, %v5807, 0.0
    %5828 = vadd.xlane.f32.xlu0 %v5827
    %v5829 = vpop.xlane.xlu0 %5828
    %v5830 = vsel %vm203, %v5808, 0.0
    %5831 = vadd.xlane.f32.xlu0 %v5830
    %v5832 = vpop.xlane.xlu0 %5831
    %v5833 = vsel %vm203, %v5809, 0.0
    %5834 = vadd.xlane.f32.xlu0 %v5833
    %v5835 = vpop.xlane.xlu0 %5834
    %v5836 = vsel %vm203, %v5810, 0.0
    %5837 = vadd.xlane.f32.xlu0 %v5836
    %v5838 = vpop.xlane.xlu0 %5837
    %v5839 = vsel %vm203, %v5811, 0.0
    %5840 = vadd.xlane.f32.xlu0 %v5839
    %v5841 = vpop.xlane.xlu0 %5840
    %v5842 = vsel %vm203, %v5812, 0.0
    %5843 = vadd.xlane.f32.xlu0 %v5842
    %v5844 = vpop.xlane.xlu0 %5843
    %v5845 = vsel %vm203, %v5813, 0.0
    %5846 = vadd.xlane.f32.xlu0 %v5845
    %v5847 = vpop.xlane.xlu0 %5846
    %v5848 = vsel %vm203, %v5814, 0.0
    %5849 = vadd.xlane.f32.xlu0 %v5848
    %v5850 = vpop.xlane.xlu0 %5849
    %v5851 = vsel %vm203, %v5815, 0.0
    %5852 = vadd.xlane.f32.xlu0 %v5851
    %v5853 = vpop.xlane.xlu0 %5852
    %v5854 = vsel %vm203, %v5816, 0.0
    %5855 = vadd.xlane.f32.xlu0 %v5854
    %v5856 = vpop.xlane.xlu0 %5855
    %v5857 = vsel %vm203, %v5817, 0.0
    %5858 = vadd.xlane.f32.xlu0 %v5857
    %v5859 = vpop.xlane.xlu0 %5858
    %v5860 = vsel %vm203, %v5818, 0.0
    %5861 = vadd.xlane.f32.xlu0 %v5860
    %v5862 = vpop.xlane.xlu0 %5861
    %v5863 = vsel %vm203, %v5819, 0.0
    %5864 = vadd.xlane.f32.xlu0 %v5863
    %v5865 = vpop.xlane.xlu0 %5864
    %v5866 = vsel %vm203, %v5820, 0.0
    %5867 = vadd.xlane.f32.xlu0 %v5866
    %v5868 = vpop.xlane.xlu0 %5867
    %v5869 = vsel %vm203, %v5821, 0.0
    %5870 = vadd.xlane.f32.xlu0 %v5869
    %v5871 = vpop.xlane.xlu0 %5870
    %v5872 = vmul.f32 %v5826, %v296
    %v5873 = vmul.f32 %v5829, %v296
    %v5874 = vmul.f32 %v5832, %v296
    %v5875 = vmul.f32 %v5835, %v296
    %v5876 = vmul.f32 %v5838, %v296
    %v5877 = vmul.f32 %v5841, %v296
    %v5878 = vmul.f32 %v5844, %v296
    %v5879 = vmul.f32 %v5847, %v296
    %v5880 = vmul.f32 %v5850, %v296
    %v5881 = vmul.f32 %v5853, %v296
    %v5882 = vmul.f32 %v5856, %v296
    %v5883 = vmul.f32 %v5859, %v296
    %v5884 = vmul.f32 %v5862, %v296
    %v5885 = vmul.f32 %v5865, %v296
    %v5886 = vmul.f32 %v5868, %v296
    %v5887 = vmul.f32 %v5871, %v296
    %v5888 = vsub.f32 %v5806, %v5872
    %v5889 = vsub.f32 %v5807, %v5873
    %v5890 = vsub.f32 %v5808, %v5874
    %v5891 = vsub.f32 %v5809, %v5875
    %v5892 = vsub.f32 %v5810, %v5876
    %v5893 = vsub.f32 %v5811, %v5877
    %v5894 = vsub.f32 %v5812, %v5878
    %v5895 = vsub.f32 %v5813, %v5879
    %v5896 = vsub.f32 %v5814, %v5880
    %v5897 = vsub.f32 %v5815, %v5881
    %v5898 = vsub.f32 %v5816, %v5882
    %v5899 = vsub.f32 %v5817, %v5883
    %v5900 = vsub.f32 %v5818, %v5884
    %v5901 = vsub.f32 %v5819, %v5885
    %v5902 = vsub.f32 %v5820, %v5886
    %v5903 = vsub.f32 %v5821, %v5887
    %v5904 = vmul.f32 %v5888, %v5888
    %v5905 = vmul.f32 %v5889, %v5889
    %v5906 = vmul.f32 %v5890, %v5890
    %v5907 = vmul.f32 %v5891, %v5891
    %v5908 = vmul.f32 %v5892, %v5892
    %v5909 = vmul.f32 %v5893, %v5893
    %v5910 = vmul.f32 %v5894, %v5894
    %v5911 = vmul.f32 %v5895, %v5895
    %v5912 = vmul.f32 %v5896, %v5896
    %v5913 = vmul.f32 %v5897, %v5897
    %v5914 = vmul.f32 %v5898, %v5898
    %v5915 = vmul.f32 %v5899, %v5899
    %v5916 = vmul.f32 %v5900, %v5900
    %v5917 = vmul.f32 %v5901, %v5901
    %v5918 = vmul.f32 %v5902, %v5902
    %v5919 = vmul.f32 %v5903, %v5903
    %v5920 = vsel %vm203, %v5904, 0.0
    %5921 = vadd.xlane.f32.xlu0 %v5920
    %v5922 = vpop.xlane.xlu0 %5921
    %v5923 = vsel %vm203, %v5905, 0.0
    %5924 = vadd.xlane.f32.xlu0 %v5923
    %v5925 = vpop.xlane.xlu0 %5924
    %v5926 = vsel %vm203, %v5906, 0.0
    %5927 = vadd.xlane.f32.xlu0 %v5926
    %v5928 = vpop.xlane.xlu0 %5927
    %v5929 = vsel %vm203, %v5907, 0.0
    %5930 = vadd.xlane.f32.xlu0 %v5929
    %v5931 = vpop.xlane.xlu0 %5930
    %v5932 = vsel %vm203, %v5908, 0.0
    %5933 = vadd.xlane.f32.xlu0 %v5932
    %v5934 = vpop.xlane.xlu0 %5933
    %v5935 = vsel %vm203, %v5909, 0.0
    %5936 = vadd.xlane.f32.xlu0 %v5935
    %v5937 = vpop.xlane.xlu0 %5936
    %v5938 = vsel %vm203, %v5910, 0.0
    %5939 = vadd.xlane.f32.xlu0 %v5938
    %v5940 = vpop.xlane.xlu0 %5939
    %v5941 = vsel %vm203, %v5911, 0.0
    %5942 = vadd.xlane.f32.xlu0 %v5941
    %v5943 = vpop.xlane.xlu0 %5942
    %v5944 = vsel %vm203, %v5912, 0.0
    %5945 = vadd.xlane.f32.xlu0 %v5944
    %v5946 = vpop.xlane.xlu0 %5945
    %v5947 = vsel %vm203, %v5913, 0.0
    %5948 = vadd.xlane.f32.xlu0 %v5947
    %v5949 = vpop.xlane.xlu0 %5948
    %v5950 = vsel %vm203, %v5914, 0.0
    %5951 = vadd.xlane.f32.xlu0 %v5950
    %v5952 = vpop.xlane.xlu0 %5951
    %v5953 = vsel %vm203, %v5915, 0.0
    %5954 = vadd.xlane.f32.xlu0 %v5953
    %v5955 = vpop.xlane.xlu0 %5954
    %v5956 = vsel %vm203, %v5916, 0.0
    %5957 = vadd.xlane.f32.xlu0 %v5956
    %v5958 = vpop.xlane.xlu0 %5957
    %v5959 = vsel %vm203, %v5917, 0.0
    %5960 = vadd.xlane.f32.xlu0 %v5959
    %v5961 = vpop.xlane.xlu0 %5960
    %v5962 = vsel %vm203, %v5918, 0.0
    %5963 = vadd.xlane.f32.xlu0 %v5962
    %v5964 = vpop.xlane.xlu0 %5963
    %v5965 = vsel %vm203, %v5919, 0.0
    %5966 = vadd.xlane.f32.xlu0 %v5965
    %v5967 = vpop.xlane.xlu0 %5966
    %v5968 = vmul.f32 %v5922, %v296
    %v5969 = vmul.f32 %v5925, %v296
    %v5970 = vmul.f32 %v5928, %v296
    %v5971 = vmul.f32 %v5931, %v296
    %v5972 = vmul.f32 %v5934, %v296
    %v5973 = vmul.f32 %v5937, %v296
    %v5974 = vmul.f32 %v5940, %v296
    %v5975 = vmul.f32 %v5943, %v296
    %v5976 = vmul.f32 %v5946, %v296
    %v5977 = vmul.f32 %v5949, %v296
    %v5978 = vmul.f32 %v5952, %v296
    %v5979 = vmul.f32 %v5955, %v296
    %v5980 = vmul.f32 %v5958, %v296
    %v5981 = vmul.f32 %v5961, %v296
    %v5982 = vmul.f32 %v5964, %v296
    %v5983 = vmul.f32 %v5967, %v296
    %v5984 = vadd.f32 %v5968, 1e-05
    %v5985 = vadd.f32 %v5969, 1e-05
    %v5986 = vadd.f32 %v5970, 1e-05
    %v5987 = vadd.f32 %v5971, 1e-05
    %v5988 = vadd.f32 %v5972, 1e-05
    %v5989 = vadd.f32 %v5973, 1e-05
    %v5990 = vadd.f32 %v5974, 1e-05
    %v5991 = vadd.f32 %v5975, 1e-05
    %v5992 = vadd.f32 %v5976, 1e-05
    %v5993 = vadd.f32 %v5977, 1e-05
    %v5994 = vadd.f32 %v5978, 1e-05
    %v5995 = vadd.f32 %v5979, 1e-05
    %v5996 = vadd.f32 %v5980, 1e-05
    %v5997 = vadd.f32 %v5981, 1e-05
    %v5998 = vadd.f32 %v5982, 1e-05
    %v5999 = vadd.f32 %v5983, 1e-05
    %v6000 = vrsqrt.pop %v5984
    %v6001 = vmul.f32 %v6000, %v5984
    %v6002 = vmul.f32 %v6001, %v6000
    %v6003 = vmul.f32 0.5, %v6002
    %v6004 = vsub.f32 1.5, %v6003
    %v6005 = vmul.f32 %v6000, %v6004
    %vm6006 = vweird.f32 %v5984
    %vm6007 = vweird.f32 %v6000
    %vm6008 = vmor %vm6006, %vm6007
    %v6009 = vsel %vm6008, %v6000, %v6005
    %v6010 = vrsqrt.pop %v5985
    %v6011 = vmul.f32 %v6010, %v5985
    %v6012 = vmul.f32 %v6011, %v6010
    %v6013 = vmul.f32 0.5, %v6012
    %v6014 = vsub.f32 1.5, %v6013
    %v6015 = vmul.f32 %v6010, %v6014
    %vm6016 = vweird.f32 %v5985
    %vm6017 = vweird.f32 %v6010
    %vm6018 = vmor %vm6016, %vm6017
    %v6019 = vsel %vm6018, %v6010, %v6015
    %v6020 = vrsqrt.pop %v5986
    %v6021 = vmul.f32 %v6020, %v5986
    %v6022 = vmul.f32 %v6021, %v6020
    %v6023 = vmul.f32 0.5, %v6022
    %v6024 = vsub.f32 1.5, %v6023
    %v6025 = vmul.f32 %v6020, %v6024
    %vm6026 = vweird.f32 %v5986
    %vm6027 = vweird.f32 %v6020
    %vm6028 = vmor %vm6026, %vm6027
    %v6029 = vsel %vm6028, %v6020, %v6025
    %v6030 = vrsqrt.pop %v5987
    %v6031 = vmul.f32 %v6030, %v5987
    %v6032 = vmul.f32 %v6031, %v6030
    %v6033 = vmul.f32 0.5, %v6032
    %v6034 = vsub.f32 1.5, %v6033
    %v6035 = vmul.f32 %v6030, %v6034
    %vm6036 = vweird.f32 %v5987
    %vm6037 = vweird.f32 %v6030
    %vm6038 = vmor %vm6036, %vm6037
    %v6039 = vsel %vm6038, %v6030, %v6035
    %v6040 = vrsqrt.pop %v5988
    %v6041 = vmul.f32 %v6040, %v5988
    %v6042 = vmul.f32 %v6041, %v6040
    %v6043 = vmul.f32 0.5, %v6042
    %v6044 = vsub.f32 1.5, %v6043
    %v6045 = vmul.f32 %v6040, %v6044
    %vm6046 = vweird.f32 %v5988
    %vm6047 = vweird.f32 %v6040
    %vm6048 = vmor %vm6046, %vm6047
    %v6049 = vsel %vm6048, %v6040, %v6045
    %v6050 = vrsqrt.pop %v5989
    %v6051 = vmul.f32 %v6050, %v5989
    %v6052 = vmul.f32 %v6051, %v6050
    %v6053 = vmul.f32 0.5, %v6052
    %v6054 = vsub.f32 1.5, %v6053
    %v6055 = vmul.f32 %v6050, %v6054
    %vm6056 = vweird.f32 %v5989
    %vm6057 = vweird.f32 %v6050
    %vm6058 = vmor %vm6056, %vm6057
    %v6059 = vsel %vm6058, %v6050, %v6055
    %v6060 = vrsqrt.pop %v5990
    %v6061 = vmul.f32 %v6060, %v5990
    %v6062 = vmul.f32 %v6061, %v6060
    %v6063 = vmul.f32 0.5, %v6062
    %v6064 = vsub.f32 1.5, %v6063
    %v6065 = vmul.f32 %v6060, %v6064
    %vm6066 = vweird.f32 %v5990
    %vm6067 = vweird.f32 %v6060
    %vm6068 = vmor %vm6066, %vm6067
    %v6069 = vsel %vm6068, %v6060, %v6065
    %v6070 = vrsqrt.pop %v5991
    %v6071 = vmul.f32 %v6070, %v5991
    %v6072 = vmul.f32 %v6071, %v6070
    %v6073 = vmul.f32 0.5, %v6072
    %v6074 = vsub.f32 1.5, %v6073
    %v6075 = vmul.f32 %v6070, %v6074
    %vm6076 = vweird.f32 %v5991
    %vm6077 = vweird.f32 %v6070
    %vm6078 = vmor %vm6076, %vm6077
    %v6079 = vsel %vm6078, %v6070, %v6075
    %v6080 = vrsqrt.pop %v5992
    %v6081 = vmul.f32 %v6080, %v5992
    %v6082 = vmul.f32 %v6081, %v6080
    %v6083 = vmul.f32 0.5, %v6082
    %v6084 = vsub.f32 1.5, %v6083
    %v6085 = vmul.f32 %v6080, %v6084
    %vm6086 = vweird.f32 %v5992
    %vm6087 = vweird.f32 %v6080
    %vm6088 = vmor %vm6086, %vm6087
    %v6089 = vsel %vm6088, %v6080, %v6085
    %v6090 = vrsqrt.pop %v5993
    %v6091 = vmul.f32 %v6090, %v5993
    %v6092 = vmul.f32 %v6091, %v6090
    %v6093 = vmul.f32 0.5, %v6092
    %v6094 = vsub.f32 1.5, %v6093
    %v6095 = vmul.f32 %v6090, %v6094
    %vm6096 = vweird.f32 %v5993
    %vm6097 = vweird.f32 %v6090
    %vm6098 = vmor %vm6096, %vm6097
    %v6099 = vsel %vm6098, %v6090, %v6095
    %v6100 = vrsqrt.pop %v5994
    %v6101 = vmul.f32 %v6100, %v5994
    %v6102 = vmul.f32 %v6101, %v6100
    %v6103 = vmul.f32 0.5, %v6102
    %v6104 = vsub.f32 1.5, %v6103
    %v6105 = vmul.f32 %v6100, %v6104
    %vm6106 = vweird.f32 %v5994
    %vm6107 = vweird.f32 %v6100
    %vm6108 = vmor %vm6106, %vm6107
    %v6109 = vsel %vm6108, %v6100, %v6105
    %v6110 = vrsqrt.pop %v5995
    %v6111 = vmul.f32 %v6110, %v5995
    %v6112 = vmul.f32 %v6111, %v6110
    %v6113 = vmul.f32 0.5, %v6112
    %v6114 = vsub.f32 1.5, %v6113
    %v6115 = vmul.f32 %v6110, %v6114
    %vm6116 = vweird.f32 %v5995
    %vm6117 = vweird.f32 %v6110
    %vm6118 = vmor %vm6116, %vm6117
    %v6119 = vsel %vm6118, %v6110, %v6115
    %v6120 = vrsqrt.pop %v5996
    %v6121 = vmul.f32 %v6120, %v5996
    %v6122 = vmul.f32 %v6121, %v6120
    %v6123 = vmul.f32 0.5, %v6122
    %v6124 = vsub.f32 1.5, %v6123
    %v6125 = vmul.f32 %v6120, %v6124
    %vm6126 = vweird.f32 %v5996
    %vm6127 = vweird.f32 %v6120
    %vm6128 = vmor %vm6126, %vm6127
    %v6129 = vsel %vm6128, %v6120, %v6125
    %v6130 = vrsqrt.pop %v5997
    %v6131 = vmul.f32 %v6130, %v5997
    %v6132 = vmul.f32 %v6131, %v6130
    %v6133 = vmul.f32 0.5, %v6132
    %v6134 = vsub.f32 1.5, %v6133
    %v6135 = vmul.f32 %v6130, %v6134
    %vm6136 = vweird.f32 %v5997
    %vm6137 = vweird.f32 %v6130
    %vm6138 = vmor %vm6136, %vm6137
    %v6139 = vsel %vm6138, %v6130, %v6135
    %v6140 = vrsqrt.pop %v5998
    %v6141 = vmul.f32 %v6140, %v5998
    %v6142 = vmul.f32 %v6141, %v6140
    %v6143 = vmul.f32 0.5, %v6142
    %v6144 = vsub.f32 1.5, %v6143
    %v6145 = vmul.f32 %v6140, %v6144
    %vm6146 = vweird.f32 %v5998
    %vm6147 = vweird.f32 %v6140
    %vm6148 = vmor %vm6146, %vm6147
    %v6149 = vsel %vm6148, %v6140, %v6145
    %v6150 = vrsqrt.pop %v5999
    %v6151 = vmul.f32 %v6150, %v5999
    %v6152 = vmul.f32 %v6151, %v6150
    %v6153 = vmul.f32 0.5, %v6152
    %v6154 = vsub.f32 1.5, %v6153
    %v6155 = vmul.f32 %v6150, %v6154
    %vm6156 = vweird.f32 %v5999
    %vm6157 = vweird.f32 %v6150
    %vm6158 = vmor %vm6156, %vm6157
    %v6159 = vsel %vm6158, %v6150, %v6155
    %v6160 = vmul.f32 %v5888, %v6009
    %v6161 = vmul.f32 %v5889, %v6019
    %v6162 = vmul.f32 %v5890, %v6029
    %v6163 = vmul.f32 %v5891, %v6039
    %v6164 = vmul.f32 %v5892, %v6049
    %v6165 = vmul.f32 %v5893, %v6059
    %v6166 = vmul.f32 %v5894, %v6069
    %v6167 = vmul.f32 %v5895, %v6079
    %v6168 = vmul.f32 %v5896, %v6089
    %v6169 = vmul.f32 %v5897, %v6099
    %v6170 = vmul.f32 %v5898, %v6109
    %v6171 = vmul.f32 %v5899, %v6119
    %v6172 = vmul.f32 %v5900, %v6129
    %v6173 = vmul.f32 %v5901, %v6139
    %v6174 = vmul.f32 %v5902, %v6149
    %v6175 = vmul.f32 %v5903, %v6159
    %v6176 = vperm.slane %v5823, 0
    %v6177 = vmul.f32 %v6160, %v6176
    %v6178 = vmul.f32 %v6161, %v6176
    %v6179 = vmul.f32 %v6162, %v6176
    %v6180 = vmul.f32 %v6163, %v6176
    %v6181 = vmul.f32 %v6164, %v6176
    %v6182 = vmul.f32 %v6165, %v6176
    %v6183 = vmul.f32 %v6166, %v6176
    %v6184 = vmul.f32 %v6167, %v6176
    %v6185 = vmul.f32 %v6168, %v6176
    %v6186 = vmul.f32 %v6169, %v6176
    %v6187 = vmul.f32 %v6170, %v6176
    %v6188 = vmul.f32 %v6171, %v6176
    %v6189 = vmul.f32 %v6172, %v6176
    %v6190 = vmul.f32 %v6173, %v6176
    %v6191 = vmul.f32 %v6174, %v6176
    %v6192 = vmul.f32 %v6175, %v6176
    %v6193 = vperm.slane %v5823, 1
    %v6194 = vadd.f32 %v6177, %v6193
    %v6195 = vadd.f32 %v6178, %v6193
    %v6196 = vadd.f32 %v6179, %v6193
    %v6197 = vadd.f32 %v6180, %v6193
    %v6198 = vadd.f32 %v6181, %v6193
    %v6199 = vadd.f32 %v6182, %v6193
    %v6200 = vadd.f32 %v6183, %v6193
    %v6201 = vadd.f32 %v6184, %v6193
    %v6202 = vadd.f32 %v6185, %v6193
    %v6203 = vadd.f32 %v6186, %v6193
    %v6204 = vadd.f32 %v6187, %v6193
    %v6205 = vadd.f32 %v6188, %v6193
    %v6206 = vadd.f32 %v6189, %v6193
    %v6207 = vadd.f32 %v6190, %v6193
    %v6208 = vadd.f32 %v6191, %v6193
    %v6209 = vadd.f32 %v6192, %v6193
    %s6210 = scalar_lea.vmem %s3, 32
    %v6211 = vld [vmem:[%s6210] sm:$0xff]
    %v6212 = vld [vmem:[%s6210 + $0x8] sm:$0xff]
    %v6213 = vld [vmem:[%s6210 + $0x10] sm:$0xff]
    %v6214 = vld [vmem:[%s6210 + $0x18] sm:$0xff]
    %v6216 = vsel %vm203, %v6194, 0
    %v6219 = vsel %vm203, %v6195, 0
    %v6222 = vsel %vm203, %v6196, 0
    %v6225 = vsel %vm203, %v6197, 0
    %v6228 = vsel %vm203, %v6198, 0
    %v6231 = vsel %vm203, %v6199, 0
    %v6234 = vsel %vm203, %v6200, 0
    %v6237 = vsel %vm203, %v6201, 0
    %v6240 = vsel %vm203, %v6202, 0
    %v6243 = vsel %vm203, %v6203, 0
    %v6246 = vsel %vm203, %v6204, 0
    %v6249 = vsel %vm203, %v6205, 0
    %v6252 = vsel %vm203, %v6206, 0
    %v6255 = vsel %vm203, %v6207, 0
    %v6258 = vsel %vm203, %v6208, 0
    %v6261 = vsel %vm203, %v6209, 0
    %6263 = vmatpush.msra.mxu0 0.0
    %6264 = vmatpush.msra.mxu0 0.0
    %6265 = vmatpush.msra.mxu0 0.0
    %6266 = vmatpush.msra.mxu0 0.0
    %6267 = vmatpush.msra.mxu0 0.0
    %6268 = vmatpush.msra.mxu0 0.0
    %6269 = vmatpush.msra.mxu0 0.0
    %6270 = vmatpush.msra.mxu0 0.0
    %6271 = vmatpush.msra.mxu0 0.0
    %6272 = vmatpush.msra.mxu0 0.0
    %6273 = vmatpush.msra.mxu0 0.0
    %6274 = vmatpush.msra.mxu0 0.0
    %6275 = vmatpush.msra.mxu0 %v6214
    %6276 = vmatpush.msra.mxu0 %v6213
    %6277 = vmatpush.msra.mxu0 %v6212
    %6278 = vmatpush.msra.mxu0 %v6211
    %6279 = vmatmul.f32.gmra.mxu0 %v6216
    %v6280 = vpop.f32.mrf.mxu0
    %v6281 = vadd.f32 0.0, %v6280
    %6282 = vmatmul.f32.gmra.mxu0 %v6219
    %v6283 = vpop.f32.mrf.mxu0
    %v6284 = vadd.f32 0.0, %v6283
    %6285 = vmatmul.f32.gmra.mxu0 %v6222
    %v6286 = vpop.f32.mrf.mxu0
    %v6287 = vadd.f32 0.0, %v6286
    %6288 = vmatmul.f32.gmra.mxu0 %v6225
    %v6289 = vpop.f32.mrf.mxu0
    %v6290 = vadd.f32 0.0, %v6289
    %6291 = vmatmul.f32.gmra.mxu0 %v6228
    %v6292 = vpop.f32.mrf.mxu0
    %v6293 = vadd.f32 0.0, %v6292
    %6294 = vmatmul.f32.gmra.mxu0 %v6231
    %v6295 = vpop.f32.mrf.mxu0
    %v6296 = vadd.f32 0.0, %v6295
    %6297 = vmatmul.f32.gmra.mxu0 %v6234
    %v6298 = vpop.f32.mrf.mxu0
    %v6299 = vadd.f32 0.0, %v6298
    %6300 = vmatmul.f32.gmra.mxu0 %v6237
    %v6301 = vpop.f32.mrf.mxu0
    %v6302 = vadd.f32 0.0, %v6301
    %6303 = vmatmul.f32.gmra.mxu0 %v6240
    %v6304 = vpop.f32.mrf.mxu0
    %v6305 = vadd.f32 0.0, %v6304
    %6306 = vmatmul.f32.gmra.mxu0 %v6243
    %v6307 = vpop.f32.mrf.mxu0
    %v6308 = vadd.f32 0.0, %v6307
    %6309 = vmatmul.f32.gmra.mxu0 %v6246
    %v6310 = vpop.f32.mrf.mxu0
    %v6311 = vadd.f32 0.0, %v6310
    %6312 = vmatmul.f32.gmra.mxu0 %v6249
    %v6313 = vpop.f32.mrf.mxu0
    %v6314 = vadd.f32 0.0, %v6313
    %6315 = vmatmul.f32.gmra.mxu0 %v6252
    %v6316 = vpop.f32.mrf.mxu0
    %v6317 = vadd.f32 0.0, %v6316
    %6318 = vmatmul.f32.gmra.mxu0 %v6255
    %v6319 = vpop.f32.mrf.mxu0
    %v6320 = vadd.f32 0.0, %v6319
    %6321 = vmatmul.f32.gmra.mxu0 %v6258
    %v6322 = vpop.f32.mrf.mxu0
    %v6323 = vadd.f32 0.0, %v6322
    %6324 = vmatmul.f32.gmra.mxu0 %v6261
    %v6325 = vpop.f32.mrf.mxu0
    %v6326 = vadd.f32 0.0, %v6325
    %6327 = vdwg.mxu0
    %s6328 = scalar_lea.vmem %s4, 32
    %v6329 = vld [vmem:[%s6328] sm:$0xff]
    %v6330 = vld [vmem:[%s6328 + $0x8] sm:$0xff]
    %v6331 = vld [vmem:[%s6328 + $0x10] sm:$0xff]
    %v6332 = vld [vmem:[%s6328 + $0x18] sm:$0xff]
    %6335 = vrot.lane.b32.xlu0 %v6281, 96
    %v6336 = vpop.permute.xlu0 %6335
    %6337 = vrot.lane.b32.xlu0 %v6284, 96
    %v6338 = vpop.permute.xlu0 %6337
    %v6339 = vsel %vm762, %v6281, 0
    %v6341 = vsel %vm762, %v6284, 0
    %v6343 = vsel %vm762, %v6336, 0
    %v6345 = vsel %vm762, %v6338, 0
    %6347 = vmatpush.xpose.msra.mxu0 0.0
    %6348 = vmatpush.xpose.msra.mxu0 0.0
    %6349 = vmatpush.xpose.msra.mxu0 0.0
    %6350 = vmatpush.xpose.msra.mxu0 0.0
    %6351 = vmatpush.xpose.msra.mxu0 0.0
    %6352 = vmatpush.xpose.msra.mxu0 0.0
    %6353 = vmatpush.xpose.msra.mxu0 0.0
    %6354 = vmatpush.xpose.msra.mxu0 0.0
    %6355 = vmatpush.xpose.msra.mxu0 0.0
    %6356 = vmatpush.xpose.msra.mxu0 0.0
    %6357 = vmatpush.xpose.msra.mxu0 0.0
    %6358 = vmatpush.xpose.msra.mxu0 0.0
    %6359 = vmatpush.xpose.msra.mxu0 0.0
    %6360 = vmatpush.xpose.msra.mxu0 0.0
    %6361 = vmatpush.xpose.msra.mxu0 %v6345
    %6362 = vmatpush.xpose.msra.mxu0 %v6343
    %6363 = vmatmul.f32.gmra.mxu0 %v6339
    %v6364 = vpop.f32.mrf.mxu0
    %v6365 = vadd.f32 0.0, %v6364
    %6366 = vmatmul.f32.gmra.mxu0 %v6341
    %v6367 = vpop.f32.mrf.mxu0
    %v6368 = vadd.f32 0.0, %v6367
    %6369 = vdwg.mxu0
    %6372 = vrot.lane.b32.xlu0 %v6287, 96
    %v6373 = vpop.permute.xlu0 %6372
    %6374 = vrot.lane.b32.xlu0 %v6290, 96
    %v6375 = vpop.permute.xlu0 %6374
    %v6376 = vsel %vm762, %v6287, 0
    %v6378 = vsel %vm762, %v6290, 0
    %v6380 = vsel %vm762, %v6373, 0
    %v6382 = vsel %vm762, %v6375, 0
    %6384 = vmatpush.xpose.msra.mxu0 0.0
    %6385 = vmatpush.xpose.msra.mxu0 0.0
    %6386 = vmatpush.xpose.msra.mxu0 0.0
    %6387 = vmatpush.xpose.msra.mxu0 0.0
    %6388 = vmatpush.xpose.msra.mxu0 0.0
    %6389 = vmatpush.xpose.msra.mxu0 0.0
    %6390 = vmatpush.xpose.msra.mxu0 0.0
    %6391 = vmatpush.xpose.msra.mxu0 0.0
    %6392 = vmatpush.xpose.msra.mxu0 0.0
    %6393 = vmatpush.xpose.msra.mxu0 0.0
    %6394 = vmatpush.xpose.msra.mxu0 0.0
    %6395 = vmatpush.xpose.msra.mxu0 0.0
    %6396 = vmatpush.xpose.msra.mxu0 0.0
    %6397 = vmatpush.xpose.msra.mxu0 0.0
    %6398 = vmatpush.xpose.msra.mxu0 %v6382
    %6399 = vmatpush.xpose.msra.mxu0 %v6380
    %6400 = vmatmul.f32.gmra.mxu0 %v6376
    %v6401 = vpop.f32.mrf.mxu0
    %v6402 = vadd.f32 0.0, %v6401
    %6403 = vmatmul.f32.gmra.mxu0 %v6378
    %v6404 = vpop.f32.mrf.mxu0
    %v6405 = vadd.f32 0.0, %v6404
    %6406 = vdwg.mxu0
    %6409 = vrot.lane.b32.xlu0 %v6293, 96
    %v6410 = vpop.permute.xlu0 %6409
    %6411 = vrot.lane.b32.xlu0 %v6296, 96
    %v6412 = vpop.permute.xlu0 %6411
    %v6413 = vsel %vm762, %v6293, 0
    %v6415 = vsel %vm762, %v6296, 0
    %v6417 = vsel %vm762, %v6410, 0
    %v6419 = vsel %vm762, %v6412, 0
    %6421 = vmatpush.xpose.msra.mxu0 0.0
    %6422 = vmatpush.xpose.msra.mxu0 0.0
    %6423 = vmatpush.xpose.msra.mxu0 0.0
    %6424 = vmatpush.xpose.msra.mxu0 0.0
    %6425 = vmatpush.xpose.msra.mxu0 0.0
    %6426 = vmatpush.xpose.msra.mxu0 0.0
    %6427 = vmatpush.xpose.msra.mxu0 0.0
    %6428 = vmatpush.xpose.msra.mxu0 0.0
    %6429 = vmatpush.xpose.msra.mxu0 0.0
    %6430 = vmatpush.xpose.msra.mxu0 0.0
    %6431 = vmatpush.xpose.msra.mxu0 0.0
    %6432 = vmatpush.xpose.msra.mxu0 0.0
    %6433 = vmatpush.xpose.msra.mxu0 0.0
    %6434 = vmatpush.xpose.msra.mxu0 0.0
    %6435 = vmatpush.xpose.msra.mxu0 %v6419
    %6436 = vmatpush.xpose.msra.mxu0 %v6417
    %6437 = vmatmul.f32.gmra.mxu0 %v6413
    %v6438 = vpop.f32.mrf.mxu0
    %v6439 = vadd.f32 0.0, %v6438
    %6440 = vmatmul.f32.gmra.mxu0 %v6415
    %v6441 = vpop.f32.mrf.mxu0
    %v6442 = vadd.f32 0.0, %v6441
    %6443 = vdwg.mxu0
    %6446 = vrot.lane.b32.xlu0 %v6299, 96
    %v6447 = vpop.permute.xlu0 %6446
    %6448 = vrot.lane.b32.xlu0 %v6302, 96
    %v6449 = vpop.permute.xlu0 %6448
    %v6450 = vsel %vm762, %v6299, 0
    %v6452 = vsel %vm762, %v6302, 0
    %v6454 = vsel %vm762, %v6447, 0
    %v6456 = vsel %vm762, %v6449, 0
    %6458 = vmatpush.xpose.msra.mxu0 0.0
    %6459 = vmatpush.xpose.msra.mxu0 0.0
    %6460 = vmatpush.xpose.msra.mxu0 0.0
    %6461 = vmatpush.xpose.msra.mxu0 0.0
    %6462 = vmatpush.xpose.msra.mxu0 0.0
    %6463 = vmatpush.xpose.msra.mxu0 0.0
    %6464 = vmatpush.xpose.msra.mxu0 0.0
    %6465 = vmatpush.xpose.msra.mxu0 0.0
    %6466 = vmatpush.xpose.msra.mxu0 0.0
    %6467 = vmatpush.xpose.msra.mxu0 0.0
    %6468 = vmatpush.xpose.msra.mxu0 0.0
    %6469 = vmatpush.xpose.msra.mxu0 0.0
    %6470 = vmatpush.xpose.msra.mxu0 0.0
    %6471 = vmatpush.xpose.msra.mxu0 0.0
    %6472 = vmatpush.xpose.msra.mxu0 %v6456
    %6473 = vmatpush.xpose.msra.mxu0 %v6454
    %6474 = vmatmul.f32.gmra.mxu0 %v6450
    %v6475 = vpop.f32.mrf.mxu0
    %v6476 = vadd.f32 0.0, %v6475
    %6477 = vmatmul.f32.gmra.mxu0 %v6452
    %v6478 = vpop.f32.mrf.mxu0
    %v6479 = vadd.f32 0.0, %v6478
    %6480 = vdwg.mxu0
    %6483 = vrot.lane.b32.xlu0 %v6305, 96
    %v6484 = vpop.permute.xlu0 %6483
    %6485 = vrot.lane.b32.xlu0 %v6308, 96
    %v6486 = vpop.permute.xlu0 %6485
    %v6487 = vsel %vm762, %v6305, 0
    %v6489 = vsel %vm762, %v6308, 0
    %v6491 = vsel %vm762, %v6484, 0
    %v6493 = vsel %vm762, %v6486, 0
    %6495 = vmatpush.xpose.msra.mxu0 0.0
    %6496 = vmatpush.xpose.msra.mxu0 0.0
    %6497 = vmatpush.xpose.msra.mxu0 0.0
    %6498 = vmatpush.xpose.msra.mxu0 0.0
    %6499 = vmatpush.xpose.msra.mxu0 0.0
    %6500 = vmatpush.xpose.msra.mxu0 0.0
    %6501 = vmatpush.xpose.msra.mxu0 0.0
    %6502 = vmatpush.xpose.msra.mxu0 0.0
    %6503 = vmatpush.xpose.msra.mxu0 0.0
    %6504 = vmatpush.xpose.msra.mxu0 0.0
    %6505 = vmatpush.xpose.msra.mxu0 0.0
    %6506 = vmatpush.xpose.msra.mxu0 0.0
    %6507 = vmatpush.xpose.msra.mxu0 0.0
    %6508 = vmatpush.xpose.msra.mxu0 0.0
    %6509 = vmatpush.xpose.msra.mxu0 %v6493
    %6510 = vmatpush.xpose.msra.mxu0 %v6491
    %6511 = vmatmul.f32.gmra.mxu0 %v6487
    %v6512 = vpop.f32.mrf.mxu0
    %v6513 = vadd.f32 0.0, %v6512
    %6514 = vmatmul.f32.gmra.mxu0 %v6489
    %v6515 = vpop.f32.mrf.mxu0
    %v6516 = vadd.f32 0.0, %v6515
    %6517 = vdwg.mxu0
    %6520 = vrot.lane.b32.xlu0 %v6311, 96
    %v6521 = vpop.permute.xlu0 %6520
    %6522 = vrot.lane.b32.xlu0 %v6314, 96
    %v6523 = vpop.permute.xlu0 %6522
    %v6524 = vsel %vm762, %v6311, 0
    %v6526 = vsel %vm762, %v6314, 0
    %v6528 = vsel %vm762, %v6521, 0
    %v6530 = vsel %vm762, %v6523, 0
    %6532 = vmatpush.xpose.msra.mxu0 0.0
    %6533 = vmatpush.xpose.msra.mxu0 0.0
    %6534 = vmatpush.xpose.msra.mxu0 0.0
    %6535 = vmatpush.xpose.msra.mxu0 0.0
    %6536 = vmatpush.xpose.msra.mxu0 0.0
    %6537 = vmatpush.xpose.msra.mxu0 0.0
    %6538 = vmatpush.xpose.msra.mxu0 0.0
    %6539 = vmatpush.xpose.msra.mxu0 0.0
    %6540 = vmatpush.xpose.msra.mxu0 0.0
    %6541 = vmatpush.xpose.msra.mxu0 0.0
    %6542 = vmatpush.xpose.msra.mxu0 0.0
    %6543 = vmatpush.xpose.msra.mxu0 0.0
    %6544 = vmatpush.xpose.msra.mxu0 0.0
    %6545 = vmatpush.xpose.msra.mxu0 0.0
    %6546 = vmatpush.xpose.msra.mxu0 %v6530
    %6547 = vmatpush.xpose.msra.mxu0 %v6528
    %6548 = vmatmul.f32.gmra.mxu0 %v6524
    %v6549 = vpop.f32.mrf.mxu0
    %v6550 = vadd.f32 0.0, %v6549
    %6551 = vmatmul.f32.gmra.mxu0 %v6526
    %v6552 = vpop.f32.mrf.mxu0
    %v6553 = vadd.f32 0.0, %v6552
    %6554 = vdwg.mxu0
    %6557 = vrot.lane.b32.xlu0 %v6317, 96
    %v6558 = vpop.permute.xlu0 %6557
    %6559 = vrot.lane.b32.xlu0 %v6320, 96
    %v6560 = vpop.permute.xlu0 %6559
    %v6561 = vsel %vm762, %v6317, 0
    %v6563 = vsel %vm762, %v6320, 0
    %v6565 = vsel %vm762, %v6558, 0
    %v6567 = vsel %vm762, %v6560, 0
    %6569 = vmatpush.xpose.msra.mxu0 0.0
    %6570 = vmatpush.xpose.msra.mxu0 0.0
    %6571 = vmatpush.xpose.msra.mxu0 0.0
    %6572 = vmatpush.xpose.msra.mxu0 0.0
    %6573 = vmatpush.xpose.msra.mxu0 0.0
    %6574 = vmatpush.xpose.msra.mxu0 0.0
    %6575 = vmatpush.xpose.msra.mxu0 0.0
    %6576 = vmatpush.xpose.msra.mxu0 0.0
    %6577 = vmatpush.xpose.msra.mxu0 0.0
    %6578 = vmatpush.xpose.msra.mxu0 0.0
    %6579 = vmatpush.xpose.msra.mxu0 0.0
    %6580 = vmatpush.xpose.msra.mxu0 0.0
    %6581 = vmatpush.xpose.msra.mxu0 0.0
    %6582 = vmatpush.xpose.msra.mxu0 0.0
    %6583 = vmatpush.xpose.msra.mxu0 %v6567
    %6584 = vmatpush.xpose.msra.mxu0 %v6565
    %6585 = vmatmul.f32.gmra.mxu0 %v6561
    %v6586 = vpop.f32.mrf.mxu0
    %v6587 = vadd.f32 0.0, %v6586
    %6588 = vmatmul.f32.gmra.mxu0 %v6563
    %v6589 = vpop.f32.mrf.mxu0
    %v6590 = vadd.f32 0.0, %v6589
    %6591 = vdwg.mxu0
    %6594 = vrot.lane.b32.xlu0 %v6323, 96
    %v6595 = vpop.permute.xlu0 %6594
    %6596 = vrot.lane.b32.xlu0 %v6326, 96
    %v6597 = vpop.permute.xlu0 %6596
    %v6598 = vsel %vm762, %v6323, 0
    %v6600 = vsel %vm762, %v6326, 0
    %v6602 = vsel %vm762, %v6595, 0
    %v6604 = vsel %vm762, %v6597, 0
    %6606 = vmatpush.xpose.msra.mxu0 0.0
    %6607 = vmatpush.xpose.msra.mxu0 0.0
    %6608 = vmatpush.xpose.msra.mxu0 0.0
    %6609 = vmatpush.xpose.msra.mxu0 0.0
    %6610 = vmatpush.xpose.msra.mxu0 0.0
    %6611 = vmatpush.xpose.msra.mxu0 0.0
    %6612 = vmatpush.xpose.msra.mxu0 0.0
    %6613 = vmatpush.xpose.msra.mxu0 0.0
    %6614 = vmatpush.xpose.msra.mxu0 0.0
    %6615 = vmatpush.xpose.msra.mxu0 0.0
    %6616 = vmatpush.xpose.msra.mxu0 0.0
    %6617 = vmatpush.xpose.msra.mxu0 0.0
    %6618 = vmatpush.xpose.msra.mxu0 0.0
    %6619 = vmatpush.xpose.msra.mxu0 0.0
    %6620 = vmatpush.xpose.msra.mxu0 %v6604
    %6621 = vmatpush.xpose.msra.mxu0 %v6602
    %6622 = vmatmul.f32.gmra.mxu0 %v6598
    %v6623 = vpop.f32.mrf.mxu0
    %v6624 = vadd.f32 0.0, %v6623
    %6625 = vmatmul.f32.gmra.mxu0 %v6600
    %v6626 = vpop.f32.mrf.mxu0
    %v6627 = vadd.f32 0.0, %v6626
    %6628 = vdwg.mxu0
    %v6629 = vmul.f32 %v6365, 0.35355338
    %v6630 = vmul.f32 %v6368, 0.35355338
    %v6631 = vmul.f32 %v6402, 0.35355338
    %v6632 = vmul.f32 %v6405, 0.35355338
    %v6633 = vmul.f32 %v6439, 0.35355338
    %v6634 = vmul.f32 %v6442, 0.35355338
    %v6635 = vmul.f32 %v6476, 0.35355338
    %v6636 = vmul.f32 %v6479, 0.35355338
    %v6637 = vmul.f32 %v6513, 0.35355338
    %v6638 = vmul.f32 %v6516, 0.35355338
    %v6639 = vmul.f32 %v6550, 0.35355338
    %v6640 = vmul.f32 %v6553, 0.35355338
    %v6641 = vmul.f32 %v6587, 0.35355338
    %v6642 = vmul.f32 %v6590, 0.35355338
    %v6643 = vmul.f32 %v6624, 0.35355338
    %v6644 = vmul.f32 %v6627, 0.35355338
    %v6645 = vadd.f32 %v6629, %v240
    %v6646 = vadd.f32 %v6630, %v240
    %v6647 = vadd.f32 %v6631, %v240
    %v6648 = vadd.f32 %v6632, %v240
    %v6649 = vadd.f32 %v6633, %v240
    %v6650 = vadd.f32 %v6634, %v240
    %v6651 = vadd.f32 %v6635, %v240
    %v6652 = vadd.f32 %v6636, %v240
    %v6653 = vadd.f32 %v6637, %v240
    %v6654 = vadd.f32 %v6638, %v240
    %v6655 = vadd.f32 %v6639, %v240
    %v6656 = vadd.f32 %v6640, %v240
    %v6657 = vadd.f32 %v6641, %v240
    %v6658 = vadd.f32 %v6642, %v240
    %v6659 = vadd.f32 %v6643, %v240
    %v6660 = vadd.f32 %v6644, %v240
    %v6661 = vsel %vm1085, %v6645, -inf
    %6662 = vmax.xlane.f32.xlu0 %v6661
    %v6663 = vpop.xlane.xlu0 %6662
    %v6664 = vsel %vm1085, %v6646, -inf
    %6665 = vmax.xlane.f32.xlu0 %v6664
    %v6666 = vpop.xlane.xlu0 %6665
    %v6667 = vsel %vm1085, %v6647, -inf
    %6668 = vmax.xlane.f32.xlu0 %v6667
    %v6669 = vpop.xlane.xlu0 %6668
    %v6670 = vsel %vm1085, %v6648, -inf
    %6671 = vmax.xlane.f32.xlu0 %v6670
    %v6672 = vpop.xlane.xlu0 %6671
    %v6673 = vsel %vm1085, %v6649, -inf
    %6674 = vmax.xlane.f32.xlu0 %v6673
    %v6675 = vpop.xlane.xlu0 %6674
    %v6676 = vsel %vm1085, %v6650, -inf
    %6677 = vmax.xlane.f32.xlu0 %v6676
    %v6678 = vpop.xlane.xlu0 %6677
    %v6679 = vsel %vm1085, %v6651, -inf
    %6680 = vmax.xlane.f32.xlu0 %v6679
    %v6681 = vpop.xlane.xlu0 %6680
    %v6682 = vsel %vm1085, %v6652, -inf
    %6683 = vmax.xlane.f32.xlu0 %v6682
    %v6684 = vpop.xlane.xlu0 %6683
    %v6685 = vsel %vm1085, %v6653, -inf
    %6686 = vmax.xlane.f32.xlu0 %v6685
    %v6687 = vpop.xlane.xlu0 %6686
    %v6688 = vsel %vm1085, %v6654, -inf
    %6689 = vmax.xlane.f32.xlu0 %v6688
    %v6690 = vpop.xlane.xlu0 %6689
    %v6691 = vsel %vm1085, %v6655, -inf
    %6692 = vmax.xlane.f32.xlu0 %v6691
    %v6693 = vpop.xlane.xlu0 %6692
    %v6694 = vsel %vm1085, %v6656, -inf
    %6695 = vmax.xlane.f32.xlu0 %v6694
    %v6696 = vpop.xlane.xlu0 %6695
    %v6697 = vsel %vm1085, %v6657, -inf
    %6698 = vmax.xlane.f32.xlu0 %v6697
    %v6699 = vpop.xlane.xlu0 %6698
    %v6700 = vsel %vm1085, %v6658, -inf
    %6701 = vmax.xlane.f32.xlu0 %v6700
    %v6702 = vpop.xlane.xlu0 %6701
    %v6703 = vsel %vm1085, %v6659, -inf
    %6704 = vmax.xlane.f32.xlu0 %v6703
    %v6705 = vpop.xlane.xlu0 %6704
    %v6706 = vsel %vm1085, %v6660, -inf
    %6707 = vmax.xlane.f32.xlu0 %v6706
    %v6708 = vpop.xlane.xlu0 %6707
    %v6709 = vsub.f32 %v6645, %v6663
    %v6710 = vsub.f32 %v6646, %v6666
    %v6711 = vsub.f32 %v6647, %v6669
    %v6712 = vsub.f32 %v6648, %v6672
    %v6713 = vsub.f32 %v6649, %v6675
    %v6714 = vsub.f32 %v6650, %v6678
    %v6715 = vsub.f32 %v6651, %v6681
    %v6716 = vsub.f32 %v6652, %v6684
    %v6717 = vsub.f32 %v6653, %v6687
    %v6718 = vsub.f32 %v6654, %v6690
    %v6719 = vsub.f32 %v6655, %v6693
    %v6720 = vsub.f32 %v6656, %v6696
    %v6721 = vsub.f32 %v6657, %v6699
    %v6722 = vsub.f32 %v6658, %v6702
    %v6723 = vsub.f32 %v6659, %v6705
    %v6724 = vsub.f32 %v6660, %v6708
    %v6725 = vmul.f32 %v6709, 1.442695
    %v6726 = vpow.pop %v6725
    %v6727 = vmul.f32 %v6710, 1.442695
    %v6728 = vpow.pop %v6727
    %v6729 = vmul.f32 %v6711, 1.442695
    %v6730 = vpow.pop %v6729
    %v6731 = vmul.f32 %v6712, 1.442695
    %v6732 = vpow.pop %v6731
    %v6733 = vmul.f32 %v6713, 1.442695
    %v6734 = vpow.pop %v6733
    %v6735 = vmul.f32 %v6714, 1.442695
    %v6736 = vpow.pop %v6735
    %v6737 = vmul.f32 %v6715, 1.442695
    %v6738 = vpow.pop %v6737
    %v6739 = vmul.f32 %v6716, 1.442695
    %v6740 = vpow.pop %v6739
    %v6741 = vmul.f32 %v6717, 1.442695
    %v6742 = vpow.pop %v6741
    %v6743 = vmul.f32 %v6718, 1.442695
    %v6744 = vpow.pop %v6743
    %v6745 = vmul.f32 %v6719, 1.442695
    %v6746 = vpow.pop %v6745
    %v6747 = vmul.f32 %v6720, 1.442695
    %v6748 = vpow.pop %v6747
    %v6749 = vmul.f32 %v6721, 1.442695
    %v6750 = vpow.pop %v6749
    %v6751 = vmul.f32 %v6722, 1.442695
    %v6752 = vpow.pop %v6751
    %v6753 = vmul.f32 %v6723, 1.442695
    %v6754 = vpow.pop %v6753
    %v6755 = vmul.f32 %v6724, 1.442695
    %v6756 = vpow.pop %v6755
    %v6757 = vsel %vm1085, %v6726, 0.0
    %6758 = vadd.xlane.f32.xlu0 %v6757
    %v6759 = vpop.xlane.xlu0 %6758
    %v6760 = vsel %vm1085, %v6728, 0.0
    %6761 = vadd.xlane.f32.xlu0 %v6760
    %v6762 = vpop.xlane.xlu0 %6761
    %v6763 = vsel %vm1085, %v6730, 0.0
    %6764 = vadd.xlane.f32.xlu0 %v6763
    %v6765 = vpop.xlane.xlu0 %6764
    %v6766 = vsel %vm1085, %v6732, 0.0
    %6767 = vadd.xlane.f32.xlu0 %v6766
    %v6768 = vpop.xlane.xlu0 %6767
    %v6769 = vsel %vm1085, %v6734, 0.0
    %6770 = vadd.xlane.f32.xlu0 %v6769
    %v6771 = vpop.xlane.xlu0 %6770
    %v6772 = vsel %vm1085, %v6736, 0.0
    %6773 = vadd.xlane.f32.xlu0 %v6772
    %v6774 = vpop.xlane.xlu0 %6773
    %v6775 = vsel %vm1085, %v6738, 0.0
    %6776 = vadd.xlane.f32.xlu0 %v6775
    %v6777 = vpop.xlane.xlu0 %6776
    %v6778 = vsel %vm1085, %v6740, 0.0
    %6779 = vadd.xlane.f32.xlu0 %v6778
    %v6780 = vpop.xlane.xlu0 %6779
    %v6781 = vsel %vm1085, %v6742, 0.0
    %6782 = vadd.xlane.f32.xlu0 %v6781
    %v6783 = vpop.xlane.xlu0 %6782
    %v6784 = vsel %vm1085, %v6744, 0.0
    %6785 = vadd.xlane.f32.xlu0 %v6784
    %v6786 = vpop.xlane.xlu0 %6785
    %v6787 = vsel %vm1085, %v6746, 0.0
    %6788 = vadd.xlane.f32.xlu0 %v6787
    %v6789 = vpop.xlane.xlu0 %6788
    %v6790 = vsel %vm1085, %v6748, 0.0
    %6791 = vadd.xlane.f32.xlu0 %v6790
    %v6792 = vpop.xlane.xlu0 %6791
    %v6793 = vsel %vm1085, %v6750, 0.0
    %6794 = vadd.xlane.f32.xlu0 %v6793
    %v6795 = vpop.xlane.xlu0 %6794
    %v6796 = vsel %vm1085, %v6752, 0.0
    %6797 = vadd.xlane.f32.xlu0 %v6796
    %v6798 = vpop.xlane.xlu0 %6797
    %v6799 = vsel %vm1085, %v6754, 0.0
    %6800 = vadd.xlane.f32.xlu0 %v6799
    %v6801 = vpop.xlane.xlu0 %6800
    %v6802 = vsel %vm1085, %v6756, 0.0
    %6803 = vadd.xlane.f32.xlu0 %v6802
    %v6804 = vpop.xlane.xlu0 %6803
    %v6805 = vrcp.pop %v6759
    %v6806 = vrcp.pop %v6762
    %v6807 = vrcp.pop %v6765
    %v6808 = vrcp.pop %v6768
    %v6809 = vrcp.pop %v6771
    %v6810 = vrcp.pop %v6774
    %v6811 = vrcp.pop %v6777
    %v6812 = vrcp.pop %v6780
    %v6813 = vrcp.pop %v6783
    %v6814 = vrcp.pop %v6786
    %v6815 = vrcp.pop %v6789
    %v6816 = vrcp.pop %v6792
    %v6817 = vrcp.pop %v6795
    %v6818 = vrcp.pop %v6798
    %v6819 = vrcp.pop %v6801
    %v6820 = vrcp.pop %v6804
    %v6821 = vmul.f32 %v6726, %v6805
    %v6822 = vmul.f32 %v6728, %v6806
    %v6823 = vmul.f32 %v6730, %v6807
    %v6824 = vmul.f32 %v6732, %v6808
    %v6825 = vmul.f32 %v6734, %v6809
    %v6826 = vmul.f32 %v6736, %v6810
    %v6827 = vmul.f32 %v6738, %v6811
    %v6828 = vmul.f32 %v6740, %v6812
    %v6829 = vmul.f32 %v6742, %v6813
    %v6830 = vmul.f32 %v6744, %v6814
    %v6831 = vmul.f32 %v6746, %v6815
    %v6832 = vmul.f32 %v6748, %v6816
    %v6833 = vmul.f32 %v6750, %v6817
    %v6834 = vmul.f32 %v6752, %v6818
    %v6835 = vmul.f32 %v6754, %v6819
    %v6836 = vmul.f32 %v6756, %v6820
    %6837 = vrot.lane.b32.xlu0 %v6281, 64
    %v6838 = vpop.permute.xlu0 %6837
    %6839 = vrot.lane.b32.xlu0 %v6284, 64
    %v6840 = vpop.permute.xlu0 %6839
    %v6844 = vsel %vm1085, %v6821, 0
    %v6847 = vsel %vm1085, %v6822, 0
    %6849 = vmatpush.msra.mxu0 0.0
    %6850 = vmatpush.msra.mxu0 0.0
    %6851 = vmatpush.msra.mxu0 0.0
    %6852 = vmatpush.msra.mxu0 0.0
    %6853 = vmatpush.msra.mxu0 0.0
    %6854 = vmatpush.msra.mxu0 0.0
    %6855 = vmatpush.msra.mxu0 0.0
    %6856 = vmatpush.msra.mxu0 0.0
    %6857 = vmatpush.msra.mxu0 0.0
    %6858 = vmatpush.msra.mxu0 0.0
    %6859 = vmatpush.msra.mxu0 0.0
    %6860 = vmatpush.msra.mxu0 0.0
    %6861 = vmatpush.msra.mxu0 0.0
    %6862 = vmatpush.msra.mxu0 0.0
    %6863 = vmatpush.msra.mxu0 %v6840
    %6864 = vmatpush.msra.mxu0 %v6838
    %6865 = vmatmul.f32.gmra.mxu0 %v6844
    %v6866 = vpop.f32.mrf.mxu0
    %v6867 = vadd.f32 0.0, %v6866
    %6868 = vmatmul.f32.gmra.mxu0 %v6847
    %v6869 = vpop.f32.mrf.mxu0
    %v6870 = vadd.f32 0.0, %v6869
    %6871 = vdwg.mxu0
    %6872 = vrot.lane.b32.xlu0 %v6287, 64
    %v6873 = vpop.permute.xlu0 %6872
    %6874 = vrot.lane.b32.xlu0 %v6290, 64
    %v6875 = vpop.permute.xlu0 %6874
    %v6879 = vsel %vm1085, %v6823, 0
    %v6882 = vsel %vm1085, %v6824, 0
    %6884 = vmatpush.msra.mxu0 0.0
    %6885 = vmatpush.msra.mxu0 0.0
    %6886 = vmatpush.msra.mxu0 0.0
    %6887 = vmatpush.msra.mxu0 0.0
    %6888 = vmatpush.msra.mxu0 0.0
    %6889 = vmatpush.msra.mxu0 0.0
    %6890 = vmatpush.msra.mxu0 0.0
    %6891 = vmatpush.msra.mxu0 0.0
    %6892 = vmatpush.msra.mxu0 0.0
    %6893 = vmatpush.msra.mxu0 0.0
    %6894 = vmatpush.msra.mxu0 0.0
    %6895 = vmatpush.msra.mxu0 0.0
    %6896 = vmatpush.msra.mxu0 0.0
    %6897 = vmatpush.msra.mxu0 0.0
    %6898 = vmatpush.msra.mxu0 %v6875
    %6899 = vmatpush.msra.mxu0 %v6873
    %6900 = vmatmul.f32.gmra.mxu0 %v6879
    %v6901 = vpop.f32.mrf.mxu0
    %v6902 = vadd.f32 0.0, %v6901
    %6903 = vmatmul.f32.gmra.mxu0 %v6882
    %v6904 = vpop.f32.mrf.mxu0
    %v6905 = vadd.f32 0.0, %v6904
    %6906 = vdwg.mxu0
    %6907 = vrot.lane.b32.xlu0 %v6293, 64
    %v6908 = vpop.permute.xlu0 %6907
    %6909 = vrot.lane.b32.xlu0 %v6296, 64
    %v6910 = vpop.permute.xlu0 %6909
    %v6914 = vsel %vm1085, %v6825, 0
    %v6917 = vsel %vm1085, %v6826, 0
    %6919 = vmatpush.msra.mxu0 0.0
    %6920 = vmatpush.msra.mxu0 0.0
    %6921 = vmatpush.msra.mxu0 0.0
    %6922 = vmatpush.msra.mxu0 0.0
    %6923 = vmatpush.msra.mxu0 0.0
    %6924 = vmatpush.msra.mxu0 0.0
    %6925 = vmatpush.msra.mxu0 0.0
    %6926 = vmatpush.msra.mxu0 0.0
    %6927 = vmatpush.msra.mxu0 0.0
    %6928 = vmatpush.msra.mxu0 0.0
    %6929 = vmatpush.msra.mxu0 0.0
    %6930 = vmatpush.msra.mxu0 0.0
    %6931 = vmatpush.msra.mxu0 0.0
    %6932 = vmatpush.msra.mxu0 0.0
    %6933 = vmatpush.msra.mxu0 %v6910
    %6934 = vmatpush.msra.mxu0 %v6908
    %6935 = vmatmul.f32.gmra.mxu0 %v6914
    %v6936 = vpop.f32.mrf.mxu0
    %v6937 = vadd.f32 0.0, %v6936
    %6938 = vmatmul.f32.gmra.mxu0 %v6917
    %v6939 = vpop.f32.mrf.mxu0
    %v6940 = vadd.f32 0.0, %v6939
    %6941 = vdwg.mxu0
    %6942 = vrot.lane.b32.xlu0 %v6299, 64
    %v6943 = vpop.permute.xlu0 %6942
    %6944 = vrot.lane.b32.xlu0 %v6302, 64
    %v6945 = vpop.permute.xlu0 %6944
    %v6949 = vsel %vm1085, %v6827, 0
    %v6952 = vsel %vm1085, %v6828, 0
    %6954 = vmatpush.msra.mxu0 0.0
    %6955 = vmatpush.msra.mxu0 0.0
    %6956 = vmatpush.msra.mxu0 0.0
    %6957 = vmatpush.msra.mxu0 0.0
    %6958 = vmatpush.msra.mxu0 0.0
    %6959 = vmatpush.msra.mxu0 0.0
    %6960 = vmatpush.msra.mxu0 0.0
    %6961 = vmatpush.msra.mxu0 0.0
    %6962 = vmatpush.msra.mxu0 0.0
    %6963 = vmatpush.msra.mxu0 0.0
    %6964 = vmatpush.msra.mxu0 0.0
    %6965 = vmatpush.msra.mxu0 0.0
    %6966 = vmatpush.msra.mxu0 0.0
    %6967 = vmatpush.msra.mxu0 0.0
    %6968 = vmatpush.msra.mxu0 %v6945
    %6969 = vmatpush.msra.mxu0 %v6943
    %6970 = vmatmul.f32.gmra.mxu0 %v6949
    %v6971 = vpop.f32.mrf.mxu0
    %v6972 = vadd.f32 0.0, %v6971
    %6973 = vmatmul.f32.gmra.mxu0 %v6952
    %v6974 = vpop.f32.mrf.mxu0
    %v6975 = vadd.f32 0.0, %v6974
    %6976 = vdwg.mxu0
    %6977 = vrot.lane.b32.xlu0 %v6305, 64
    %v6978 = vpop.permute.xlu0 %6977
    %6979 = vrot.lane.b32.xlu0 %v6308, 64
    %v6980 = vpop.permute.xlu0 %6979
    %v6984 = vsel %vm1085, %v6829, 0
    %v6987 = vsel %vm1085, %v6830, 0
    %6989 = vmatpush.msra.mxu0 0.0
    %6990 = vmatpush.msra.mxu0 0.0
    %6991 = vmatpush.msra.mxu0 0.0
    %6992 = vmatpush.msra.mxu0 0.0
    %6993 = vmatpush.msra.mxu0 0.0
    %6994 = vmatpush.msra.mxu0 0.0
    %6995 = vmatpush.msra.mxu0 0.0
    %6996 = vmatpush.msra.mxu0 0.0
    %6997 = vmatpush.msra.mxu0 0.0
    %6998 = vmatpush.msra.mxu0 0.0
    %6999 = vmatpush.msra.mxu0 0.0
    %7000 = vmatpush.msra.mxu0 0.0
    %7001 = vmatpush.msra.mxu0 0.0
    %7002 = vmatpush.msra.mxu0 0.0
    %7003 = vmatpush.msra.mxu0 %v6980
    %7004 = vmatpush.msra.mxu0 %v6978
    %7005 = vmatmul.f32.gmra.mxu0 %v6984
    %v7006 = vpop.f32.mrf.mxu0
    %v7007 = vadd.f32 0.0, %v7006
    %7008 = vmatmul.f32.gmra.mxu0 %v6987
    %v7009 = vpop.f32.mrf.mxu0
    %v7010 = vadd.f32 0.0, %v7009
    %7011 = vdwg.mxu0
    %7012 = vrot.lane.b32.xlu0 %v6311, 64
    %v7013 = vpop.permute.xlu0 %7012
    %7014 = vrot.lane.b32.xlu0 %v6314, 64
    %v7015 = vpop.permute.xlu0 %7014
    %v7019 = vsel %vm1085, %v6831, 0
    %v7022 = vsel %vm1085, %v6832, 0
    %7024 = vmatpush.msra.mxu0 0.0
    %7025 = vmatpush.msra.mxu0 0.0
    %7026 = vmatpush.msra.mxu0 0.0
    %7027 = vmatpush.msra.mxu0 0.0
    %7028 = vmatpush.msra.mxu0 0.0
    %7029 = vmatpush.msra.mxu0 0.0
    %7030 = vmatpush.msra.mxu0 0.0
    %7031 = vmatpush.msra.mxu0 0.0
    %7032 = vmatpush.msra.mxu0 0.0
    %7033 = vmatpush.msra.mxu0 0.0
    %7034 = vmatpush.msra.mxu0 0.0
    %7035 = vmatpush.msra.mxu0 0.0
    %7036 = vmatpush.msra.mxu0 0.0
    %7037 = vmatpush.msra.mxu0 0.0
    %7038 = vmatpush.msra.mxu0 %v7015
    %7039 = vmatpush.msra.mxu0 %v7013
    %7040 = vmatmul.f32.gmra.mxu0 %v7019
    %v7041 = vpop.f32.mrf.mxu0
    %v7042 = vadd.f32 0.0, %v7041
    %7043 = vmatmul.f32.gmra.mxu0 %v7022
    %v7044 = vpop.f32.mrf.mxu0
    %v7045 = vadd.f32 0.0, %v7044
    %7046 = vdwg.mxu0
    %7047 = vrot.lane.b32.xlu0 %v6317, 64
    %v7048 = vpop.permute.xlu0 %7047
    %7049 = vrot.lane.b32.xlu0 %v6320, 64
    %v7050 = vpop.permute.xlu0 %7049
    %v7054 = vsel %vm1085, %v6833, 0
    %v7057 = vsel %vm1085, %v6834, 0
    %7059 = vmatpush.msra.mxu0 0.0
    %7060 = vmatpush.msra.mxu0 0.0
    %7061 = vmatpush.msra.mxu0 0.0
    %7062 = vmatpush.msra.mxu0 0.0
    %7063 = vmatpush.msra.mxu0 0.0
    %7064 = vmatpush.msra.mxu0 0.0
    %7065 = vmatpush.msra.mxu0 0.0
    %7066 = vmatpush.msra.mxu0 0.0
    %7067 = vmatpush.msra.mxu0 0.0
    %7068 = vmatpush.msra.mxu0 0.0
    %7069 = vmatpush.msra.mxu0 0.0
    %7070 = vmatpush.msra.mxu0 0.0
    %7071 = vmatpush.msra.mxu0 0.0
    %7072 = vmatpush.msra.mxu0 0.0
    %7073 = vmatpush.msra.mxu0 %v7050
    %7074 = vmatpush.msra.mxu0 %v7048
    %7075 = vmatmul.f32.gmra.mxu0 %v7054
    %v7076 = vpop.f32.mrf.mxu0
    %v7077 = vadd.f32 0.0, %v7076
    %7078 = vmatmul.f32.gmra.mxu0 %v7057
    %v7079 = vpop.f32.mrf.mxu0
    %v7080 = vadd.f32 0.0, %v7079
    %7081 = vdwg.mxu0
    %7082 = vrot.lane.b32.xlu0 %v6323, 64
    %v7083 = vpop.permute.xlu0 %7082
    %7084 = vrot.lane.b32.xlu0 %v6326, 64
    %v7085 = vpop.permute.xlu0 %7084
    %v7089 = vsel %vm1085, %v6835, 0
    %v7092 = vsel %vm1085, %v6836, 0
    %7094 = vmatpush.msra.mxu0 0.0
    %7095 = vmatpush.msra.mxu0 0.0
    %7096 = vmatpush.msra.mxu0 0.0
    %7097 = vmatpush.msra.mxu0 0.0
    %7098 = vmatpush.msra.mxu0 0.0
    %7099 = vmatpush.msra.mxu0 0.0
    %7100 = vmatpush.msra.mxu0 0.0
    %7101 = vmatpush.msra.mxu0 0.0
    %7102 = vmatpush.msra.mxu0 0.0
    %7103 = vmatpush.msra.mxu0 0.0
    %7104 = vmatpush.msra.mxu0 0.0
    %7105 = vmatpush.msra.mxu0 0.0
    %7106 = vmatpush.msra.mxu0 0.0
    %7107 = vmatpush.msra.mxu0 0.0
    %7108 = vmatpush.msra.mxu0 %v7085
    %7109 = vmatpush.msra.mxu0 %v7083
    %7110 = vmatmul.f32.gmra.mxu0 %v7089
    %v7111 = vpop.f32.mrf.mxu0
    %v7112 = vadd.f32 0.0, %v7111
    %7113 = vmatmul.f32.gmra.mxu0 %v7092
    %v7114 = vpop.f32.mrf.mxu0
    %v7115 = vadd.f32 0.0, %v7114
    %7116 = vdwg.mxu0
    %7117 = vrot.lane.b32.xlu0 %v6281, 120
    %v7118 = vpop.permute.xlu0 %7117
    %7119 = vrot.lane.b32.xlu0 %v6284, 120
    %v7120 = vpop.permute.xlu0 %7119
    %7121 = vrot.lane.b32.xlu0 %v6281, 88
    %v7122 = vpop.permute.xlu0 %7121
    %7123 = vrot.lane.b32.xlu0 %v6284, 88
    %v7124 = vpop.permute.xlu0 %7123
    %v7125 = vsel %vm762, %v7118, 0
    %v7127 = vsel %vm762, %v7120, 0
    %v7129 = vsel %vm762, %v7122, 0
    %v7131 = vsel %vm762, %v7124, 0
    %7133 = vmatpush.xpose.msra.mxu0 0.0
    %7134 = vmatpush.xpose.msra.mxu0 0.0
    %7135 = vmatpush.xpose.msra.mxu0 0.0
    %7136 = vmatpush.xpose.msra.mxu0 0.0
    %7137 = vmatpush.xpose.msra.mxu0 0.0
    %7138 = vmatpush.xpose.msra.mxu0 0.0
    %7139 = vmatpush.xpose.msra.mxu0 0.0
    %7140 = vmatpush.xpose.msra.mxu0 0.0
    %7141 = vmatpush.xpose.msra.mxu0 0.0
    %7142 = vmatpush.xpose.msra.mxu0 0.0
    %7143 = vmatpush.xpose.msra.mxu0 0.0
    %7144 = vmatpush.xpose.msra.mxu0 0.0
    %7145 = vmatpush.xpose.msra.mxu0 0.0
    %7146 = vmatpush.xpose.msra.mxu0 0.0
    %7147 = vmatpush.xpose.msra.mxu0 %v7131
    %7148 = vmatpush.xpose.msra.mxu0 %v7129
    %7149 = vmatmul.f32.gmra.mxu0 %v7125
    %v7150 = vpop.f32.mrf.mxu0
    %v7151 = vadd.f32 0.0, %v7150
    %7152 = vmatmul.f32.gmra.mxu0 %v7127
    %v7153 = vpop.f32.mrf.mxu0
    %v7154 = vadd.f32 0.0, %v7153
    %7155 = vdwg.mxu0
    %7156 = vrot.lane.b32.xlu0 %v6287, 120
    %v7157 = vpop.permute.xlu0 %7156
    %7158 = vrot.lane.b32.xlu0 %v6290, 120
    %v7159 = vpop.permute.xlu0 %7158
    %7160 = vrot.lane.b32.xlu0 %v6287, 88
    %v7161 = vpop.permute.xlu0 %7160
    %7162 = vrot.lane.b32.xlu0 %v6290, 88
    %v7163 = vpop.permute.xlu0 %7162
    %v7164 = vsel %vm762, %v7157, 0
    %v7166 = vsel %vm762, %v7159, 0
    %v7168 = vsel %vm762, %v7161, 0
    %v7170 = vsel %vm762, %v7163, 0
    %7172 = vmatpush.xpose.msra.mxu0 0.0
    %7173 = vmatpush.xpose.msra.mxu0 0.0
    %7174 = vmatpush.xpose.msra.mxu0 0.0
    %7175 = vmatpush.xpose.msra.mxu0 0.0
    %7176 = vmatpush.xpose.msra.mxu0 0.0
    %7177 = vmatpush.xpose.msra.mxu0 0.0
    %7178 = vmatpush.xpose.msra.mxu0 0.0
    %7179 = vmatpush.xpose.msra.mxu0 0.0
    %7180 = vmatpush.xpose.msra.mxu0 0.0
    %7181 = vmatpush.xpose.msra.mxu0 0.0
    %7182 = vmatpush.xpose.msra.mxu0 0.0
    %7183 = vmatpush.xpose.msra.mxu0 0.0
    %7184 = vmatpush.xpose.msra.mxu0 0.0
    %7185 = vmatpush.xpose.msra.mxu0 0.0
    %7186 = vmatpush.xpose.msra.mxu0 %v7170
    %7187 = vmatpush.xpose.msra.mxu0 %v7168
    %7188 = vmatmul.f32.gmra.mxu0 %v7164
    %v7189 = vpop.f32.mrf.mxu0
    %v7190 = vadd.f32 0.0, %v7189
    %7191 = vmatmul.f32.gmra.mxu0 %v7166
    %v7192 = vpop.f32.mrf.mxu0
    %v7193 = vadd.f32 0.0, %v7192
    %7194 = vdwg.mxu0
    %7195 = vrot.lane.b32.xlu0 %v6293, 120
    %v7196 = vpop.permute.xlu0 %7195
    %7197 = vrot.lane.b32.xlu0 %v6296, 120
    %v7198 = vpop.permute.xlu0 %7197
    %7199 = vrot.lane.b32.xlu0 %v6293, 88
    %v7200 = vpop.permute.xlu0 %7199
    %7201 = vrot.lane.b32.xlu0 %v6296, 88
    %v7202 = vpop.permute.xlu0 %7201
    %v7203 = vsel %vm762, %v7196, 0
    %v7205 = vsel %vm762, %v7198, 0
    %v7207 = vsel %vm762, %v7200, 0
    %v7209 = vsel %vm762, %v7202, 0
    %7211 = vmatpush.xpose.msra.mxu0 0.0
    %7212 = vmatpush.xpose.msra.mxu0 0.0
    %7213 = vmatpush.xpose.msra.mxu0 0.0
    %7214 = vmatpush.xpose.msra.mxu0 0.0
    %7215 = vmatpush.xpose.msra.mxu0 0.0
    %7216 = vmatpush.xpose.msra.mxu0 0.0
    %7217 = vmatpush.xpose.msra.mxu0 0.0
    %7218 = vmatpush.xpose.msra.mxu0 0.0
    %7219 = vmatpush.xpose.msra.mxu0 0.0
    %7220 = vmatpush.xpose.msra.mxu0 0.0
    %7221 = vmatpush.xpose.msra.mxu0 0.0
    %7222 = vmatpush.xpose.msra.mxu0 0.0
    %7223 = vmatpush.xpose.msra.mxu0 0.0
    %7224 = vmatpush.xpose.msra.mxu0 0.0
    %7225 = vmatpush.xpose.msra.mxu0 %v7209
    %7226 = vmatpush.xpose.msra.mxu0 %v7207
    %7227 = vmatmul.f32.gmra.mxu0 %v7203
    %v7228 = vpop.f32.mrf.mxu0
    %v7229 = vadd.f32 0.0, %v7228
    %7230 = vmatmul.f32.gmra.mxu0 %v7205
    %v7231 = vpop.f32.mrf.mxu0
    %v7232 = vadd.f32 0.0, %v7231
    %7233 = vdwg.mxu0
    %7234 = vrot.lane.b32.xlu0 %v6299, 120
    %v7235 = vpop.permute.xlu0 %7234
    %7236 = vrot.lane.b32.xlu0 %v6302, 120
    %v7237 = vpop.permute.xlu0 %7236
    %7238 = vrot.lane.b32.xlu0 %v6299, 88
    %v7239 = vpop.permute.xlu0 %7238
    %7240 = vrot.lane.b32.xlu0 %v6302, 88
    %v7241 = vpop.permute.xlu0 %7240
    %v7242 = vsel %vm762, %v7235, 0
    %v7244 = vsel %vm762, %v7237, 0
    %v7246 = vsel %vm762, %v7239, 0
    %v7248 = vsel %vm762, %v7241, 0
    %7250 = vmatpush.xpose.msra.mxu0 0.0
    %7251 = vmatpush.xpose.msra.mxu0 0.0
    %7252 = vmatpush.xpose.msra.mxu0 0.0
    %7253 = vmatpush.xpose.msra.mxu0 0.0
    %7254 = vmatpush.xpose.msra.mxu0 0.0
    %7255 = vmatpush.xpose.msra.mxu0 0.0
    %7256 = vmatpush.xpose.msra.mxu0 0.0
    %7257 = vmatpush.xpose.msra.mxu0 0.0
    %7258 = vmatpush.xpose.msra.mxu0 0.0
    %7259 = vmatpush.xpose.msra.mxu0 0.0
    %7260 = vmatpush.xpose.msra.mxu0 0.0
    %7261 = vmatpush.xpose.msra.mxu0 0.0
    %7262 = vmatpush.xpose.msra.mxu0 0.0
    %7263 = vmatpush.xpose.msra.mxu0 0.0
    %7264 = vmatpush.xpose.msra.mxu0 %v7248
    %7265 = vmatpush.xpose.msra.mxu0 %v7246
    %7266 = vmatmul.f32.gmra.mxu0 %v7242
    %v7267 = vpop.f32.mrf.mxu0
    %v7268 = vadd.f32 0.0, %v7267
    %7269 = vmatmul.f32.gmra.mxu0 %v7244
    %v7270 = vpop.f32.mrf.mxu0
    %v7271 = vadd.f32 0.0, %v7270
    %7272 = vdwg.mxu0
    %7273 = vrot.lane.b32.xlu0 %v6305, 120
    %v7274 = vpop.permute.xlu0 %7273
    %7275 = vrot.lane.b32.xlu0 %v6308, 120
    %v7276 = vpop.permute.xlu0 %7275
    %7277 = vrot.lane.b32.xlu0 %v6305, 88
    %v7278 = vpop.permute.xlu0 %7277
    %7279 = vrot.lane.b32.xlu0 %v6308, 88
    %v7280 = vpop.permute.xlu0 %7279
    %v7281 = vsel %vm762, %v7274, 0
    %v7283 = vsel %vm762, %v7276, 0
    %v7285 = vsel %vm762, %v7278, 0
    %v7287 = vsel %vm762, %v7280, 0
    %7289 = vmatpush.xpose.msra.mxu0 0.0
    %7290 = vmatpush.xpose.msra.mxu0 0.0
    %7291 = vmatpush.xpose.msra.mxu0 0.0
    %7292 = vmatpush.xpose.msra.mxu0 0.0
    %7293 = vmatpush.xpose.msra.mxu0 0.0
    %7294 = vmatpush.xpose.msra.mxu0 0.0
    %7295 = vmatpush.xpose.msra.mxu0 0.0
    %7296 = vmatpush.xpose.msra.mxu0 0.0
    %7297 = vmatpush.xpose.msra.mxu0 0.0
    %7298 = vmatpush.xpose.msra.mxu0 0.0
    %7299 = vmatpush.xpose.msra.mxu0 0.0
    %7300 = vmatpush.xpose.msra.mxu0 0.0
    %7301 = vmatpush.xpose.msra.mxu0 0.0
    %7302 = vmatpush.xpose.msra.mxu0 0.0
    %7303 = vmatpush.xpose.msra.mxu0 %v7287
    %7304 = vmatpush.xpose.msra.mxu0 %v7285
    %7305 = vmatmul.f32.gmra.mxu0 %v7281
    %v7306 = vpop.f32.mrf.mxu0
    %v7307 = vadd.f32 0.0, %v7306
    %7308 = vmatmul.f32.gmra.mxu0 %v7283
    %v7309 = vpop.f32.mrf.mxu0
    %v7310 = vadd.f32 0.0, %v7309
    %7311 = vdwg.mxu0
    %7312 = vrot.lane.b32.xlu0 %v6311, 120
    %v7313 = vpop.permute.xlu0 %7312
    %7314 = vrot.lane.b32.xlu0 %v6314, 120
    %v7315 = vpop.permute.xlu0 %7314
    %7316 = vrot.lane.b32.xlu0 %v6311, 88
    %v7317 = vpop.permute.xlu0 %7316
    %7318 = vrot.lane.b32.xlu0 %v6314, 88
    %v7319 = vpop.permute.xlu0 %7318
    %v7320 = vsel %vm762, %v7313, 0
    %v7322 = vsel %vm762, %v7315, 0
    %v7324 = vsel %vm762, %v7317, 0
    %v7326 = vsel %vm762, %v7319, 0
    %7328 = vmatpush.xpose.msra.mxu0 0.0
    %7329 = vmatpush.xpose.msra.mxu0 0.0
    %7330 = vmatpush.xpose.msra.mxu0 0.0
    %7331 = vmatpush.xpose.msra.mxu0 0.0
    %7332 = vmatpush.xpose.msra.mxu0 0.0
    %7333 = vmatpush.xpose.msra.mxu0 0.0
    %7334 = vmatpush.xpose.msra.mxu0 0.0
    %7335 = vmatpush.xpose.msra.mxu0 0.0
    %7336 = vmatpush.xpose.msra.mxu0 0.0
    %7337 = vmatpush.xpose.msra.mxu0 0.0
    %7338 = vmatpush.xpose.msra.mxu0 0.0
    %7339 = vmatpush.xpose.msra.mxu0 0.0
    %7340 = vmatpush.xpose.msra.mxu0 0.0
    %7341 = vmatpush.xpose.msra.mxu0 0.0
    %7342 = vmatpush.xpose.msra.mxu0 %v7326
    %7343 = vmatpush.xpose.msra.mxu0 %v7324
    %7344 = vmatmul.f32.gmra.mxu0 %v7320
    %v7345 = vpop.f32.mrf.mxu0
    %v7346 = vadd.f32 0.0, %v7345
    %7347 = vmatmul.f32.gmra.mxu0 %v7322
    %v7348 = vpop.f32.mrf.mxu0
    %v7349 = vadd.f32 0.0, %v7348
    %7350 = vdwg.mxu0
    %7351 = vrot.lane.b32.xlu0 %v6317, 120
    %v7352 = vpop.permute.xlu0 %7351
    %7353 = vrot.lane.b32.xlu0 %v6320, 120
    %v7354 = vpop.permute.xlu0 %7353
    %7355 = vrot.lane.b32.xlu0 %v6317, 88
    %v7356 = vpop.permute.xlu0 %7355
    %7357 = vrot.lane.b32.xlu0 %v6320, 88
    %v7358 = vpop.permute.xlu0 %7357
    %v7359 = vsel %vm762, %v7352, 0
    %v7361 = vsel %vm762, %v7354, 0
    %v7363 = vsel %vm762, %v7356, 0
    %v7365 = vsel %vm762, %v7358, 0
    %7367 = vmatpush.xpose.msra.mxu0 0.0
    %7368 = vmatpush.xpose.msra.mxu0 0.0
    %7369 = vmatpush.xpose.msra.mxu0 0.0
    %7370 = vmatpush.xpose.msra.mxu0 0.0
    %7371 = vmatpush.xpose.msra.mxu0 0.0
    %7372 = vmatpush.xpose.msra.mxu0 0.0
    %7373 = vmatpush.xpose.msra.mxu0 0.0
    %7374 = vmatpush.xpose.msra.mxu0 0.0
    %7375 = vmatpush.xpose.msra.mxu0 0.0
    %7376 = vmatpush.xpose.msra.mxu0 0.0
    %7377 = vmatpush.xpose.msra.mxu0 0.0
    %7378 = vmatpush.xpose.msra.mxu0 0.0
    %7379 = vmatpush.xpose.msra.mxu0 0.0
    %7380 = vmatpush.xpose.msra.mxu0 0.0
    %7381 = vmatpush.xpose.msra.mxu0 %v7365
    %7382 = vmatpush.xpose.msra.mxu0 %v7363
    %7383 = vmatmul.f32.gmra.mxu0 %v7359
    %v7384 = vpop.f32.mrf.mxu0
    %v7385 = vadd.f32 0.0, %v7384
    %7386 = vmatmul.f32.gmra.mxu0 %v7361
    %v7387 = vpop.f32.mrf.mxu0
    %v7388 = vadd.f32 0.0, %v7387
    %7389 = vdwg.mxu0
    %7390 = vrot.lane.b32.xlu0 %v6323, 120
    %v7391 = vpop.permute.xlu0 %7390
    %7392 = vrot.lane.b32.xlu0 %v6326, 120
    %v7393 = vpop.permute.xlu0 %7392
    %7394 = vrot.lane.b32.xlu0 %v6323, 88
    %v7395 = vpop.permute.xlu0 %7394
    %7396 = vrot.lane.b32.xlu0 %v6326, 88
    %v7397 = vpop.permute.xlu0 %7396
    %v7398 = vsel %vm762, %v7391, 0
    %v7400 = vsel %vm762, %v7393, 0
    %v7402 = vsel %vm762, %v7395, 0
    %v7404 = vsel %vm762, %v7397, 0
    %7406 = vmatpush.xpose.msra.mxu0 0.0
    %7407 = vmatpush.xpose.msra.mxu0 0.0
    %7408 = vmatpush.xpose.msra.mxu0 0.0
    %7409 = vmatpush.xpose.msra.mxu0 0.0
    %7410 = vmatpush.xpose.msra.mxu0 0.0
    %7411 = vmatpush.xpose.msra.mxu0 0.0
    %7412 = vmatpush.xpose.msra.mxu0 0.0
    %7413 = vmatpush.xpose.msra.mxu0 0.0
    %7414 = vmatpush.xpose.msra.mxu0 0.0
    %7415 = vmatpush.xpose.msra.mxu0 0.0
    %7416 = vmatpush.xpose.msra.mxu0 0.0
    %7417 = vmatpush.xpose.msra.mxu0 0.0
    %7418 = vmatpush.xpose.msra.mxu0 0.0
    %7419 = vmatpush.xpose.msra.mxu0 0.0
    %7420 = vmatpush.xpose.msra.mxu0 %v7404
    %7421 = vmatpush.xpose.msra.mxu0 %v7402
    %7422 = vmatmul.f32.gmra.mxu0 %v7398
    %v7423 = vpop.f32.mrf.mxu0
    %v7424 = vadd.f32 0.0, %v7423
    %7425 = vmatmul.f32.gmra.mxu0 %v7400
    %v7426 = vpop.f32.mrf.mxu0
    %v7427 = vadd.f32 0.0, %v7426
    %7428 = vdwg.mxu0
    %v7429 = vmul.f32 %v7151, 0.35355338
    %v7430 = vmul.f32 %v7154, 0.35355338
    %v7431 = vmul.f32 %v7190, 0.35355338
    %v7432 = vmul.f32 %v7193, 0.35355338
    %v7433 = vmul.f32 %v7229, 0.35355338
    %v7434 = vmul.f32 %v7232, 0.35355338
    %v7435 = vmul.f32 %v7268, 0.35355338
    %v7436 = vmul.f32 %v7271, 0.35355338
    %v7437 = vmul.f32 %v7307, 0.35355338
    %v7438 = vmul.f32 %v7310, 0.35355338
    %v7439 = vmul.f32 %v7346, 0.35355338
    %v7440 = vmul.f32 %v7349, 0.35355338
    %v7441 = vmul.f32 %v7385, 0.35355338
    %v7442 = vmul.f32 %v7388, 0.35355338
    %v7443 = vmul.f32 %v7424, 0.35355338
    %v7444 = vmul.f32 %v7427, 0.35355338
    %v7445 = vadd.f32 %v7429, %v240
    %v7446 = vadd.f32 %v7430, %v240
    %v7447 = vadd.f32 %v7431, %v240
    %v7448 = vadd.f32 %v7432, %v240
    %v7449 = vadd.f32 %v7433, %v240
    %v7450 = vadd.f32 %v7434, %v240
    %v7451 = vadd.f32 %v7435, %v240
    %v7452 = vadd.f32 %v7436, %v240
    %v7453 = vadd.f32 %v7437, %v240
    %v7454 = vadd.f32 %v7438, %v240
    %v7455 = vadd.f32 %v7439, %v240
    %v7456 = vadd.f32 %v7440, %v240
    %v7457 = vadd.f32 %v7441, %v240
    %v7458 = vadd.f32 %v7442, %v240
    %v7459 = vadd.f32 %v7443, %v240
    %v7460 = vadd.f32 %v7444, %v240
    %v7461 = vsel %vm1085, %v7445, -inf
    %7462 = vmax.xlane.f32.xlu0 %v7461
    %v7463 = vpop.xlane.xlu0 %7462
    %v7464 = vsel %vm1085, %v7446, -inf
    %7465 = vmax.xlane.f32.xlu0 %v7464
    %v7466 = vpop.xlane.xlu0 %7465
    %v7467 = vsel %vm1085, %v7447, -inf
    %7468 = vmax.xlane.f32.xlu0 %v7467
    %v7469 = vpop.xlane.xlu0 %7468
    %v7470 = vsel %vm1085, %v7448, -inf
    %7471 = vmax.xlane.f32.xlu0 %v7470
    %v7472 = vpop.xlane.xlu0 %7471
    %v7473 = vsel %vm1085, %v7449, -inf
    %7474 = vmax.xlane.f32.xlu0 %v7473
    %v7475 = vpop.xlane.xlu0 %7474
    %v7476 = vsel %vm1085, %v7450, -inf
    %7477 = vmax.xlane.f32.xlu0 %v7476
    %v7478 = vpop.xlane.xlu0 %7477
    %v7479 = vsel %vm1085, %v7451, -inf
    %7480 = vmax.xlane.f32.xlu0 %v7479
    %v7481 = vpop.xlane.xlu0 %7480
    %v7482 = vsel %vm1085, %v7452, -inf
    %7483 = vmax.xlane.f32.xlu0 %v7482
    %v7484 = vpop.xlane.xlu0 %7483
    %v7485 = vsel %vm1085, %v7453, -inf
    %7486 = vmax.xlane.f32.xlu0 %v7485
    %v7487 = vpop.xlane.xlu0 %7486
    %v7488 = vsel %vm1085, %v7454, -inf
    %7489 = vmax.xlane.f32.xlu0 %v7488
    %v7490 = vpop.xlane.xlu0 %7489
    %v7491 = vsel %vm1085, %v7455, -inf
    %7492 = vmax.xlane.f32.xlu0 %v7491
    %v7493 = vpop.xlane.xlu0 %7492
    %v7494 = vsel %vm1085, %v7456, -inf
    %7495 = vmax.xlane.f32.xlu0 %v7494
    %v7496 = vpop.xlane.xlu0 %7495
    %v7497 = vsel %vm1085, %v7457, -inf
    %7498 = vmax.xlane.f32.xlu0 %v7497
    %v7499 = vpop.xlane.xlu0 %7498
    %v7500 = vsel %vm1085, %v7458, -inf
    %7501 = vmax.xlane.f32.xlu0 %v7500
    %v7502 = vpop.xlane.xlu0 %7501
    %v7503 = vsel %vm1085, %v7459, -inf
    %7504 = vmax.xlane.f32.xlu0 %v7503
    %v7505 = vpop.xlane.xlu0 %7504
    %v7506 = vsel %vm1085, %v7460, -inf
    %7507 = vmax.xlane.f32.xlu0 %v7506
    %v7508 = vpop.xlane.xlu0 %7507
    %v7509 = vsub.f32 %v7445, %v7463
    %v7510 = vsub.f32 %v7446, %v7466
    %v7511 = vsub.f32 %v7447, %v7469
    %v7512 = vsub.f32 %v7448, %v7472
    %v7513 = vsub.f32 %v7449, %v7475
    %v7514 = vsub.f32 %v7450, %v7478
    %v7515 = vsub.f32 %v7451, %v7481
    %v7516 = vsub.f32 %v7452, %v7484
    %v7517 = vsub.f32 %v7453, %v7487
    %v7518 = vsub.f32 %v7454, %v7490
    %v7519 = vsub.f32 %v7455, %v7493
    %v7520 = vsub.f32 %v7456, %v7496
    %v7521 = vsub.f32 %v7457, %v7499
    %v7522 = vsub.f32 %v7458, %v7502
    %v7523 = vsub.f32 %v7459, %v7505
    %v7524 = vsub.f32 %v7460, %v7508
    %v7525 = vmul.f32 %v7509, 1.442695
    %v7526 = vpow.pop %v7525
    %v7527 = vmul.f32 %v7510, 1.442695
    %v7528 = vpow.pop %v7527
    %v7529 = vmul.f32 %v7511, 1.442695
    %v7530 = vpow.pop %v7529
    %v7531 = vmul.f32 %v7512, 1.442695
    %v7532 = vpow.pop %v7531
    %v7533 = vmul.f32 %v7513, 1.442695
    %v7534 = vpow.pop %v7533
    %v7535 = vmul.f32 %v7514, 1.442695
    %v7536 = vpow.pop %v7535
    %v7537 = vmul.f32 %v7515, 1.442695
    %v7538 = vpow.pop %v7537
    %v7539 = vmul.f32 %v7516, 1.442695
    %v7540 = vpow.pop %v7539
    %v7541 = vmul.f32 %v7517, 1.442695
    %v7542 = vpow.pop %v7541
    %v7543 = vmul.f32 %v7518, 1.442695
    %v7544 = vpow.pop %v7543
    %v7545 = vmul.f32 %v7519, 1.442695
    %v7546 = vpow.pop %v7545
    %v7547 = vmul.f32 %v7520, 1.442695
    %v7548 = vpow.pop %v7547
    %v7549 = vmul.f32 %v7521, 1.442695
    %v7550 = vpow.pop %v7549
    %v7551 = vmul.f32 %v7522, 1.442695
    %v7552 = vpow.pop %v7551
    %v7553 = vmul.f32 %v7523, 1.442695
    %v7554 = vpow.pop %v7553
    %v7555 = vmul.f32 %v7524, 1.442695
    %v7556 = vpow.pop %v7555
    %v7557 = vsel %vm1085, %v7526, 0.0
    %7558 = vadd.xlane.f32.xlu0 %v7557
    %v7559 = vpop.xlane.xlu0 %7558
    %v7560 = vsel %vm1085, %v7528, 0.0
    %7561 = vadd.xlane.f32.xlu0 %v7560
    %v7562 = vpop.xlane.xlu0 %7561
    %v7563 = vsel %vm1085, %v7530, 0.0
    %7564 = vadd.xlane.f32.xlu0 %v7563
    %v7565 = vpop.xlane.xlu0 %7564
    %v7566 = vsel %vm1085, %v7532, 0.0
    %7567 = vadd.xlane.f32.xlu0 %v7566
    %v7568 = vpop.xlane.xlu0 %7567
    %v7569 = vsel %vm1085, %v7534, 0.0
    %7570 = vadd.xlane.f32.xlu0 %v7569
    %v7571 = vpop.xlane.xlu0 %7570
    %v7572 = vsel %vm1085, %v7536, 0.0
    %7573 = vadd.xlane.f32.xlu0 %v7572
    %v7574 = vpop.xlane.xlu0 %7573
    %v7575 = vsel %vm1085, %v7538, 0.0
    %7576 = vadd.xlane.f32.xlu0 %v7575
    %v7577 = vpop.xlane.xlu0 %7576
    %v7578 = vsel %vm1085, %v7540, 0.0
    %7579 = vadd.xlane.f32.xlu0 %v7578
    %v7580 = vpop.xlane.xlu0 %7579
    %v7581 = vsel %vm1085, %v7542, 0.0
    %7582 = vadd.xlane.f32.xlu0 %v7581
    %v7583 = vpop.xlane.xlu0 %7582
    %v7584 = vsel %vm1085, %v7544, 0.0
    %7585 = vadd.xlane.f32.xlu0 %v7584
    %v7586 = vpop.xlane.xlu0 %7585
    %v7587 = vsel %vm1085, %v7546, 0.0
    %7588 = vadd.xlane.f32.xlu0 %v7587
    %v7589 = vpop.xlane.xlu0 %7588
    %v7590 = vsel %vm1085, %v7548, 0.0
    %7591 = vadd.xlane.f32.xlu0 %v7590
    %v7592 = vpop.xlane.xlu0 %7591
    %v7593 = vsel %vm1085, %v7550, 0.0
    %7594 = vadd.xlane.f32.xlu0 %v7593
    %v7595 = vpop.xlane.xlu0 %7594
    %v7596 = vsel %vm1085, %v7552, 0.0
    %7597 = vadd.xlane.f32.xlu0 %v7596
    %v7598 = vpop.xlane.xlu0 %7597
    %v7599 = vsel %vm1085, %v7554, 0.0
    %7600 = vadd.xlane.f32.xlu0 %v7599
    %v7601 = vpop.xlane.xlu0 %7600
    %v7602 = vsel %vm1085, %v7556, 0.0
    %7603 = vadd.xlane.f32.xlu0 %v7602
    %v7604 = vpop.xlane.xlu0 %7603
    %v7605 = vrcp.pop %v7559
    %v7606 = vrcp.pop %v7562
    %v7607 = vrcp.pop %v7565
    %v7608 = vrcp.pop %v7568
    %v7609 = vrcp.pop %v7571
    %v7610 = vrcp.pop %v7574
    %v7611 = vrcp.pop %v7577
    %v7612 = vrcp.pop %v7580
    %v7613 = vrcp.pop %v7583
    %v7614 = vrcp.pop %v7586
    %v7615 = vrcp.pop %v7589
    %v7616 = vrcp.pop %v7592
    %v7617 = vrcp.pop %v7595
    %v7618 = vrcp.pop %v7598
    %v7619 = vrcp.pop %v7601
    %v7620 = vrcp.pop %v7604
    %v7621 = vmul.f32 %v7526, %v7605
    %v7622 = vmul.f32 %v7528, %v7606
    %v7623 = vmul.f32 %v7530, %v7607
    %v7624 = vmul.f32 %v7532, %v7608
    %v7625 = vmul.f32 %v7534, %v7609
    %v7626 = vmul.f32 %v7536, %v7610
    %v7627 = vmul.f32 %v7538, %v7611
    %v7628 = vmul.f32 %v7540, %v7612
    %v7629 = vmul.f32 %v7542, %v7613
    %v7630 = vmul.f32 %v7544, %v7614
    %v7631 = vmul.f32 %v7546, %v7615
    %v7632 = vmul.f32 %v7548, %v7616
    %v7633 = vmul.f32 %v7550, %v7617
    %v7634 = vmul.f32 %v7552, %v7618
    %v7635 = vmul.f32 %v7554, %v7619
    %v7636 = vmul.f32 %v7556, %v7620
    %7637 = vrot.lane.b32.xlu0 %v6281, 56
    %v7638 = vpop.permute.xlu0 %7637
    %7639 = vrot.lane.b32.xlu0 %v6284, 56
    %v7640 = vpop.permute.xlu0 %7639
    %v7644 = vsel %vm1085, %v7621, 0
    %v7647 = vsel %vm1085, %v7622, 0
    %7649 = vmatpush.msra.mxu0 0.0
    %7650 = vmatpush.msra.mxu0 0.0
    %7651 = vmatpush.msra.mxu0 0.0
    %7652 = vmatpush.msra.mxu0 0.0
    %7653 = vmatpush.msra.mxu0 0.0
    %7654 = vmatpush.msra.mxu0 0.0
    %7655 = vmatpush.msra.mxu0 0.0
    %7656 = vmatpush.msra.mxu0 0.0
    %7657 = vmatpush.msra.mxu0 0.0
    %7658 = vmatpush.msra.mxu0 0.0
    %7659 = vmatpush.msra.mxu0 0.0
    %7660 = vmatpush.msra.mxu0 0.0
    %7661 = vmatpush.msra.mxu0 0.0
    %7662 = vmatpush.msra.mxu0 0.0
    %7663 = vmatpush.msra.mxu0 %v7640
    %7664 = vmatpush.msra.mxu0 %v7638
    %7665 = vmatmul.f32.gmra.mxu0 %v7644
    %v7666 = vpop.f32.mrf.mxu0
    %v7667 = vadd.f32 0.0, %v7666
    %7668 = vmatmul.f32.gmra.mxu0 %v7647
    %v7669 = vpop.f32.mrf.mxu0
    %v7670 = vadd.f32 0.0, %v7669
    %7671 = vdwg.mxu0
    %7672 = vrot.lane.b32.xlu0 %v6287, 56
    %v7673 = vpop.permute.xlu0 %7672
    %7674 = vrot.lane.b32.xlu0 %v6290, 56
    %v7675 = vpop.permute.xlu0 %7674
    %v7679 = vsel %vm1085, %v7623, 0
    %v7682 = vsel %vm1085, %v7624, 0
    %7684 = vmatpush.msra.mxu0 0.0
    %7685 = vmatpush.msra.mxu0 0.0
    %7686 = vmatpush.msra.mxu0 0.0
    %7687 = vmatpush.msra.mxu0 0.0
    %7688 = vmatpush.msra.mxu0 0.0
    %7689 = vmatpush.msra.mxu0 0.0
    %7690 = vmatpush.msra.mxu0 0.0
    %7691 = vmatpush.msra.mxu0 0.0
    %7692 = vmatpush.msra.mxu0 0.0
    %7693 = vmatpush.msra.mxu0 0.0
    %7694 = vmatpush.msra.mxu0 0.0
    %7695 = vmatpush.msra.mxu0 0.0
    %7696 = vmatpush.msra.mxu0 0.0
    %7697 = vmatpush.msra.mxu0 0.0
    %7698 = vmatpush.msra.mxu0 %v7675
    %7699 = vmatpush.msra.mxu0 %v7673
    %7700 = vmatmul.f32.gmra.mxu0 %v7679
    %v7701 = vpop.f32.mrf.mxu0
    %v7702 = vadd.f32 0.0, %v7701
    %7703 = vmatmul.f32.gmra.mxu0 %v7682
    %v7704 = vpop.f32.mrf.mxu0
    %v7705 = vadd.f32 0.0, %v7704
    %7706 = vdwg.mxu0
    %7707 = vrot.lane.b32.xlu0 %v6293, 56
    %v7708 = vpop.permute.xlu0 %7707
    %7709 = vrot.lane.b32.xlu0 %v6296, 56
    %v7710 = vpop.permute.xlu0 %7709
    %v7714 = vsel %vm1085, %v7625, 0
    %v7717 = vsel %vm1085, %v7626, 0
    %7719 = vmatpush.msra.mxu0 0.0
    %7720 = vmatpush.msra.mxu0 0.0
    %7721 = vmatpush.msra.mxu0 0.0
    %7722 = vmatpush.msra.mxu0 0.0
    %7723 = vmatpush.msra.mxu0 0.0
    %7724 = vmatpush.msra.mxu0 0.0
    %7725 = vmatpush.msra.mxu0 0.0
    %7726 = vmatpush.msra.mxu0 0.0
    %7727 = vmatpush.msra.mxu0 0.0
    %7728 = vmatpush.msra.mxu0 0.0
    %7729 = vmatpush.msra.mxu0 0.0
    %7730 = vmatpush.msra.mxu0 0.0
    %7731 = vmatpush.msra.mxu0 0.0
    %7732 = vmatpush.msra.mxu0 0.0
    %7733 = vmatpush.msra.mxu0 %v7710
    %7734 = vmatpush.msra.mxu0 %v7708
    %7735 = vmatmul.f32.gmra.mxu0 %v7714
    %v7736 = vpop.f32.mrf.mxu0
    %v7737 = vadd.f32 0.0, %v7736
    %7738 = vmatmul.f32.gmra.mxu0 %v7717
    %v7739 = vpop.f32.mrf.mxu0
    %v7740 = vadd.f32 0.0, %v7739
    %7741 = vdwg.mxu0
    %7742 = vrot.lane.b32.xlu0 %v6299, 56
    %v7743 = vpop.permute.xlu0 %7742
    %7744 = vrot.lane.b32.xlu0 %v6302, 56
    %v7745 = vpop.permute.xlu0 %7744
    %v7749 = vsel %vm1085, %v7627, 0
    %v7752 = vsel %vm1085, %v7628, 0
    %7754 = vmatpush.msra.mxu0 0.0
    %7755 = vmatpush.msra.mxu0 0.0
    %7756 = vmatpush.msra.mxu0 0.0
    %7757 = vmatpush.msra.mxu0 0.0
    %7758 = vmatpush.msra.mxu0 0.0
    %7759 = vmatpush.msra.mxu0 0.0
    %7760 = vmatpush.msra.mxu0 0.0
    %7761 = vmatpush.msra.mxu0 0.0
    %7762 = vmatpush.msra.mxu0 0.0
    %7763 = vmatpush.msra.mxu0 0.0
    %7764 = vmatpush.msra.mxu0 0.0
    %7765 = vmatpush.msra.mxu0 0.0
    %7766 = vmatpush.msra.mxu0 0.0
    %7767 = vmatpush.msra.mxu0 0.0
    %7768 = vmatpush.msra.mxu0 %v7745
    %7769 = vmatpush.msra.mxu0 %v7743
    %7770 = vmatmul.f32.gmra.mxu0 %v7749
    %v7771 = vpop.f32.mrf.mxu0
    %v7772 = vadd.f32 0.0, %v7771
    %7773 = vmatmul.f32.gmra.mxu0 %v7752
    %v7774 = vpop.f32.mrf.mxu0
    %v7775 = vadd.f32 0.0, %v7774
    %7776 = vdwg.mxu0
    %7777 = vrot.lane.b32.xlu0 %v6305, 56
    %v7778 = vpop.permute.xlu0 %7777
    %7779 = vrot.lane.b32.xlu0 %v6308, 56
    %v7780 = vpop.permute.xlu0 %7779
    %v7784 = vsel %vm1085, %v7629, 0
    %v7787 = vsel %vm1085, %v7630, 0
    %7789 = vmatpush.msra.mxu0 0.0
    %7790 = vmatpush.msra.mxu0 0.0
    %7791 = vmatpush.msra.mxu0 0.0
    %7792 = vmatpush.msra.mxu0 0.0
    %7793 = vmatpush.msra.mxu0 0.0
    %7794 = vmatpush.msra.mxu0 0.0
    %7795 = vmatpush.msra.mxu0 0.0
    %7796 = vmatpush.msra.mxu0 0.0
    %7797 = vmatpush.msra.mxu0 0.0
    %7798 = vmatpush.msra.mxu0 0.0
    %7799 = vmatpush.msra.mxu0 0.0
    %7800 = vmatpush.msra.mxu0 0.0
    %7801 = vmatpush.msra.mxu0 0.0
    %7802 = vmatpush.msra.mxu0 0.0
    %7803 = vmatpush.msra.mxu0 %v7780
    %7804 = vmatpush.msra.mxu0 %v7778
    %7805 = vmatmul.f32.gmra.mxu0 %v7784
    %v7806 = vpop.f32.mrf.mxu0
    %v7807 = vadd.f32 0.0, %v7806
    %7808 = vmatmul.f32.gmra.mxu0 %v7787
    %v7809 = vpop.f32.mrf.mxu0
    %v7810 = vadd.f32 0.0, %v7809
    %7811 = vdwg.mxu0
    %7812 = vrot.lane.b32.xlu0 %v6311, 56
    %v7813 = vpop.permute.xlu0 %7812
    %7814 = vrot.lane.b32.xlu0 %v6314, 56
    %v7815 = vpop.permute.xlu0 %7814
    %v7819 = vsel %vm1085, %v7631, 0
    %v7822 = vsel %vm1085, %v7632, 0
    %7824 = vmatpush.msra.mxu0 0.0
    %7825 = vmatpush.msra.mxu0 0.0
    %7826 = vmatpush.msra.mxu0 0.0
    %7827 = vmatpush.msra.mxu0 0.0
    %7828 = vmatpush.msra.mxu0 0.0
    %7829 = vmatpush.msra.mxu0 0.0
    %7830 = vmatpush.msra.mxu0 0.0
    %7831 = vmatpush.msra.mxu0 0.0
    %7832 = vmatpush.msra.mxu0 0.0
    %7833 = vmatpush.msra.mxu0 0.0
    %7834 = vmatpush.msra.mxu0 0.0
    %7835 = vmatpush.msra.mxu0 0.0
    %7836 = vmatpush.msra.mxu0 0.0
    %7837 = vmatpush.msra.mxu0 0.0
    %7838 = vmatpush.msra.mxu0 %v7815
    %7839 = vmatpush.msra.mxu0 %v7813
    %7840 = vmatmul.f32.gmra.mxu0 %v7819
    %v7841 = vpop.f32.mrf.mxu0
    %v7842 = vadd.f32 0.0, %v7841
    %7843 = vmatmul.f32.gmra.mxu0 %v7822
    %v7844 = vpop.f32.mrf.mxu0
    %v7845 = vadd.f32 0.0, %v7844
    %7846 = vdwg.mxu0
    %7847 = vrot.lane.b32.xlu0 %v6317, 56
    %v7848 = vpop.permute.xlu0 %7847
    %7849 = vrot.lane.b32.xlu0 %v6320, 56
    %v7850 = vpop.permute.xlu0 %7849
    %v7854 = vsel %vm1085, %v7633, 0
    %v7857 = vsel %vm1085, %v7634, 0
    %7859 = vmatpush.msra.mxu0 0.0
    %7860 = vmatpush.msra.mxu0 0.0
    %7861 = vmatpush.msra.mxu0 0.0
    %7862 = vmatpush.msra.mxu0 0.0
    %7863 = vmatpush.msra.mxu0 0.0
    %7864 = vmatpush.msra.mxu0 0.0
    %7865 = vmatpush.msra.mxu0 0.0
    %7866 = vmatpush.msra.mxu0 0.0
    %7867 = vmatpush.msra.mxu0 0.0
    %7868 = vmatpush.msra.mxu0 0.0
    %7869 = vmatpush.msra.mxu0 0.0
    %7870 = vmatpush.msra.mxu0 0.0
    %7871 = vmatpush.msra.mxu0 0.0
    %7872 = vmatpush.msra.mxu0 0.0
    %7873 = vmatpush.msra.mxu0 %v7850
    %7874 = vmatpush.msra.mxu0 %v7848
    %7875 = vmatmul.f32.gmra.mxu0 %v7854
    %v7876 = vpop.f32.mrf.mxu0
    %v7877 = vadd.f32 0.0, %v7876
    %7878 = vmatmul.f32.gmra.mxu0 %v7857
    %v7879 = vpop.f32.mrf.mxu0
    %v7880 = vadd.f32 0.0, %v7879
    %7881 = vdwg.mxu0
    %7882 = vrot.lane.b32.xlu0 %v6323, 56
    %v7883 = vpop.permute.xlu0 %7882
    %7884 = vrot.lane.b32.xlu0 %v6326, 56
    %v7885 = vpop.permute.xlu0 %7884
    %v7889 = vsel %vm1085, %v7635, 0
    %v7892 = vsel %vm1085, %v7636, 0
    %7894 = vmatpush.msra.mxu0 0.0
    %7895 = vmatpush.msra.mxu0 0.0
    %7896 = vmatpush.msra.mxu0 0.0
    %7897 = vmatpush.msra.mxu0 0.0
    %7898 = vmatpush.msra.mxu0 0.0
    %7899 = vmatpush.msra.mxu0 0.0
    %7900 = vmatpush.msra.mxu0 0.0
    %7901 = vmatpush.msra.mxu0 0.0
    %7902 = vmatpush.msra.mxu0 0.0
    %7903 = vmatpush.msra.mxu0 0.0
    %7904 = vmatpush.msra.mxu0 0.0
    %7905 = vmatpush.msra.mxu0 0.0
    %7906 = vmatpush.msra.mxu0 0.0
    %7907 = vmatpush.msra.mxu0 0.0
    %7908 = vmatpush.msra.mxu0 %v7885
    %7909 = vmatpush.msra.mxu0 %v7883
    %7910 = vmatmul.f32.gmra.mxu0 %v7889
    %v7911 = vpop.f32.mrf.mxu0
    %v7912 = vadd.f32 0.0, %v7911
    %7913 = vmatmul.f32.gmra.mxu0 %v7892
    %v7914 = vpop.f32.mrf.mxu0
    %v7915 = vadd.f32 0.0, %v7914
    %7916 = vdwg.mxu0
    %v7918 = vsel %vm762, %v7667, 0
    %v7921 = vsel %vm762, %v7670, 0
    %v7924 = vsel %vm762, %v7702, 0
    %v7927 = vsel %vm762, %v7705, 0
    %v7930 = vsel %vm762, %v7737, 0
    %v7933 = vsel %vm762, %v7740, 0
    %v7936 = vsel %vm762, %v7772, 0
    %v7939 = vsel %vm762, %v7775, 0
    %v7942 = vsel %vm762, %v7807, 0
    %v7945 = vsel %vm762, %v7810, 0
    %v7948 = vsel %vm762, %v7842, 0
    %v7951 = vsel %vm762, %v7845, 0
    %v7954 = vsel %vm762, %v7877, 0
    %v7957 = vsel %vm762, %v7880, 0
    %v7960 = vsel %vm762, %v7912, 0
    %v7963 = vsel %vm762, %v7915, 0
    %7965 = vmatpush.msra.mxu0 0.0
    %7966 = vmatpush.msra.mxu0 0.0
    %7967 = vmatpush.msra.mxu0 0.0
    %7968 = vmatpush.msra.mxu0 0.0
    %7969 = vmatpush.msra.mxu0 0.0
    %7970 = vmatpush.msra.mxu0 0.0
    %7971 = vmatpush.msra.mxu0 0.0
    %7972 = vmatpush.msra.mxu0 0.0
    %7973 = vmatpush.msra.mxu0 0.0
    %7974 = vmatpush.msra.mxu0 0.0
    %7975 = vmatpush.msra.mxu0 0.0
    %7976 = vmatpush.msra.mxu0 0.0
    %7977 = vmatpush.msra.mxu0 0.0
    %7978 = vmatpush.msra.mxu0 0.0
    %7979 = vmatpush.msra.mxu0 0.0
    %7980 = vmatpush.msra.mxu0 %v6330
    %7981 = vmatmul.f32.gmra.mxu0 %v7918
    %v7982 = vpop.f32.mrf.mxu0
    %v7983 = vadd.f32 0.0, %v7982
    %7984 = vmatmul.f32.gmra.mxu0 %v7921
    %v7985 = vpop.f32.mrf.mxu0
    %v7986 = vadd.f32 0.0, %v7985
    %7987 = vmatmul.f32.gmra.mxu0 %v7924
    %v7988 = vpop.f32.mrf.mxu0
    %v7989 = vadd.f32 0.0, %v7988
    %7990 = vmatmul.f32.gmra.mxu0 %v7927
    %v7991 = vpop.f32.mrf.mxu0
    %v7992 = vadd.f32 0.0, %v7991
    %7993 = vmatmul.f32.gmra.mxu0 %v7930
    %v7994 = vpop.f32.mrf.mxu0
    %v7995 = vadd.f32 0.0, %v7994
    %7996 = vmatmul.f32.gmra.mxu0 %v7933
    %v7997 = vpop.f32.mrf.mxu0
    %v7998 = vadd.f32 0.0, %v7997
    %7999 = vmatmul.f32.gmra.mxu0 %v7936
    %v8000 = vpop.f32.mrf.mxu0
    %v8001 = vadd.f32 0.0, %v8000
    %8002 = vmatmul.f32.gmra.mxu0 %v7939
    %v8003 = vpop.f32.mrf.mxu0
    %v8004 = vadd.f32 0.0, %v8003
    %8005 = vmatmul.f32.gmra.mxu0 %v7942
    %v8006 = vpop.f32.mrf.mxu0
    %v8007 = vadd.f32 0.0, %v8006
    %8008 = vmatmul.f32.gmra.mxu0 %v7945
    %v8009 = vpop.f32.mrf.mxu0
    %v8010 = vadd.f32 0.0, %v8009
    %8011 = vmatmul.f32.gmra.mxu0 %v7948
    %v8012 = vpop.f32.mrf.mxu0
    %v8013 = vadd.f32 0.0, %v8012
    %8014 = vmatmul.f32.gmra.mxu0 %v7951
    %v8015 = vpop.f32.mrf.mxu0
    %v8016 = vadd.f32 0.0, %v8015
    %8017 = vmatmul.f32.gmra.mxu0 %v7954
    %v8018 = vpop.f32.mrf.mxu0
    %v8019 = vadd.f32 0.0, %v8018
    %8020 = vmatmul.f32.gmra.mxu0 %v7957
    %v8021 = vpop.f32.mrf.mxu0
    %v8022 = vadd.f32 0.0, %v8021
    %8023 = vmatmul.f32.gmra.mxu0 %v7960
    %v8024 = vpop.f32.mrf.mxu0
    %v8025 = vadd.f32 0.0, %v8024
    %8026 = vmatmul.f32.gmra.mxu0 %v7963
    %v8027 = vpop.f32.mrf.mxu0
    %v8028 = vadd.f32 0.0, %v8027
    %8029 = vdwg.mxu0
    %v8031 = vsel %vm762, %v6867, 0
    %v8034 = vsel %vm762, %v6870, 0
    %v8037 = vsel %vm762, %v6902, 0
    %v8040 = vsel %vm762, %v6905, 0
    %v8043 = vsel %vm762, %v6937, 0
    %v8046 = vsel %vm762, %v6940, 0
    %v8049 = vsel %vm762, %v6972, 0
    %v8052 = vsel %vm762, %v6975, 0
    %v8055 = vsel %vm762, %v7007, 0
    %v8058 = vsel %vm762, %v7010, 0
    %v8061 = vsel %vm762, %v7042, 0
    %v8064 = vsel %vm762, %v7045, 0
    %v8067 = vsel %vm762, %v7077, 0
    %v8070 = vsel %vm762, %v7080, 0
    %v8073 = vsel %vm762, %v7112, 0
    %v8076 = vsel %vm762, %v7115, 0
    %8078 = vmatpush.msra.mxu0 0.0
    %8079 = vmatpush.msra.mxu0 0.0
    %8080 = vmatpush.msra.mxu0 0.0
    %8081 = vmatpush.msra.mxu0 0.0
    %8082 = vmatpush.msra.mxu0 0.0
    %8083 = vmatpush.msra.mxu0 0.0
    %8084 = vmatpush.msra.mxu0 0.0
    %8085 = vmatpush.msra.mxu0 0.0
    %8086 = vmatpush.msra.mxu0 0.0
    %8087 = vmatpush.msra.mxu0 0.0
    %8088 = vmatpush.msra.mxu0 0.0
    %8089 = vmatpush.msra.mxu0 0.0
    %8090 = vmatpush.msra.mxu0 0.0
    %8091 = vmatpush.msra.mxu0 0.0
    %8092 = vmatpush.msra.mxu0 0.0
    %8093 = vmatpush.msra.mxu0 %v6329
    %8094 = vmatmul.f32.gmra.mxu0 %v8031
    %v8095 = vpop.f32.mrf.mxu0
    %v8096 = vadd.f32 %v7983, %v8095
    %8097 = vmatmul.f32.gmra.mxu0 %v8034
    %v8098 = vpop.f32.mrf.mxu0
    %v8099 = vadd.f32 %v7986, %v8098
    %8100 = vmatmul.f32.gmra.mxu0 %v8037
    %v8101 = vpop.f32.mrf.mxu0
    %v8102 = vadd.f32 %v7989, %v8101
    %8103 = vmatmul.f32.gmra.mxu0 %v8040
    %v8104 = vpop.f32.mrf.mxu0
    %v8105 = vadd.f32 %v7992, %v8104
    %8106 = vmatmul.f32.gmra.mxu0 %v8043
    %v8107 = vpop.f32.mrf.mxu0
    %v8108 = vadd.f32 %v7995, %v8107
    %8109 = vmatmul.f32.gmra.mxu0 %v8046
    %v8110 = vpop.f32.mrf.mxu0
    %v8111 = vadd.f32 %v7998, %v8110
    %8112 = vmatmul.f32.gmra.mxu0 %v8049
    %v8113 = vpop.f32.mrf.mxu0
    %v8114 = vadd.f32 %v8001, %v8113
    %8115 = vmatmul.f32.gmra.mxu0 %v8052
    %v8116 = vpop.f32.mrf.mxu0
    %v8117 = vadd.f32 %v8004, %v8116
    %8118 = vmatmul.f32.gmra.mxu0 %v8055
    %v8119 = vpop.f32.mrf.mxu0
    %v8120 = vadd.f32 %v8007, %v8119
    %8121 = vmatmul.f32.gmra.mxu0 %v8058
    %v8122 = vpop.f32.mrf.mxu0
    %v8123 = vadd.f32 %v8010, %v8122
    %8124 = vmatmul.f32.gmra.mxu0 %v8061
    %v8125 = vpop.f32.mrf.mxu0
    %v8126 = vadd.f32 %v8013, %v8125
    %8127 = vmatmul.f32.gmra.mxu0 %v8064
    %v8128 = vpop.f32.mrf.mxu0
    %v8129 = vadd.f32 %v8016, %v8128
    %8130 = vmatmul.f32.gmra.mxu0 %v8067
    %v8131 = vpop.f32.mrf.mxu0
    %v8132 = vadd.f32 %v8019, %v8131
    %8133 = vmatmul.f32.gmra.mxu0 %v8070
    %v8134 = vpop.f32.mrf.mxu0
    %v8135 = vadd.f32 %v8022, %v8134
    %8136 = vmatmul.f32.gmra.mxu0 %v8073
    %v8137 = vpop.f32.mrf.mxu0
    %v8138 = vadd.f32 %v8025, %v8137
    %8139 = vmatmul.f32.gmra.mxu0 %v8076
    %v8140 = vpop.f32.mrf.mxu0
    %v8141 = vadd.f32 %v8028, %v8140
    %8142 = vdwg.mxu0
    %8143 = vrot.lane.b32.xlu0 %v6281, 112
    %v8144 = vpop.permute.xlu0 %8143
    %8145 = vrot.lane.b32.xlu0 %v6284, 112
    %v8146 = vpop.permute.xlu0 %8145
    %8147 = vrot.lane.b32.xlu0 %v6281, 80
    %v8148 = vpop.permute.xlu0 %8147
    %8149 = vrot.lane.b32.xlu0 %v6284, 80
    %v8150 = vpop.permute.xlu0 %8149
    %v8151 = vsel %vm762, %v8144, 0
    %v8153 = vsel %vm762, %v8146, 0
    %v8155 = vsel %vm762, %v8148, 0
    %v8157 = vsel %vm762, %v8150, 0
    %8159 = vmatpush.xpose.msra.mxu0 0.0
    %8160 = vmatpush.xpose.msra.mxu0 0.0
    %8161 = vmatpush.xpose.msra.mxu0 0.0
    %8162 = vmatpush.xpose.msra.mxu0 0.0
    %8163 = vmatpush.xpose.msra.mxu0 0.0
    %8164 = vmatpush.xpose.msra.mxu0 0.0
    %8165 = vmatpush.xpose.msra.mxu0 0.0
    %8166 = vmatpush.xpose.msra.mxu0 0.0
    %8167 = vmatpush.xpose.msra.mxu0 0.0
    %8168 = vmatpush.xpose.msra.mxu0 0.0
    %8169 = vmatpush.xpose.msra.mxu0 0.0
    %8170 = vmatpush.xpose.msra.mxu0 0.0
    %8171 = vmatpush.xpose.msra.mxu0 0.0
    %8172 = vmatpush.xpose.msra.mxu0 0.0
    %8173 = vmatpush.xpose.msra.mxu0 %v8157
    %8174 = vmatpush.xpose.msra.mxu0 %v8155
    %8175 = vmatmul.f32.gmra.mxu0 %v8151
    %v8176 = vpop.f32.mrf.mxu0
    %v8177 = vadd.f32 0.0, %v8176
    %8178 = vmatmul.f32.gmra.mxu0 %v8153
    %v8179 = vpop.f32.mrf.mxu0
    %v8180 = vadd.f32 0.0, %v8179
    %8181 = vdwg.mxu0
    %8182 = vrot.lane.b32.xlu0 %v6287, 112
    %v8183 = vpop.permute.xlu0 %8182
    %8184 = vrot.lane.b32.xlu0 %v6290, 112
    %v8185 = vpop.permute.xlu0 %8184
    %8186 = vrot.lane.b32.xlu0 %v6287, 80
    %v8187 = vpop.permute.xlu0 %8186
    %8188 = vrot.lane.b32.xlu0 %v6290, 80
    %v8189 = vpop.permute.xlu0 %8188
    %v8190 = vsel %vm762, %v8183, 0
    %v8192 = vsel %vm762, %v8185, 0
    %v8194 = vsel %vm762, %v8187, 0
    %v8196 = vsel %vm762, %v8189, 0
    %8198 = vmatpush.xpose.msra.mxu0 0.0
    %8199 = vmatpush.xpose.msra.mxu0 0.0
    %8200 = vmatpush.xpose.msra.mxu0 0.0
    %8201 = vmatpush.xpose.msra.mxu0 0.0
    %8202 = vmatpush.xpose.msra.mxu0 0.0
    %8203 = vmatpush.xpose.msra.mxu0 0.0
    %8204 = vmatpush.xpose.msra.mxu0 0.0
    %8205 = vmatpush.xpose.msra.mxu0 0.0
    %8206 = vmatpush.xpose.msra.mxu0 0.0
    %8207 = vmatpush.xpose.msra.mxu0 0.0
    %8208 = vmatpush.xpose.msra.mxu0 0.0
    %8209 = vmatpush.xpose.msra.mxu0 0.0
    %8210 = vmatpush.xpose.msra.mxu0 0.0
    %8211 = vmatpush.xpose.msra.mxu0 0.0
    %8212 = vmatpush.xpose.msra.mxu0 %v8196
    %8213 = vmatpush.xpose.msra.mxu0 %v8194
    %8214 = vmatmul.f32.gmra.mxu0 %v8190
    %v8215 = vpop.f32.mrf.mxu0
    %v8216 = vadd.f32 0.0, %v8215
    %8217 = vmatmul.f32.gmra.mxu0 %v8192
    %v8218 = vpop.f32.mrf.mxu0
    %v8219 = vadd.f32 0.0, %v8218
    %8220 = vdwg.mxu0
    %8221 = vrot.lane.b32.xlu0 %v6293, 112
    %v8222 = vpop.permute.xlu0 %8221
    %8223 = vrot.lane.b32.xlu0 %v6296, 112
    %v8224 = vpop.permute.xlu0 %8223
    %8225 = vrot.lane.b32.xlu0 %v6293, 80
    %v8226 = vpop.permute.xlu0 %8225
    %8227 = vrot.lane.b32.xlu0 %v6296, 80
    %v8228 = vpop.permute.xlu0 %8227
    %v8229 = vsel %vm762, %v8222, 0
    %v8231 = vsel %vm762, %v8224, 0
    %v8233 = vsel %vm762, %v8226, 0
    %v8235 = vsel %vm762, %v8228, 0
    %8237 = vmatpush.xpose.msra.mxu0 0.0
    %8238 = vmatpush.xpose.msra.mxu0 0.0
    %8239 = vmatpush.xpose.msra.mxu0 0.0
    %8240 = vmatpush.xpose.msra.mxu0 0.0
    %8241 = vmatpush.xpose.msra.mxu0 0.0
    %8242 = vmatpush.xpose.msra.mxu0 0.0
    %8243 = vmatpush.xpose.msra.mxu0 0.0
    %8244 = vmatpush.xpose.msra.mxu0 0.0
    %8245 = vmatpush.xpose.msra.mxu0 0.0
    %8246 = vmatpush.xpose.msra.mxu0 0.0
    %8247 = vmatpush.xpose.msra.mxu0 0.0
    %8248 = vmatpush.xpose.msra.mxu0 0.0
    %8249 = vmatpush.xpose.msra.mxu0 0.0
    %8250 = vmatpush.xpose.msra.mxu0 0.0
    %8251 = vmatpush.xpose.msra.mxu0 %v8235
    %8252 = vmatpush.xpose.msra.mxu0 %v8233
    %8253 = vmatmul.f32.gmra.mxu0 %v8229
    %v8254 = vpop.f32.mrf.mxu0
    %v8255 = vadd.f32 0.0, %v8254
    %8256 = vmatmul.f32.gmra.mxu0 %v8231
    %v8257 = vpop.f32.mrf.mxu0
    %v8258 = vadd.f32 0.0, %v8257
    %8259 = vdwg.mxu0
    %8260 = vrot.lane.b32.xlu0 %v6299, 112
    %v8261 = vpop.permute.xlu0 %8260
    %8262 = vrot.lane.b32.xlu0 %v6302, 112
    %v8263 = vpop.permute.xlu0 %8262
    %8264 = vrot.lane.b32.xlu0 %v6299, 80
    %v8265 = vpop.permute.xlu0 %8264
    %8266 = vrot.lane.b32.xlu0 %v6302, 80
    %v8267 = vpop.permute.xlu0 %8266
    %v8268 = vsel %vm762, %v8261, 0
    %v8270 = vsel %vm762, %v8263, 0
    %v8272 = vsel %vm762, %v8265, 0
    %v8274 = vsel %vm762, %v8267, 0
    %8276 = vmatpush.xpose.msra.mxu0 0.0
    %8277 = vmatpush.xpose.msra.mxu0 0.0
    %8278 = vmatpush.xpose.msra.mxu0 0.0
    %8279 = vmatpush.xpose.msra.mxu0 0.0
    %8280 = vmatpush.xpose.msra.mxu0 0.0
    %8281 = vmatpush.xpose.msra.mxu0 0.0
    %8282 = vmatpush.xpose.msra.mxu0 0.0
    %8283 = vmatpush.xpose.msra.mxu0 0.0
    %8284 = vmatpush.xpose.msra.mxu0 0.0
    %8285 = vmatpush.xpose.msra.mxu0 0.0
    %8286 = vmatpush.xpose.msra.mxu0 0.0
    %8287 = vmatpush.xpose.msra.mxu0 0.0
    %8288 = vmatpush.xpose.msra.mxu0 0.0
    %8289 = vmatpush.xpose.msra.mxu0 0.0
    %8290 = vmatpush.xpose.msra.mxu0 %v8274
    %8291 = vmatpush.xpose.msra.mxu0 %v8272
    %8292 = vmatmul.f32.gmra.mxu0 %v8268
    %v8293 = vpop.f32.mrf.mxu0
    %v8294 = vadd.f32 0.0, %v8293
    %8295 = vmatmul.f32.gmra.mxu0 %v8270
    %v8296 = vpop.f32.mrf.mxu0
    %v8297 = vadd.f32 0.0, %v8296
    %8298 = vdwg.mxu0
    %8299 = vrot.lane.b32.xlu0 %v6305, 112
    %v8300 = vpop.permute.xlu0 %8299
    %8301 = vrot.lane.b32.xlu0 %v6308, 112
    %v8302 = vpop.permute.xlu0 %8301
    %8303 = vrot.lane.b32.xlu0 %v6305, 80
    %v8304 = vpop.permute.xlu0 %8303
    %8305 = vrot.lane.b32.xlu0 %v6308, 80
    %v8306 = vpop.permute.xlu0 %8305
    %v8307 = vsel %vm762, %v8300, 0
    %v8309 = vsel %vm762, %v8302, 0
    %v8311 = vsel %vm762, %v8304, 0
    %v8313 = vsel %vm762, %v8306, 0
    %8315 = vmatpush.xpose.msra.mxu0 0.0
    %8316 = vmatpush.xpose.msra.mxu0 0.0
    %8317 = vmatpush.xpose.msra.mxu0 0.0
    %8318 = vmatpush.xpose.msra.mxu0 0.0
    %8319 = vmatpush.xpose.msra.mxu0 0.0
    %8320 = vmatpush.xpose.msra.mxu0 0.0
    %8321 = vmatpush.xpose.msra.mxu0 0.0
    %8322 = vmatpush.xpose.msra.mxu0 0.0
    %8323 = vmatpush.xpose.msra.mxu0 0.0
    %8324 = vmatpush.xpose.msra.mxu0 0.0
    %8325 = vmatpush.xpose.msra.mxu0 0.0
    %8326 = vmatpush.xpose.msra.mxu0 0.0
    %8327 = vmatpush.xpose.msra.mxu0 0.0
    %8328 = vmatpush.xpose.msra.mxu0 0.0
    %8329 = vmatpush.xpose.msra.mxu0 %v8313
    %8330 = vmatpush.xpose.msra.mxu0 %v8311
    %8331 = vmatmul.f32.gmra.mxu0 %v8307
    %v8332 = vpop.f32.mrf.mxu0
    %v8333 = vadd.f32 0.0, %v8332
    %8334 = vmatmul.f32.gmra.mxu0 %v8309
    %v8335 = vpop.f32.mrf.mxu0
    %v8336 = vadd.f32 0.0, %v8335
    %8337 = vdwg.mxu0
    %8338 = vrot.lane.b32.xlu0 %v6311, 112
    %v8339 = vpop.permute.xlu0 %8338
    %8340 = vrot.lane.b32.xlu0 %v6314, 112
    %v8341 = vpop.permute.xlu0 %8340
    %8342 = vrot.lane.b32.xlu0 %v6311, 80
    %v8343 = vpop.permute.xlu0 %8342
    %8344 = vrot.lane.b32.xlu0 %v6314, 80
    %v8345 = vpop.permute.xlu0 %8344
    %v8346 = vsel %vm762, %v8339, 0
    %v8348 = vsel %vm762, %v8341, 0
    %v8350 = vsel %vm762, %v8343, 0
    %v8352 = vsel %vm762, %v8345, 0
    %8354 = vmatpush.xpose.msra.mxu0 0.0
    %8355 = vmatpush.xpose.msra.mxu0 0.0
    %8356 = vmatpush.xpose.msra.mxu0 0.0
    %8357 = vmatpush.xpose.msra.mxu0 0.0
    %8358 = vmatpush.xpose.msra.mxu0 0.0
    %8359 = vmatpush.xpose.msra.mxu0 0.0
    %8360 = vmatpush.xpose.msra.mxu0 0.0
    %8361 = vmatpush.xpose.msra.mxu0 0.0
    %8362 = vmatpush.xpose.msra.mxu0 0.0
    %8363 = vmatpush.xpose.msra.mxu0 0.0
    %8364 = vmatpush.xpose.msra.mxu0 0.0
    %8365 = vmatpush.xpose.msra.mxu0 0.0
    %8366 = vmatpush.xpose.msra.mxu0 0.0
    %8367 = vmatpush.xpose.msra.mxu0 0.0
    %8368 = vmatpush.xpose.msra.mxu0 %v8352
    %8369 = vmatpush.xpose.msra.mxu0 %v8350
    %8370 = vmatmul.f32.gmra.mxu0 %v8346
    %v8371 = vpop.f32.mrf.mxu0
    %v8372 = vadd.f32 0.0, %v8371
    %8373 = vmatmul.f32.gmra.mxu0 %v8348
    %v8374 = vpop.f32.mrf.mxu0
    %v8375 = vadd.f32 0.0, %v8374
    %8376 = vdwg.mxu0
    %8377 = vrot.lane.b32.xlu0 %v6317, 112
    %v8378 = vpop.permute.xlu0 %8377
    %8379 = vrot.lane.b32.xlu0 %v6320, 112
    %v8380 = vpop.permute.xlu0 %8379
    %8381 = vrot.lane.b32.xlu0 %v6317, 80
    %v8382 = vpop.permute.xlu0 %8381
    %8383 = vrot.lane.b32.xlu0 %v6320, 80
    %v8384 = vpop.permute.xlu0 %8383
    %v8385 = vsel %vm762, %v8378, 0
    %v8387 = vsel %vm762, %v8380, 0
    %v8389 = vsel %vm762, %v8382, 0
    %v8391 = vsel %vm762, %v8384, 0
    %8393 = vmatpush.xpose.msra.mxu0 0.0
    %8394 = vmatpush.xpose.msra.mxu0 0.0
    %8395 = vmatpush.xpose.msra.mxu0 0.0
    %8396 = vmatpush.xpose.msra.mxu0 0.0
    %8397 = vmatpush.xpose.msra.mxu0 0.0
    %8398 = vmatpush.xpose.msra.mxu0 0.0
    %8399 = vmatpush.xpose.msra.mxu0 0.0
    %8400 = vmatpush.xpose.msra.mxu0 0.0
    %8401 = vmatpush.xpose.msra.mxu0 0.0
    %8402 = vmatpush.xpose.msra.mxu0 0.0
    %8403 = vmatpush.xpose.msra.mxu0 0.0
    %8404 = vmatpush.xpose.msra.mxu0 0.0
    %8405 = vmatpush.xpose.msra.mxu0 0.0
    %8406 = vmatpush.xpose.msra.mxu0 0.0
    %8407 = vmatpush.xpose.msra.mxu0 %v8391
    %8408 = vmatpush.xpose.msra.mxu0 %v8389
    %8409 = vmatmul.f32.gmra.mxu0 %v8385
    %v8410 = vpop.f32.mrf.mxu0
    %v8411 = vadd.f32 0.0, %v8410
    %8412 = vmatmul.f32.gmra.mxu0 %v8387
    %v8413 = vpop.f32.mrf.mxu0
    %v8414 = vadd.f32 0.0, %v8413
    %8415 = vdwg.mxu0
    %8416 = vrot.lane.b32.xlu0 %v6323, 112
    %v8417 = vpop.permute.xlu0 %8416
    %8418 = vrot.lane.b32.xlu0 %v6326, 112
    %v8419 = vpop.permute.xlu0 %8418
    %8420 = vrot.lane.b32.xlu0 %v6323, 80
    %v8421 = vpop.permute.xlu0 %8420
    %8422 = vrot.lane.b32.xlu0 %v6326, 80
    %v8423 = vpop.permute.xlu0 %8422
    %v8424 = vsel %vm762, %v8417, 0
    %v8426 = vsel %vm762, %v8419, 0
    %v8428 = vsel %vm762, %v8421, 0
    %v8430 = vsel %vm762, %v8423, 0
    %8432 = vmatpush.xpose.msra.mxu0 0.0
    %8433 = vmatpush.xpose.msra.mxu0 0.0
    %8434 = vmatpush.xpose.msra.mxu0 0.0
    %8435 = vmatpush.xpose.msra.mxu0 0.0
    %8436 = vmatpush.xpose.msra.mxu0 0.0
    %8437 = vmatpush.xpose.msra.mxu0 0.0
    %8438 = vmatpush.xpose.msra.mxu0 0.0
    %8439 = vmatpush.xpose.msra.mxu0 0.0
    %8440 = vmatpush.xpose.msra.mxu0 0.0
    %8441 = vmatpush.xpose.msra.mxu0 0.0
    %8442 = vmatpush.xpose.msra.mxu0 0.0
    %8443 = vmatpush.xpose.msra.mxu0 0.0
    %8444 = vmatpush.xpose.msra.mxu0 0.0
    %8445 = vmatpush.xpose.msra.mxu0 0.0
    %8446 = vmatpush.xpose.msra.mxu0 %v8430
    %8447 = vmatpush.xpose.msra.mxu0 %v8428
    %8448 = vmatmul.f32.gmra.mxu0 %v8424
    %v8449 = vpop.f32.mrf.mxu0
    %v8450 = vadd.f32 0.0, %v8449
    %8451 = vmatmul.f32.gmra.mxu0 %v8426
    %v8452 = vpop.f32.mrf.mxu0
    %v8453 = vadd.f32 0.0, %v8452
    %8454 = vdwg.mxu0
    %v8455 = vmul.f32 %v8177, 0.35355338
    %v8456 = vmul.f32 %v8180, 0.35355338
    %v8457 = vmul.f32 %v8216, 0.35355338
    %v8458 = vmul.f32 %v8219, 0.35355338
    %v8459 = vmul.f32 %v8255, 0.35355338
    %v8460 = vmul.f32 %v8258, 0.35355338
    %v8461 = vmul.f32 %v8294, 0.35355338
    %v8462 = vmul.f32 %v8297, 0.35355338
    %v8463 = vmul.f32 %v8333, 0.35355338
    %v8464 = vmul.f32 %v8336, 0.35355338
    %v8465 = vmul.f32 %v8372, 0.35355338
    %v8466 = vmul.f32 %v8375, 0.35355338
    %v8467 = vmul.f32 %v8411, 0.35355338
    %v8468 = vmul.f32 %v8414, 0.35355338
    %v8469 = vmul.f32 %v8450, 0.35355338
    %v8470 = vmul.f32 %v8453, 0.35355338
    %v8471 = vadd.f32 %v8455, %v240
    %v8472 = vadd.f32 %v8456, %v240
    %v8473 = vadd.f32 %v8457, %v240
    %v8474 = vadd.f32 %v8458, %v240
    %v8475 = vadd.f32 %v8459, %v240
    %v8476 = vadd.f32 %v8460, %v240
    %v8477 = vadd.f32 %v8461, %v240
    %v8478 = vadd.f32 %v8462, %v240
    %v8479 = vadd.f32 %v8463, %v240
    %v8480 = vadd.f32 %v8464, %v240
    %v8481 = vadd.f32 %v8465, %v240
    %v8482 = vadd.f32 %v8466, %v240
    %v8483 = vadd.f32 %v8467, %v240
    %v8484 = vadd.f32 %v8468, %v240
    %v8485 = vadd.f32 %v8469, %v240
    %v8486 = vadd.f32 %v8470, %v240
    %v8487 = vsel %vm1085, %v8471, -inf
    %8488 = vmax.xlane.f32.xlu0 %v8487
    %v8489 = vpop.xlane.xlu0 %8488
    %v8490 = vsel %vm1085, %v8472, -inf
    %8491 = vmax.xlane.f32.xlu0 %v8490
    %v8492 = vpop.xlane.xlu0 %8491
    %v8493 = vsel %vm1085, %v8473, -inf
    %8494 = vmax.xlane.f32.xlu0 %v8493
    %v8495 = vpop.xlane.xlu0 %8494
    %v8496 = vsel %vm1085, %v8474, -inf
    %8497 = vmax.xlane.f32.xlu0 %v8496
    %v8498 = vpop.xlane.xlu0 %8497
    %v8499 = vsel %vm1085, %v8475, -inf
    %8500 = vmax.xlane.f32.xlu0 %v8499
    %v8501 = vpop.xlane.xlu0 %8500
    %v8502 = vsel %vm1085, %v8476, -inf
    %8503 = vmax.xlane.f32.xlu0 %v8502
    %v8504 = vpop.xlane.xlu0 %8503
    %v8505 = vsel %vm1085, %v8477, -inf
    %8506 = vmax.xlane.f32.xlu0 %v8505
    %v8507 = vpop.xlane.xlu0 %8506
    %v8508 = vsel %vm1085, %v8478, -inf
    %8509 = vmax.xlane.f32.xlu0 %v8508
    %v8510 = vpop.xlane.xlu0 %8509
    %v8511 = vsel %vm1085, %v8479, -inf
    %8512 = vmax.xlane.f32.xlu0 %v8511
    %v8513 = vpop.xlane.xlu0 %8512
    %v8514 = vsel %vm1085, %v8480, -inf
    %8515 = vmax.xlane.f32.xlu0 %v8514
    %v8516 = vpop.xlane.xlu0 %8515
    %v8517 = vsel %vm1085, %v8481, -inf
    %8518 = vmax.xlane.f32.xlu0 %v8517
    %v8519 = vpop.xlane.xlu0 %8518
    %v8520 = vsel %vm1085, %v8482, -inf
    %8521 = vmax.xlane.f32.xlu0 %v8520
    %v8522 = vpop.xlane.xlu0 %8521
    %v8523 = vsel %vm1085, %v8483, -inf
    %8524 = vmax.xlane.f32.xlu0 %v8523
    %v8525 = vpop.xlane.xlu0 %8524
    %v8526 = vsel %vm1085, %v8484, -inf
    %8527 = vmax.xlane.f32.xlu0 %v8526
    %v8528 = vpop.xlane.xlu0 %8527
    %v8529 = vsel %vm1085, %v8485, -inf
    %8530 = vmax.xlane.f32.xlu0 %v8529
    %v8531 = vpop.xlane.xlu0 %8530
    %v8532 = vsel %vm1085, %v8486, -inf
    %8533 = vmax.xlane.f32.xlu0 %v8532
    %v8534 = vpop.xlane.xlu0 %8533
    %v8535 = vsub.f32 %v8471, %v8489
    %v8536 = vsub.f32 %v8472, %v8492
    %v8537 = vsub.f32 %v8473, %v8495
    %v8538 = vsub.f32 %v8474, %v8498
    %v8539 = vsub.f32 %v8475, %v8501
    %v8540 = vsub.f32 %v8476, %v8504
    %v8541 = vsub.f32 %v8477, %v8507
    %v8542 = vsub.f32 %v8478, %v8510
    %v8543 = vsub.f32 %v8479, %v8513
    %v8544 = vsub.f32 %v8480, %v8516
    %v8545 = vsub.f32 %v8481, %v8519
    %v8546 = vsub.f32 %v8482, %v8522
    %v8547 = vsub.f32 %v8483, %v8525
    %v8548 = vsub.f32 %v8484, %v8528
    %v8549 = vsub.f32 %v8485, %v8531
    %v8550 = vsub.f32 %v8486, %v8534
    %v8551 = vmul.f32 %v8535, 1.442695
    %v8552 = vpow.pop %v8551
    %v8553 = vmul.f32 %v8536, 1.442695
    %v8554 = vpow.pop %v8553
    %v8555 = vmul.f32 %v8537, 1.442695
    %v8556 = vpow.pop %v8555
    %v8557 = vmul.f32 %v8538, 1.442695
    %v8558 = vpow.pop %v8557
    %v8559 = vmul.f32 %v8539, 1.442695
    %v8560 = vpow.pop %v8559
    %v8561 = vmul.f32 %v8540, 1.442695
    %v8562 = vpow.pop %v8561
    %v8563 = vmul.f32 %v8541, 1.442695
    %v8564 = vpow.pop %v8563
    %v8565 = vmul.f32 %v8542, 1.442695
    %v8566 = vpow.pop %v8565
    %v8567 = vmul.f32 %v8543, 1.442695
    %v8568 = vpow.pop %v8567
    %v8569 = vmul.f32 %v8544, 1.442695
    %v8570 = vpow.pop %v8569
    %v8571 = vmul.f32 %v8545, 1.442695
    %v8572 = vpow.pop %v8571
    %v8573 = vmul.f32 %v8546, 1.442695
    %v8574 = vpow.pop %v8573
    %v8575 = vmul.f32 %v8547, 1.442695
    %v8576 = vpow.pop %v8575
    %v8577 = vmul.f32 %v8548, 1.442695
    %v8578 = vpow.pop %v8577
    %v8579 = vmul.f32 %v8549, 1.442695
    %v8580 = vpow.pop %v8579
    %v8581 = vmul.f32 %v8550, 1.442695
    %v8582 = vpow.pop %v8581
    %v8583 = vsel %vm1085, %v8552, 0.0
    %8584 = vadd.xlane.f32.xlu0 %v8583
    %v8585 = vpop.xlane.xlu0 %8584
    %v8586 = vsel %vm1085, %v8554, 0.0
    %8587 = vadd.xlane.f32.xlu0 %v8586
    %v8588 = vpop.xlane.xlu0 %8587
    %v8589 = vsel %vm1085, %v8556, 0.0
    %8590 = vadd.xlane.f32.xlu0 %v8589
    %v8591 = vpop.xlane.xlu0 %8590
    %v8592 = vsel %vm1085, %v8558, 0.0
    %8593 = vadd.xlane.f32.xlu0 %v8592
    %v8594 = vpop.xlane.xlu0 %8593
    %v8595 = vsel %vm1085, %v8560, 0.0
    %8596 = vadd.xlane.f32.xlu0 %v8595
    %v8597 = vpop.xlane.xlu0 %8596
    %v8598 = vsel %vm1085, %v8562, 0.0
    %8599 = vadd.xlane.f32.xlu0 %v8598
    %v8600 = vpop.xlane.xlu0 %8599
    %v8601 = vsel %vm1085, %v8564, 0.0
    %8602 = vadd.xlane.f32.xlu0 %v8601
    %v8603 = vpop.xlane.xlu0 %8602
    %v8604 = vsel %vm1085, %v8566, 0.0
    %8605 = vadd.xlane.f32.xlu0 %v8604
    %v8606 = vpop.xlane.xlu0 %8605
    %v8607 = vsel %vm1085, %v8568, 0.0
    %8608 = vadd.xlane.f32.xlu0 %v8607
    %v8609 = vpop.xlane.xlu0 %8608
    %v8610 = vsel %vm1085, %v8570, 0.0
    %8611 = vadd.xlane.f32.xlu0 %v8610
    %v8612 = vpop.xlane.xlu0 %8611
    %v8613 = vsel %vm1085, %v8572, 0.0
    %8614 = vadd.xlane.f32.xlu0 %v8613
    %v8615 = vpop.xlane.xlu0 %8614
    %v8616 = vsel %vm1085, %v8574, 0.0
    %8617 = vadd.xlane.f32.xlu0 %v8616
    %v8618 = vpop.xlane.xlu0 %8617
    %v8619 = vsel %vm1085, %v8576, 0.0
    %8620 = vadd.xlane.f32.xlu0 %v8619
    %v8621 = vpop.xlane.xlu0 %8620
    %v8622 = vsel %vm1085, %v8578, 0.0
    %8623 = vadd.xlane.f32.xlu0 %v8622
    %v8624 = vpop.xlane.xlu0 %8623
    %v8625 = vsel %vm1085, %v8580, 0.0
    %8626 = vadd.xlane.f32.xlu0 %v8625
    %v8627 = vpop.xlane.xlu0 %8626
    %v8628 = vsel %vm1085, %v8582, 0.0
    %8629 = vadd.xlane.f32.xlu0 %v8628
    %v8630 = vpop.xlane.xlu0 %8629
    %v8631 = vrcp.pop %v8585
    %v8632 = vrcp.pop %v8588
    %v8633 = vrcp.pop %v8591
    %v8634 = vrcp.pop %v8594
    %v8635 = vrcp.pop %v8597
    %v8636 = vrcp.pop %v8600
    %v8637 = vrcp.pop %v8603
    %v8638 = vrcp.pop %v8606
    %v8639 = vrcp.pop %v8609
    %v8640 = vrcp.pop %v8612
    %v8641 = vrcp.pop %v8615
    %v8642 = vrcp.pop %v8618
    %v8643 = vrcp.pop %v8621
    %v8644 = vrcp.pop %v8624
    %v8645 = vrcp.pop %v8627
    %v8646 = vrcp.pop %v8630
    %v8647 = vmul.f32 %v8552, %v8631
    %v8648 = vmul.f32 %v8554, %v8632
    %v8649 = vmul.f32 %v8556, %v8633
    %v8650 = vmul.f32 %v8558, %v8634
    %v8651 = vmul.f32 %v8560, %v8635
    %v8652 = vmul.f32 %v8562, %v8636
    %v8653 = vmul.f32 %v8564, %v8637
    %v8654 = vmul.f32 %v8566, %v8638
    %v8655 = vmul.f32 %v8568, %v8639
    %v8656 = vmul.f32 %v8570, %v8640
    %v8657 = vmul.f32 %v8572, %v8641
    %v8658 = vmul.f32 %v8574, %v8642
    %v8659 = vmul.f32 %v8576, %v8643
    %v8660 = vmul.f32 %v8578, %v8644
    %v8661 = vmul.f32 %v8580, %v8645
    %v8662 = vmul.f32 %v8582, %v8646
    %8663 = vrot.lane.b32.xlu0 %v6281, 48
    %v8664 = vpop.permute.xlu0 %8663
    %8665 = vrot.lane.b32.xlu0 %v6284, 48
    %v8666 = vpop.permute.xlu0 %8665
    %v8670 = vsel %vm1085, %v8647, 0
    %v8673 = vsel %vm1085, %v8648, 0
    %8675 = vmatpush.msra.mxu0 0.0
    %8676 = vmatpush.msra.mxu0 0.0
    %8677 = vmatpush.msra.mxu0 0.0
    %8678 = vmatpush.msra.mxu0 0.0
    %8679 = vmatpush.msra.mxu0 0.0
    %8680 = vmatpush.msra.mxu0 0.0
    %8681 = vmatpush.msra.mxu0 0.0
    %8682 = vmatpush.msra.mxu0 0.0
    %8683 = vmatpush.msra.mxu0 0.0
    %8684 = vmatpush.msra.mxu0 0.0
    %8685 = vmatpush.msra.mxu0 0.0
    %8686 = vmatpush.msra.mxu0 0.0
    %8687 = vmatpush.msra.mxu0 0.0
    %8688 = vmatpush.msra.mxu0 0.0
    %8689 = vmatpush.msra.mxu0 %v8666
    %8690 = vmatpush.msra.mxu0 %v8664
    %8691 = vmatmul.f32.gmra.mxu0 %v8670
    %v8692 = vpop.f32.mrf.mxu0
    %v8693 = vadd.f32 0.0, %v8692
    %8694 = vmatmul.f32.gmra.mxu0 %v8673
    %v8695 = vpop.f32.mrf.mxu0
    %v8696 = vadd.f32 0.0, %v8695
    %8697 = vdwg.mxu0
    %8698 = vrot.lane.b32.xlu0 %v6287, 48
    %v8699 = vpop.permute.xlu0 %8698
    %8700 = vrot.lane.b32.xlu0 %v6290, 48
    %v8701 = vpop.permute.xlu0 %8700
    %v8705 = vsel %vm1085, %v8649, 0
    %v8708 = vsel %vm1085, %v8650, 0
    %8710 = vmatpush.msra.mxu0 0.0
    %8711 = vmatpush.msra.mxu0 0.0
    %8712 = vmatpush.msra.mxu0 0.0
    %8713 = vmatpush.msra.mxu0 0.0
    %8714 = vmatpush.msra.mxu0 0.0
    %8715 = vmatpush.msra.mxu0 0.0
    %8716 = vmatpush.msra.mxu0 0.0
    %8717 = vmatpush.msra.mxu0 0.0
    %8718 = vmatpush.msra.mxu0 0.0
    %8719 = vmatpush.msra.mxu0 0.0
    %8720 = vmatpush.msra.mxu0 0.0
    %8721 = vmatpush.msra.mxu0 0.0
    %8722 = vmatpush.msra.mxu0 0.0
    %8723 = vmatpush.msra.mxu0 0.0
    %8724 = vmatpush.msra.mxu0 %v8701
    %8725 = vmatpush.msra.mxu0 %v8699
    %8726 = vmatmul.f32.gmra.mxu0 %v8705
    %v8727 = vpop.f32.mrf.mxu0
    %v8728 = vadd.f32 0.0, %v8727
    %8729 = vmatmul.f32.gmra.mxu0 %v8708
    %v8730 = vpop.f32.mrf.mxu0
    %v8731 = vadd.f32 0.0, %v8730
    %8732 = vdwg.mxu0
    %8733 = vrot.lane.b32.xlu0 %v6293, 48
    %v8734 = vpop.permute.xlu0 %8733
    %8735 = vrot.lane.b32.xlu0 %v6296, 48
    %v8736 = vpop.permute.xlu0 %8735
    %v8740 = vsel %vm1085, %v8651, 0
    %v8743 = vsel %vm1085, %v8652, 0
    %8745 = vmatpush.msra.mxu0 0.0
    %8746 = vmatpush.msra.mxu0 0.0
    %8747 = vmatpush.msra.mxu0 0.0
    %8748 = vmatpush.msra.mxu0 0.0
    %8749 = vmatpush.msra.mxu0 0.0
    %8750 = vmatpush.msra.mxu0 0.0
    %8751 = vmatpush.msra.mxu0 0.0
    %8752 = vmatpush.msra.mxu0 0.0
    %8753 = vmatpush.msra.mxu0 0.0
    %8754 = vmatpush.msra.mxu0 0.0
    %8755 = vmatpush.msra.mxu0 0.0
    %8756 = vmatpush.msra.mxu0 0.0
    %8757 = vmatpush.msra.mxu0 0.0
    %8758 = vmatpush.msra.mxu0 0.0
    %8759 = vmatpush.msra.mxu0 %v8736
    %8760 = vmatpush.msra.mxu0 %v8734
    %8761 = vmatmul.f32.gmra.mxu0 %v8740
    %v8762 = vpop.f32.mrf.mxu0
    %v8763 = vadd.f32 0.0, %v8762
    %8764 = vmatmul.f32.gmra.mxu0 %v8743
    %v8765 = vpop.f32.mrf.mxu0
    %v8766 = vadd.f32 0.0, %v8765
    %8767 = vdwg.mxu0
    %8768 = vrot.lane.b32.xlu0 %v6299, 48
    %v8769 = vpop.permute.xlu0 %8768
    %8770 = vrot.lane.b32.xlu0 %v6302, 48
    %v8771 = vpop.permute.xlu0 %8770
    %v8775 = vsel %vm1085, %v8653, 0
    %v8778 = vsel %vm1085, %v8654, 0
    %8780 = vmatpush.msra.mxu0 0.0
    %8781 = vmatpush.msra.mxu0 0.0
    %8782 = vmatpush.msra.mxu0 0.0
    %8783 = vmatpush.msra.mxu0 0.0
    %8784 = vmatpush.msra.mxu0 0.0
    %8785 = vmatpush.msra.mxu0 0.0
    %8786 = vmatpush.msra.mxu0 0.0
    %8787 = vmatpush.msra.mxu0 0.0
    %8788 = vmatpush.msra.mxu0 0.0
    %8789 = vmatpush.msra.mxu0 0.0
    %8790 = vmatpush.msra.mxu0 0.0
    %8791 = vmatpush.msra.mxu0 0.0
    %8792 = vmatpush.msra.mxu0 0.0
    %8793 = vmatpush.msra.mxu0 0.0
    %8794 = vmatpush.msra.mxu0 %v8771
    %8795 = vmatpush.msra.mxu0 %v8769
    %8796 = vmatmul.f32.gmra.mxu0 %v8775
    %v8797 = vpop.f32.mrf.mxu0
    %v8798 = vadd.f32 0.0, %v8797
    %8799 = vmatmul.f32.gmra.mxu0 %v8778
    %v8800 = vpop.f32.mrf.mxu0
    %v8801 = vadd.f32 0.0, %v8800
    %8802 = vdwg.mxu0
    %8803 = vrot.lane.b32.xlu0 %v6305, 48
    %v8804 = vpop.permute.xlu0 %8803
    %8805 = vrot.lane.b32.xlu0 %v6308, 48
    %v8806 = vpop.permute.xlu0 %8805
    %v8810 = vsel %vm1085, %v8655, 0
    %v8813 = vsel %vm1085, %v8656, 0
    %8815 = vmatpush.msra.mxu0 0.0
    %8816 = vmatpush.msra.mxu0 0.0
    %8817 = vmatpush.msra.mxu0 0.0
    %8818 = vmatpush.msra.mxu0 0.0
    %8819 = vmatpush.msra.mxu0 0.0
    %8820 = vmatpush.msra.mxu0 0.0
    %8821 = vmatpush.msra.mxu0 0.0
    %8822 = vmatpush.msra.mxu0 0.0
    %8823 = vmatpush.msra.mxu0 0.0
    %8824 = vmatpush.msra.mxu0 0.0
    %8825 = vmatpush.msra.mxu0 0.0
    %8826 = vmatpush.msra.mxu0 0.0
    %8827 = vmatpush.msra.mxu0 0.0
    %8828 = vmatpush.msra.mxu0 0.0
    %8829 = vmatpush.msra.mxu0 %v8806
    %8830 = vmatpush.msra.mxu0 %v8804
    %8831 = vmatmul.f32.gmra.mxu0 %v8810
    %v8832 = vpop.f32.mrf.mxu0
    %v8833 = vadd.f32 0.0, %v8832
    %8834 = vmatmul.f32.gmra.mxu0 %v8813
    %v8835 = vpop.f32.mrf.mxu0
    %v8836 = vadd.f32 0.0, %v8835
    %8837 = vdwg.mxu0
    %8838 = vrot.lane.b32.xlu0 %v6311, 48
    %v8839 = vpop.permute.xlu0 %8838
    %8840 = vrot.lane.b32.xlu0 %v6314, 48
    %v8841 = vpop.permute.xlu0 %8840
    %v8845 = vsel %vm1085, %v8657, 0
    %v8848 = vsel %vm1085, %v8658, 0
    %8850 = vmatpush.msra.mxu0 0.0
    %8851 = vmatpush.msra.mxu0 0.0
    %8852 = vmatpush.msra.mxu0 0.0
    %8853 = vmatpush.msra.mxu0 0.0
    %8854 = vmatpush.msra.mxu0 0.0
    %8855 = vmatpush.msra.mxu0 0.0
    %8856 = vmatpush.msra.mxu0 0.0
    %8857 = vmatpush.msra.mxu0 0.0
    %8858 = vmatpush.msra.mxu0 0.0
    %8859 = vmatpush.msra.mxu0 0.0
    %8860 = vmatpush.msra.mxu0 0.0
    %8861 = vmatpush.msra.mxu0 0.0
    %8862 = vmatpush.msra.mxu0 0.0
    %8863 = vmatpush.msra.mxu0 0.0
    %8864 = vmatpush.msra.mxu0 %v8841
    %8865 = vmatpush.msra.mxu0 %v8839
    %8866 = vmatmul.f32.gmra.mxu0 %v8845
    %v8867 = vpop.f32.mrf.mxu0
    %v8868 = vadd.f32 0.0, %v8867
    %8869 = vmatmul.f32.gmra.mxu0 %v8848
    %v8870 = vpop.f32.mrf.mxu0
    %v8871 = vadd.f32 0.0, %v8870
    %8872 = vdwg.mxu0
    %8873 = vrot.lane.b32.xlu0 %v6317, 48
    %v8874 = vpop.permute.xlu0 %8873
    %8875 = vrot.lane.b32.xlu0 %v6320, 48
    %v8876 = vpop.permute.xlu0 %8875
    %v8880 = vsel %vm1085, %v8659, 0
    %v8883 = vsel %vm1085, %v8660, 0
    %8885 = vmatpush.msra.mxu0 0.0
    %8886 = vmatpush.msra.mxu0 0.0
    %8887 = vmatpush.msra.mxu0 0.0
    %8888 = vmatpush.msra.mxu0 0.0
    %8889 = vmatpush.msra.mxu0 0.0
    %8890 = vmatpush.msra.mxu0 0.0
    %8891 = vmatpush.msra.mxu0 0.0
    %8892 = vmatpush.msra.mxu0 0.0
    %8893 = vmatpush.msra.mxu0 0.0
    %8894 = vmatpush.msra.mxu0 0.0
    %8895 = vmatpush.msra.mxu0 0.0
    %8896 = vmatpush.msra.mxu0 0.0
    %8897 = vmatpush.msra.mxu0 0.0
    %8898 = vmatpush.msra.mxu0 0.0
    %8899 = vmatpush.msra.mxu0 %v8876
    %8900 = vmatpush.msra.mxu0 %v8874
    %8901 = vmatmul.f32.gmra.mxu0 %v8880
    %v8902 = vpop.f32.mrf.mxu0
    %v8903 = vadd.f32 0.0, %v8902
    %8904 = vmatmul.f32.gmra.mxu0 %v8883
    %v8905 = vpop.f32.mrf.mxu0
    %v8906 = vadd.f32 0.0, %v8905
    %8907 = vdwg.mxu0
    %8908 = vrot.lane.b32.xlu0 %v6323, 48
    %v8909 = vpop.permute.xlu0 %8908
    %8910 = vrot.lane.b32.xlu0 %v6326, 48
    %v8911 = vpop.permute.xlu0 %8910
    %v8915 = vsel %vm1085, %v8661, 0
    %v8918 = vsel %vm1085, %v8662, 0
    %8920 = vmatpush.msra.mxu0 0.0
    %8921 = vmatpush.msra.mxu0 0.0
    %8922 = vmatpush.msra.mxu0 0.0
    %8923 = vmatpush.msra.mxu0 0.0
    %8924 = vmatpush.msra.mxu0 0.0
    %8925 = vmatpush.msra.mxu0 0.0
    %8926 = vmatpush.msra.mxu0 0.0
    %8927 = vmatpush.msra.mxu0 0.0
    %8928 = vmatpush.msra.mxu0 0.0
    %8929 = vmatpush.msra.mxu0 0.0
    %8930 = vmatpush.msra.mxu0 0.0
    %8931 = vmatpush.msra.mxu0 0.0
    %8932 = vmatpush.msra.mxu0 0.0
    %8933 = vmatpush.msra.mxu0 0.0
    %8934 = vmatpush.msra.mxu0 %v8911
    %8935 = vmatpush.msra.mxu0 %v8909
    %8936 = vmatmul.f32.gmra.mxu0 %v8915
    %v8937 = vpop.f32.mrf.mxu0
    %v8938 = vadd.f32 0.0, %v8937
    %8939 = vmatmul.f32.gmra.mxu0 %v8918
    %v8940 = vpop.f32.mrf.mxu0
    %v8941 = vadd.f32 0.0, %v8940
    %8942 = vdwg.mxu0
    %v8944 = vsel %vm762, %v8693, 0
    %v8947 = vsel %vm762, %v8696, 0
    %v8950 = vsel %vm762, %v8728, 0
    %v8953 = vsel %vm762, %v8731, 0
    %v8956 = vsel %vm762, %v8763, 0
    %v8959 = vsel %vm762, %v8766, 0
    %v8962 = vsel %vm762, %v8798, 0
    %v8965 = vsel %vm762, %v8801, 0
    %v8968 = vsel %vm762, %v8833, 0
    %v8971 = vsel %vm762, %v8836, 0
    %v8974 = vsel %vm762, %v8868, 0
    %v8977 = vsel %vm762, %v8871, 0
    %v8980 = vsel %vm762, %v8903, 0
    %v8983 = vsel %vm762, %v8906, 0
    %v8986 = vsel %vm762, %v8938, 0
    %v8989 = vsel %vm762, %v8941, 0
    %8991 = vmatpush.msra.mxu0 0.0
    %8992 = vmatpush.msra.mxu0 0.0
    %8993 = vmatpush.msra.mxu0 0.0
    %8994 = vmatpush.msra.mxu0 0.0
    %8995 = vmatpush.msra.mxu0 0.0
    %8996 = vmatpush.msra.mxu0 0.0
    %8997 = vmatpush.msra.mxu0 0.0
    %8998 = vmatpush.msra.mxu0 0.0
    %8999 = vmatpush.msra.mxu0 0.0
    %9000 = vmatpush.msra.mxu0 0.0
    %9001 = vmatpush.msra.mxu0 0.0
    %9002 = vmatpush.msra.mxu0 0.0
    %9003 = vmatpush.msra.mxu0 0.0
    %9004 = vmatpush.msra.mxu0 0.0
    %9005 = vmatpush.msra.mxu0 0.0
    %9006 = vmatpush.msra.mxu0 %v6331
    %9007 = vmatmul.f32.gmra.mxu0 %v8944
    %v9008 = vpop.f32.mrf.mxu0
    %v9009 = vadd.f32 0.0, %v9008
    %9010 = vmatmul.f32.gmra.mxu0 %v8947
    %v9011 = vpop.f32.mrf.mxu0
    %v9012 = vadd.f32 0.0, %v9011
    %9013 = vmatmul.f32.gmra.mxu0 %v8950
    %v9014 = vpop.f32.mrf.mxu0
    %v9015 = vadd.f32 0.0, %v9014
    %9016 = vmatmul.f32.gmra.mxu0 %v8953
    %v9017 = vpop.f32.mrf.mxu0
    %v9018 = vadd.f32 0.0, %v9017
    %9019 = vmatmul.f32.gmra.mxu0 %v8956
    %v9020 = vpop.f32.mrf.mxu0
    %v9021 = vadd.f32 0.0, %v9020
    %9022 = vmatmul.f32.gmra.mxu0 %v8959
    %v9023 = vpop.f32.mrf.mxu0
    %v9024 = vadd.f32 0.0, %v9023
    %9025 = vmatmul.f32.gmra.mxu0 %v8962
    %v9026 = vpop.f32.mrf.mxu0
    %v9027 = vadd.f32 0.0, %v9026
    %9028 = vmatmul.f32.gmra.mxu0 %v8965
    %v9029 = vpop.f32.mrf.mxu0
    %v9030 = vadd.f32 0.0, %v9029
    %9031 = vmatmul.f32.gmra.mxu0 %v8968
    %v9032 = vpop.f32.mrf.mxu0
    %v9033 = vadd.f32 0.0, %v9032
    %9034 = vmatmul.f32.gmra.mxu0 %v8971
    %v9035 = vpop.f32.mrf.mxu0
    %v9036 = vadd.f32 0.0, %v9035
    %9037 = vmatmul.f32.gmra.mxu0 %v8974
    %v9038 = vpop.f32.mrf.mxu0
    %v9039 = vadd.f32 0.0, %v9038
    %9040 = vmatmul.f32.gmra.mxu0 %v8977
    %v9041 = vpop.f32.mrf.mxu0
    %v9042 = vadd.f32 0.0, %v9041
    %9043 = vmatmul.f32.gmra.mxu0 %v8980
    %v9044 = vpop.f32.mrf.mxu0
    %v9045 = vadd.f32 0.0, %v9044
    %9046 = vmatmul.f32.gmra.mxu0 %v8983
    %v9047 = vpop.f32.mrf.mxu0
    %v9048 = vadd.f32 0.0, %v9047
    %9049 = vmatmul.f32.gmra.mxu0 %v8986
    %v9050 = vpop.f32.mrf.mxu0
    %v9051 = vadd.f32 0.0, %v9050
    %9052 = vmatmul.f32.gmra.mxu0 %v8989
    %v9053 = vpop.f32.mrf.mxu0
    %v9054 = vadd.f32 0.0, %v9053
    %9055 = vdwg.mxu0
    %v9056 = vadd.f32 %v8096, %v9009
    %v9057 = vadd.f32 %v8099, %v9012
    %v9058 = vadd.f32 %v8102, %v9015
    %v9059 = vadd.f32 %v8105, %v9018
    %v9060 = vadd.f32 %v8108, %v9021
    %v9061 = vadd.f32 %v8111, %v9024
    %v9062 = vadd.f32 %v8114, %v9027
    %v9063 = vadd.f32 %v8117, %v9030
    %v9064 = vadd.f32 %v8120, %v9033
    %v9065 = vadd.f32 %v8123, %v9036
    %v9066 = vadd.f32 %v8126, %v9039
    %v9067 = vadd.f32 %v8129, %v9042
    %v9068 = vadd.f32 %v8132, %v9045
    %v9069 = vadd.f32 %v8135, %v9048
    %v9070 = vadd.f32 %v8138, %v9051
    %v9071 = vadd.f32 %v8141, %v9054
    %9072 = vrot.lane.b32.xlu0 %v6281, 104
    %v9073 = vpop.permute.xlu0 %9072
    %9074 = vrot.lane.b32.xlu0 %v6284, 104
    %v9075 = vpop.permute.xlu0 %9074
    %9076 = vrot.lane.b32.xlu0 %v6281, 72
    %v9077 = vpop.permute.xlu0 %9076
    %9078 = vrot.lane.b32.xlu0 %v6284, 72
    %v9079 = vpop.permute.xlu0 %9078
    %v9080 = vsel %vm762, %v9073, 0
    %v9082 = vsel %vm762, %v9075, 0
    %v9084 = vsel %vm762, %v9077, 0
    %v9086 = vsel %vm762, %v9079, 0
    %9088 = vmatpush.xpose.msra.mxu0 0.0
    %9089 = vmatpush.xpose.msra.mxu0 0.0
    %9090 = vmatpush.xpose.msra.mxu0 0.0
    %9091 = vmatpush.xpose.msra.mxu0 0.0
    %9092 = vmatpush.xpose.msra.mxu0 0.0
    %9093 = vmatpush.xpose.msra.mxu0 0.0
    %9094 = vmatpush.xpose.msra.mxu0 0.0
    %9095 = vmatpush.xpose.msra.mxu0 0.0
    %9096 = vmatpush.xpose.msra.mxu0 0.0
    %9097 = vmatpush.xpose.msra.mxu0 0.0
    %9098 = vmatpush.xpose.msra.mxu0 0.0
    %9099 = vmatpush.xpose.msra.mxu0 0.0
    %9100 = vmatpush.xpose.msra.mxu0 0.0
    %9101 = vmatpush.xpose.msra.mxu0 0.0
    %9102 = vmatpush.xpose.msra.mxu0 %v9086
    %9103 = vmatpush.xpose.msra.mxu0 %v9084
    %9104 = vmatmul.f32.gmra.mxu0 %v9080
    %v9105 = vpop.f32.mrf.mxu0
    %v9106 = vadd.f32 0.0, %v9105
    %9107 = vmatmul.f32.gmra.mxu0 %v9082
    %v9108 = vpop.f32.mrf.mxu0
    %v9109 = vadd.f32 0.0, %v9108
    %9110 = vdwg.mxu0
    %9111 = vrot.lane.b32.xlu0 %v6287, 104
    %v9112 = vpop.permute.xlu0 %9111
    %9113 = vrot.lane.b32.xlu0 %v6290, 104
    %v9114 = vpop.permute.xlu0 %9113
    %9115 = vrot.lane.b32.xlu0 %v6287, 72
    %v9116 = vpop.permute.xlu0 %9115
    %9117 = vrot.lane.b32.xlu0 %v6290, 72
    %v9118 = vpop.permute.xlu0 %9117
    %v9119 = vsel %vm762, %v9112, 0
    %v9121 = vsel %vm762, %v9114, 0
    %v9123 = vsel %vm762, %v9116, 0
    %v9125 = vsel %vm762, %v9118, 0
    %9127 = vmatpush.xpose.msra.mxu0 0.0
    %9128 = vmatpush.xpose.msra.mxu0 0.0
    %9129 = vmatpush.xpose.msra.mxu0 0.0
    %9130 = vmatpush.xpose.msra.mxu0 0.0
    %9131 = vmatpush.xpose.msra.mxu0 0.0
    %9132 = vmatpush.xpose.msra.mxu0 0.0
    %9133 = vmatpush.xpose.msra.mxu0 0.0
    %9134 = vmatpush.xpose.msra.mxu0 0.0
    %9135 = vmatpush.xpose.msra.mxu0 0.0
    %9136 = vmatpush.xpose.msra.mxu0 0.0
    %9137 = vmatpush.xpose.msra.mxu0 0.0
    %9138 = vmatpush.xpose.msra.mxu0 0.0
    %9139 = vmatpush.xpose.msra.mxu0 0.0
    %9140 = vmatpush.xpose.msra.mxu0 0.0
    %9141 = vmatpush.xpose.msra.mxu0 %v9125
    %9142 = vmatpush.xpose.msra.mxu0 %v9123
    %9143 = vmatmul.f32.gmra.mxu0 %v9119
    %v9144 = vpop.f32.mrf.mxu0
    %v9145 = vadd.f32 0.0, %v9144
    %9146 = vmatmul.f32.gmra.mxu0 %v9121
    %v9147 = vpop.f32.mrf.mxu0
    %v9148 = vadd.f32 0.0, %v9147
    %9149 = vdwg.mxu0
    %9150 = vrot.lane.b32.xlu0 %v6293, 104
    %v9151 = vpop.permute.xlu0 %9150
    %9152 = vrot.lane.b32.xlu0 %v6296, 104
    %v9153 = vpop.permute.xlu0 %9152
    %9154 = vrot.lane.b32.xlu0 %v6293, 72
    %v9155 = vpop.permute.xlu0 %9154
    %9156 = vrot.lane.b32.xlu0 %v6296, 72
    %v9157 = vpop.permute.xlu0 %9156
    %v9158 = vsel %vm762, %v9151, 0
    %v9160 = vsel %vm762, %v9153, 0
    %v9162 = vsel %vm762, %v9155, 0
    %v9164 = vsel %vm762, %v9157, 0
    %9166 = vmatpush.xpose.msra.mxu0 0.0
    %9167 = vmatpush.xpose.msra.mxu0 0.0
    %9168 = vmatpush.xpose.msra.mxu0 0.0
    %9169 = vmatpush.xpose.msra.mxu0 0.0
    %9170 = vmatpush.xpose.msra.mxu0 0.0
    %9171 = vmatpush.xpose.msra.mxu0 0.0
    %9172 = vmatpush.xpose.msra.mxu0 0.0
    %9173 = vmatpush.xpose.msra.mxu0 0.0
    %9174 = vmatpush.xpose.msra.mxu0 0.0
    %9175 = vmatpush.xpose.msra.mxu0 0.0
    %9176 = vmatpush.xpose.msra.mxu0 0.0
    %9177 = vmatpush.xpose.msra.mxu0 0.0
    %9178 = vmatpush.xpose.msra.mxu0 0.0
    %9179 = vmatpush.xpose.msra.mxu0 0.0
    %9180 = vmatpush.xpose.msra.mxu0 %v9164
    %9181 = vmatpush.xpose.msra.mxu0 %v9162
    %9182 = vmatmul.f32.gmra.mxu0 %v9158
    %v9183 = vpop.f32.mrf.mxu0
    %v9184 = vadd.f32 0.0, %v9183
    %9185 = vmatmul.f32.gmra.mxu0 %v9160
    %v9186 = vpop.f32.mrf.mxu0
    %v9187 = vadd.f32 0.0, %v9186
    %9188 = vdwg.mxu0
    %9189 = vrot.lane.b32.xlu0 %v6299, 104
    %v9190 = vpop.permute.xlu0 %9189
    %9191 = vrot.lane.b32.xlu0 %v6302, 104
    %v9192 = vpop.permute.xlu0 %9191
    %9193 = vrot.lane.b32.xlu0 %v6299, 72
    %v9194 = vpop.permute.xlu0 %9193
    %9195 = vrot.lane.b32.xlu0 %v6302, 72
    %v9196 = vpop.permute.xlu0 %9195
    %v9197 = vsel %vm762, %v9190, 0
    %v9199 = vsel %vm762, %v9192, 0
    %v9201 = vsel %vm762, %v9194, 0
    %v9203 = vsel %vm762, %v9196, 0
    %9205 = vmatpush.xpose.msra.mxu0 0.0
    %9206 = vmatpush.xpose.msra.mxu0 0.0
    %9207 = vmatpush.xpose.msra.mxu0 0.0
    %9208 = vmatpush.xpose.msra.mxu0 0.0
    %9209 = vmatpush.xpose.msra.mxu0 0.0
    %9210 = vmatpush.xpose.msra.mxu0 0.0
    %9211 = vmatpush.xpose.msra.mxu0 0.0
    %9212 = vmatpush.xpose.msra.mxu0 0.0
    %9213 = vmatpush.xpose.msra.mxu0 0.0
    %9214 = vmatpush.xpose.msra.mxu0 0.0
    %9215 = vmatpush.xpose.msra.mxu0 0.0
    %9216 = vmatpush.xpose.msra.mxu0 0.0
    %9217 = vmatpush.xpose.msra.mxu0 0.0
    %9218 = vmatpush.xpose.msra.mxu0 0.0
    %9219 = vmatpush.xpose.msra.mxu0 %v9203
    %9220 = vmatpush.xpose.msra.mxu0 %v9201
    %9221 = vmatmul.f32.gmra.mxu0 %v9197
    %v9222 = vpop.f32.mrf.mxu0
    %v9223 = vadd.f32 0.0, %v9222
    %9224 = vmatmul.f32.gmra.mxu0 %v9199
    %v9225 = vpop.f32.mrf.mxu0
    %v9226 = vadd.f32 0.0, %v9225
    %9227 = vdwg.mxu0
    %9228 = vrot.lane.b32.xlu0 %v6305, 104
    %v9229 = vpop.permute.xlu0 %9228
    %9230 = vrot.lane.b32.xlu0 %v6308, 104
    %v9231 = vpop.permute.xlu0 %9230
    %9232 = vrot.lane.b32.xlu0 %v6305, 72
    %v9233 = vpop.permute.xlu0 %9232
    %9234 = vrot.lane.b32.xlu0 %v6308, 72
    %v9235 = vpop.permute.xlu0 %9234
    %v9236 = vsel %vm762, %v9229, 0
    %v9238 = vsel %vm762, %v9231, 0
    %v9240 = vsel %vm762, %v9233, 0
    %v9242 = vsel %vm762, %v9235, 0
    %9244 = vmatpush.xpose.msra.mxu0 0.0
    %9245 = vmatpush.xpose.msra.mxu0 0.0
    %9246 = vmatpush.xpose.msra.mxu0 0.0
    %9247 = vmatpush.xpose.msra.mxu0 0.0
    %9248 = vmatpush.xpose.msra.mxu0 0.0
    %9249 = vmatpush.xpose.msra.mxu0 0.0
    %9250 = vmatpush.xpose.msra.mxu0 0.0
    %9251 = vmatpush.xpose.msra.mxu0 0.0
    %9252 = vmatpush.xpose.msra.mxu0 0.0
    %9253 = vmatpush.xpose.msra.mxu0 0.0
    %9254 = vmatpush.xpose.msra.mxu0 0.0
    %9255 = vmatpush.xpose.msra.mxu0 0.0
    %9256 = vmatpush.xpose.msra.mxu0 0.0
    %9257 = vmatpush.xpose.msra.mxu0 0.0
    %9258 = vmatpush.xpose.msra.mxu0 %v9242
    %9259 = vmatpush.xpose.msra.mxu0 %v9240
    %9260 = vmatmul.f32.gmra.mxu0 %v9236
    %v9261 = vpop.f32.mrf.mxu0
    %v9262 = vadd.f32 0.0, %v9261
    %9263 = vmatmul.f32.gmra.mxu0 %v9238
    %v9264 = vpop.f32.mrf.mxu0
    %v9265 = vadd.f32 0.0, %v9264
    %9266 = vdwg.mxu0
    %9267 = vrot.lane.b32.xlu0 %v6311, 104
    %v9268 = vpop.permute.xlu0 %9267
    %9269 = vrot.lane.b32.xlu0 %v6314, 104
    %v9270 = vpop.permute.xlu0 %9269
    %9271 = vrot.lane.b32.xlu0 %v6311, 72
    %v9272 = vpop.permute.xlu0 %9271
    %9273 = vrot.lane.b32.xlu0 %v6314, 72
    %v9274 = vpop.permute.xlu0 %9273
    %v9275 = vsel %vm762, %v9268, 0
    %v9277 = vsel %vm762, %v9270, 0
    %v9279 = vsel %vm762, %v9272, 0
    %v9281 = vsel %vm762, %v9274, 0
    %9283 = vmatpush.xpose.msra.mxu0 0.0
    %9284 = vmatpush.xpose.msra.mxu0 0.0
    %9285 = vmatpush.xpose.msra.mxu0 0.0
    %9286 = vmatpush.xpose.msra.mxu0 0.0
    %9287 = vmatpush.xpose.msra.mxu0 0.0
    %9288 = vmatpush.xpose.msra.mxu0 0.0
    %9289 = vmatpush.xpose.msra.mxu0 0.0
    %9290 = vmatpush.xpose.msra.mxu0 0.0
    %9291 = vmatpush.xpose.msra.mxu0 0.0
    %9292 = vmatpush.xpose.msra.mxu0 0.0
    %9293 = vmatpush.xpose.msra.mxu0 0.0
    %9294 = vmatpush.xpose.msra.mxu0 0.0
    %9295 = vmatpush.xpose.msra.mxu0 0.0
    %9296 = vmatpush.xpose.msra.mxu0 0.0
    %9297 = vmatpush.xpose.msra.mxu0 %v9281
    %9298 = vmatpush.xpose.msra.mxu0 %v9279
    %9299 = vmatmul.f32.gmra.mxu0 %v9275
    %v9300 = vpop.f32.mrf.mxu0
    %v9301 = vadd.f32 0.0, %v9300
    %9302 = vmatmul.f32.gmra.mxu0 %v9277
    %v9303 = vpop.f32.mrf.mxu0
    %v9304 = vadd.f32 0.0, %v9303
    %9305 = vdwg.mxu0
    %9306 = vrot.lane.b32.xlu0 %v6317, 104
    %v9307 = vpop.permute.xlu0 %9306
    %9308 = vrot.lane.b32.xlu0 %v6320, 104
    %v9309 = vpop.permute.xlu0 %9308
    %9310 = vrot.lane.b32.xlu0 %v6317, 72
    %v9311 = vpop.permute.xlu0 %9310
    %9312 = vrot.lane.b32.xlu0 %v6320, 72
    %v9313 = vpop.permute.xlu0 %9312
    %v9314 = vsel %vm762, %v9307, 0
    %v9316 = vsel %vm762, %v9309, 0
    %v9318 = vsel %vm762, %v9311, 0
    %v9320 = vsel %vm762, %v9313, 0
    %9322 = vmatpush.xpose.msra.mxu0 0.0
    %9323 = vmatpush.xpose.msra.mxu0 0.0
    %9324 = vmatpush.xpose.msra.mxu0 0.0
    %9325 = vmatpush.xpose.msra.mxu0 0.0
    %9326 = vmatpush.xpose.msra.mxu0 0.0
    %9327 = vmatpush.xpose.msra.mxu0 0.0
    %9328 = vmatpush.xpose.msra.mxu0 0.0
    %9329 = vmatpush.xpose.msra.mxu0 0.0
    %9330 = vmatpush.xpose.msra.mxu0 0.0
    %9331 = vmatpush.xpose.msra.mxu0 0.0
    %9332 = vmatpush.xpose.msra.mxu0 0.0
    %9333 = vmatpush.xpose.msra.mxu0 0.0
    %9334 = vmatpush.xpose.msra.mxu0 0.0
    %9335 = vmatpush.xpose.msra.mxu0 0.0
    %9336 = vmatpush.xpose.msra.mxu0 %v9320
    %9337 = vmatpush.xpose.msra.mxu0 %v9318
    %9338 = vmatmul.f32.gmra.mxu0 %v9314
    %v9339 = vpop.f32.mrf.mxu0
    %v9340 = vadd.f32 0.0, %v9339
    %9341 = vmatmul.f32.gmra.mxu0 %v9316
    %v9342 = vpop.f32.mrf.mxu0
    %v9343 = vadd.f32 0.0, %v9342
    %9344 = vdwg.mxu0
    %9345 = vrot.lane.b32.xlu0 %v6323, 104
    %v9346 = vpop.permute.xlu0 %9345
    %9347 = vrot.lane.b32.xlu0 %v6326, 104
    %v9348 = vpop.permute.xlu0 %9347
    %9349 = vrot.lane.b32.xlu0 %v6323, 72
    %v9350 = vpop.permute.xlu0 %9349
    %9351 = vrot.lane.b32.xlu0 %v6326, 72
    %v9352 = vpop.permute.xlu0 %9351
    %v9353 = vsel %vm762, %v9346, 0
    %v9355 = vsel %vm762, %v9348, 0
    %v9357 = vsel %vm762, %v9350, 0
    %v9359 = vsel %vm762, %v9352, 0
    %9361 = vmatpush.xpose.msra.mxu0 0.0
    %9362 = vmatpush.xpose.msra.mxu0 0.0
    %9363 = vmatpush.xpose.msra.mxu0 0.0
    %9364 = vmatpush.xpose.msra.mxu0 0.0
    %9365 = vmatpush.xpose.msra.mxu0 0.0
    %9366 = vmatpush.xpose.msra.mxu0 0.0
    %9367 = vmatpush.xpose.msra.mxu0 0.0
    %9368 = vmatpush.xpose.msra.mxu0 0.0
    %9369 = vmatpush.xpose.msra.mxu0 0.0
    %9370 = vmatpush.xpose.msra.mxu0 0.0
    %9371 = vmatpush.xpose.msra.mxu0 0.0
    %9372 = vmatpush.xpose.msra.mxu0 0.0
    %9373 = vmatpush.xpose.msra.mxu0 0.0
    %9374 = vmatpush.xpose.msra.mxu0 0.0
    %9375 = vmatpush.xpose.msra.mxu0 %v9359
    %9376 = vmatpush.xpose.msra.mxu0 %v9357
    %9377 = vmatmul.f32.gmra.mxu0 %v9353
    %v9378 = vpop.f32.mrf.mxu0
    %v9379 = vadd.f32 0.0, %v9378
    %9380 = vmatmul.f32.gmra.mxu0 %v9355
    %v9381 = vpop.f32.mrf.mxu0
    %v9382 = vadd.f32 0.0, %v9381
    %9383 = vdwg.mxu0
    %v9384 = vmul.f32 %v9106, 0.35355338
    %v9385 = vmul.f32 %v9109, 0.35355338
    %v9386 = vmul.f32 %v9145, 0.35355338
    %v9387 = vmul.f32 %v9148, 0.35355338
    %v9388 = vmul.f32 %v9184, 0.35355338
    %v9389 = vmul.f32 %v9187, 0.35355338
    %v9390 = vmul.f32 %v9223, 0.35355338
    %v9391 = vmul.f32 %v9226, 0.35355338
    %v9392 = vmul.f32 %v9262, 0.35355338
    %v9393 = vmul.f32 %v9265, 0.35355338
    %v9394 = vmul.f32 %v9301, 0.35355338
    %v9395 = vmul.f32 %v9304, 0.35355338
    %v9396 = vmul.f32 %v9340, 0.35355338
    %v9397 = vmul.f32 %v9343, 0.35355338
    %v9398 = vmul.f32 %v9379, 0.35355338
    %v9399 = vmul.f32 %v9382, 0.35355338
    %v9400 = vadd.f32 %v9384, %v240
    %v9401 = vadd.f32 %v9385, %v240
    %v9402 = vadd.f32 %v9386, %v240
    %v9403 = vadd.f32 %v9387, %v240
    %v9404 = vadd.f32 %v9388, %v240
    %v9405 = vadd.f32 %v9389, %v240
    %v9406 = vadd.f32 %v9390, %v240
    %v9407 = vadd.f32 %v9391, %v240
    %v9408 = vadd.f32 %v9392, %v240
    %v9409 = vadd.f32 %v9393, %v240
    %v9410 = vadd.f32 %v9394, %v240
    %v9411 = vadd.f32 %v9395, %v240
    %v9412 = vadd.f32 %v9396, %v240
    %v9413 = vadd.f32 %v9397, %v240
    %v9414 = vadd.f32 %v9398, %v240
    %v9415 = vadd.f32 %v9399, %v240
    %v9416 = vsel %vm1085, %v9400, -inf
    %9417 = vmax.xlane.f32.xlu0 %v9416
    %v9418 = vpop.xlane.xlu0 %9417
    %v9419 = vsel %vm1085, %v9401, -inf
    %9420 = vmax.xlane.f32.xlu0 %v9419
    %v9421 = vpop.xlane.xlu0 %9420
    %v9422 = vsel %vm1085, %v9402, -inf
    %9423 = vmax.xlane.f32.xlu0 %v9422
    %v9424 = vpop.xlane.xlu0 %9423
    %v9425 = vsel %vm1085, %v9403, -inf
    %9426 = vmax.xlane.f32.xlu0 %v9425
    %v9427 = vpop.xlane.xlu0 %9426
    %v9428 = vsel %vm1085, %v9404, -inf
    %9429 = vmax.xlane.f32.xlu0 %v9428
    %v9430 = vpop.xlane.xlu0 %9429
    %v9431 = vsel %vm1085, %v9405, -inf
    %9432 = vmax.xlane.f32.xlu0 %v9431
    %v9433 = vpop.xlane.xlu0 %9432
    %v9434 = vsel %vm1085, %v9406, -inf
    %9435 = vmax.xlane.f32.xlu0 %v9434
    %v9436 = vpop.xlane.xlu0 %9435
    %v9437 = vsel %vm1085, %v9407, -inf
    %9438 = vmax.xlane.f32.xlu0 %v9437
    %v9439 = vpop.xlane.xlu0 %9438
    %v9440 = vsel %vm1085, %v9408, -inf
    %9441 = vmax.xlane.f32.xlu0 %v9440
    %v9442 = vpop.xlane.xlu0 %9441
    %v9443 = vsel %vm1085, %v9409, -inf
    %9444 = vmax.xlane.f32.xlu0 %v9443
    %v9445 = vpop.xlane.xlu0 %9444
    %v9446 = vsel %vm1085, %v9410, -inf
    %9447 = vmax.xlane.f32.xlu0 %v9446
    %v9448 = vpop.xlane.xlu0 %9447
    %v9449 = vsel %vm1085, %v9411, -inf
    %9450 = vmax.xlane.f32.xlu0 %v9449
    %v9451 = vpop.xlane.xlu0 %9450
    %v9452 = vsel %vm1085, %v9412, -inf
    %9453 = vmax.xlane.f32.xlu0 %v9452
    %v9454 = vpop.xlane.xlu0 %9453
    %v9455 = vsel %vm1085, %v9413, -inf
    %9456 = vmax.xlane.f32.xlu0 %v9455
    %v9457 = vpop.xlane.xlu0 %9456
    %v9458 = vsel %vm1085, %v9414, -inf
    %9459 = vmax.xlane.f32.xlu0 %v9458
    %v9460 = vpop.xlane.xlu0 %9459
    %v9461 = vsel %vm1085, %v9415, -inf
    %9462 = vmax.xlane.f32.xlu0 %v9461
    %v9463 = vpop.xlane.xlu0 %9462
    %v9464 = vsub.f32 %v9400, %v9418
    %v9465 = vsub.f32 %v9401, %v9421
    %v9466 = vsub.f32 %v9402, %v9424
    %v9467 = vsub.f32 %v9403, %v9427
    %v9468 = vsub.f32 %v9404, %v9430
    %v9469 = vsub.f32 %v9405, %v9433
    %v9470 = vsub.f32 %v9406, %v9436
    %v9471 = vsub.f32 %v9407, %v9439
    %v9472 = vsub.f32 %v9408, %v9442
    %v9473 = vsub.f32 %v9409, %v9445
    %v9474 = vsub.f32 %v9410, %v9448
    %v9475 = vsub.f32 %v9411, %v9451
    %v9476 = vsub.f32 %v9412, %v9454
    %v9477 = vsub.f32 %v9413, %v9457
    %v9478 = vsub.f32 %v9414, %v9460
    %v9479 = vsub.f32 %v9415, %v9463
    %v9480 = vmul.f32 %v9464, 1.442695
    %v9481 = vpow.pop %v9480
    %v9482 = vmul.f32 %v9465, 1.442695
    %v9483 = vpow.pop %v9482
    %v9484 = vmul.f32 %v9466, 1.442695
    %v9485 = vpow.pop %v9484
    %v9486 = vmul.f32 %v9467, 1.442695
    %v9487 = vpow.pop %v9486
    %v9488 = vmul.f32 %v9468, 1.442695
    %v9489 = vpow.pop %v9488
    %v9490 = vmul.f32 %v9469, 1.442695
    %v9491 = vpow.pop %v9490
    %v9492 = vmul.f32 %v9470, 1.442695
    %v9493 = vpow.pop %v9492
    %v9494 = vmul.f32 %v9471, 1.442695
    %v9495 = vpow.pop %v9494
    %v9496 = vmul.f32 %v9472, 1.442695
    %v9497 = vpow.pop %v9496
    %v9498 = vmul.f32 %v9473, 1.442695
    %v9499 = vpow.pop %v9498
    %v9500 = vmul.f32 %v9474, 1.442695
    %v9501 = vpow.pop %v9500
    %v9502 = vmul.f32 %v9475, 1.442695
    %v9503 = vpow.pop %v9502
    %v9504 = vmul.f32 %v9476, 1.442695
    %v9505 = vpow.pop %v9504
    %v9506 = vmul.f32 %v9477, 1.442695
    %v9507 = vpow.pop %v9506
    %v9508 = vmul.f32 %v9478, 1.442695
    %v9509 = vpow.pop %v9508
    %v9510 = vmul.f32 %v9479, 1.442695
    %v9511 = vpow.pop %v9510
    %v9512 = vsel %vm1085, %v9481, 0.0
    %9513 = vadd.xlane.f32.xlu0 %v9512
    %v9514 = vpop.xlane.xlu0 %9513
    %v9515 = vsel %vm1085, %v9483, 0.0
    %9516 = vadd.xlane.f32.xlu0 %v9515
    %v9517 = vpop.xlane.xlu0 %9516
    %v9518 = vsel %vm1085, %v9485, 0.0
    %9519 = vadd.xlane.f32.xlu0 %v9518
    %v9520 = vpop.xlane.xlu0 %9519
    %v9521 = vsel %vm1085, %v9487, 0.0
    %9522 = vadd.xlane.f32.xlu0 %v9521
    %v9523 = vpop.xlane.xlu0 %9522
    %v9524 = vsel %vm1085, %v9489, 0.0
    %9525 = vadd.xlane.f32.xlu0 %v9524
    %v9526 = vpop.xlane.xlu0 %9525
    %v9527 = vsel %vm1085, %v9491, 0.0
    %9528 = vadd.xlane.f32.xlu0 %v9527
    %v9529 = vpop.xlane.xlu0 %9528
    %v9530 = vsel %vm1085, %v9493, 0.0
    %9531 = vadd.xlane.f32.xlu0 %v9530
    %v9532 = vpop.xlane.xlu0 %9531
    %v9533 = vsel %vm1085, %v9495, 0.0
    %9534 = vadd.xlane.f32.xlu0 %v9533
    %v9535 = vpop.xlane.xlu0 %9534
    %v9536 = vsel %vm1085, %v9497, 0.0
    %9537 = vadd.xlane.f32.xlu0 %v9536
    %v9538 = vpop.xlane.xlu0 %9537
    %v9539 = vsel %vm1085, %v9499, 0.0
    %9540 = vadd.xlane.f32.xlu0 %v9539
    %v9541 = vpop.xlane.xlu0 %9540
    %v9542 = vsel %vm1085, %v9501, 0.0
    %9543 = vadd.xlane.f32.xlu0 %v9542
    %v9544 = vpop.xlane.xlu0 %9543
    %v9545 = vsel %vm1085, %v9503, 0.0
    %9546 = vadd.xlane.f32.xlu0 %v9545
    %v9547 = vpop.xlane.xlu0 %9546
    %v9548 = vsel %vm1085, %v9505, 0.0
    %9549 = vadd.xlane.f32.xlu0 %v9548
    %v9550 = vpop.xlane.xlu0 %9549
    %v9551 = vsel %vm1085, %v9507, 0.0
    %9552 = vadd.xlane.f32.xlu0 %v9551
    %v9553 = vpop.xlane.xlu0 %9552
    %v9554 = vsel %vm1085, %v9509, 0.0
    %9555 = vadd.xlane.f32.xlu0 %v9554
    %v9556 = vpop.xlane.xlu0 %9555
    %v9557 = vsel %vm1085, %v9511, 0.0
    %9558 = vadd.xlane.f32.xlu0 %v9557
    %v9559 = vpop.xlane.xlu0 %9558
    %v9560 = vrcp.pop %v9514
    %v9561 = vrcp.pop %v9517
    %v9562 = vrcp.pop %v9520
    %v9563 = vrcp.pop %v9523
    %v9564 = vrcp.pop %v9526
    %v9565 = vrcp.pop %v9529
    %v9566 = vrcp.pop %v9532
    %v9567 = vrcp.pop %v9535
    %v9568 = vrcp.pop %v9538
    %v9569 = vrcp.pop %v9541
    %v9570 = vrcp.pop %v9544
    %v9571 = vrcp.pop %v9547
    %v9572 = vrcp.pop %v9550
    %v9573 = vrcp.pop %v9553
    %v9574 = vrcp.pop %v9556
    %v9575 = vrcp.pop %v9559
    %v9576 = vmul.f32 %v9481, %v9560
    %v9577 = vmul.f32 %v9483, %v9561
    %v9578 = vmul.f32 %v9485, %v9562
    %v9579 = vmul.f32 %v9487, %v9563
    %v9580 = vmul.f32 %v9489, %v9564
    %v9581 = vmul.f32 %v9491, %v9565
    %v9582 = vmul.f32 %v9493, %v9566
    %v9583 = vmul.f32 %v9495, %v9567
    %v9584 = vmul.f32 %v9497, %v9568
    %v9585 = vmul.f32 %v9499, %v9569
    %v9586 = vmul.f32 %v9501, %v9570
    %v9587 = vmul.f32 %v9503, %v9571
    %v9588 = vmul.f32 %v9505, %v9572
    %v9589 = vmul.f32 %v9507, %v9573
    %v9590 = vmul.f32 %v9509, %v9574
    %v9591 = vmul.f32 %v9511, %v9575
    %9592 = vrot.lane.b32.xlu0 %v6281, 40
    %v9593 = vpop.permute.xlu0 %9592
    %9594 = vrot.lane.b32.xlu0 %v6284, 40
    %v9595 = vpop.permute.xlu0 %9594
    %v9599 = vsel %vm1085, %v9576, 0
    %v9602 = vsel %vm1085, %v9577, 0
    %9604 = vmatpush.msra.mxu0 0.0
    %9605 = vmatpush.msra.mxu0 0.0
    %9606 = vmatpush.msra.mxu0 0.0
    %9607 = vmatpush.msra.mxu0 0.0
    %9608 = vmatpush.msra.mxu0 0.0
    %9609 = vmatpush.msra.mxu0 0.0
    %9610 = vmatpush.msra.mxu0 0.0
    %9611 = vmatpush.msra.mxu0 0.0
    %9612 = vmatpush.msra.mxu0 0.0
    %9613 = vmatpush.msra.mxu0 0.0
    %9614 = vmatpush.msra.mxu0 0.0
    %9615 = vmatpush.msra.mxu0 0.0
    %9616 = vmatpush.msra.mxu0 0.0
    %9617 = vmatpush.msra.mxu0 0.0
    %9618 = vmatpush.msra.mxu0 %v9595
    %9619 = vmatpush.msra.mxu0 %v9593
    %9620 = vmatmul.f32.gmra.mxu0 %v9599
    %v9621 = vpop.f32.mrf.mxu0
    %v9622 = vadd.f32 0.0, %v9621
    %9623 = vmatmul.f32.gmra.mxu0 %v9602
    %v9624 = vpop.f32.mrf.mxu0
    %v9625 = vadd.f32 0.0, %v9624
    %9626 = vdwg.mxu0
    %9627 = vrot.lane.b32.xlu0 %v6287, 40
    %v9628 = vpop.permute.xlu0 %9627
    %9629 = vrot.lane.b32.xlu0 %v6290, 40
    %v9630 = vpop.permute.xlu0 %9629
    %v9634 = vsel %vm1085, %v9578, 0
    %v9637 = vsel %vm1085, %v9579, 0
    %9639 = vmatpush.msra.mxu0 0.0
    %9640 = vmatpush.msra.mxu0 0.0
    %9641 = vmatpush.msra.mxu0 0.0
    %9642 = vmatpush.msra.mxu0 0.0
    %9643 = vmatpush.msra.mxu0 0.0
    %9644 = vmatpush.msra.mxu0 0.0
    %9645 = vmatpush.msra.mxu0 0.0
    %9646 = vmatpush.msra.mxu0 0.0
    %9647 = vmatpush.msra.mxu0 0.0
    %9648 = vmatpush.msra.mxu0 0.0
    %9649 = vmatpush.msra.mxu0 0.0
    %9650 = vmatpush.msra.mxu0 0.0
    %9651 = vmatpush.msra.mxu0 0.0
    %9652 = vmatpush.msra.mxu0 0.0
    %9653 = vmatpush.msra.mxu0 %v9630
    %9654 = vmatpush.msra.mxu0 %v9628
    %9655 = vmatmul.f32.gmra.mxu0 %v9634
    %v9656 = vpop.f32.mrf.mxu0
    %v9657 = vadd.f32 0.0, %v9656
    %9658 = vmatmul.f32.gmra.mxu0 %v9637
    %v9659 = vpop.f32.mrf.mxu0
    %v9660 = vadd.f32 0.0, %v9659
    %9661 = vdwg.mxu0
    %9662 = vrot.lane.b32.xlu0 %v6293, 40
    %v9663 = vpop.permute.xlu0 %9662
    %9664 = vrot.lane.b32.xlu0 %v6296, 40
    %v9665 = vpop.permute.xlu0 %9664
    %v9669 = vsel %vm1085, %v9580, 0
    %v9672 = vsel %vm1085, %v9581, 0
    %9674 = vmatpush.msra.mxu0 0.0
    %9675 = vmatpush.msra.mxu0 0.0
    %9676 = vmatpush.msra.mxu0 0.0
    %9677 = vmatpush.msra.mxu0 0.0
    %9678 = vmatpush.msra.mxu0 0.0
    %9679 = vmatpush.msra.mxu0 0.0
    %9680 = vmatpush.msra.mxu0 0.0
    %9681 = vmatpush.msra.mxu0 0.0
    %9682 = vmatpush.msra.mxu0 0.0
    %9683 = vmatpush.msra.mxu0 0.0
    %9684 = vmatpush.msra.mxu0 0.0
    %9685 = vmatpush.msra.mxu0 0.0
    %9686 = vmatpush.msra.mxu0 0.0
    %9687 = vmatpush.msra.mxu0 0.0
    %9688 = vmatpush.msra.mxu0 %v9665
    %9689 = vmatpush.msra.mxu0 %v9663
    %9690 = vmatmul.f32.gmra.mxu0 %v9669
    %v9691 = vpop.f32.mrf.mxu0
    %v9692 = vadd.f32 0.0, %v9691
    %9693 = vmatmul.f32.gmra.mxu0 %v9672
    %v9694 = vpop.f32.mrf.mxu0
    %v9695 = vadd.f32 0.0, %v9694
    %9696 = vdwg.mxu0
    %9697 = vrot.lane.b32.xlu0 %v6299, 40
    %v9698 = vpop.permute.xlu0 %9697
    %9699 = vrot.lane.b32.xlu0 %v6302, 40
    %v9700 = vpop.permute.xlu0 %9699
    %v9704 = vsel %vm1085, %v9582, 0
    %v9707 = vsel %vm1085, %v9583, 0
    %9709 = vmatpush.msra.mxu0 0.0
    %9710 = vmatpush.msra.mxu0 0.0
    %9711 = vmatpush.msra.mxu0 0.0
    %9712 = vmatpush.msra.mxu0 0.0
    %9713 = vmatpush.msra.mxu0 0.0
    %9714 = vmatpush.msra.mxu0 0.0
    %9715 = vmatpush.msra.mxu0 0.0
    %9716 = vmatpush.msra.mxu0 0.0
    %9717 = vmatpush.msra.mxu0 0.0
    %9718 = vmatpush.msra.mxu0 0.0
    %9719 = vmatpush.msra.mxu0 0.0
    %9720 = vmatpush.msra.mxu0 0.0
    %9721 = vmatpush.msra.mxu0 0.0
    %9722 = vmatpush.msra.mxu0 0.0
    %9723 = vmatpush.msra.mxu0 %v9700
    %9724 = vmatpush.msra.mxu0 %v9698
    %9725 = vmatmul.f32.gmra.mxu0 %v9704
    %v9726 = vpop.f32.mrf.mxu0
    %v9727 = vadd.f32 0.0, %v9726
    %9728 = vmatmul.f32.gmra.mxu0 %v9707
    %v9729 = vpop.f32.mrf.mxu0
    %v9730 = vadd.f32 0.0, %v9729
    %9731 = vdwg.mxu0
    %9732 = vrot.lane.b32.xlu0 %v6305, 40
    %v9733 = vpop.permute.xlu0 %9732
    %9734 = vrot.lane.b32.xlu0 %v6308, 40
    %v9735 = vpop.permute.xlu0 %9734
    %v9739 = vsel %vm1085, %v9584, 0
    %v9742 = vsel %vm1085, %v9585, 0
    %9744 = vmatpush.msra.mxu0 0.0
    %9745 = vmatpush.msra.mxu0 0.0
    %9746 = vmatpush.msra.mxu0 0.0
    %9747 = vmatpush.msra.mxu0 0.0
    %9748 = vmatpush.msra.mxu0 0.0
    %9749 = vmatpush.msra.mxu0 0.0
    %9750 = vmatpush.msra.mxu0 0.0
    %9751 = vmatpush.msra.mxu0 0.0
    %9752 = vmatpush.msra.mxu0 0.0
    %9753 = vmatpush.msra.mxu0 0.0
    %9754 = vmatpush.msra.mxu0 0.0
    %9755 = vmatpush.msra.mxu0 0.0
    %9756 = vmatpush.msra.mxu0 0.0
    %9757 = vmatpush.msra.mxu0 0.0
    %9758 = vmatpush.msra.mxu0 %v9735
    %9759 = vmatpush.msra.mxu0 %v9733
    %9760 = vmatmul.f32.gmra.mxu0 %v9739
    %v9761 = vpop.f32.mrf.mxu0
    %v9762 = vadd.f32 0.0, %v9761
    %9763 = vmatmul.f32.gmra.mxu0 %v9742
    %v9764 = vpop.f32.mrf.mxu0
    %v9765 = vadd.f32 0.0, %v9764
    %9766 = vdwg.mxu0
    %9767 = vrot.lane.b32.xlu0 %v6311, 40
    %v9768 = vpop.permute.xlu0 %9767
    %9769 = vrot.lane.b32.xlu0 %v6314, 40
    %v9770 = vpop.permute.xlu0 %9769
    %v9774 = vsel %vm1085, %v9586, 0
    %v9777 = vsel %vm1085, %v9587, 0
    %9779 = vmatpush.msra.mxu0 0.0
    %9780 = vmatpush.msra.mxu0 0.0
    %9781 = vmatpush.msra.mxu0 0.0
    %9782 = vmatpush.msra.mxu0 0.0
    %9783 = vmatpush.msra.mxu0 0.0
    %9784 = vmatpush.msra.mxu0 0.0
    %9785 = vmatpush.msra.mxu0 0.0
    %9786 = vmatpush.msra.mxu0 0.0
    %9787 = vmatpush.msra.mxu0 0.0
    %9788 = vmatpush.msra.mxu0 0.0
    %9789 = vmatpush.msra.mxu0 0.0
    %9790 = vmatpush.msra.mxu0 0.0
    %9791 = vmatpush.msra.mxu0 0.0
    %9792 = vmatpush.msra.mxu0 0.0
    %9793 = vmatpush.msra.mxu0 %v9770
    %9794 = vmatpush.msra.mxu0 %v9768
    %9795 = vmatmul.f32.gmra.mxu0 %v9774
    %v9796 = vpop.f32.mrf.mxu0
    %v9797 = vadd.f32 0.0, %v9796
    %9798 = vmatmul.f32.gmra.mxu0 %v9777
    %v9799 = vpop.f32.mrf.mxu0
    %v9800 = vadd.f32 0.0, %v9799
    %9801 = vdwg.mxu0
    %9802 = vrot.lane.b32.xlu0 %v6317, 40
    %v9803 = vpop.permute.xlu0 %9802
    %9804 = vrot.lane.b32.xlu0 %v6320, 40
    %v9805 = vpop.permute.xlu0 %9804
    %v9809 = vsel %vm1085, %v9588, 0
    %v9812 = vsel %vm1085, %v9589, 0
    %9814 = vmatpush.msra.mxu0 0.0
    %9815 = vmatpush.msra.mxu0 0.0
    %9816 = vmatpush.msra.mxu0 0.0
    %9817 = vmatpush.msra.mxu0 0.0
    %9818 = vmatpush.msra.mxu0 0.0
    %9819 = vmatpush.msra.mxu0 0.0
    %9820 = vmatpush.msra.mxu0 0.0
    %9821 = vmatpush.msra.mxu0 0.0
    %9822 = vmatpush.msra.mxu0 0.0
    %9823 = vmatpush.msra.mxu0 0.0
    %9824 = vmatpush.msra.mxu0 0.0
    %9825 = vmatpush.msra.mxu0 0.0
    %9826 = vmatpush.msra.mxu0 0.0
    %9827 = vmatpush.msra.mxu0 0.0
    %9828 = vmatpush.msra.mxu0 %v9805
    %9829 = vmatpush.msra.mxu0 %v9803
    %9830 = vmatmul.f32.gmra.mxu0 %v9809
    %v9831 = vpop.f32.mrf.mxu0
    %v9832 = vadd.f32 0.0, %v9831
    %9833 = vmatmul.f32.gmra.mxu0 %v9812
    %v9834 = vpop.f32.mrf.mxu0
    %v9835 = vadd.f32 0.0, %v9834
    %9836 = vdwg.mxu0
    %9837 = vrot.lane.b32.xlu0 %v6323, 40
    %v9838 = vpop.permute.xlu0 %9837
    %9839 = vrot.lane.b32.xlu0 %v6326, 40
    %v9840 = vpop.permute.xlu0 %9839
    %v9844 = vsel %vm1085, %v9590, 0
    %v9847 = vsel %vm1085, %v9591, 0
    %9849 = vmatpush.msra.mxu0 0.0
    %9850 = vmatpush.msra.mxu0 0.0
    %9851 = vmatpush.msra.mxu0 0.0
    %9852 = vmatpush.msra.mxu0 0.0
    %9853 = vmatpush.msra.mxu0 0.0
    %9854 = vmatpush.msra.mxu0 0.0
    %9855 = vmatpush.msra.mxu0 0.0
    %9856 = vmatpush.msra.mxu0 0.0
    %9857 = vmatpush.msra.mxu0 0.0
    %9858 = vmatpush.msra.mxu0 0.0
    %9859 = vmatpush.msra.mxu0 0.0
    %9860 = vmatpush.msra.mxu0 0.0
    %9861 = vmatpush.msra.mxu0 0.0
    %9862 = vmatpush.msra.mxu0 0.0
    %9863 = vmatpush.msra.mxu0 %v9840
    %9864 = vmatpush.msra.mxu0 %v9838
    %9865 = vmatmul.f32.gmra.mxu0 %v9844
    %v9866 = vpop.f32.mrf.mxu0
    %v9867 = vadd.f32 0.0, %v9866
    %9868 = vmatmul.f32.gmra.mxu0 %v9847
    %v9869 = vpop.f32.mrf.mxu0
    %v9870 = vadd.f32 0.0, %v9869
    %9871 = vdwg.mxu0
    %v9873 = vsel %vm762, %v9622, 0
    %v9876 = vsel %vm762, %v9625, 0
    %v9879 = vsel %vm762, %v9657, 0
    %v9882 = vsel %vm762, %v9660, 0
    %v9885 = vsel %vm762, %v9692, 0
    %v9888 = vsel %vm762, %v9695, 0
    %v9891 = vsel %vm762, %v9727, 0
    %v9894 = vsel %vm762, %v9730, 0
    %v9897 = vsel %vm762, %v9762, 0
    %v9900 = vsel %vm762, %v9765, 0
    %v9903 = vsel %vm762, %v9797, 0
    %v9906 = vsel %vm762, %v9800, 0
    %v9909 = vsel %vm762, %v9832, 0
    %v9912 = vsel %vm762, %v9835, 0
    %v9915 = vsel %vm762, %v9867, 0
    %v9918 = vsel %vm762, %v9870, 0
    %9920 = vmatpush.msra.mxu0 0.0
    %9921 = vmatpush.msra.mxu0 0.0
    %9922 = vmatpush.msra.mxu0 0.0
    %9923 = vmatpush.msra.mxu0 0.0
    %9924 = vmatpush.msra.mxu0 0.0
    %9925 = vmatpush.msra.mxu0 0.0
    %9926 = vmatpush.msra.mxu0 0.0
    %9927 = vmatpush.msra.mxu0 0.0
    %9928 = vmatpush.msra.mxu0 0.0
    %9929 = vmatpush.msra.mxu0 0.0
    %9930 = vmatpush.msra.mxu0 0.0
    %9931 = vmatpush.msra.mxu0 0.0
    %9932 = vmatpush.msra.mxu0 0.0
    %9933 = vmatpush.msra.mxu0 0.0
    %9934 = vmatpush.msra.mxu0 0.0
    %9935 = vmatpush.msra.mxu0 %v6332
    %9936 = vmatmul.f32.gmra.mxu0 %v9873
    %v9937 = vpop.f32.mrf.mxu0
    %v9938 = vadd.f32 0.0, %v9937
    %9939 = vmatmul.f32.gmra.mxu0 %v9876
    %v9940 = vpop.f32.mrf.mxu0
    %v9941 = vadd.f32 0.0, %v9940
    %9942 = vmatmul.f32.gmra.mxu0 %v9879
    %v9943 = vpop.f32.mrf.mxu0
    %v9944 = vadd.f32 0.0, %v9943
    %9945 = vmatmul.f32.gmra.mxu0 %v9882
    %v9946 = vpop.f32.mrf.mxu0
    %v9947 = vadd.f32 0.0, %v9946
    %9948 = vmatmul.f32.gmra.mxu0 %v9885
    %v9949 = vpop.f32.mrf.mxu0
    %v9950 = vadd.f32 0.0, %v9949
    %9951 = vmatmul.f32.gmra.mxu0 %v9888
    %v9952 = vpop.f32.mrf.mxu0
    %v9953 = vadd.f32 0.0, %v9952
    %9954 = vmatmul.f32.gmra.mxu0 %v9891
    %v9955 = vpop.f32.mrf.mxu0
    %v9956 = vadd.f32 0.0, %v9955
    %9957 = vmatmul.f32.gmra.mxu0 %v9894
    %v9958 = vpop.f32.mrf.mxu0
    %v9959 = vadd.f32 0.0, %v9958
    %9960 = vmatmul.f32.gmra.mxu0 %v9897
    %v9961 = vpop.f32.mrf.mxu0
    %v9962 = vadd.f32 0.0, %v9961
    %9963 = vmatmul.f32.gmra.mxu0 %v9900
    %v9964 = vpop.f32.mrf.mxu0
    %v9965 = vadd.f32 0.0, %v9964
    %9966 = vmatmul.f32.gmra.mxu0 %v9903
    %v9967 = vpop.f32.mrf.mxu0
    %v9968 = vadd.f32 0.0, %v9967
    %9969 = vmatmul.f32.gmra.mxu0 %v9906
    %v9970 = vpop.f32.mrf.mxu0
    %v9971 = vadd.f32 0.0, %v9970
    %9972 = vmatmul.f32.gmra.mxu0 %v9909
    %v9973 = vpop.f32.mrf.mxu0
    %v9974 = vadd.f32 0.0, %v9973
    %9975 = vmatmul.f32.gmra.mxu0 %v9912
    %v9976 = vpop.f32.mrf.mxu0
    %v9977 = vadd.f32 0.0, %v9976
    %9978 = vmatmul.f32.gmra.mxu0 %v9915
    %v9979 = vpop.f32.mrf.mxu0
    %v9980 = vadd.f32 0.0, %v9979
    %9981 = vmatmul.f32.gmra.mxu0 %v9918
    %v9982 = vpop.f32.mrf.mxu0
    %v9983 = vadd.f32 0.0, %v9982
    %9984 = vdwg.mxu0
    %v9985 = vadd.f32 %v9056, %v9938
    %v9986 = vadd.f32 %v9057, %v9941
    %v9987 = vadd.f32 %v9058, %v9944
    %v9988 = vadd.f32 %v9059, %v9947
    %v9989 = vadd.f32 %v9060, %v9950
    %v9990 = vadd.f32 %v9061, %v9953
    %v9991 = vadd.f32 %v9062, %v9956
    %v9992 = vadd.f32 %v9063, %v9959
    %v9993 = vadd.f32 %v9064, %v9962
    %v9994 = vadd.f32 %v9065, %v9965
    %v9995 = vadd.f32 %v9066, %v9968
    %v9996 = vadd.f32 %v9067, %v9971
    %v9997 = vadd.f32 %v9068, %v9974
    %v9998 = vadd.f32 %v9069, %v9977
    %v9999 = vadd.f32 %v9070, %v9980
    %v10000 = vadd.f32 %v9071, %v9983
    %v10001 = vadd.f32 %v5806, %v9985
    %v10002 = vadd.f32 %v5807, %v9986
    %v10003 = vadd.f32 %v5808, %v9987
    %v10004 = vadd.f32 %v5809, %v9988
    %v10005 = vadd.f32 %v5810, %v9989
    %v10006 = vadd.f32 %v5811, %v9990
    %v10007 = vadd.f32 %v5812, %v9991
    %v10008 = vadd.f32 %v5813, %v9992
    %v10009 = vadd.f32 %v5814, %v9993
    %v10010 = vadd.f32 %v5815, %v9994
    %v10011 = vadd.f32 %v5816, %v9995
    %v10012 = vadd.f32 %v5817, %v9996
    %v10013 = vadd.f32 %v5818, %v9997
    %v10014 = vadd.f32 %v5819, %v9998
    %v10015 = vadd.f32 %v5820, %v9999
    %v10016 = vadd.f32 %v5821, %v10000
    %v10017 = vperm.slane %v5823, 2
    %v10018 = vadd.f32 %v10001, %v10017
    %v10019 = vadd.f32 %v10002, %v10017
    %v10020 = vadd.f32 %v10003, %v10017
    %v10021 = vadd.f32 %v10004, %v10017
    %v10022 = vadd.f32 %v10005, %v10017
    %v10023 = vadd.f32 %v10006, %v10017
    %v10024 = vadd.f32 %v10007, %v10017
    %v10025 = vadd.f32 %v10008, %v10017
    %v10026 = vadd.f32 %v10009, %v10017
    %v10027 = vadd.f32 %v10010, %v10017
    %v10028 = vadd.f32 %v10011, %v10017
    %v10029 = vadd.f32 %v10012, %v10017
    %v10030 = vadd.f32 %v10013, %v10017
    %v10031 = vadd.f32 %v10014, %v10017
    %v10032 = vadd.f32 %v10015, %v10017
    %v10033 = vadd.f32 %v10016, %v10017
    %v10034 = vsel %vm203, %v10018, 0.0
    %10035 = vadd.xlane.f32.xlu0 %v10034
    %v10036 = vpop.xlane.xlu0 %10035
    %v10037 = vsel %vm203, %v10019, 0.0
    %10038 = vadd.xlane.f32.xlu0 %v10037
    %v10039 = vpop.xlane.xlu0 %10038
    %v10040 = vsel %vm203, %v10020, 0.0
    %10041 = vadd.xlane.f32.xlu0 %v10040
    %v10042 = vpop.xlane.xlu0 %10041
    %v10043 = vsel %vm203, %v10021, 0.0
    %10044 = vadd.xlane.f32.xlu0 %v10043
    %v10045 = vpop.xlane.xlu0 %10044
    %v10046 = vsel %vm203, %v10022, 0.0
    %10047 = vadd.xlane.f32.xlu0 %v10046
    %v10048 = vpop.xlane.xlu0 %10047
    %v10049 = vsel %vm203, %v10023, 0.0
    %10050 = vadd.xlane.f32.xlu0 %v10049
    %v10051 = vpop.xlane.xlu0 %10050
    %v10052 = vsel %vm203, %v10024, 0.0
    %10053 = vadd.xlane.f32.xlu0 %v10052
    %v10054 = vpop.xlane.xlu0 %10053
    %v10055 = vsel %vm203, %v10025, 0.0
    %10056 = vadd.xlane.f32.xlu0 %v10055
    %v10057 = vpop.xlane.xlu0 %10056
    %v10058 = vsel %vm203, %v10026, 0.0
    %10059 = vadd.xlane.f32.xlu0 %v10058
    %v10060 = vpop.xlane.xlu0 %10059
    %v10061 = vsel %vm203, %v10027, 0.0
    %10062 = vadd.xlane.f32.xlu0 %v10061
    %v10063 = vpop.xlane.xlu0 %10062
    %v10064 = vsel %vm203, %v10028, 0.0
    %10065 = vadd.xlane.f32.xlu0 %v10064
    %v10066 = vpop.xlane.xlu0 %10065
    %v10067 = vsel %vm203, %v10029, 0.0
    %10068 = vadd.xlane.f32.xlu0 %v10067
    %v10069 = vpop.xlane.xlu0 %10068
    %v10070 = vsel %vm203, %v10030, 0.0
    %10071 = vadd.xlane.f32.xlu0 %v10070
    %v10072 = vpop.xlane.xlu0 %10071
    %v10073 = vsel %vm203, %v10031, 0.0
    %10074 = vadd.xlane.f32.xlu0 %v10073
    %v10075 = vpop.xlane.xlu0 %10074
    %v10076 = vsel %vm203, %v10032, 0.0
    %10077 = vadd.xlane.f32.xlu0 %v10076
    %v10078 = vpop.xlane.xlu0 %10077
    %v10079 = vsel %vm203, %v10033, 0.0
    %10080 = vadd.xlane.f32.xlu0 %v10079
    %v10081 = vpop.xlane.xlu0 %10080
    %v10082 = vmul.f32 %v10036, %v296
    %v10083 = vmul.f32 %v10039, %v296
    %v10084 = vmul.f32 %v10042, %v296
    %v10085 = vmul.f32 %v10045, %v296
    %v10086 = vmul.f32 %v10048, %v296
    %v10087 = vmul.f32 %v10051, %v296
    %v10088 = vmul.f32 %v10054, %v296
    %v10089 = vmul.f32 %v10057, %v296
    %v10090 = vmul.f32 %v10060, %v296
    %v10091 = vmul.f32 %v10063, %v296
    %v10092 = vmul.f32 %v10066, %v296
    %v10093 = vmul.f32 %v10069, %v296
    %v10094 = vmul.f32 %v10072, %v296
    %v10095 = vmul.f32 %v10075, %v296
    %v10096 = vmul.f32 %v10078, %v296
    %v10097 = vmul.f32 %v10081, %v296
    %v10098 = vsub.f32 %v10018, %v10082
    %v10099 = vsub.f32 %v10019, %v10083
    %v10100 = vsub.f32 %v10020, %v10084
    %v10101 = vsub.f32 %v10021, %v10085
    %v10102 = vsub.f32 %v10022, %v10086
    %v10103 = vsub.f32 %v10023, %v10087
    %v10104 = vsub.f32 %v10024, %v10088
    %v10105 = vsub.f32 %v10025, %v10089
    %v10106 = vsub.f32 %v10026, %v10090
    %v10107 = vsub.f32 %v10027, %v10091
    %v10108 = vsub.f32 %v10028, %v10092
    %v10109 = vsub.f32 %v10029, %v10093
    %v10110 = vsub.f32 %v10030, %v10094
    %v10111 = vsub.f32 %v10031, %v10095
    %v10112 = vsub.f32 %v10032, %v10096
    %v10113 = vsub.f32 %v10033, %v10097
    %v10114 = vmul.f32 %v10098, %v10098
    %v10115 = vmul.f32 %v10099, %v10099
    %v10116 = vmul.f32 %v10100, %v10100
    %v10117 = vmul.f32 %v10101, %v10101
    %v10118 = vmul.f32 %v10102, %v10102
    %v10119 = vmul.f32 %v10103, %v10103
    %v10120 = vmul.f32 %v10104, %v10104
    %v10121 = vmul.f32 %v10105, %v10105
    %v10122 = vmul.f32 %v10106, %v10106
    %v10123 = vmul.f32 %v10107, %v10107
    %v10124 = vmul.f32 %v10108, %v10108
    %v10125 = vmul.f32 %v10109, %v10109
    %v10126 = vmul.f32 %v10110, %v10110
    %v10127 = vmul.f32 %v10111, %v10111
    %v10128 = vmul.f32 %v10112, %v10112
    %v10129 = vmul.f32 %v10113, %v10113
    %v10130 = vsel %vm203, %v10114, 0.0
    %10131 = vadd.xlane.f32.xlu0 %v10130
    %v10132 = vpop.xlane.xlu0 %10131
    %v10133 = vsel %vm203, %v10115, 0.0
    %10134 = vadd.xlane.f32.xlu0 %v10133
    %v10135 = vpop.xlane.xlu0 %10134
    %v10136 = vsel %vm203, %v10116, 0.0
    %10137 = vadd.xlane.f32.xlu0 %v10136
    %v10138 = vpop.xlane.xlu0 %10137
    %v10139 = vsel %vm203, %v10117, 0.0
    %10140 = vadd.xlane.f32.xlu0 %v10139
    %v10141 = vpop.xlane.xlu0 %10140
    %v10142 = vsel %vm203, %v10118, 0.0
    %10143 = vadd.xlane.f32.xlu0 %v10142
    %v10144 = vpop.xlane.xlu0 %10143
    %v10145 = vsel %vm203, %v10119, 0.0
    %10146 = vadd.xlane.f32.xlu0 %v10145
    %v10147 = vpop.xlane.xlu0 %10146
    %v10148 = vsel %vm203, %v10120, 0.0
    %10149 = vadd.xlane.f32.xlu0 %v10148
    %v10150 = vpop.xlane.xlu0 %10149
    %v10151 = vsel %vm203, %v10121, 0.0
    %10152 = vadd.xlane.f32.xlu0 %v10151
    %v10153 = vpop.xlane.xlu0 %10152
    %v10154 = vsel %vm203, %v10122, 0.0
    %10155 = vadd.xlane.f32.xlu0 %v10154
    %v10156 = vpop.xlane.xlu0 %10155
    %v10157 = vsel %vm203, %v10123, 0.0
    %10158 = vadd.xlane.f32.xlu0 %v10157
    %v10159 = vpop.xlane.xlu0 %10158
    %v10160 = vsel %vm203, %v10124, 0.0
    %10161 = vadd.xlane.f32.xlu0 %v10160
    %v10162 = vpop.xlane.xlu0 %10161
    %v10163 = vsel %vm203, %v10125, 0.0
    %10164 = vadd.xlane.f32.xlu0 %v10163
    %v10165 = vpop.xlane.xlu0 %10164
    %v10166 = vsel %vm203, %v10126, 0.0
    %10167 = vadd.xlane.f32.xlu0 %v10166
    %v10168 = vpop.xlane.xlu0 %10167
    %v10169 = vsel %vm203, %v10127, 0.0
    %10170 = vadd.xlane.f32.xlu0 %v10169
    %v10171 = vpop.xlane.xlu0 %10170
    %v10172 = vsel %vm203, %v10128, 0.0
    %10173 = vadd.xlane.f32.xlu0 %v10172
    %v10174 = vpop.xlane.xlu0 %10173
    %v10175 = vsel %vm203, %v10129, 0.0
    %10176 = vadd.xlane.f32.xlu0 %v10175
    %v10177 = vpop.xlane.xlu0 %10176
    %v10178 = vmul.f32 %v10132, %v296
    %v10179 = vmul.f32 %v10135, %v296
    %v10180 = vmul.f32 %v10138, %v296
    %v10181 = vmul.f32 %v10141, %v296
    %v10182 = vmul.f32 %v10144, %v296
    %v10183 = vmul.f32 %v10147, %v296
    %v10184 = vmul.f32 %v10150, %v296
    %v10185 = vmul.f32 %v10153, %v296
    %v10186 = vmul.f32 %v10156, %v296
    %v10187 = vmul.f32 %v10159, %v296
    %v10188 = vmul.f32 %v10162, %v296
    %v10189 = vmul.f32 %v10165, %v296
    %v10190 = vmul.f32 %v10168, %v296
    %v10191 = vmul.f32 %v10171, %v296
    %v10192 = vmul.f32 %v10174, %v296
    %v10193 = vmul.f32 %v10177, %v296
    %v10194 = vadd.f32 %v10178, 1e-05
    %v10195 = vadd.f32 %v10179, 1e-05
    %v10196 = vadd.f32 %v10180, 1e-05
    %v10197 = vadd.f32 %v10181, 1e-05
    %v10198 = vadd.f32 %v10182, 1e-05
    %v10199 = vadd.f32 %v10183, 1e-05
    %v10200 = vadd.f32 %v10184, 1e-05
    %v10201 = vadd.f32 %v10185, 1e-05
    %v10202 = vadd.f32 %v10186, 1e-05
    %v10203 = vadd.f32 %v10187, 1e-05
    %v10204 = vadd.f32 %v10188, 1e-05
    %v10205 = vadd.f32 %v10189, 1e-05
    %v10206 = vadd.f32 %v10190, 1e-05
    %v10207 = vadd.f32 %v10191, 1e-05
    %v10208 = vadd.f32 %v10192, 1e-05
    %v10209 = vadd.f32 %v10193, 1e-05
    %v10210 = vrsqrt.pop %v10194
    %v10211 = vmul.f32 %v10210, %v10194
    %v10212 = vmul.f32 %v10211, %v10210
    %v10213 = vmul.f32 0.5, %v10212
    %v10214 = vsub.f32 1.5, %v10213
    %v10215 = vmul.f32 %v10210, %v10214
    %vm10216 = vweird.f32 %v10194
    %vm10217 = vweird.f32 %v10210
    %vm10218 = vmor %vm10216, %vm10217
    %v10219 = vsel %vm10218, %v10210, %v10215
    %v10220 = vrsqrt.pop %v10195
    %v10221 = vmul.f32 %v10220, %v10195
    %v10222 = vmul.f32 %v10221, %v10220
    %v10223 = vmul.f32 0.5, %v10222
    %v10224 = vsub.f32 1.5, %v10223
    %v10225 = vmul.f32 %v10220, %v10224
    %vm10226 = vweird.f32 %v10195
    %vm10227 = vweird.f32 %v10220
    %vm10228 = vmor %vm10226, %vm10227
    %v10229 = vsel %vm10228, %v10220, %v10225
    %v10230 = vrsqrt.pop %v10196
    %v10231 = vmul.f32 %v10230, %v10196
    %v10232 = vmul.f32 %v10231, %v10230
    %v10233 = vmul.f32 0.5, %v10232
    %v10234 = vsub.f32 1.5, %v10233
    %v10235 = vmul.f32 %v10230, %v10234
    %vm10236 = vweird.f32 %v10196
    %vm10237 = vweird.f32 %v10230
    %vm10238 = vmor %vm10236, %vm10237
    %v10239 = vsel %vm10238, %v10230, %v10235
    %v10240 = vrsqrt.pop %v10197
    %v10241 = vmul.f32 %v10240, %v10197
    %v10242 = vmul.f32 %v10241, %v10240
    %v10243 = vmul.f32 0.5, %v10242
    %v10244 = vsub.f32 1.5, %v10243
    %v10245 = vmul.f32 %v10240, %v10244
    %vm10246 = vweird.f32 %v10197
    %vm10247 = vweird.f32 %v10240
    %vm10248 = vmor %vm10246, %vm10247
    %v10249 = vsel %vm10248, %v10240, %v10245
    %v10250 = vrsqrt.pop %v10198
    %v10251 = vmul.f32 %v10250, %v10198
    %v10252 = vmul.f32 %v10251, %v10250
    %v10253 = vmul.f32 0.5, %v10252
    %v10254 = vsub.f32 1.5, %v10253
    %v10255 = vmul.f32 %v10250, %v10254
    %vm10256 = vweird.f32 %v10198
    %vm10257 = vweird.f32 %v10250
    %vm10258 = vmor %vm10256, %vm10257
    %v10259 = vsel %vm10258, %v10250, %v10255
    %v10260 = vrsqrt.pop %v10199
    %v10261 = vmul.f32 %v10260, %v10199
    %v10262 = vmul.f32 %v10261, %v10260
    %v10263 = vmul.f32 0.5, %v10262
    %v10264 = vsub.f32 1.5, %v10263
    %v10265 = vmul.f32 %v10260, %v10264
    %vm10266 = vweird.f32 %v10199
    %vm10267 = vweird.f32 %v10260
    %vm10268 = vmor %vm10266, %vm10267
    %v10269 = vsel %vm10268, %v10260, %v10265
    %v10270 = vrsqrt.pop %v10200
    %v10271 = vmul.f32 %v10270, %v10200
    %v10272 = vmul.f32 %v10271, %v10270
    %v10273 = vmul.f32 0.5, %v10272
    %v10274 = vsub.f32 1.5, %v10273
    %v10275 = vmul.f32 %v10270, %v10274
    %vm10276 = vweird.f32 %v10200
    %vm10277 = vweird.f32 %v10270
    %vm10278 = vmor %vm10276, %vm10277
    %v10279 = vsel %vm10278, %v10270, %v10275
    %v10280 = vrsqrt.pop %v10201
    %v10281 = vmul.f32 %v10280, %v10201
    %v10282 = vmul.f32 %v10281, %v10280
    %v10283 = vmul.f32 0.5, %v10282
    %v10284 = vsub.f32 1.5, %v10283
    %v10285 = vmul.f32 %v10280, %v10284
    %vm10286 = vweird.f32 %v10201
    %vm10287 = vweird.f32 %v10280
    %vm10288 = vmor %vm10286, %vm10287
    %v10289 = vsel %vm10288, %v10280, %v10285
    %v10290 = vrsqrt.pop %v10202
    %v10291 = vmul.f32 %v10290, %v10202
    %v10292 = vmul.f32 %v10291, %v10290
    %v10293 = vmul.f32 0.5, %v10292
    %v10294 = vsub.f32 1.5, %v10293
    %v10295 = vmul.f32 %v10290, %v10294
    %vm10296 = vweird.f32 %v10202
    %vm10297 = vweird.f32 %v10290
    %vm10298 = vmor %vm10296, %vm10297
    %v10299 = vsel %vm10298, %v10290, %v10295
    %v10300 = vrsqrt.pop %v10203
    %v10301 = vmul.f32 %v10300, %v10203
    %v10302 = vmul.f32 %v10301, %v10300
    %v10303 = vmul.f32 0.5, %v10302
    %v10304 = vsub.f32 1.5, %v10303
    %v10305 = vmul.f32 %v10300, %v10304
    %vm10306 = vweird.f32 %v10203
    %vm10307 = vweird.f32 %v10300
    %vm10308 = vmor %vm10306, %vm10307
    %v10309 = vsel %vm10308, %v10300, %v10305
    %v10310 = vrsqrt.pop %v10204
    %v10311 = vmul.f32 %v10310, %v10204
    %v10312 = vmul.f32 %v10311, %v10310
    %v10313 = vmul.f32 0.5, %v10312
    %v10314 = vsub.f32 1.5, %v10313
    %v10315 = vmul.f32 %v10310, %v10314
    %vm10316 = vweird.f32 %v10204
    %vm10317 = vweird.f32 %v10310
    %vm10318 = vmor %vm10316, %vm10317
    %v10319 = vsel %vm10318, %v10310, %v10315
    %v10320 = vrsqrt.pop %v10205
    %v10321 = vmul.f32 %v10320, %v10205
    %v10322 = vmul.f32 %v10321, %v10320
    %v10323 = vmul.f32 0.5, %v10322
    %v10324 = vsub.f32 1.5, %v10323
    %v10325 = vmul.f32 %v10320, %v10324
    %vm10326 = vweird.f32 %v10205
    %vm10327 = vweird.f32 %v10320
    %vm10328 = vmor %vm10326, %vm10327
    %v10329 = vsel %vm10328, %v10320, %v10325
    %v10330 = vrsqrt.pop %v10206
    %v10331 = vmul.f32 %v10330, %v10206
    %v10332 = vmul.f32 %v10331, %v10330
    %v10333 = vmul.f32 0.5, %v10332
    %v10334 = vsub.f32 1.5, %v10333
    %v10335 = vmul.f32 %v10330, %v10334
    %vm10336 = vweird.f32 %v10206
    %vm10337 = vweird.f32 %v10330
    %vm10338 = vmor %vm10336, %vm10337
    %v10339 = vsel %vm10338, %v10330, %v10335
    %v10340 = vrsqrt.pop %v10207
    %v10341 = vmul.f32 %v10340, %v10207
    %v10342 = vmul.f32 %v10341, %v10340
    %v10343 = vmul.f32 0.5, %v10342
    %v10344 = vsub.f32 1.5, %v10343
    %v10345 = vmul.f32 %v10340, %v10344
    %vm10346 = vweird.f32 %v10207
    %vm10347 = vweird.f32 %v10340
    %vm10348 = vmor %vm10346, %vm10347
    %v10349 = vsel %vm10348, %v10340, %v10345
    %v10350 = vrsqrt.pop %v10208
    %v10351 = vmul.f32 %v10350, %v10208
    %v10352 = vmul.f32 %v10351, %v10350
    %v10353 = vmul.f32 0.5, %v10352
    %v10354 = vsub.f32 1.5, %v10353
    %v10355 = vmul.f32 %v10350, %v10354
    %vm10356 = vweird.f32 %v10208
    %vm10357 = vweird.f32 %v10350
    %vm10358 = vmor %vm10356, %vm10357
    %v10359 = vsel %vm10358, %v10350, %v10355
    %v10360 = vrsqrt.pop %v10209
    %v10361 = vmul.f32 %v10360, %v10209
    %v10362 = vmul.f32 %v10361, %v10360
    %v10363 = vmul.f32 0.5, %v10362
    %v10364 = vsub.f32 1.5, %v10363
    %v10365 = vmul.f32 %v10360, %v10364
    %vm10366 = vweird.f32 %v10209
    %vm10367 = vweird.f32 %v10360
    %vm10368 = vmor %vm10366, %vm10367
    %v10369 = vsel %vm10368, %v10360, %v10365
    %v10370 = vmul.f32 %v10098, %v10219
    %v10371 = vmul.f32 %v10099, %v10229
    %v10372 = vmul.f32 %v10100, %v10239
    %v10373 = vmul.f32 %v10101, %v10249
    %v10374 = vmul.f32 %v10102, %v10259
    %v10375 = vmul.f32 %v10103, %v10269
    %v10376 = vmul.f32 %v10104, %v10279
    %v10377 = vmul.f32 %v10105, %v10289
    %v10378 = vmul.f32 %v10106, %v10299
    %v10379 = vmul.f32 %v10107, %v10309
    %v10380 = vmul.f32 %v10108, %v10319
    %v10381 = vmul.f32 %v10109, %v10329
    %v10382 = vmul.f32 %v10110, %v10339
    %v10383 = vmul.f32 %v10111, %v10349
    %v10384 = vmul.f32 %v10112, %v10359
    %v10385 = vmul.f32 %v10113, %v10369
    %v10386 = vperm.slane %v5823, 3
    %v10387 = vmul.f32 %v10370, %v10386
    %v10388 = vmul.f32 %v10371, %v10386
    %v10389 = vmul.f32 %v10372, %v10386
    %v10390 = vmul.f32 %v10373, %v10386
    %v10391 = vmul.f32 %v10374, %v10386
    %v10392 = vmul.f32 %v10375, %v10386
    %v10393 = vmul.f32 %v10376, %v10386
    %v10394 = vmul.f32 %v10377, %v10386
    %v10395 = vmul.f32 %v10378, %v10386
    %v10396 = vmul.f32 %v10379, %v10386
    %v10397 = vmul.f32 %v10380, %v10386
    %v10398 = vmul.f32 %v10381, %v10386
    %v10399 = vmul.f32 %v10382, %v10386
    %v10400 = vmul.f32 %v10383, %v10386
    %v10401 = vmul.f32 %v10384, %v10386
    %v10402 = vmul.f32 %v10385, %v10386
    %v10403 = vperm.slane %v5823, 4
    %v10404 = vadd.f32 %v10387, %v10403
    %v10405 = vadd.f32 %v10388, %v10403
    %v10406 = vadd.f32 %v10389, %v10403
    %v10407 = vadd.f32 %v10390, %v10403
    %v10408 = vadd.f32 %v10391, %v10403
    %v10409 = vadd.f32 %v10392, %v10403
    %v10410 = vadd.f32 %v10393, %v10403
    %v10411 = vadd.f32 %v10394, %v10403
    %v10412 = vadd.f32 %v10395, %v10403
    %v10413 = vadd.f32 %v10396, %v10403
    %v10414 = vadd.f32 %v10397, %v10403
    %v10415 = vadd.f32 %v10398, %v10403
    %v10416 = vadd.f32 %v10399, %v10403
    %v10417 = vadd.f32 %v10400, %v10403
    %v10418 = vadd.f32 %v10401, %v10403
    %v10419 = vadd.f32 %v10402, %v10403
    %s10420 = scalar_lea.vmem %s5, 40
    %v10421 = vld [vmem:[%s10420] sm:$0xff]
    %v10422 = vld [vmem:[%s10420 + $0x8] sm:$0xff]
    %v10423 = vld [vmem:[%s10420 + $0x10] sm:$0xff]
    %v10424 = vld [vmem:[%s10420 + $0x18] sm:$0xff]
    %v10425 = vld [vmem:[%s10420 + $0x20] sm:$0x1]
    %v10426 = vperm.slane %v10425, 0
    %v10428 = vsel %vm203, %v10404, 0
    %v10431 = vsel %vm203, %v10405, 0
    %v10434 = vsel %vm203, %v10406, 0
    %v10437 = vsel %vm203, %v10407, 0
    %v10440 = vsel %vm203, %v10408, 0
    %v10443 = vsel %vm203, %v10409, 0
    %v10446 = vsel %vm203, %v10410, 0
    %v10449 = vsel %vm203, %v10411, 0
    %v10452 = vsel %vm203, %v10412, 0
    %v10455 = vsel %vm203, %v10413, 0
    %v10458 = vsel %vm203, %v10414, 0
    %v10461 = vsel %vm203, %v10415, 0
    %v10464 = vsel %vm203, %v10416, 0
    %v10467 = vsel %vm203, %v10417, 0
    %v10470 = vsel %vm203, %v10418, 0
    %v10473 = vsel %vm203, %v10419, 0
    %10475 = vmatpush.msra.mxu0 0.0
    %10476 = vmatpush.msra.mxu0 0.0
    %10477 = vmatpush.msra.mxu0 0.0
    %10478 = vmatpush.msra.mxu0 0.0
    %10479 = vmatpush.msra.mxu0 0.0
    %10480 = vmatpush.msra.mxu0 0.0
    %10481 = vmatpush.msra.mxu0 0.0
    %10482 = vmatpush.msra.mxu0 0.0
    %10483 = vmatpush.msra.mxu0 0.0
    %10484 = vmatpush.msra.mxu0 0.0
    %10485 = vmatpush.msra.mxu0 0.0
    %10486 = vmatpush.msra.mxu0 0.0
    %10487 = vmatpush.msra.mxu0 %v10424
    %10488 = vmatpush.msra.mxu0 %v10423
    %10489 = vmatpush.msra.mxu0 %v10422
    %10490 = vmatpush.msra.mxu0 %v10421
    %10491 = vmatmul.f32.gmra.mxu0 %v10428
    %v10492 = vpop.f32.mrf.mxu0
    %v10493 = vadd.f32 %v10426, %v10492
    %10494 = vmatmul.f32.gmra.mxu0 %v10431
    %v10495 = vpop.f32.mrf.mxu0
    %v10496 = vadd.f32 %v10426, %v10495
    %10497 = vmatmul.f32.gmra.mxu0 %v10434
    %v10498 = vpop.f32.mrf.mxu0
    %v10499 = vadd.f32 %v10426, %v10498
    %10500 = vmatmul.f32.gmra.mxu0 %v10437
    %v10501 = vpop.f32.mrf.mxu0
    %v10502 = vadd.f32 %v10426, %v10501
    %10503 = vmatmul.f32.gmra.mxu0 %v10440
    %v10504 = vpop.f32.mrf.mxu0
    %v10505 = vadd.f32 %v10426, %v10504
    %10506 = vmatmul.f32.gmra.mxu0 %v10443
    %v10507 = vpop.f32.mrf.mxu0
    %v10508 = vadd.f32 %v10426, %v10507
    %10509 = vmatmul.f32.gmra.mxu0 %v10446
    %v10510 = vpop.f32.mrf.mxu0
    %v10511 = vadd.f32 %v10426, %v10510
    %10512 = vmatmul.f32.gmra.mxu0 %v10449
    %v10513 = vpop.f32.mrf.mxu0
    %v10514 = vadd.f32 %v10426, %v10513
    %10515 = vmatmul.f32.gmra.mxu0 %v10452
    %v10516 = vpop.f32.mrf.mxu0
    %v10517 = vadd.f32 %v10426, %v10516
    %10518 = vmatmul.f32.gmra.mxu0 %v10455
    %v10519 = vpop.f32.mrf.mxu0
    %v10520 = vadd.f32 %v10426, %v10519
    %10521 = vmatmul.f32.gmra.mxu0 %v10458
    %v10522 = vpop.f32.mrf.mxu0
    %v10523 = vadd.f32 %v10426, %v10522
    %10524 = vmatmul.f32.gmra.mxu0 %v10461
    %v10525 = vpop.f32.mrf.mxu0
    %v10526 = vadd.f32 %v10426, %v10525
    %10527 = vmatmul.f32.gmra.mxu0 %v10464
    %v10528 = vpop.f32.mrf.mxu0
    %v10529 = vadd.f32 %v10426, %v10528
    %10530 = vmatmul.f32.gmra.mxu0 %v10467
    %v10531 = vpop.f32.mrf.mxu0
    %v10532 = vadd.f32 %v10426, %v10531
    %10533 = vmatmul.f32.gmra.mxu0 %v10470
    %v10534 = vpop.f32.mrf.mxu0
    %v10535 = vadd.f32 %v10426, %v10534
    %10536 = vmatmul.f32.gmra.mxu0 %v10473
    %v10537 = vpop.f32.mrf.mxu0
    %v10538 = vadd.f32 %v10426, %v10537
    %10539 = vdwg.mxu0
    %v10540 = vmul.f32 %v10493, 0.5
    %v10541 = vmul.f32 %v10496, 0.5
    %v10542 = vmul.f32 %v10499, 0.5
    %v10543 = vmul.f32 %v10502, 0.5
    %v10544 = vmul.f32 %v10505, 0.5
    %v10545 = vmul.f32 %v10508, 0.5
    %v10546 = vmul.f32 %v10511, 0.5
    %v10547 = vmul.f32 %v10514, 0.5
    %v10548 = vmul.f32 %v10517, 0.5
    %v10549 = vmul.f32 %v10520, 0.5
    %v10550 = vmul.f32 %v10523, 0.5
    %v10551 = vmul.f32 %v10526, 0.5
    %v10552 = vmul.f32 %v10529, 0.5
    %v10553 = vmul.f32 %v10532, 0.5
    %v10554 = vmul.f32 %v10535, 0.5
    %v10555 = vmul.f32 %v10538, 0.5
    %v10556 = vmul.f32 %v10493, 0.70710677
    %v10557 = vmul.f32 %v10496, 0.70710677
    %v10558 = vmul.f32 %v10499, 0.70710677
    %v10559 = vmul.f32 %v10502, 0.70710677
    %v10560 = vmul.f32 %v10505, 0.70710677
    %v10561 = vmul.f32 %v10508, 0.70710677
    %v10562 = vmul.f32 %v10511, 0.70710677
    %v10563 = vmul.f32 %v10514, 0.70710677
    %v10564 = vmul.f32 %v10517, 0.70710677
    %v10565 = vmul.f32 %v10520, 0.70710677
    %v10566 = vmul.f32 %v10523, 0.70710677
    %v10567 = vmul.f32 %v10526, 0.70710677
    %v10568 = vmul.f32 %v10529, 0.70710677
    %v10569 = vmul.f32 %v10532, 0.70710677
    %v10570 = vmul.f32 %v10535, 0.70710677
    %v10571 = vmul.f32 %v10538, 0.70710677
    %v10572 = vmul.f32 %v10556, %v10556
    %v10573 = vmin.f32 16.0, %v10572
    %v10574 = vmul.f32 %v10573, 2.1237322e-06
    %v10575 = vadd.f32 %v10574, 0.00028619796
    %v10576 = vmul.f32 %v10573, %v10575
    %v10577 = vadd.f32 %v10576, 0.0036580483
    %v10578 = vmul.f32 %v10573, %v10577
    %v10579 = vadd.f32 %v10578, 0.05243302
    %v10580 = vmul.f32 %v10573, %v10579
    %v10581 = vadd.f32 %v10580, 0.18741608
    %v10582 = vmul.f32 %v10573, %v10581
    %v10583 = vadd.f32 %v10582, 1.1283791
    %v10584 = vmul.f32 %v10556, %v10583
    %v10585 = vmul.f32 %v10573, 3.8918573e-05
    %v10586 = vadd.f32 %v10585, 0.001143296
    %v10587 = vmul.f32 %v10573, %v10586
    %v10588 = vadd.f32 %v10587, 0.014752088
    %v10589 = vmul.f32 %v10573, %v10588
    %v10590 = vadd.f32 %v10589, 0.112945676
    %v10591 = vmul.f32 %v10573, %v10590
    %v10592 = vadd.f32 %v10591, 0.4994258
    %v10593 = vmul.f32 %v10573, %v10592
    %v10594 = vadd.f32 %v10593, 1.0
    %v10595 = vrcp.pop %v10594
    %v10596 = vmul.f32 %v10594, %v10595
    %v10597 = vsub.f32 1.0, %v10596
    %v10598 = vmul.f32 %v10595, %v10597
    %v10599 = vadd.f32 %v10595, %v10598
    %vm10600 = vweird.f32 %v10594
    %vm10601 = vweird.f32 %v10595
    %vm10602 = vmor %vm10600, %vm10601
    %v10603 = vsel %vm10602, %v10595, %v10599
    %v10604 = vand.u32 2147483647, %v10594
    %vm10605 = vcmp.eq.f32.partialorder %v10604, 8.507059e+37
    %v10606 = vand.u32 %v10594, 2147483648
    %v10607 = vor.u32 1.1754944e-38, %v10606
    %v10608 = vsel %vm10605, %v10607, %v10603
    %v10609 = vmul.f32 %v10584, %v10608
    %v10610 = vmin.f32 %v10609, 1.0
    %v10611 = vmax.f32 %v10610, -1.0
    %v10612 = vmul.f32 %v10557, %v10557
    %v10613 = vmin.f32 16.0, %v10612
    %v10614 = vmul.f32 %v10613, 2.1237322e-06
    %v10615 = vadd.f32 %v10614, 0.00028619796
    %v10616 = vmul.f32 %v10613, %v10615
    %v10617 = vadd.f32 %v10616, 0.0036580483
    %v10618 = vmul.f32 %v10613, %v10617
    %v10619 = vadd.f32 %v10618, 0.05243302
    %v10620 = vmul.f32 %v10613, %v10619
    %v10621 = vadd.f32 %v10620, 0.18741608
    %v10622 = vmul.f32 %v10613, %v10621
    %v10623 = vadd.f32 %v10622, 1.1283791
    %v10624 = vmul.f32 %v10557, %v10623
    %v10625 = vmul.f32 %v10613, 3.8918573e-05
    %v10626 = vadd.f32 %v10625, 0.001143296
    %v10627 = vmul.f32 %v10613, %v10626
    %v10628 = vadd.f32 %v10627, 0.014752088
    %v10629 = vmul.f32 %v10613, %v10628
    %v10630 = vadd.f32 %v10629, 0.112945676
    %v10631 = vmul.f32 %v10613, %v10630
    %v10632 = vadd.f32 %v10631, 0.4994258
    %v10633 = vmul.f32 %v10613, %v10632
    %v10634 = vadd.f32 %v10633, 1.0
    %v10635 = vrcp.pop %v10634
    %v10636 = vmul.f32 %v10634, %v10635
    %v10637 = vsub.f32 1.0, %v10636
    %v10638 = vmul.f32 %v10635, %v10637
    %v10639 = vadd.f32 %v10635, %v10638
    %vm10640 = vweird.f32 %v10634
    %vm10641 = vweird.f32 %v10635
    %vm10642 = vmor %vm10640, %vm10641
    %v10643 = vsel %vm10642, %v10635, %v10639
    %v10644 = vand.u32 2147483647, %v10634
    %vm10645 = vcmp.eq.f32.partialorder %v10644, 8.507059e+37
    %v10646 = vand.u32 %v10634, 2147483648
    %v10647 = vor.u32 1.1754944e-38, %v10646
    %v10648 = vsel %vm10645, %v10647, %v10643
    %v10649 = vmul.f32 %v10624, %v10648
    %v10650 = vmin.f32 %v10649, 1.0
    %v10651 = vmax.f32 %v10650, -1.0
    %v10652 = vmul.f32 %v10558, %v10558
    %v10653 = vmin.f32 16.0, %v10652
    %v10654 = vmul.f32 %v10653, 2.1237322e-06
    %v10655 = vadd.f32 %v10654, 0.00028619796
    %v10656 = vmul.f32 %v10653, %v10655
    %v10657 = vadd.f32 %v10656, 0.0036580483
    %v10658 = vmul.f32 %v10653, %v10657
    %v10659 = vadd.f32 %v10658, 0.05243302
    %v10660 = vmul.f32 %v10653, %v10659
    %v10661 = vadd.f32 %v10660, 0.18741608
    %v10662 = vmul.f32 %v10653, %v10661
    %v10663 = vadd.f32 %v10662, 1.1283791
    %v10664 = vmul.f32 %v10558, %v10663
    %v10665 = vmul.f32 %v10653, 3.8918573e-05
    %v10666 = vadd.f32 %v10665, 0.001143296
    %v10667 = vmul.f32 %v10653, %v10666
    %v10668 = vadd.f32 %v10667, 0.014752088
    %v10669 = vmul.f32 %v10653, %v10668
    %v10670 = vadd.f32 %v10669, 0.112945676
    %v10671 = vmul.f32 %v10653, %v10670
    %v10672 = vadd.f32 %v10671, 0.4994258
    %v10673 = vmul.f32 %v10653, %v10672
    %v10674 = vadd.f32 %v10673, 1.0
    %v10675 = vrcp.pop %v10674
    %v10676 = vmul.f32 %v10674, %v10675
    %v10677 = vsub.f32 1.0, %v10676
    %v10678 = vmul.f32 %v10675, %v10677
    %v10679 = vadd.f32 %v10675, %v10678
    %vm10680 = vweird.f32 %v10674
    %vm10681 = vweird.f32 %v10675
    %vm10682 = vmor %vm10680, %vm10681
    %v10683 = vsel %vm10682, %v10675, %v10679
    %v10684 = vand.u32 2147483647, %v10674
    %vm10685 = vcmp.eq.f32.partialorder %v10684, 8.507059e+37
    %v10686 = vand.u32 %v10674, 2147483648
    %v10687 = vor.u32 1.1754944e-38, %v10686
    %v10688 = vsel %vm10685, %v10687, %v10683
    %v10689 = vmul.f32 %v10664, %v10688
    %v10690 = vmin.f32 %v10689, 1.0
    %v10691 = vmax.f32 %v10690, -1.0
    %v10692 = vmul.f32 %v10559, %v10559
    %v10693 = vmin.f32 16.0, %v10692
    %v10694 = vmul.f32 %v10693, 2.1237322e-06
    %v10695 = vadd.f32 %v10694, 0.00028619796
    %v10696 = vmul.f32 %v10693, %v10695
    %v10697 = vadd.f32 %v10696, 0.0036580483
    %v10698 = vmul.f32 %v10693, %v10697
    %v10699 = vadd.f32 %v10698, 0.05243302
    %v10700 = vmul.f32 %v10693, %v10699
    %v10701 = vadd.f32 %v10700, 0.18741608
    %v10702 = vmul.f32 %v10693, %v10701
    %v10703 = vadd.f32 %v10702, 1.1283791
    %v10704 = vmul.f32 %v10559, %v10703
    %v10705 = vmul.f32 %v10693, 3.8918573e-05
    %v10706 = vadd.f32 %v10705, 0.001143296
    %v10707 = vmul.f32 %v10693, %v10706
    %v10708 = vadd.f32 %v10707, 0.014752088
    %v10709 = vmul.f32 %v10693, %v10708
    %v10710 = vadd.f32 %v10709, 0.112945676
    %v10711 = vmul.f32 %v10693, %v10710
    %v10712 = vadd.f32 %v10711, 0.4994258
    %v10713 = vmul.f32 %v10693, %v10712
    %v10714 = vadd.f32 %v10713, 1.0
    %v10715 = vrcp.pop %v10714
    %v10716 = vmul.f32 %v10714, %v10715
    %v10717 = vsub.f32 1.0, %v10716
    %v10718 = vmul.f32 %v10715, %v10717
    %v10719 = vadd.f32 %v10715, %v10718
    %vm10720 = vweird.f32 %v10714
    %vm10721 = vweird.f32 %v10715
    %vm10722 = vmor %vm10720, %vm10721
    %v10723 = vsel %vm10722, %v10715, %v10719
    %v10724 = vand.u32 2147483647, %v10714
    %vm10725 = vcmp.eq.f32.partialorder %v10724, 8.507059e+37
    %v10726 = vand.u32 %v10714, 2147483648
    %v10727 = vor.u32 1.1754944e-38, %v10726
    %v10728 = vsel %vm10725, %v10727, %v10723
    %v10729 = vmul.f32 %v10704, %v10728
    %v10730 = vmin.f32 %v10729, 1.0
    %v10731 = vmax.f32 %v10730, -1.0
    %v10732 = vmul.f32 %v10560, %v10560
    %v10733 = vmin.f32 16.0, %v10732
    %v10734 = vmul.f32 %v10733, 2.1237322e-06
    %v10735 = vadd.f32 %v10734, 0.00028619796
    %v10736 = vmul.f32 %v10733, %v10735
    %v10737 = vadd.f32 %v10736, 0.0036580483
    %v10738 = vmul.f32 %v10733, %v10737
    %v10739 = vadd.f32 %v10738, 0.05243302
    %v10740 = vmul.f32 %v10733, %v10739
    %v10741 = vadd.f32 %v10740, 0.18741608
    %v10742 = vmul.f32 %v10733, %v10741
    %v10743 = vadd.f32 %v10742, 1.1283791
    %v10744 = vmul.f32 %v10560, %v10743
    %v10745 = vmul.f32 %v10733, 3.8918573e-05
    %v10746 = vadd.f32 %v10745, 0.001143296
    %v10747 = vmul.f32 %v10733, %v10746
    %v10748 = vadd.f32 %v10747, 0.014752088
    %v10749 = vmul.f32 %v10733, %v10748
    %v10750 = vadd.f32 %v10749, 0.112945676
    %v10751 = vmul.f32 %v10733, %v10750
    %v10752 = vadd.f32 %v10751, 0.4994258
    %v10753 = vmul.f32 %v10733, %v10752
    %v10754 = vadd.f32 %v10753, 1.0
    %v10755 = vrcp.pop %v10754
    %v10756 = vmul.f32 %v10754, %v10755
    %v10757 = vsub.f32 1.0, %v10756
    %v10758 = vmul.f32 %v10755, %v10757
    %v10759 = vadd.f32 %v10755, %v10758
    %vm10760 = vweird.f32 %v10754
    %vm10761 = vweird.f32 %v10755
    %vm10762 = vmor %vm10760, %vm10761
    %v10763 = vsel %vm10762, %v10755, %v10759
    %v10764 = vand.u32 2147483647, %v10754
    %vm10765 = vcmp.eq.f32.partialorder %v10764, 8.507059e+37
    %v10766 = vand.u32 %v10754, 2147483648
    %v10767 = vor.u32 1.1754944e-38, %v10766
    %v10768 = vsel %vm10765, %v10767, %v10763
    %v10769 = vmul.f32 %v10744, %v10768
    %v10770 = vmin.f32 %v10769, 1.0
    %v10771 = vmax.f32 %v10770, -1.0
    %v10772 = vmul.f32 %v10561, %v10561
    %v10773 = vmin.f32 16.0, %v10772
    %v10774 = vmul.f32 %v10773, 2.1237322e-06
    %v10775 = vadd.f32 %v10774, 0.00028619796
    %v10776 = vmul.f32 %v10773, %v10775
    %v10777 = vadd.f32 %v10776, 0.0036580483
    %v10778 = vmul.f32 %v10773, %v10777
    %v10779 = vadd.f32 %v10778, 0.05243302
    %v10780 = vmul.f32 %v10773, %v10779
    %v10781 = vadd.f32 %v10780, 0.18741608
    %v10782 = vmul.f32 %v10773, %v10781
    %v10783 = vadd.f32 %v10782, 1.1283791
    %v10784 = vmul.f32 %v10561, %v10783
    %v10785 = vmul.f32 %v10773, 3.8918573e-05
    %v10786 = vadd.f32 %v10785, 0.001143296
    %v10787 = vmul.f32 %v10773, %v10786
    %v10788 = vadd.f32 %v10787, 0.014752088
    %v10789 = vmul.f32 %v10773, %v10788
    %v10790 = vadd.f32 %v10789, 0.112945676
    %v10791 = vmul.f32 %v10773, %v10790
    %v10792 = vadd.f32 %v10791, 0.4994258
    %v10793 = vmul.f32 %v10773, %v10792
    %v10794 = vadd.f32 %v10793, 1.0
    %v10795 = vrcp.pop %v10794
    %v10796 = vmul.f32 %v10794, %v10795
    %v10797 = vsub.f32 1.0, %v10796
    %v10798 = vmul.f32 %v10795, %v10797
    %v10799 = vadd.f32 %v10795, %v10798
    %vm10800 = vweird.f32 %v10794
    %vm10801 = vweird.f32 %v10795
    %vm10802 = vmor %vm10800, %vm10801
    %v10803 = vsel %vm10802, %v10795, %v10799
    %v10804 = vand.u32 2147483647, %v10794
    %vm10805 = vcmp.eq.f32.partialorder %v10804, 8.507059e+37
    %v10806 = vand.u32 %v10794, 2147483648
    %v10807 = vor.u32 1.1754944e-38, %v10806
    %v10808 = vsel %vm10805, %v10807, %v10803
    %v10809 = vmul.f32 %v10784, %v10808
    %v10810 = vmin.f32 %v10809, 1.0
    %v10811 = vmax.f32 %v10810, -1.0
    %v10812 = vmul.f32 %v10562, %v10562
    %v10813 = vmin.f32 16.0, %v10812
    %v10814 = vmul.f32 %v10813, 2.1237322e-06
    %v10815 = vadd.f32 %v10814, 0.00028619796
    %v10816 = vmul.f32 %v10813, %v10815
    %v10817 = vadd.f32 %v10816, 0.0036580483
    %v10818 = vmul.f32 %v10813, %v10817
    %v10819 = vadd.f32 %v10818, 0.05243302
    %v10820 = vmul.f32 %v10813, %v10819
    %v10821 = vadd.f32 %v10820, 0.18741608
    %v10822 = vmul.f32 %v10813, %v10821
    %v10823 = vadd.f32 %v10822, 1.1283791
    %v10824 = vmul.f32 %v10562, %v10823
    %v10825 = vmul.f32 %v10813, 3.8918573e-05
    %v10826 = vadd.f32 %v10825, 0.001143296
    %v10827 = vmul.f32 %v10813, %v10826
    %v10828 = vadd.f32 %v10827, 0.014752088
    %v10829 = vmul.f32 %v10813, %v10828
    %v10830 = vadd.f32 %v10829, 0.112945676
    %v10831 = vmul.f32 %v10813, %v10830
    %v10832 = vadd.f32 %v10831, 0.4994258
    %v10833 = vmul.f32 %v10813, %v10832
    %v10834 = vadd.f32 %v10833, 1.0
    %v10835 = vrcp.pop %v10834
    %v10836 = vmul.f32 %v10834, %v10835
    %v10837 = vsub.f32 1.0, %v10836
    %v10838 = vmul.f32 %v10835, %v10837
    %v10839 = vadd.f32 %v10835, %v10838
    %vm10840 = vweird.f32 %v10834
    %vm10841 = vweird.f32 %v10835
    %vm10842 = vmor %vm10840, %vm10841
    %v10843 = vsel %vm10842, %v10835, %v10839
    %v10844 = vand.u32 2147483647, %v10834
    %vm10845 = vcmp.eq.f32.partialorder %v10844, 8.507059e+37
    %v10846 = vand.u32 %v10834, 2147483648
    %v10847 = vor.u32 1.1754944e-38, %v10846
    %v10848 = vsel %vm10845, %v10847, %v10843
    %v10849 = vmul.f32 %v10824, %v10848
    %v10850 = vmin.f32 %v10849, 1.0
    %v10851 = vmax.f32 %v10850, -1.0
    %v10852 = vmul.f32 %v10563, %v10563
    %v10853 = vmin.f32 16.0, %v10852
    %v10854 = vmul.f32 %v10853, 2.1237322e-06
    %v10855 = vadd.f32 %v10854, 0.00028619796
    %v10856 = vmul.f32 %v10853, %v10855
    %v10857 = vadd.f32 %v10856, 0.0036580483
    %v10858 = vmul.f32 %v10853, %v10857
    %v10859 = vadd.f32 %v10858, 0.05243302
    %v10860 = vmul.f32 %v10853, %v10859
    %v10861 = vadd.f32 %v10860, 0.18741608
    %v10862 = vmul.f32 %v10853, %v10861
    %v10863 = vadd.f32 %v10862, 1.1283791
    %v10864 = vmul.f32 %v10563, %v10863
    %v10865 = vmul.f32 %v10853, 3.8918573e-05
    %v10866 = vadd.f32 %v10865, 0.001143296
    %v10867 = vmul.f32 %v10853, %v10866
    %v10868 = vadd.f32 %v10867, 0.014752088
    %v10869 = vmul.f32 %v10853, %v10868
    %v10870 = vadd.f32 %v10869, 0.112945676
    %v10871 = vmul.f32 %v10853, %v10870
    %v10872 = vadd.f32 %v10871, 0.4994258
    %v10873 = vmul.f32 %v10853, %v10872
    %v10874 = vadd.f32 %v10873, 1.0
    %v10875 = vrcp.pop %v10874
    %v10876 = vmul.f32 %v10874, %v10875
    %v10877 = vsub.f32 1.0, %v10876
    %v10878 = vmul.f32 %v10875, %v10877
    %v10879 = vadd.f32 %v10875, %v10878
    %vm10880 = vweird.f32 %v10874
    %vm10881 = vweird.f32 %v10875
    %vm10882 = vmor %vm10880, %vm10881
    %v10883 = vsel %vm10882, %v10875, %v10879
    %v10884 = vand.u32 2147483647, %v10874
    %vm10885 = vcmp.eq.f32.partialorder %v10884, 8.507059e+37
    %v10886 = vand.u32 %v10874, 2147483648
    %v10887 = vor.u32 1.1754944e-38, %v10886
    %v10888 = vsel %vm10885, %v10887, %v10883
    %v10889 = vmul.f32 %v10864, %v10888
    %v10890 = vmin.f32 %v10889, 1.0
    %v10891 = vmax.f32 %v10890, -1.0
    %v10892 = vmul.f32 %v10564, %v10564
    %v10893 = vmin.f32 16.0, %v10892
    %v10894 = vmul.f32 %v10893, 2.1237322e-06
    %v10895 = vadd.f32 %v10894, 0.00028619796
    %v10896 = vmul.f32 %v10893, %v10895
    %v10897 = vadd.f32 %v10896, 0.0036580483
    %v10898 = vmul.f32 %v10893, %v10897
    %v10899 = vadd.f32 %v10898, 0.05243302
    %v10900 = vmul.f32 %v10893, %v10899
    %v10901 = vadd.f32 %v10900, 0.18741608
    %v10902 = vmul.f32 %v10893, %v10901
    %v10903 = vadd.f32 %v10902, 1.1283791
    %v10904 = vmul.f32 %v10564, %v10903
    %v10905 = vmul.f32 %v10893, 3.8918573e-05
    %v10906 = vadd.f32 %v10905, 0.001143296
    %v10907 = vmul.f32 %v10893, %v10906
    %v10908 = vadd.f32 %v10907, 0.014752088
    %v10909 = vmul.f32 %v10893, %v10908
    %v10910 = vadd.f32 %v10909, 0.112945676
    %v10911 = vmul.f32 %v10893, %v10910
    %v10912 = vadd.f32 %v10911, 0.4994258
    %v10913 = vmul.f32 %v10893, %v10912
    %v10914 = vadd.f32 %v10913, 1.0
    %v10915 = vrcp.pop %v10914
    %v10916 = vmul.f32 %v10914, %v10915
    %v10917 = vsub.f32 1.0, %v10916
    %v10918 = vmul.f32 %v10915, %v10917
    %v10919 = vadd.f32 %v10915, %v10918
    %vm10920 = vweird.f32 %v10914
    %vm10921 = vweird.f32 %v10915
    %vm10922 = vmor %vm10920, %vm10921
    %v10923 = vsel %vm10922, %v10915, %v10919
    %v10924 = vand.u32 2147483647, %v10914
    %vm10925 = vcmp.eq.f32.partialorder %v10924, 8.507059e+37
    %v10926 = vand.u32 %v10914, 2147483648
    %v10927 = vor.u32 1.1754944e-38, %v10926
    %v10928 = vsel %vm10925, %v10927, %v10923
    %v10929 = vmul.f32 %v10904, %v10928
    %v10930 = vmin.f32 %v10929, 1.0
    %v10931 = vmax.f32 %v10930, -1.0
    %v10932 = vmul.f32 %v10565, %v10565
    %v10933 = vmin.f32 16.0, %v10932
    %v10934 = vmul.f32 %v10933, 2.1237322e-06
    %v10935 = vadd.f32 %v10934, 0.00028619796
    %v10936 = vmul.f32 %v10933, %v10935
    %v10937 = vadd.f32 %v10936, 0.0036580483
    %v10938 = vmul.f32 %v10933, %v10937
    %v10939 = vadd.f32 %v10938, 0.05243302
    %v10940 = vmul.f32 %v10933, %v10939
    %v10941 = vadd.f32 %v10940, 0.18741608
    %v10942 = vmul.f32 %v10933, %v10941
    %v10943 = vadd.f32 %v10942, 1.1283791
    %v10944 = vmul.f32 %v10565, %v10943
    %v10945 = vmul.f32 %v10933, 3.8918573e-05
    %v10946 = vadd.f32 %v10945, 0.001143296
    %v10947 = vmul.f32 %v10933, %v10946
    %v10948 = vadd.f32 %v10947, 0.014752088
    %v10949 = vmul.f32 %v10933, %v10948
    %v10950 = vadd.f32 %v10949, 0.112945676
    %v10951 = vmul.f32 %v10933, %v10950
    %v10952 = vadd.f32 %v10951, 0.4994258
    %v10953 = vmul.f32 %v10933, %v10952
    %v10954 = vadd.f32 %v10953, 1.0
    %v10955 = vrcp.pop %v10954
    %v10956 = vmul.f32 %v10954, %v10955
    %v10957 = vsub.f32 1.0, %v10956
    %v10958 = vmul.f32 %v10955, %v10957
    %v10959 = vadd.f32 %v10955, %v10958
    %vm10960 = vweird.f32 %v10954
    %vm10961 = vweird.f32 %v10955
    %vm10962 = vmor %vm10960, %vm10961
    %v10963 = vsel %vm10962, %v10955, %v10959
    %v10964 = vand.u32 2147483647, %v10954
    %vm10965 = vcmp.eq.f32.partialorder %v10964, 8.507059e+37
    %v10966 = vand.u32 %v10954, 2147483648
    %v10967 = vor.u32 1.1754944e-38, %v10966
    %v10968 = vsel %vm10965, %v10967, %v10963
    %v10969 = vmul.f32 %v10944, %v10968
    %v10970 = vmin.f32 %v10969, 1.0
    %v10971 = vmax.f32 %v10970, -1.0
    %v10972 = vmul.f32 %v10566, %v10566
    %v10973 = vmin.f32 16.0, %v10972
    %v10974 = vmul.f32 %v10973, 2.1237322e-06
    %v10975 = vadd.f32 %v10974, 0.00028619796
    %v10976 = vmul.f32 %v10973, %v10975
    %v10977 = vadd.f32 %v10976, 0.0036580483
    %v10978 = vmul.f32 %v10973, %v10977
    %v10979 = vadd.f32 %v10978, 0.05243302
    %v10980 = vmul.f32 %v10973, %v10979
    %v10981 = vadd.f32 %v10980, 0.18741608
    %v10982 = vmul.f32 %v10973, %v10981
    %v10983 = vadd.f32 %v10982, 1.1283791
    %v10984 = vmul.f32 %v10566, %v10983
    %v10985 = vmul.f32 %v10973, 3.8918573e-05
    %v10986 = vadd.f32 %v10985, 0.001143296
    %v10987 = vmul.f32 %v10973, %v10986
    %v10988 = vadd.f32 %v10987, 0.014752088
    %v10989 = vmul.f32 %v10973, %v10988
    %v10990 = vadd.f32 %v10989, 0.112945676
    %v10991 = vmul.f32 %v10973, %v10990
    %v10992 = vadd.f32 %v10991, 0.4994258
    %v10993 = vmul.f32 %v10973, %v10992
    %v10994 = vadd.f32 %v10993, 1.0
    %v10995 = vrcp.pop %v10994
    %v10996 = vmul.f32 %v10994, %v10995
    %v10997 = vsub.f32 1.0, %v10996
    %v10998 = vmul.f32 %v10995, %v10997
    %v10999 = vadd.f32 %v10995, %v10998
    %vm11000 = vweird.f32 %v10994
    %vm11001 = vweird.f32 %v10995
    %vm11002 = vmor %vm11000, %vm11001
    %v11003 = vsel %vm11002, %v10995, %v10999
    %v11004 = vand.u32 2147483647, %v10994
    %vm11005 = vcmp.eq.f32.partialorder %v11004, 8.507059e+37
    %v11006 = vand.u32 %v10994, 2147483648
    %v11007 = vor.u32 1.1754944e-38, %v11006
    %v11008 = vsel %vm11005, %v11007, %v11003
    %v11009 = vmul.f32 %v10984, %v11008
    %v11010 = vmin.f32 %v11009, 1.0
    %v11011 = vmax.f32 %v11010, -1.0
    %v11012 = vmul.f32 %v10567, %v10567
    %v11013 = vmin.f32 16.0, %v11012
    %v11014 = vmul.f32 %v11013, 2.1237322e-06
    %v11015 = vadd.f32 %v11014, 0.00028619796
    %v11016 = vmul.f32 %v11013, %v11015
    %v11017 = vadd.f32 %v11016, 0.0036580483
    %v11018 = vmul.f32 %v11013, %v11017
    %v11019 = vadd.f32 %v11018, 0.05243302
    %v11020 = vmul.f32 %v11013, %v11019
    %v11021 = vadd.f32 %v11020, 0.18741608
    %v11022 = vmul.f32 %v11013, %v11021
    %v11023 = vadd.f32 %v11022, 1.1283791
    %v11024 = vmul.f32 %v10567, %v11023
    %v11025 = vmul.f32 %v11013, 3.8918573e-05
    %v11026 = vadd.f32 %v11025, 0.001143296
    %v11027 = vmul.f32 %v11013, %v11026
    %v11028 = vadd.f32 %v11027, 0.014752088
    %v11029 = vmul.f32 %v11013, %v11028
    %v11030 = vadd.f32 %v11029, 0.112945676
    %v11031 = vmul.f32 %v11013, %v11030
    %v11032 = vadd.f32 %v11031, 0.4994258
    %v11033 = vmul.f32 %v11013, %v11032
    %v11034 = vadd.f32 %v11033, 1.0
    %v11035 = vrcp.pop %v11034
    %v11036 = vmul.f32 %v11034, %v11035
    %v11037 = vsub.f32 1.0, %v11036
    %v11038 = vmul.f32 %v11035, %v11037
    %v11039 = vadd.f32 %v11035, %v11038
    %vm11040 = vweird.f32 %v11034
    %vm11041 = vweird.f32 %v11035
    %vm11042 = vmor %vm11040, %vm11041
    %v11043 = vsel %vm11042, %v11035, %v11039
    %v11044 = vand.u32 2147483647, %v11034
    %vm11045 = vcmp.eq.f32.partialorder %v11044, 8.507059e+37
    %v11046 = vand.u32 %v11034, 2147483648
    %v11047 = vor.u32 1.1754944e-38, %v11046
    %v11048 = vsel %vm11045, %v11047, %v11043
    %v11049 = vmul.f32 %v11024, %v11048
    %v11050 = vmin.f32 %v11049, 1.0
    %v11051 = vmax.f32 %v11050, -1.0
    %v11052 = vmul.f32 %v10568, %v10568
    %v11053 = vmin.f32 16.0, %v11052
    %v11054 = vmul.f32 %v11053, 2.1237322e-06
    %v11055 = vadd.f32 %v11054, 0.00028619796
    %v11056 = vmul.f32 %v11053, %v11055
    %v11057 = vadd.f32 %v11056, 0.0036580483
    %v11058 = vmul.f32 %v11053, %v11057
    %v11059 = vadd.f32 %v11058, 0.05243302
    %v11060 = vmul.f32 %v11053, %v11059
    %v11061 = vadd.f32 %v11060, 0.18741608
    %v11062 = vmul.f32 %v11053, %v11061
    %v11063 = vadd.f32 %v11062, 1.1283791
    %v11064 = vmul.f32 %v10568, %v11063
    %v11065 = vmul.f32 %v11053, 3.8918573e-05
    %v11066 = vadd.f32 %v11065, 0.001143296
    %v11067 = vmul.f32 %v11053, %v11066
    %v11068 = vadd.f32 %v11067, 0.014752088
    %v11069 = vmul.f32 %v11053, %v11068
    %v11070 = vadd.f32 %v11069, 0.112945676
    %v11071 = vmul.f32 %v11053, %v11070
    %v11072 = vadd.f32 %v11071, 0.4994258
    %v11073 = vmul.f32 %v11053, %v11072
    %v11074 = vadd.f32 %v11073, 1.0
    %v11075 = vrcp.pop %v11074
    %v11076 = vmul.f32 %v11074, %v11075
    %v11077 = vsub.f32 1.0, %v11076
    %v11078 = vmul.f32 %v11075, %v11077
    %v11079 = vadd.f32 %v11075, %v11078
    %vm11080 = vweird.f32 %v11074
    %vm11081 = vweird.f32 %v11075
    %vm11082 = vmor %vm11080, %vm11081
    %v11083 = vsel %vm11082, %v11075, %v11079
    %v11084 = vand.u32 2147483647, %v11074
    %vm11085 = vcmp.eq.f32.partialorder %v11084, 8.507059e+37
    %v11086 = vand.u32 %v11074, 2147483648
    %v11087 = vor.u32 1.1754944e-38, %v11086
    %v11088 = vsel %vm11085, %v11087, %v11083
    %v11089 = vmul.f32 %v11064, %v11088
    %v11090 = vmin.f32 %v11089, 1.0
    %v11091 = vmax.f32 %v11090, -1.0
    %v11092 = vmul.f32 %v10569, %v10569
    %v11093 = vmin.f32 16.0, %v11092
    %v11094 = vmul.f32 %v11093, 2.1237322e-06
    %v11095 = vadd.f32 %v11094, 0.00028619796
    %v11096 = vmul.f32 %v11093, %v11095
    %v11097 = vadd.f32 %v11096, 0.0036580483
    %v11098 = vmul.f32 %v11093, %v11097
    %v11099 = vadd.f32 %v11098, 0.05243302
    %v11100 = vmul.f32 %v11093, %v11099
    %v11101 = vadd.f32 %v11100, 0.18741608
    %v11102 = vmul.f32 %v11093, %v11101
    %v11103 = vadd.f32 %v11102, 1.1283791
    %v11104 = vmul.f32 %v10569, %v11103
    %v11105 = vmul.f32 %v11093, 3.8918573e-05
    %v11106 = vadd.f32 %v11105, 0.001143296
    %v11107 = vmul.f32 %v11093, %v11106
    %v11108 = vadd.f32 %v11107, 0.014752088
    %v11109 = vmul.f32 %v11093, %v11108
    %v11110 = vadd.f32 %v11109, 0.112945676
    %v11111 = vmul.f32 %v11093, %v11110
    %v11112 = vadd.f32 %v11111, 0.4994258
    %v11113 = vmul.f32 %v11093, %v11112
    %v11114 = vadd.f32 %v11113, 1.0
    %v11115 = vrcp.pop %v11114
    %v11116 = vmul.f32 %v11114, %v11115
    %v11117 = vsub.f32 1.0, %v11116
    %v11118 = vmul.f32 %v11115, %v11117
    %v11119 = vadd.f32 %v11115, %v11118
    %vm11120 = vweird.f32 %v11114
    %vm11121 = vweird.f32 %v11115
    %vm11122 = vmor %vm11120, %vm11121
    %v11123 = vsel %vm11122, %v11115, %v11119
    %v11124 = vand.u32 2147483647, %v11114
    %vm11125 = vcmp.eq.f32.partialorder %v11124, 8.507059e+37
    %v11126 = vand.u32 %v11114, 2147483648
    %v11127 = vor.u32 1.1754944e-38, %v11126
    %v11128 = vsel %vm11125, %v11127, %v11123
    %v11129 = vmul.f32 %v11104, %v11128
    %v11130 = vmin.f32 %v11129, 1.0
    %v11131 = vmax.f32 %v11130, -1.0
    %v11132 = vmul.f32 %v10570, %v10570
    %v11133 = vmin.f32 16.0, %v11132
    %v11134 = vmul.f32 %v11133, 2.1237322e-06
    %v11135 = vadd.f32 %v11134, 0.00028619796
    %v11136 = vmul.f32 %v11133, %v11135
    %v11137 = vadd.f32 %v11136, 0.0036580483
    %v11138 = vmul.f32 %v11133, %v11137
    %v11139 = vadd.f32 %v11138, 0.05243302
    %v11140 = vmul.f32 %v11133, %v11139
    %v11141 = vadd.f32 %v11140, 0.18741608
    %v11142 = vmul.f32 %v11133, %v11141
    %v11143 = vadd.f32 %v11142, 1.1283791
    %v11144 = vmul.f32 %v10570, %v11143
    %v11145 = vmul.f32 %v11133, 3.8918573e-05
    %v11146 = vadd.f32 %v11145, 0.001143296
    %v11147 = vmul.f32 %v11133, %v11146
    %v11148 = vadd.f32 %v11147, 0.014752088
    %v11149 = vmul.f32 %v11133, %v11148
    %v11150 = vadd.f32 %v11149, 0.112945676
    %v11151 = vmul.f32 %v11133, %v11150
    %v11152 = vadd.f32 %v11151, 0.4994258
    %v11153 = vmul.f32 %v11133, %v11152
    %v11154 = vadd.f32 %v11153, 1.0
    %v11155 = vrcp.pop %v11154
    %v11156 = vmul.f32 %v11154, %v11155
    %v11157 = vsub.f32 1.0, %v11156
    %v11158 = vmul.f32 %v11155, %v11157
    %v11159 = vadd.f32 %v11155, %v11158
    %vm11160 = vweird.f32 %v11154
    %vm11161 = vweird.f32 %v11155
    %vm11162 = vmor %vm11160, %vm11161
    %v11163 = vsel %vm11162, %v11155, %v11159
    %v11164 = vand.u32 2147483647, %v11154
    %vm11165 = vcmp.eq.f32.partialorder %v11164, 8.507059e+37
    %v11166 = vand.u32 %v11154, 2147483648
    %v11167 = vor.u32 1.1754944e-38, %v11166
    %v11168 = vsel %vm11165, %v11167, %v11163
    %v11169 = vmul.f32 %v11144, %v11168
    %v11170 = vmin.f32 %v11169, 1.0
    %v11171 = vmax.f32 %v11170, -1.0
    %v11172 = vmul.f32 %v10571, %v10571
    %v11173 = vmin.f32 16.0, %v11172
    %v11174 = vmul.f32 %v11173, 2.1237322e-06
    %v11175 = vadd.f32 %v11174, 0.00028619796
    %v11176 = vmul.f32 %v11173, %v11175
    %v11177 = vadd.f32 %v11176, 0.0036580483
    %v11178 = vmul.f32 %v11173, %v11177
    %v11179 = vadd.f32 %v11178, 0.05243302
    %v11180 = vmul.f32 %v11173, %v11179
    %v11181 = vadd.f32 %v11180, 0.18741608
    %v11182 = vmul.f32 %v11173, %v11181
    %v11183 = vadd.f32 %v11182, 1.1283791
    %v11184 = vmul.f32 %v10571, %v11183
    %v11185 = vmul.f32 %v11173, 3.8918573e-05
    %v11186 = vadd.f32 %v11185, 0.001143296
    %v11187 = vmul.f32 %v11173, %v11186
    %v11188 = vadd.f32 %v11187, 0.014752088
    %v11189 = vmul.f32 %v11173, %v11188
    %v11190 = vadd.f32 %v11189, 0.112945676
    %v11191 = vmul.f32 %v11173, %v11190
    %v11192 = vadd.f32 %v11191, 0.4994258
    %v11193 = vmul.f32 %v11173, %v11192
    %v11194 = vadd.f32 %v11193, 1.0
    %v11195 = vrcp.pop %v11194
    %v11196 = vmul.f32 %v11194, %v11195
    %v11197 = vsub.f32 1.0, %v11196
    %v11198 = vmul.f32 %v11195, %v11197
    %v11199 = vadd.f32 %v11195, %v11198
    %vm11200 = vweird.f32 %v11194
    %vm11201 = vweird.f32 %v11195
    %vm11202 = vmor %vm11200, %vm11201
    %v11203 = vsel %vm11202, %v11195, %v11199
    %v11204 = vand.u32 2147483647, %v11194
    %vm11205 = vcmp.eq.f32.partialorder %v11204, 8.507059e+37
    %v11206 = vand.u32 %v11194, 2147483648
    %v11207 = vor.u32 1.1754944e-38, %v11206
    %v11208 = vsel %vm11205, %v11207, %v11203
    %v11209 = vmul.f32 %v11184, %v11208
    %v11210 = vmin.f32 %v11209, 1.0
    %v11211 = vmax.f32 %v11210, -1.0
    %v11212 = vadd.f32 %v10611, 1.0
    %v11213 = vadd.f32 %v10651, 1.0
    %v11214 = vadd.f32 %v10691, 1.0
    %v11215 = vadd.f32 %v10731, 1.0
    %v11216 = vadd.f32 %v10771, 1.0
    %v11217 = vadd.f32 %v10811, 1.0
    %v11218 = vadd.f32 %v10851, 1.0
    %v11219 = vadd.f32 %v10891, 1.0
    %v11220 = vadd.f32 %v10931, 1.0
    %v11221 = vadd.f32 %v10971, 1.0
    %v11222 = vadd.f32 %v11011, 1.0
    %v11223 = vadd.f32 %v11051, 1.0
    %v11224 = vadd.f32 %v11091, 1.0
    %v11225 = vadd.f32 %v11131, 1.0
    %v11226 = vadd.f32 %v11171, 1.0
    %v11227 = vadd.f32 %v11211, 1.0
    %v11228 = vmul.f32 %v10540, %v11212
    %v11229 = vmul.f32 %v10541, %v11213
    %v11230 = vmul.f32 %v10542, %v11214
    %v11231 = vmul.f32 %v10543, %v11215
    %v11232 = vmul.f32 %v10544, %v11216
    %v11233 = vmul.f32 %v10545, %v11217
    %v11234 = vmul.f32 %v10546, %v11218
    %v11235 = vmul.f32 %v10547, %v11219
    %v11236 = vmul.f32 %v10548, %v11220
    %v11237 = vmul.f32 %v10549, %v11221
    %v11238 = vmul.f32 %v10550, %v11222
    %v11239 = vmul.f32 %v10551, %v11223
    %v11240 = vmul.f32 %v10552, %v11224
    %v11241 = vmul.f32 %v10553, %v11225
    %v11242 = vmul.f32 %v10554, %v11226
    %v11243 = vmul.f32 %v10555, %v11227
    %s11244 = scalar_lea.vmem %s6, 64
    %v11245 = vld [vmem:[%s11244] sm:$0xff]
    %v11246 = vld [vmem:[%s11244 + $0x8] sm:$0xff]
    %v11247 = vld [vmem:[%s11244 + $0x10] sm:$0xff]
    %v11248 = vld [vmem:[%s11244 + $0x18] sm:$0xff]
    %v11249 = vld [vmem:[%s11244 + $0x20] sm:$0xff]
    %v11250 = vld [vmem:[%s11244 + $0x28] sm:$0xff]
    %v11251 = vld [vmem:[%s11244 + $0x30] sm:$0xff]
    %v11252 = vld [vmem:[%s11244 + $0x38] sm:$0xff]
    %v11254 = vsel %vm70, %v11228, 0
    %v11257 = vsel %vm70, %v11229, 0
    %v11260 = vsel %vm70, %v11230, 0
    %v11263 = vsel %vm70, %v11231, 0
    %v11266 = vsel %vm70, %v11232, 0
    %v11269 = vsel %vm70, %v11233, 0
    %v11272 = vsel %vm70, %v11234, 0
    %v11275 = vsel %vm70, %v11235, 0
    %v11278 = vsel %vm70, %v11236, 0
    %v11281 = vsel %vm70, %v11237, 0
    %v11284 = vsel %vm70, %v11238, 0
    %v11287 = vsel %vm70, %v11239, 0
    %v11290 = vsel %vm70, %v11240, 0
    %v11293 = vsel %vm70, %v11241, 0
    %v11296 = vsel %vm70, %v11242, 0
    %v11299 = vsel %vm70, %v11243, 0
    %11301 = vmatpush.msra.mxu0 0.0
    %11302 = vmatpush.msra.mxu0 0.0
    %11303 = vmatpush.msra.mxu0 0.0
    %11304 = vmatpush.msra.mxu0 0.0
    %11305 = vmatpush.msra.mxu0 0.0
    %11306 = vmatpush.msra.mxu0 0.0
    %11307 = vmatpush.msra.mxu0 0.0
    %11308 = vmatpush.msra.mxu0 0.0
    %11309 = vmatpush.msra.mxu0 %v11252
    %11310 = vmatpush.msra.mxu0 %v11251
    %11311 = vmatpush.msra.mxu0 %v11250
    %11312 = vmatpush.msra.mxu0 %v11249
    %11313 = vmatpush.msra.mxu0 %v11248
    %11314 = vmatpush.msra.mxu0 %v11247
    %11315 = vmatpush.msra.mxu0 %v11246
    %11316 = vmatpush.msra.mxu0 %v11245
    %11317 = vmatmul.f32.gmra.mxu0 %v11254
    %v11318 = vpop.f32.mrf.mxu0
    %v11319 = vadd.f32 0.0, %v11318
    %11320 = vmatmul.f32.gmra.mxu0 %v11257
    %v11321 = vpop.f32.mrf.mxu0
    %11322 = vmatmul.f32.gmra.mxu0 %v11260
    %v11323 = vpop.f32.mrf.mxu0
    %v11324 = vadd.f32 0.0, %v11323
    %11325 = vmatmul.f32.gmra.mxu0 %v11263
    %v11326 = vpop.f32.mrf.mxu0
    %11327 = vmatmul.f32.gmra.mxu0 %v11266
    %v11328 = vpop.f32.mrf.mxu0
    %v11329 = vadd.f32 0.0, %v11328
    %11330 = vmatmul.f32.gmra.mxu0 %v11269
    %v11331 = vpop.f32.mrf.mxu0
    %11332 = vmatmul.f32.gmra.mxu0 %v11272
    %v11333 = vpop.f32.mrf.mxu0
    %v11334 = vadd.f32 0.0, %v11333
    %11335 = vmatmul.f32.gmra.mxu0 %v11275
    %v11336 = vpop.f32.mrf.mxu0
    %11337 = vmatmul.f32.gmra.mxu0 %v11278
    %v11338 = vpop.f32.mrf.mxu0
    %v11339 = vadd.f32 0.0, %v11338
    %11340 = vmatmul.f32.gmra.mxu0 %v11281
    %v11341 = vpop.f32.mrf.mxu0
    %11342 = vmatmul.f32.gmra.mxu0 %v11284
    %v11343 = vpop.f32.mrf.mxu0
    %v11344 = vadd.f32 0.0, %v11343
    %11345 = vmatmul.f32.gmra.mxu0 %v11287
    %v11346 = vpop.f32.mrf.mxu0
    %11347 = vmatmul.f32.gmra.mxu0 %v11290
    %v11348 = vpop.f32.mrf.mxu0
    %v11349 = vadd.f32 0.0, %v11348
    %11350 = vmatmul.f32.gmra.mxu0 %v11293
    %v11351 = vpop.f32.mrf.mxu0
    %11352 = vmatmul.f32.gmra.mxu0 %v11296
    %v11353 = vpop.f32.mrf.mxu0
    %v11354 = vadd.f32 0.0, %v11353
    %11355 = vmatmul.f32.gmra.mxu0 %v11299
    %v11356 = vpop.f32.mrf.mxu0
    %11357 = vdwg.mxu0
    %v11358 = vadd.f32 %v10018, %v11319
    %v11359 = vadd.f32 %v10020, %v11324
    %v11360 = vadd.f32 %v10022, %v11329
    %v11361 = vadd.f32 %v10024, %v11334
    %v11362 = vadd.f32 %v10026, %v11339
    %v11363 = vadd.f32 %v10028, %v11344
    %v11364 = vadd.f32 %v10030, %v11349
    %v11365 = vadd.f32 %v10032, %v11354
    %v11366 = vperm.slane %v5823, 5
    %v11367 = vadd.f32 %v11358, %v11366
    %v11368 = vadd.f32 %v11359, %v11366
    %v11369 = vadd.f32 %v11360, %v11366
    %v11370 = vadd.f32 %v11361, %v11366
    %v11371 = vadd.f32 %v11362, %v11366
    %v11372 = vadd.f32 %v11363, %v11366
    %v11373 = vadd.f32 %v11364, %v11366
    %v11374 = vadd.f32 %v11365, %v11366
    %v11383 = vrot.slane %v11368, 7
    %vm11384 = vcmask 1041409
    %v11385 = vsel %vm11384, %v11383, %v11367
    %v11386 = vrot.slane %v11369, 6
    %vm11387 = vcmask 1042434
    %v11388 = vsel %vm11387, %v11386, %v11385
    %v11389 = vrot.slane %v11370, 5
    %vm11390 = vcmask 1043459
    %v11391 = vsel %vm11390, %v11389, %v11388
    %v11392 = vrot.slane %v11371, 4
    %vm11393 = vcmask 1044484
    %v11394 = vsel %vm11393, %v11392, %v11391
    %v11395 = vrot.slane %v11372, 3
    %vm11396 = vcmask 1045509
    %v11397 = vsel %vm11396, %v11395, %v11394
    %v11398 = vrot.slane %v11373, 2
    %vm11399 = vcmask 1046534
    %v11400 = vsel %vm11399, %v11398, %v11397
    %v11401 = vrot.slane %v11374, 1
    %vm11402 = vcmask 1047559
    %v11403 = vsel %vm11402, %v11401, %v11400
    %11405 = vst.msk [vmem:[#allocation3] sm:$0xff] %vm203, %v11403
    // Predicated region
    $region34: #{tpu_custom_call.1} parent=1 // pred_check
      _
    $region35: #{tpu_custom_call.1} parent=1 // pred_check_branch
      %11407 = sbr.rel (0) target = $region37
    $region36: #{tpu_custom_call.1} parent=1 // pred_region
      %11409 = vsyncadd [#allocation4], 0
      %s11411 = sshll.u32 [#allocation3], 4
      %s11412 = int_to_ptr.vmem [resolvable:$true] %s11411
      %s11413 = sshll.u32 %s8, 4
      %s11414 = int_to_ptr.hbm [resolvable:$true] %s11413
      %11416 = dma.vmem_to_hbm [thread:$0]  %s11412, 128, %s11414, [#allocation4]
    $region37: #{tpu_custom_call.1} parent=1 // pred_fallthru
      _
    // Predicated region
    $region38: #{tpu_custom_call.1} parent=1 // pred_check
      _
    $region39: #{tpu_custom_call.1} parent=1 // pred_check_branch
      %11418 = sbr.rel (0) target = $region41
    $region40: #{tpu_custom_call.1} parent=1 // pred_region
      %11420 = dma.done [#allocation4], 128
    $region41: #{tpu_custom_call.1} parent=1 // pred_fallthru
      _
    %11421 = vsyncpa [#allocation4], 1

</llo_original>
